<compile_context>
chip_gen: v5e
topology: v5e:2x2
jax: 0.10.0
libtpu: 0.0.40
codegen_flags: <defaults>
</compile_context>

<pallas_src>
import functools
import math

import jax
import jax.numpy as jnp
from jax.experimental import pallas as pl
from jax.experimental.pallas import tpu as pltpu

NORM = 4.0       # MultiSpike: min=0, max=4, Norm=max
KS = 7           # depthwise kernel size
PAD = KS // 2    # 3


def _round_up(x, m):
    return (x + m - 1) // m * m


def _spike(x):
    # MultiSpike forward: round(clamp(x, 0, 4)) / 4 (jnp.round == torch.round, half-to-even)
    return jnp.round(jnp.clip(x, 0.0, 4.0)) * (1.0 / NORM)


# ----------------------------------------------------------------------------
# Generation-dependent VMEM sizing
# ----------------------------------------------------------------------------
def _device_profile():
    try:
        kind = jax.devices()[0].device_kind.lower()
    except Exception:
        kind = ""
    mib = 2 ** 20
    if "7x" in kind or "v7" in kind:                 # v7x: 64 MiB physical VMEM / TC
        return {"vmem_limit": 56 * mib, "budget": 40 * mib}
    if "v6" in kind:                                 # v6e: 128 MiB physical VMEM
        return {"vmem_limit": 100 * mib, "budget": 72 * mib}
    if "v5 lite" in kind or "v5e" in kind:           # v5e: 128 MiB physical VMEM
        return {"vmem_limit": 100 * mib, "budget": 72 * mib}
    # Unknown generation: stay within the default scoped-VMEM limit.
    return {"vmem_limit": None, "budget": 10 * mib}


def _estimate_step_vmem(th, Wp, Cp, Mp):
    """Conservative per-grid-step VMEM estimate (bytes)."""
    thh = th + 2 * PAD
    xbuf = thh * Wp * Cp * 2                                   # bf16 halo window scratch
    outb = 2 * th * Wp * Cp * 4                                # double-buffered f32 output block
    h_f32 = thh * Wp * Mp * 4                                  # stage-1 matmul output
    hs = thh * Wp * Mp * 4                                     # spiked activations
    hx = thh * Wp * Mp * 4                                     # one rolled copy live at a time
    acc = th * Wp * Mp * 4                                     # depthwise accumulator
    gs_y = th * Wp * (Mp * 2 + Cp * 4)                         # stage-3 operand + result
    wts = 2 * (Cp * Mp * 2 + Mp * Cp * 2 + KS * KS * Mp * 4 + (2 * Mp + 2 * Cp) * 4)
    return xbuf + outb + h_f32 + hs + hx + acc + gs_y + wts


def _pick_tile_h(H, Wp, Cp, Mp, budget):
    """Largest multiple-of-8 row tile that fits the VMEM budget, penalizing both
    halo recompute (small TH) and tail waste (TH not dividing H)."""
    cap = min(max(8, _round_up(H, 8)), 512)
    best, best_cost = 8, None
    th = 8
    while th <= cap:
        if _estimate_step_vmem(th, Wp, Cp, Mp) <= budget:
            n_tiles = (H + th - 1) // th
            cost = n_tiles * (th + 2 * PAD)        # total rows pushed through stages 1-2
            if best_cost is None or cost <= best_cost:
                best, best_cost = th, cost
        th += 8
    return best


# ----------------------------------------------------------------------------
# Fused kernel: (spike1 on host) -> 1x1 conv -> BN -> spike -> 7x7 dw conv -> BN
#               -> spike -> 1x1 conv -> BN, for one (batch, row-tile) grid step.
#   x_hbm  : (B, Hpad+6, Wp, Cp) bf16 in HBM (pre-spiked, zero-padded); manual DMA
#   w1_ref : (Cp, Mp) bf16        1x1 weights * BN1 scale
#   b1_ref : (1, Mp)  f32         BN1 shift
#   wdw_ref: (49, Mp) f32         7x7 depthwise taps * BN2 scale
#   b2_ref : (1, Mp)  f32         BN2 shift
#   w2_ref : (Mp, Cp) bf16        1x1 weights * BN3 scale
#   b3_ref : (1, Cp)  f32         BN3 shift
#   o_ref  : (1, TH, Wp, Cp) f32
#   xbuf   : (TH+6, Wp, Cp) bf16  VMEM scratch for the halo window
# ----------------------------------------------------------------------------
def _sepconv_kernel(x_hbm, w1_ref, b1_ref, wdw_ref, b2_ref, w2_ref, b3_ref,
                    o_ref, xbuf, dma_sem, *, H, W, TH, Wp, Cp, Mp):
    b = pl.program_id(0)
    i = pl.program_id(1)
    THh = TH + 2 * PAD
    row0 = pl.multiple_of(i * TH, 8)

    # ---- halo-window DMA: only TH + 6 rows of the pre-spiked bf16 input ----
    cp = pltpu.make_async_copy(x_hbm.at[b, pl.ds(row0, THh)], xbuf, dma_sem)
    cp.start()
    cp.wait()

    # ---- stage 1: 1x1 conv on the MXU (BN1 scale folded into w1); BN1 shift
    #      added in f32; zero-padding ring / alignment padding restored with an
    #      iota mask so the depthwise stage sees exact zeros there. ----
    xs = xbuf[...]                                              # (THh, Wp, Cp) bf16
    h = jnp.dot(xs.reshape(THh * Wp, Cp), w1_ref[...],
                preferred_element_type=jnp.float32)             # MXU, f32 acc
    h = h.reshape(THh, Wp, Mp)
    row = jax.lax.broadcasted_iota(jnp.int32, (THh, Wp, 1), 0) + row0
    col = jax.lax.broadcasted_iota(jnp.int32, (THh, Wp, 1), 1)
    inside = ((row >= PAD) & (row < PAD + H)) & ((col >= PAD) & (col < PAD + W))
    h = jnp.where(inside, h + b1_ref[...], 0.0)

    # ---- stage 2: spike2 -> 7x7 depthwise conv (BN2 scale folded) + BN2 shift.
    #      kx shift hoisted out of the ky loop: 6 full-block XLU rolls total. ----
    hs = _spike(h)                                              # (THh, Wp, Mp) f32
    wdw = wdw_ref[...]                                          # (49, Mp) f32
    acc = jnp.zeros((TH, Wp, Mp), jnp.float32)
    for kx in range(KS):
        # hx[:, c, :] == hs[:, c + kx, :]; roll wraparound only pollutes cols >= W.
        hx = hs if kx == 0 else pltpu.roll(hs, shift=Wp - kx, axis=1)
        for ky in range(KS):
            tap = wdw[ky * KS + kx:ky * KS + kx + 1, :]         # (1, Mp)
            acc = acc + hx[ky:ky + TH] * tap
    g = acc + b2_ref[...]                                       # (TH, Wp, Mp)

    # ---- stage 3: spike3 -> 1x1 conv (BN3 scale folded) + BN3 shift, over the
    #      full sublane-aligned Wp width (W / C crop happens on the host). ----
    gs = _spike(g).astype(jnp.bfloat16)
    y = jnp.dot(gs.reshape(TH * Wp, Mp), w2_ref[...],
                preferred_element_type=jnp.float32)             # (TH*Wp, Cp)
    y = y + b3_ref[...]
    o_ref[0] = y.reshape(TH, Wp, Cp).astype(o_ref.dtype)


# ----------------------------------------------------------------------------
# Parameter init (deterministic) & inference-mode BN folding
# ----------------------------------------------------------------------------
def fold_bn(gamma, beta, mean, var, eps=1e-5):
    scale = gamma / jnp.sqrt(var + eps)
    shift = beta - mean * scale
    return scale.astype(jnp.float32), shift.astype(jnp.float32)


def init_params(dim, key, expansion_ratio=2):
    med = int(expansion_ratio * dim)
    keys = jax.random.split(key, 6)

    def conv_w(k, shape, fan_in):
        bound = 1.0 / math.sqrt(fan_in)
        return jax.random.uniform(k, shape, jnp.float32, -bound, bound)

    def bn_params(k, c):
        k1, k2, k3, k4 = jax.random.split(k, 4)
        gamma = 1.0 + 0.1 * jax.random.normal(k1, (c,), jnp.float32)
        beta = 0.1 * jax.random.normal(k2, (c,), jnp.float32)
        mean = 0.1 * jax.random.normal(k3, (c,), jnp.float32)
        var = jnp.abs(1.0 + 0.1 * jax.random.normal(k4, (c,), jnp.float32))
        return fold_bn(gamma, beta, mean, var)

    return {
        "w_pw1": conv_w(keys[0], (dim, med), dim),          # 1x1: dim -> med
        "bn1": bn_params(keys[1], med),
        "w_dw": conv_w(keys[2], (KS, KS, med), KS * KS),    # 7x7 depthwise (per channel)
        "bn2": bn_params(keys[3], med),
        "w_pw2": conv_w(keys[4], (med, dim), med),          # 1x1: med -> dim
        "bn3": bn_params(keys[5], dim),
    }


def _prepare_folded_params(params, C, med, Cp, Mp):
    s1, b1 = params["bn1"]
    s2, b2 = params["bn2"]
    s3, b3 = params["bn3"]

    w1p = jnp.zeros((Cp, Mp), jnp.float32)
    w1p = w1p.at[:C, :med].set(params["w_pw1"] * s1[None, :]).astype(jnp.bfloat16)
    b1p = jnp.zeros((1, Mp), jnp.float32).at[0, :med].set(b1)        # f32 shift (not bf16-rounded)

    wdwp = jnp.zeros((KS * KS, Mp), jnp.float32)
    wdwp = wdwp.at[:, :med].set((params["w_dw"] * s2[None, None, :]).reshape(KS * KS, med))
    b2p = jnp.zeros((1, Mp), jnp.float32).at[0, :med].set(b2)

    w2p = jnp.zeros((Mp, Cp), jnp.float32)
    w2p = w2p.at[:med, :C].set(params["w_pw2"] * s3[None, :]).astype(jnp.bfloat16)
    b3p = jnp.zeros((1, Cp), jnp.float32).at[0, :C].set(b3)

    return w1p, b1p, wdwp, b2p, w2p, b3p


# ----------------------------------------------------------------------------
# Full forward. Input/output NCHW (PyTorch convention); the kernel runs NHWC
# (channels on TPU lanes). Host glue: transpose, spike1 + bf16 cast (exact),
# zero-pad rows/cols/channels once, crop + transpose back at the end.
# ----------------------------------------------------------------------------
def sepconv_spike_forward(x_nchw, params):
    B, C, H, W = x_nchw.shape
    med = params["w_pw1"].shape[1]

    Cp = _round_up(C, 128)              # lane-dense channels
    Mp = _round_up(med, 128)
    Wp = _round_up(W + 2 * PAD, 8)      # sublane-aligned padded width
    assert Wp >= W + 2 * PAD            # kx-roll wraparound must only pollute cols >= W

    prof = _device_profile()
    TH = _pick_tile_h(H, Wp, Cp, Mp, prof["budget"])   # multiple of 8
    nH = (H + TH - 1) // TH
    Hpad = nH * TH

    w1p, b1p, wdwp, b2p, w2p, b3p = _prepare_folded_params(params, C, med, Cp, Mp)

    # Host prep: NCHW -> NHWC, spike1 (exact in bf16), one zero-pad pass.
    x = jnp.transpose(x_nchw, (0, 2, 3, 1)).astype(jnp.float32)
    xs = _spike(x).astype(jnp.bfloat16)
    x_pad = jnp.pad(xs, ((0, 0), (PAD, PAD + (Hpad - H)),
                         (PAD, Wp - W - PAD), (0, Cp - C)))        # (B, Hpad+6, Wp, Cp)

    kernel = functools.partial(_sepconv_kernel, H=H, W=W, TH=TH,
                               Wp=Wp, Cp=Cp, Mp=Mp)
    const2 = lambda b, i: (0, 0)

    cparams = {"dimension_semantics": ("parallel", "parallel")}
    if prof["vmem_limit"] is not None:
        cparams["vmem_limit_bytes"] = prof["vmem_limit"]

    out_p = pl.pallas_call(
        kernel,
        out_shape=jax.ShapeDtypeStruct((B, Hpad, Wp, Cp), jnp.float32),
        grid=(B, nH),
        in_specs=[
            pl.BlockSpec(memory_space=pl.ANY),               # input stays in HBM; manual halo DMA
            pl.BlockSpec((Cp, Mp), const2),
            pl.BlockSpec((1, Mp), const2),
            pl.BlockSpec((KS * KS, Mp), const2),
            pl.BlockSpec((1, Mp), const2),
            pl.BlockSpec((Mp, Cp), const2),
            pl.BlockSpec((1, Cp), const2),
        ],
        out_specs=pl.BlockSpec((1, TH, Wp, Cp), lambda b, i: (b, i, 0, 0)),
        scratch_shapes=[
            pltpu.VMEM((TH + 2 * PAD, Wp, Cp), jnp.bfloat16),   # halo window buffer
            pltpu.SemaphoreType.DMA,
        ],
        compiler_params=pltpu.CompilerParams(**cparams),
    )(x_pad, w1p, b1p, wdwp, b2p, w2p, b3p)

    out = out_p[:, :H, :W, :C]                                   # drop row/col/channel padding
    return jnp.transpose(out, (0, 3, 1, 2))                      # NHWC -> NCHW


# ----------------------------------------------------------------------------
# Pure-jnp reference mirroring the kernel's folded weights / dtypes (for checks)
# ----------------------------------------------------------------------------
def _reference_forward(x_nchw, params):
    B, C, H, W = x_nchw.shape
    med = params["w_pw1"].shape[1]
    s1, b1 = params["bn1"]
    s2, b2 = params["bn2"]
    s3, b3 = params["bn3"]

    x = jnp.transpose(x_nchw, (0, 2, 3, 1)).astype(jnp.float32)
    xs = _spike(x).astype(jnp.bfloat16)
    w1 = (params["w_pw1"] * s1[None, :]).astype(jnp.bfloat16)
    h = jnp.dot(xs.reshape(-1, C), w1, preferred_element_type=jnp.float32)
    h = h.reshape(B, H, W, med) + b1

    hs = _spike(h)
    hp = jnp.pad(hs, ((0, 0), (PAD, PAD), (PAD, PAD), (0, 0)))
    taps = params["w_dw"] * s2[None, None, :]                      # (7, 7, med) f32
    g = jnp.zeros((B, H, W, med), jnp.float32)
    for ky in range(KS):
        for kx in range(KS):
            g = g + hp[:, ky:ky + H, kx:kx + W, :] * taps[ky, kx]
    g = g + b2

    gs = _spike(g).astype(jnp.bfloat16)
    w2 = (params["w_pw2"] * s3[None, :]).astype(jnp.bfloat16)
    y = jnp.dot(gs.reshape(-1, med), w2, preferred_element_type=jnp.float32)
    y = y.reshape(B, H, W, C) + b3
    return jnp.transpose(y, (0, 3, 1, 2))


if __name__ == "__main__":
    B, C, H, W = 2, 4, 16, 16          # dim=4, expansion_ratio=2 -> med=8
    key = jax.random.PRNGKey(0)
    k_x, k_p = jax.random.split(key)
    # NCHW input (PyTorch convention), shifted so the spike nonlinearity is active.
    x_nchw = jax.random.normal(k_x, (B, C, H, W), jnp.float32) * 2.0 + 1.0
    params = init_params(C, k_p)

    fwd = jax.jit(lambda xx: sepconv_spike_forward(xx, params))
    out = fwd(x_nchw)
    jax.block_until_ready(out)

    assert out.shape == (B, C, H, W)
    assert out.dtype == jnp.float32
    assert bool(jnp.all(jnp.isfinite(out)))

    # Sanity check against a pure-jnp reference using the same folded bf16 weights.
    ref = _reference_forward(x_nchw, params)
    diff = jnp.abs(out - ref)
    assert float(jnp.mean(diff)) < 2e-3, float(jnp.mean(diff))
    assert float(jnp.max(diff)) < 0.25, float(jnp.max(diff))

    print("KERNEL_OK")
</pallas_src>

<mosaic_0001>
module attributes {stable_mosaic.version = 11 : i64} {
  func.func @_sepconv_kernel(%arg0: i32, %arg1: i32, %arg2: memref<2x22x24x128xbf16, #tpu.memory_space<any>>, %arg3: memref<128x128xbf16, #tpu.memory_space<vmem>>, %arg4: memref<1x128xf32, #tpu.memory_space<vmem>>, %arg5: memref<49x128xf32, #tpu.memory_space<vmem>>, %arg6: memref<1x128xf32, #tpu.memory_space<vmem>>, %arg7: memref<128x128xbf16, #tpu.memory_space<vmem>>, %arg8: memref<1x128xf32, #tpu.memory_space<vmem>>, %arg9: memref<1x16x24x128xf32, #tpu.memory_space<vmem>>, %arg10: memref<22x24x128xbf16, #tpu.memory_space<vmem>>, %arg11: memref<!tpu.dma_semaphore, #tpu.memory_space<semaphore_mem>>) attributes {dimension_semantics = [#tpu.dimension_semantics<parallel>, #tpu.dimension_semantics<parallel>], iteration_bounds = array<i64: 2, 1>, scalar_prefetch = 0 : i64, scratch_operands = 2 : i64, tpu.core_type = #tpu.core_type<tc>, window_params = [{}, {pipeline_mode = #tpu.pipeline_mode<synchronous>, transform_indices = @transform_1, window_bounds = array<i64: 128, 128>}, {pipeline_mode = #tpu.pipeline_mode<synchronous>, transform_indices = @transform_2, window_bounds = array<i64: 1, 128>}, {pipeline_mode = #tpu.pipeline_mode<synchronous>, transform_indices = @transform_3, window_bounds = array<i64: 49, 128>}, {pipeline_mode = #tpu.pipeline_mode<synchronous>, transform_indices = @transform_4, window_bounds = array<i64: 1, 128>}, {pipeline_mode = #tpu.pipeline_mode<synchronous>, transform_indices = @transform_5, window_bounds = array<i64: 128, 128>}, {pipeline_mode = #tpu.pipeline_mode<synchronous>, transform_indices = @transform_6, window_bounds = array<i64: 1, 128>}, {transform_indices = @transform_7, window_bounds = array<i64: 1, 16, 24, 128>}]} {
    %c16_i32 = arith.constant 16 : i32
    %0 = arith.muli %arg1, %c16_i32 : i32
    %1 = tpu.assume_multiple %0, 8 : i32
    %c0_i32 = arith.constant 0 : i32
    %c0_i32_0 = arith.constant 0 : i32
    %2 = tpu.memref_slice %arg2[%arg0, %1, %c0_i32, %c0_i32_0] : memref<2x22x24x128xbf16, #tpu.memory_space<any>> -> memref<1x22x24x128xbf16, #tpu.memory_space<any>>
    %3 = tpu.memref_squeeze %2 : memref<1x22x24x128xbf16, #tpu.memory_space<any>> -> memref<22x24x128xbf16, #tpu.memory_space<any>>
    tpu.enqueue_dma source(%3 : memref<22x24x128xbf16, #tpu.memory_space<any>>) target(%arg10 : memref<22x24x128xbf16, #tpu.memory_space<vmem>>) target_semaphore(%arg11 : memref<!tpu.dma_semaphore, #tpu.memory_space<semaphore_mem>>)
    %c0_i32_1 = arith.constant 0 : i32
    %c0_i32_2 = arith.constant 0 : i32
    %4 = tpu.memref_slice %arg2[%arg0, %1, %c0_i32_1, %c0_i32_2] : memref<2x22x24x128xbf16, #tpu.memory_space<any>> -> memref<1x22x24x128xbf16, #tpu.memory_space<any>>
    %5 = tpu.memref_squeeze %4 : memref<1x22x24x128xbf16, #tpu.memory_space<any>> -> memref<22x24x128xbf16, #tpu.memory_space<any>>
    tpu.wait_dma2 semaphore(%arg11 : memref<!tpu.dma_semaphore, #tpu.memory_space<semaphore_mem>>) src(%5 : memref<22x24x128xbf16, #tpu.memory_space<any>>) dst(%arg10 : memref<22x24x128xbf16, #tpu.memory_space<vmem>>)
    %c0 = arith.constant 0 : index
    %c0_3 = arith.constant 0 : index
    %c0_4 = arith.constant 0 : index
    %6 = vector.load %arg10[%c0, %c0_3, %c0_4] : memref<22x24x128xbf16, #tpu.memory_space<vmem>>, vector<22x24x128xbf16>
    %7 = vector.shape_cast %6 : vector<22x24x128xbf16> to vector<528x128xbf16>
    %c0_5 = arith.constant 0 : index
    %c0_6 = arith.constant 0 : index
    %8 = vector.load %arg3[%c0_5, %c0_6] : memref<128x128xbf16, #tpu.memory_space<vmem>>, vector<128x128xbf16>
    %cst = arith.constant dense<0.000000e+00> : vector<528x128xf32>
    %9 = tpu.matmul %7, %8, %cst {dimension_numbers = #tpu.dot_dimension_numbers<[1], [0], [0], [1], [0, 0, 1, 1], [], []>} : vector<528x128xbf16>, vector<128x128xbf16>, vector<528x128xf32> -> vector<528x128xf32>
    %10 = vector.shape_cast %9 : vector<528x128xf32> to vector<22x24x128xf32>
    %11 = tpu.iota {dimensions = array<i32: 0>} : vector<22x24x1xi32>
    %12 = vector.broadcast %1 : i32 to vector<22x24x1xi32>
    %13 = arith.addi %11, %12 : vector<22x24x1xi32>
    %14 = tpu.iota {dimensions = array<i32: 1>} : vector<22x24x1xi32>
    %c3_i32 = arith.constant 3 : i32
    %15 = vector.broadcast %c3_i32 : i32 to vector<22x24x1xi32>
    %16 = arith.cmpi sge, %13, %15 : vector<22x24x1xi32>
    %c19_i32 = arith.constant 19 : i32
    %17 = vector.broadcast %c19_i32 : i32 to vector<22x24x1xi32>
    %18 = arith.cmpi slt, %13, %17 : vector<22x24x1xi32>
    %19 = arith.andi %16, %18 : vector<22x24x1xi1>
    %c3_i32_7 = arith.constant 3 : i32
    %20 = vector.broadcast %c3_i32_7 : i32 to vector<22x24x1xi32>
    %21 = arith.cmpi sge, %14, %20 : vector<22x24x1xi32>
    %c19_i32_8 = arith.constant 19 : i32
    %22 = vector.broadcast %c19_i32_8 : i32 to vector<22x24x1xi32>
    %23 = arith.cmpi slt, %14, %22 : vector<22x24x1xi32>
    %24 = arith.andi %21, %23 : vector<22x24x1xi1>
    %25 = arith.andi %19, %24 : vector<22x24x1xi1>
    %c0_9 = arith.constant 0 : index
    %c0_10 = arith.constant 0 : index
    %26 = vector.load %arg4[%c0_9, %c0_10] : memref<1x128xf32, #tpu.memory_space<vmem>>, vector<1x128xf32>
    %27 = vector.shape_cast %26 : vector<1x128xf32> to vector<1x1x128xf32>
    %28 = vector.broadcast %27 : vector<1x1x128xf32> to vector<22x24x128xf32>
    %29 = arith.addf %10, %28 : vector<22x24x128xf32>
    %cst_11 = arith.constant 0.000000e+00 : f32
    %30 = vector.shape_cast %25 : vector<22x24x1xi1> to vector<22x24x1xi1>
    %31 = vector.broadcast %30 : vector<22x24x1xi1> to vector<22x24x128xi1>
    %32 = vector.broadcast %cst_11 : f32 to vector<22x24x128xf32>
    %33 = arith.select %31, %29, %32 : vector<22x24x128xi1>, vector<22x24x128xf32>
    %cst_12 = arith.constant 0.000000e+00 : f32
    %cst_13 = arith.constant 4.000000e+00 : f32
    %34 = vector.broadcast %cst_12 : f32 to vector<22x24x128xf32>
    %35 = arith.maximumf %34, %33 : vector<22x24x128xf32>
    %36 = vector.broadcast %cst_13 : f32 to vector<22x24x128xf32>
    %37 = arith.minimumf %36, %35 : vector<22x24x128xf32>
    %38 = math.roundeven %37 : vector<22x24x128xf32>
    %cst_14 = arith.constant 2.500000e-01 : f32
    %39 = vector.broadcast %cst_14 : f32 to vector<22x24x128xf32>
    %40 = arith.mulf %38, %39 : vector<22x24x128xf32>
    %c0_15 = arith.constant 0 : index
    %c0_16 = arith.constant 0 : index
    %41 = vector.load %arg5[%c0_15, %c0_16] : memref<49x128xf32, #tpu.memory_space<vmem>>, vector<49x128xf32>
    %cst_17 = arith.constant 0.000000e+00 : f32
    %42 = vector.broadcast %cst_17 : f32 to vector<16x24x128xf32>
    %43 = vector.extract_strided_slice %41 {offsets = [0, 0], sizes = [1, 128], strides = [1, 1]} : vector<49x128xf32> to vector<1x128xf32>
    %44 = vector.extract_strided_slice %40 {offsets = [0, 0, 0], sizes = [16, 24, 128], strides = [1, 1, 1]} : vector<22x24x128xf32> to vector<16x24x128xf32>
    %45 = vector.shape_cast %43 : vector<1x128xf32> to vector<1x1x128xf32>
    %46 = vector.broadcast %45 : vector<1x1x128xf32> to vector<16x24x128xf32>
    %47 = arith.mulf %44, %46 : vector<16x24x128xf32>
    %48 = arith.addf %42, %47 : vector<16x24x128xf32>
    %49 = vector.extract_strided_slice %41 {offsets = [7, 0], sizes = [1, 128], strides = [1, 1]} : vector<49x128xf32> to vector<1x128xf32>
    %50 = vector.extract_strided_slice %40 {offsets = [1, 0, 0], sizes = [16, 24, 128], strides = [1, 1, 1]} : vector<22x24x128xf32> to vector<16x24x128xf32>
    %51 = vector.shape_cast %49 : vector<1x128xf32> to vector<1x1x128xf32>
    %52 = vector.broadcast %51 : vector<1x1x128xf32> to vector<16x24x128xf32>
    %53 = arith.mulf %50, %52 : vector<16x24x128xf32>
    %54 = arith.addf %48, %53 : vector<16x24x128xf32>
    %55 = vector.extract_strided_slice %41 {offsets = [14, 0], sizes = [1, 128], strides = [1, 1]} : vector<49x128xf32> to vector<1x128xf32>
    %56 = vector.extract_strided_slice %40 {offsets = [2, 0, 0], sizes = [16, 24, 128], strides = [1, 1, 1]} : vector<22x24x128xf32> to vector<16x24x128xf32>
    %57 = vector.shape_cast %55 : vector<1x128xf32> to vector<1x1x128xf32>
    %58 = vector.broadcast %57 : vector<1x1x128xf32> to vector<16x24x128xf32>
    %59 = arith.mulf %56, %58 : vector<16x24x128xf32>
    %60 = arith.addf %54, %59 : vector<16x24x128xf32>
    %61 = vector.extract_strided_slice %41 {offsets = [21, 0], sizes = [1, 128], strides = [1, 1]} : vector<49x128xf32> to vector<1x128xf32>
    %62 = vector.extract_strided_slice %40 {offsets = [3, 0, 0], sizes = [16, 24, 128], strides = [1, 1, 1]} : vector<22x24x128xf32> to vector<16x24x128xf32>
    %63 = vector.shape_cast %61 : vector<1x128xf32> to vector<1x1x128xf32>
    %64 = vector.broadcast %63 : vector<1x1x128xf32> to vector<16x24x128xf32>
    %65 = arith.mulf %62, %64 : vector<16x24x128xf32>
    %66 = arith.addf %60, %65 : vector<16x24x128xf32>
    %67 = vector.extract_strided_slice %41 {offsets = [28, 0], sizes = [1, 128], strides = [1, 1]} : vector<49x128xf32> to vector<1x128xf32>
    %68 = vector.extract_strided_slice %40 {offsets = [4, 0, 0], sizes = [16, 24, 128], strides = [1, 1, 1]} : vector<22x24x128xf32> to vector<16x24x128xf32>
    %69 = vector.shape_cast %67 : vector<1x128xf32> to vector<1x1x128xf32>
    %70 = vector.broadcast %69 : vector<1x1x128xf32> to vector<16x24x128xf32>
    %71 = arith.mulf %68, %70 : vector<16x24x128xf32>
    %72 = arith.addf %66, %71 : vector<16x24x128xf32>
    %73 = vector.extract_strided_slice %41 {offsets = [35, 0], sizes = [1, 128], strides = [1, 1]} : vector<49x128xf32> to vector<1x128xf32>
    %74 = vector.extract_strided_slice %40 {offsets = [5, 0, 0], sizes = [16, 24, 128], strides = [1, 1, 1]} : vector<22x24x128xf32> to vector<16x24x128xf32>
    %75 = vector.shape_cast %73 : vector<1x128xf32> to vector<1x1x128xf32>
    %76 = vector.broadcast %75 : vector<1x1x128xf32> to vector<16x24x128xf32>
    %77 = arith.mulf %74, %76 : vector<16x24x128xf32>
    %78 = arith.addf %72, %77 : vector<16x24x128xf32>
    %79 = vector.extract_strided_slice %41 {offsets = [42, 0], sizes = [1, 128], strides = [1, 1]} : vector<49x128xf32> to vector<1x128xf32>
    %80 = vector.extract_strided_slice %40 {offsets = [6, 0, 0], sizes = [16, 24, 128], strides = [1, 1, 1]} : vector<22x24x128xf32> to vector<16x24x128xf32>
    %81 = vector.shape_cast %79 : vector<1x128xf32> to vector<1x1x128xf32>
    %82 = vector.broadcast %81 : vector<1x1x128xf32> to vector<16x24x128xf32>
    %83 = arith.mulf %80, %82 : vector<16x24x128xf32>
    %84 = arith.addf %78, %83 : vector<16x24x128xf32>
    %c23_i32 = arith.constant 23 : i32
    %85 = tpu.dynamic_rotate %40 by %c23_i32 dim 1 : vector<22x24x128xf32>, i32 -> vector<22x24x128xf32>
    %86 = vector.extract_strided_slice %41 {offsets = [1, 0], sizes = [1, 128], strides = [1, 1]} : vector<49x128xf32> to vector<1x128xf32>
    %87 = vector.extract_strided_slice %85 {offsets = [0, 0, 0], sizes = [16, 24, 128], strides = [1, 1, 1]} : vector<22x24x128xf32> to vector<16x24x128xf32>
    %88 = vector.shape_cast %86 : vector<1x128xf32> to vector<1x1x128xf32>
    %89 = vector.broadcast %88 : vector<1x1x128xf32> to vector<16x24x128xf32>
    %90 = arith.mulf %87, %89 : vector<16x24x128xf32>
    %91 = arith.addf %84, %90 : vector<16x24x128xf32>
    %92 = vector.extract_strided_slice %41 {offsets = [8, 0], sizes = [1, 128], strides = [1, 1]} : vector<49x128xf32> to vector<1x128xf32>
    %93 = vector.extract_strided_slice %85 {offsets = [1, 0, 0], sizes = [16, 24, 128], strides = [1, 1, 1]} : vector<22x24x128xf32> to vector<16x24x128xf32>
    %94 = vector.shape_cast %92 : vector<1x128xf32> to vector<1x1x128xf32>
    %95 = vector.broadcast %94 : vector<1x1x128xf32> to vector<16x24x128xf32>
    %96 = arith.mulf %93, %95 : vector<16x24x128xf32>
    %97 = arith.addf %91, %96 : vector<16x24x128xf32>
    %98 = vector.extract_strided_slice %41 {offsets = [15, 0], sizes = [1, 128], strides = [1, 1]} : vector<49x128xf32> to vector<1x128xf32>
    %99 = vector.extract_strided_slice %85 {offsets = [2, 0, 0], sizes = [16, 24, 128], strides = [1, 1, 1]} : vector<22x24x128xf32> to vector<16x24x128xf32>
    %100 = vector.shape_cast %98 : vector<1x128xf32> to vector<1x1x128xf32>
    %101 = vector.broadcast %100 : vector<1x1x128xf32> to vector<16x24x128xf32>
    %102 = arith.mulf %99, %101 : vector<16x24x128xf32>
    %103 = arith.addf %97, %102 : vector<16x24x128xf32>
    %104 = vector.extract_strided_slice %41 {offsets = [22, 0], sizes = [1, 128], strides = [1, 1]} : vector<49x128xf32> to vector<1x128xf32>
    %105 = vector.extract_strided_slice %85 {offsets = [3, 0, 0], sizes = [16, 24, 128], strides = [1, 1, 1]} : vector<22x24x128xf32> to vector<16x24x128xf32>
    %106 = vector.shape_cast %104 : vector<1x128xf32> to vector<1x1x128xf32>
    %107 = vector.broadcast %106 : vector<1x1x128xf32> to vector<16x24x128xf32>
    %108 = arith.mulf %105, %107 : vector<16x24x128xf32>
    %109 = arith.addf %103, %108 : vector<16x24x128xf32>
    %110 = vector.extract_strided_slice %41 {offsets = [29, 0], sizes = [1, 128], strides = [1, 1]} : vector<49x128xf32> to vector<1x128xf32>
    %111 = vector.extract_strided_slice %85 {offsets = [4, 0, 0], sizes = [16, 24, 128], strides = [1, 1, 1]} : vector<22x24x128xf32> to vector<16x24x128xf32>
    %112 = vector.shape_cast %110 : vector<1x128xf32> to vector<1x1x128xf32>
    %113 = vector.broadcast %112 : vector<1x1x128xf32> to vector<16x24x128xf32>
    %114 = arith.mulf %111, %113 : vector<16x24x128xf32>
    %115 = arith.addf %109, %114 : vector<16x24x128xf32>
    %116 = vector.extract_strided_slice %41 {offsets = [36, 0], sizes = [1, 128], strides = [1, 1]} : vector<49x128xf32> to vector<1x128xf32>
    %117 = vector.extract_strided_slice %85 {offsets = [5, 0, 0], sizes = [16, 24, 128], strides = [1, 1, 1]} : vector<22x24x128xf32> to vector<16x24x128xf32>
    %118 = vector.shape_cast %116 : vector<1x128xf32> to vector<1x1x128xf32>
    %119 = vector.broadcast %118 : vector<1x1x128xf32> to vector<16x24x128xf32>
    %120 = arith.mulf %117, %119 : vector<16x24x128xf32>
    %121 = arith.addf %115, %120 : vector<16x24x128xf32>
    %122 = vector.extract_strided_slice %41 {offsets = [43, 0], sizes = [1, 128], strides = [1, 1]} : vector<49x128xf32> to vector<1x128xf32>
    %123 = vector.extract_strided_slice %85 {offsets = [6, 0, 0], sizes = [16, 24, 128], strides = [1, 1, 1]} : vector<22x24x128xf32> to vector<16x24x128xf32>
    %124 = vector.shape_cast %122 : vector<1x128xf32> to vector<1x1x128xf32>
    %125 = vector.broadcast %124 : vector<1x1x128xf32> to vector<16x24x128xf32>
    %126 = arith.mulf %123, %125 : vector<16x24x128xf32>
    %127 = arith.addf %121, %126 : vector<16x24x128xf32>
    %c22_i32 = arith.constant 22 : i32
    %128 = tpu.dynamic_rotate %40 by %c22_i32 dim 1 : vector<22x24x128xf32>, i32 -> vector<22x24x128xf32>
    %129 = vector.extract_strided_slice %41 {offsets = [2, 0], sizes = [1, 128], strides = [1, 1]} : vector<49x128xf32> to vector<1x128xf32>
    %130 = vector.extract_strided_slice %128 {offsets = [0, 0, 0], sizes = [16, 24, 128], strides = [1, 1, 1]} : vector<22x24x128xf32> to vector<16x24x128xf32>
    %131 = vector.shape_cast %129 : vector<1x128xf32> to vector<1x1x128xf32>
    %132 = vector.broadcast %131 : vector<1x1x128xf32> to vector<16x24x128xf32>
    %133 = arith.mulf %130, %132 : vector<16x24x128xf32>
    %134 = arith.addf %127, %133 : vector<16x24x128xf32>
    %135 = vector.extract_strided_slice %41 {offsets = [9, 0], sizes = [1, 128], strides = [1, 1]} : vector<49x128xf32> to vector<1x128xf32>
    %136 = vector.extract_strided_slice %128 {offsets = [1, 0, 0], sizes = [16, 24, 128], strides = [1, 1, 1]} : vector<22x24x128xf32> to vector<16x24x128xf32>
    %137 = vector.shape_cast %135 : vector<1x128xf32> to vector<1x1x128xf32>
    %138 = vector.broadcast %137 : vector<1x1x128xf32> to vector<16x24x128xf32>
    %139 = arith.mulf %136, %138 : vector<16x24x128xf32>
    %140 = arith.addf %134, %139 : vector<16x24x128xf32>
    %141 = vector.extract_strided_slice %41 {offsets = [16, 0], sizes = [1, 128], strides = [1, 1]} : vector<49x128xf32> to vector<1x128xf32>
    %142 = vector.extract_strided_slice %128 {offsets = [2, 0, 0], sizes = [16, 24, 128], strides = [1, 1, 1]} : vector<22x24x128xf32> to vector<16x24x128xf32>
    %143 = vector.shape_cast %141 : vector<1x128xf32> to vector<1x1x128xf32>
    %144 = vector.broadcast %143 : vector<1x1x128xf32> to vector<16x24x128xf32>
    %145 = arith.mulf %142, %144 : vector<16x24x128xf32>
    %146 = arith.addf %140, %145 : vector<16x24x128xf32>
    %147 = vector.extract_strided_slice %41 {offsets = [23, 0], sizes = [1, 128], strides = [1, 1]} : vector<49x128xf32> to vector<1x128xf32>
    %148 = vector.extract_strided_slice %128 {offsets = [3, 0, 0], sizes = [16, 24, 128], strides = [1, 1, 1]} : vector<22x24x128xf32> to vector<16x24x128xf32>
    %149 = vector.shape_cast %147 : vector<1x128xf32> to vector<1x1x128xf32>
    %150 = vector.broadcast %149 : vector<1x1x128xf32> to vector<16x24x128xf32>
    %151 = arith.mulf %148, %150 : vector<16x24x128xf32>
    %152 = arith.addf %146, %151 : vector<16x24x128xf32>
    %153 = vector.extract_strided_slice %41 {offsets = [30, 0], sizes = [1, 128], strides = [1, 1]} : vector<49x128xf32> to vector<1x128xf32>
    %154 = vector.extract_strided_slice %128 {offsets = [4, 0, 0], sizes = [16, 24, 128], strides = [1, 1, 1]} : vector<22x24x128xf32> to vector<16x24x128xf32>
    %155 = vector.shape_cast %153 : vector<1x128xf32> to vector<1x1x128xf32>
    %156 = vector.broadcast %155 : vector<1x1x128xf32> to vector<16x24x128xf32>
    %157 = arith.mulf %154, %156 : vector<16x24x128xf32>
    %158 = arith.addf %152, %157 : vector<16x24x128xf32>
    %159 = vector.extract_strided_slice %41 {offsets = [37, 0], sizes = [1, 128], strides = [1, 1]} : vector<49x128xf32> to vector<1x128xf32>
    %160 = vector.extract_strided_slice %128 {offsets = [5, 0, 0], sizes = [16, 24, 128], strides = [1, 1, 1]} : vector<22x24x128xf32> to vector<16x24x128xf32>
    %161 = vector.shape_cast %159 : vector<1x128xf32> to vector<1x1x128xf32>
    %162 = vector.broadcast %161 : vector<1x1x128xf32> to vector<16x24x128xf32>
    %163 = arith.mulf %160, %162 : vector<16x24x128xf32>
    %164 = arith.addf %158, %163 : vector<16x24x128xf32>
    %165 = vector.extract_strided_slice %41 {offsets = [44, 0], sizes = [1, 128], strides = [1, 1]} : vector<49x128xf32> to vector<1x128xf32>
    %166 = vector.extract_strided_slice %128 {offsets = [6, 0, 0], sizes = [16, 24, 128], strides = [1, 1, 1]} : vector<22x24x128xf32> to vector<16x24x128xf32>
    %167 = vector.shape_cast %165 : vector<1x128xf32> to vector<1x1x128xf32>
    %168 = vector.broadcast %167 : vector<1x1x128xf32> to vector<16x24x128xf32>
    %169 = arith.mulf %166, %168 : vector<16x24x128xf32>
    %170 = arith.addf %164, %169 : vector<16x24x128xf32>
    %c21_i32 = arith.constant 21 : i32
    %171 = tpu.dynamic_rotate %40 by %c21_i32 dim 1 : vector<22x24x128xf32>, i32 -> vector<22x24x128xf32>
    %172 = vector.extract_strided_slice %41 {offsets = [3, 0], sizes = [1, 128], strides = [1, 1]} : vector<49x128xf32> to vector<1x128xf32>
    %173 = vector.extract_strided_slice %171 {offsets = [0, 0, 0], sizes = [16, 24, 128], strides = [1, 1, 1]} : vector<22x24x128xf32> to vector<16x24x128xf32>
    %174 = vector.shape_cast %172 : vector<1x128xf32> to vector<1x1x128xf32>
    %175 = vector.broadcast %174 : vector<1x1x128xf32> to vector<16x24x128xf32>
    %176 = arith.mulf %173, %175 : vector<16x24x128xf32>
    %177 = arith.addf %170, %176 : vector<16x24x128xf32>
    %178 = vector.extract_strided_slice %41 {offsets = [10, 0], sizes = [1, 128], strides = [1, 1]} : vector<49x128xf32> to vector<1x128xf32>
    %179 = vector.extract_strided_slice %171 {offsets = [1, 0, 0], sizes = [16, 24, 128], strides = [1, 1, 1]} : vector<22x24x128xf32> to vector<16x24x128xf32>
    %180 = vector.shape_cast %178 : vector<1x128xf32> to vector<1x1x128xf32>
    %181 = vector.broadcast %180 : vector<1x1x128xf32> to vector<16x24x128xf32>
    %182 = arith.mulf %179, %181 : vector<16x24x128xf32>
    %183 = arith.addf %177, %182 : vector<16x24x128xf32>
    %184 = vector.extract_strided_slice %41 {offsets = [17, 0], sizes = [1, 128], strides = [1, 1]} : vector<49x128xf32> to vector<1x128xf32>
    %185 = vector.extract_strided_slice %171 {offsets = [2, 0, 0], sizes = [16, 24, 128], strides = [1, 1, 1]} : vector<22x24x128xf32> to vector<16x24x128xf32>
    %186 = vector.shape_cast %184 : vector<1x128xf32> to vector<1x1x128xf32>
    %187 = vector.broadcast %186 : vector<1x1x128xf32> to vector<16x24x128xf32>
    %188 = arith.mulf %185, %187 : vector<16x24x128xf32>
    %189 = arith.addf %183, %188 : vector<16x24x128xf32>
    %190 = vector.extract_strided_slice %41 {offsets = [24, 0], sizes = [1, 128], strides = [1, 1]} : vector<49x128xf32> to vector<1x128xf32>
    %191 = vector.extract_strided_slice %171 {offsets = [3, 0, 0], sizes = [16, 24, 128], strides = [1, 1, 1]} : vector<22x24x128xf32> to vector<16x24x128xf32>
    %192 = vector.shape_cast %190 : vector<1x128xf32> to vector<1x1x128xf32>
    %193 = vector.broadcast %192 : vector<1x1x128xf32> to vector<16x24x128xf32>
    %194 = arith.mulf %191, %193 : vector<16x24x128xf32>
    %195 = arith.addf %189, %194 : vector<16x24x128xf32>
    %196 = vector.extract_strided_slice %41 {offsets = [31, 0], sizes = [1, 128], strides = [1, 1]} : vector<49x128xf32> to vector<1x128xf32>
    %197 = vector.extract_strided_slice %171 {offsets = [4, 0, 0], sizes = [16, 24, 128], strides = [1, 1, 1]} : vector<22x24x128xf32> to vector<16x24x128xf32>
    %198 = vector.shape_cast %196 : vector<1x128xf32> to vector<1x1x128xf32>
    %199 = vector.broadcast %198 : vector<1x1x128xf32> to vector<16x24x128xf32>
    %200 = arith.mulf %197, %199 : vector<16x24x128xf32>
    %201 = arith.addf %195, %200 : vector<16x24x128xf32>
    %202 = vector.extract_strided_slice %41 {offsets = [38, 0], sizes = [1, 128], strides = [1, 1]} : vector<49x128xf32> to vector<1x128xf32>
    %203 = vector.extract_strided_slice %171 {offsets = [5, 0, 0], sizes = [16, 24, 128], strides = [1, 1, 1]} : vector<22x24x128xf32> to vector<16x24x128xf32>
    %204 = vector.shape_cast %202 : vector<1x128xf32> to vector<1x1x128xf32>
    %205 = vector.broadcast %204 : vector<1x1x128xf32> to vector<16x24x128xf32>
    %206 = arith.mulf %203, %205 : vector<16x24x128xf32>
    %207 = arith.addf %201, %206 : vector<16x24x128xf32>
    %208 = vector.extract_strided_slice %41 {offsets = [45, 0], sizes = [1, 128], strides = [1, 1]} : vector<49x128xf32> to vector<1x128xf32>
    %209 = vector.extract_strided_slice %171 {offsets = [6, 0, 0], sizes = [16, 24, 128], strides = [1, 1, 1]} : vector<22x24x128xf32> to vector<16x24x128xf32>
    %210 = vector.shape_cast %208 : vector<1x128xf32> to vector<1x1x128xf32>
    %211 = vector.broadcast %210 : vector<1x1x128xf32> to vector<16x24x128xf32>
    %212 = arith.mulf %209, %211 : vector<16x24x128xf32>
    %213 = arith.addf %207, %212 : vector<16x24x128xf32>
    %c20_i32 = arith.constant 20 : i32
    %214 = tpu.dynamic_rotate %40 by %c20_i32 dim 1 : vector<22x24x128xf32>, i32 -> vector<22x24x128xf32>
    %215 = vector.extract_strided_slice %41 {offsets = [4, 0], sizes = [1, 128], strides = [1, 1]} : vector<49x128xf32> to vector<1x128xf32>
    %216 = vector.extract_strided_slice %214 {offsets = [0, 0, 0], sizes = [16, 24, 128], strides = [1, 1, 1]} : vector<22x24x128xf32> to vector<16x24x128xf32>
    %217 = vector.shape_cast %215 : vector<1x128xf32> to vector<1x1x128xf32>
    %218 = vector.broadcast %217 : vector<1x1x128xf32> to vector<16x24x128xf32>
    %219 = arith.mulf %216, %218 : vector<16x24x128xf32>
    %220 = arith.addf %213, %219 : vector<16x24x128xf32>
    %221 = vector.extract_strided_slice %41 {offsets = [11, 0], sizes = [1, 128], strides = [1, 1]} : vector<49x128xf32> to vector<1x128xf32>
    %222 = vector.extract_strided_slice %214 {offsets = [1, 0, 0], sizes = [16, 24, 128], strides = [1, 1, 1]} : vector<22x24x128xf32> to vector<16x24x128xf32>
    %223 = vector.shape_cast %221 : vector<1x128xf32> to vector<1x1x128xf32>
    %224 = vector.broadcast %223 : vector<1x1x128xf32> to vector<16x24x128xf32>
    %225 = arith.mulf %222, %224 : vector<16x24x128xf32>
    %226 = arith.addf %220, %225 : vector<16x24x128xf32>
    %227 = vector.extract_strided_slice %41 {offsets = [18, 0], sizes = [1, 128], strides = [1, 1]} : vector<49x128xf32> to vector<1x128xf32>
    %228 = vector.extract_strided_slice %214 {offsets = [2, 0, 0], sizes = [16, 24, 128], strides = [1, 1, 1]} : vector<22x24x128xf32> to vector<16x24x128xf32>
    %229 = vector.shape_cast %227 : vector<1x128xf32> to vector<1x1x128xf32>
    %230 = vector.broadcast %229 : vector<1x1x128xf32> to vector<16x24x128xf32>
    %231 = arith.mulf %228, %230 : vector<16x24x128xf32>
    %232 = arith.addf %226, %231 : vector<16x24x128xf32>
    %233 = vector.extract_strided_slice %41 {offsets = [25, 0], sizes = [1, 128], strides = [1, 1]} : vector<49x128xf32> to vector<1x128xf32>
    %234 = vector.extract_strided_slice %214 {offsets = [3, 0, 0], sizes = [16, 24, 128], strides = [1, 1, 1]} : vector<22x24x128xf32> to vector<16x24x128xf32>
    %235 = vector.shape_cast %233 : vector<1x128xf32> to vector<1x1x128xf32>
    %236 = vector.broadcast %235 : vector<1x1x128xf32> to vector<16x24x128xf32>
    %237 = arith.mulf %234, %236 : vector<16x24x128xf32>
    %238 = arith.addf %232, %237 : vector<16x24x128xf32>
    %239 = vector.extract_strided_slice %41 {offsets = [32, 0], sizes = [1, 128], strides = [1, 1]} : vector<49x128xf32> to vector<1x128xf32>
    %240 = vector.extract_strided_slice %214 {offsets = [4, 0, 0], sizes = [16, 24, 128], strides = [1, 1, 1]} : vector<22x24x128xf32> to vector<16x24x128xf32>
    %241 = vector.shape_cast %239 : vector<1x128xf32> to vector<1x1x128xf32>
    %242 = vector.broadcast %241 : vector<1x1x128xf32> to vector<16x24x128xf32>
    %243 = arith.mulf %240, %242 : vector<16x24x128xf32>
    %244 = arith.addf %238, %243 : vector<16x24x128xf32>
    %245 = vector.extract_strided_slice %41 {offsets = [39, 0], sizes = [1, 128], strides = [1, 1]} : vector<49x128xf32> to vector<1x128xf32>
    %246 = vector.extract_strided_slice %214 {offsets = [5, 0, 0], sizes = [16, 24, 128], strides = [1, 1, 1]} : vector<22x24x128xf32> to vector<16x24x128xf32>
    %247 = vector.shape_cast %245 : vector<1x128xf32> to vector<1x1x128xf32>
    %248 = vector.broadcast %247 : vector<1x1x128xf32> to vector<16x24x128xf32>
    %249 = arith.mulf %246, %248 : vector<16x24x128xf32>
    %250 = arith.addf %244, %249 : vector<16x24x128xf32>
    %251 = vector.extract_strided_slice %41 {offsets = [46, 0], sizes = [1, 128], strides = [1, 1]} : vector<49x128xf32> to vector<1x128xf32>
    %252 = vector.extract_strided_slice %214 {offsets = [6, 0, 0], sizes = [16, 24, 128], strides = [1, 1, 1]} : vector<22x24x128xf32> to vector<16x24x128xf32>
    %253 = vector.shape_cast %251 : vector<1x128xf32> to vector<1x1x128xf32>
    %254 = vector.broadcast %253 : vector<1x1x128xf32> to vector<16x24x128xf32>
    %255 = arith.mulf %252, %254 : vector<16x24x128xf32>
    %256 = arith.addf %250, %255 : vector<16x24x128xf32>
    %c19_i32_18 = arith.constant 19 : i32
    %257 = tpu.dynamic_rotate %40 by %c19_i32_18 dim 1 : vector<22x24x128xf32>, i32 -> vector<22x24x128xf32>
    %258 = vector.extract_strided_slice %41 {offsets = [5, 0], sizes = [1, 128], strides = [1, 1]} : vector<49x128xf32> to vector<1x128xf32>
    %259 = vector.extract_strided_slice %257 {offsets = [0, 0, 0], sizes = [16, 24, 128], strides = [1, 1, 1]} : vector<22x24x128xf32> to vector<16x24x128xf32>
    %260 = vector.shape_cast %258 : vector<1x128xf32> to vector<1x1x128xf32>
    %261 = vector.broadcast %260 : vector<1x1x128xf32> to vector<16x24x128xf32>
    %262 = arith.mulf %259, %261 : vector<16x24x128xf32>
    %263 = arith.addf %256, %262 : vector<16x24x128xf32>
    %264 = vector.extract_strided_slice %41 {offsets = [12, 0], sizes = [1, 128], strides = [1, 1]} : vector<49x128xf32> to vector<1x128xf32>
    %265 = vector.extract_strided_slice %257 {offsets = [1, 0, 0], sizes = [16, 24, 128], strides = [1, 1, 1]} : vector<22x24x128xf32> to vector<16x24x128xf32>
    %266 = vector.shape_cast %264 : vector<1x128xf32> to vector<1x1x128xf32>
    %267 = vector.broadcast %266 : vector<1x1x128xf32> to vector<16x24x128xf32>
    %268 = arith.mulf %265, %267 : vector<16x24x128xf32>
    %269 = arith.addf %263, %268 : vector<16x24x128xf32>
    %270 = vector.extract_strided_slice %41 {offsets = [19, 0], sizes = [1, 128], strides = [1, 1]} : vector<49x128xf32> to vector<1x128xf32>
    %271 = vector.extract_strided_slice %257 {offsets = [2, 0, 0], sizes = [16, 24, 128], strides = [1, 1, 1]} : vector<22x24x128xf32> to vector<16x24x128xf32>
    %272 = vector.shape_cast %270 : vector<1x128xf32> to vector<1x1x128xf32>
    %273 = vector.broadcast %272 : vector<1x1x128xf32> to vector<16x24x128xf32>
    %274 = arith.mulf %271, %273 : vector<16x24x128xf32>
    %275 = arith.addf %269, %274 : vector<16x24x128xf32>
    %276 = vector.extract_strided_slice %41 {offsets = [26, 0], sizes = [1, 128], strides = [1, 1]} : vector<49x128xf32> to vector<1x128xf32>
    %277 = vector.extract_strided_slice %257 {offsets = [3, 0, 0], sizes = [16, 24, 128], strides = [1, 1, 1]} : vector<22x24x128xf32> to vector<16x24x128xf32>
    %278 = vector.shape_cast %276 : vector<1x128xf32> to vector<1x1x128xf32>
    %279 = vector.broadcast %278 : vector<1x1x128xf32> to vector<16x24x128xf32>
    %280 = arith.mulf %277, %279 : vector<16x24x128xf32>
    %281 = arith.addf %275, %280 : vector<16x24x128xf32>
    %282 = vector.extract_strided_slice %41 {offsets = [33, 0], sizes = [1, 128], strides = [1, 1]} : vector<49x128xf32> to vector<1x128xf32>
    %283 = vector.extract_strided_slice %257 {offsets = [4, 0, 0], sizes = [16, 24, 128], strides = [1, 1, 1]} : vector<22x24x128xf32> to vector<16x24x128xf32>
    %284 = vector.shape_cast %282 : vector<1x128xf32> to vector<1x1x128xf32>
    %285 = vector.broadcast %284 : vector<1x1x128xf32> to vector<16x24x128xf32>
    %286 = arith.mulf %283, %285 : vector<16x24x128xf32>
    %287 = arith.addf %281, %286 : vector<16x24x128xf32>
    %288 = vector.extract_strided_slice %41 {offsets = [40, 0], sizes = [1, 128], strides = [1, 1]} : vector<49x128xf32> to vector<1x128xf32>
    %289 = vector.extract_strided_slice %257 {offsets = [5, 0, 0], sizes = [16, 24, 128], strides = [1, 1, 1]} : vector<22x24x128xf32> to vector<16x24x128xf32>
    %290 = vector.shape_cast %288 : vector<1x128xf32> to vector<1x1x128xf32>
    %291 = vector.broadcast %290 : vector<1x1x128xf32> to vector<16x24x128xf32>
    %292 = arith.mulf %289, %291 : vector<16x24x128xf32>
    %293 = arith.addf %287, %292 : vector<16x24x128xf32>
    %294 = vector.extract_strided_slice %41 {offsets = [47, 0], sizes = [1, 128], strides = [1, 1]} : vector<49x128xf32> to vector<1x128xf32>
    %295 = vector.extract_strided_slice %257 {offsets = [6, 0, 0], sizes = [16, 24, 128], strides = [1, 1, 1]} : vector<22x24x128xf32> to vector<16x24x128xf32>
    %296 = vector.shape_cast %294 : vector<1x128xf32> to vector<1x1x128xf32>
    %297 = vector.broadcast %296 : vector<1x1x128xf32> to vector<16x24x128xf32>
    %298 = arith.mulf %295, %297 : vector<16x24x128xf32>
    %299 = arith.addf %293, %298 : vector<16x24x128xf32>
    %c18_i32 = arith.constant 18 : i32
    %300 = tpu.dynamic_rotate %40 by %c18_i32 dim 1 : vector<22x24x128xf32>, i32 -> vector<22x24x128xf32>
    %301 = vector.extract_strided_slice %41 {offsets = [6, 0], sizes = [1, 128], strides = [1, 1]} : vector<49x128xf32> to vector<1x128xf32>
    %302 = vector.extract_strided_slice %300 {offsets = [0, 0, 0], sizes = [16, 24, 128], strides = [1, 1, 1]} : vector<22x24x128xf32> to vector<16x24x128xf32>
    %303 = vector.shape_cast %301 : vector<1x128xf32> to vector<1x1x128xf32>
    %304 = vector.broadcast %303 : vector<1x1x128xf32> to vector<16x24x128xf32>
    %305 = arith.mulf %302, %304 : vector<16x24x128xf32>
    %306 = arith.addf %299, %305 : vector<16x24x128xf32>
    %307 = vector.extract_strided_slice %41 {offsets = [13, 0], sizes = [1, 128], strides = [1, 1]} : vector<49x128xf32> to vector<1x128xf32>
    %308 = vector.extract_strided_slice %300 {offsets = [1, 0, 0], sizes = [16, 24, 128], strides = [1, 1, 1]} : vector<22x24x128xf32> to vector<16x24x128xf32>
    %309 = vector.shape_cast %307 : vector<1x128xf32> to vector<1x1x128xf32>
    %310 = vector.broadcast %309 : vector<1x1x128xf32> to vector<16x24x128xf32>
    %311 = arith.mulf %308, %310 : vector<16x24x128xf32>
    %312 = arith.addf %306, %311 : vector<16x24x128xf32>
    %313 = vector.extract_strided_slice %41 {offsets = [20, 0], sizes = [1, 128], strides = [1, 1]} : vector<49x128xf32> to vector<1x128xf32>
    %314 = vector.extract_strided_slice %300 {offsets = [2, 0, 0], sizes = [16, 24, 128], strides = [1, 1, 1]} : vector<22x24x128xf32> to vector<16x24x128xf32>
    %315 = vector.shape_cast %313 : vector<1x128xf32> to vector<1x1x128xf32>
    %316 = vector.broadcast %315 : vector<1x1x128xf32> to vector<16x24x128xf32>
    %317 = arith.mulf %314, %316 : vector<16x24x128xf32>
    %318 = arith.addf %312, %317 : vector<16x24x128xf32>
    %319 = vector.extract_strided_slice %41 {offsets = [27, 0], sizes = [1, 128], strides = [1, 1]} : vector<49x128xf32> to vector<1x128xf32>
    %320 = vector.extract_strided_slice %300 {offsets = [3, 0, 0], sizes = [16, 24, 128], strides = [1, 1, 1]} : vector<22x24x128xf32> to vector<16x24x128xf32>
    %321 = vector.shape_cast %319 : vector<1x128xf32> to vector<1x1x128xf32>
    %322 = vector.broadcast %321 : vector<1x1x128xf32> to vector<16x24x128xf32>
    %323 = arith.mulf %320, %322 : vector<16x24x128xf32>
    %324 = arith.addf %318, %323 : vector<16x24x128xf32>
    %325 = vector.extract_strided_slice %41 {offsets = [34, 0], sizes = [1, 128], strides = [1, 1]} : vector<49x128xf32> to vector<1x128xf32>
    %326 = vector.extract_strided_slice %300 {offsets = [4, 0, 0], sizes = [16, 24, 128], strides = [1, 1, 1]} : vector<22x24x128xf32> to vector<16x24x128xf32>
    %327 = vector.shape_cast %325 : vector<1x128xf32> to vector<1x1x128xf32>
    %328 = vector.broadcast %327 : vector<1x1x128xf32> to vector<16x24x128xf32>
    %329 = arith.mulf %326, %328 : vector<16x24x128xf32>
    %330 = arith.addf %324, %329 : vector<16x24x128xf32>
    %331 = vector.extract_strided_slice %41 {offsets = [41, 0], sizes = [1, 128], strides = [1, 1]} : vector<49x128xf32> to vector<1x128xf32>
    %332 = vector.extract_strided_slice %300 {offsets = [5, 0, 0], sizes = [16, 24, 128], strides = [1, 1, 1]} : vector<22x24x128xf32> to vector<16x24x128xf32>
    %333 = vector.shape_cast %331 : vector<1x128xf32> to vector<1x1x128xf32>
    %334 = vector.broadcast %333 : vector<1x1x128xf32> to vector<16x24x128xf32>
    %335 = arith.mulf %332, %334 : vector<16x24x128xf32>
    %336 = arith.addf %330, %335 : vector<16x24x128xf32>
    %337 = vector.extract_strided_slice %41 {offsets = [48, 0], sizes = [1, 128], strides = [1, 1]} : vector<49x128xf32> to vector<1x128xf32>
    %338 = vector.extract_strided_slice %300 {offsets = [6, 0, 0], sizes = [16, 24, 128], strides = [1, 1, 1]} : vector<22x24x128xf32> to vector<16x24x128xf32>
    %339 = vector.shape_cast %337 : vector<1x128xf32> to vector<1x1x128xf32>
    %340 = vector.broadcast %339 : vector<1x1x128xf32> to vector<16x24x128xf32>
    %341 = arith.mulf %338, %340 : vector<16x24x128xf32>
    %342 = arith.addf %336, %341 : vector<16x24x128xf32>
    %c0_19 = arith.constant 0 : index
    %c0_20 = arith.constant 0 : index
    %343 = vector.load %arg6[%c0_19, %c0_20] : memref<1x128xf32, #tpu.memory_space<vmem>>, vector<1x128xf32>
    %344 = vector.shape_cast %343 : vector<1x128xf32> to vector<1x1x128xf32>
    %345 = vector.broadcast %344 : vector<1x1x128xf32> to vector<16x24x128xf32>
    %346 = arith.addf %342, %345 : vector<16x24x128xf32>
    %cst_21 = arith.constant 0.000000e+00 : f32
    %cst_22 = arith.constant 4.000000e+00 : f32
    %347 = vector.broadcast %cst_21 : f32 to vector<16x24x128xf32>
    %348 = arith.maximumf %347, %346 : vector<16x24x128xf32>
    %349 = vector.broadcast %cst_22 : f32 to vector<16x24x128xf32>
    %350 = arith.minimumf %349, %348 : vector<16x24x128xf32>
    %351 = math.roundeven %350 : vector<16x24x128xf32>
    %cst_23 = arith.constant 2.500000e-01 : f32
    %352 = vector.broadcast %cst_23 : f32 to vector<16x24x128xf32>
    %353 = arith.mulf %351, %352 : vector<16x24x128xf32>
    %354 = arith.truncf %353 : vector<16x24x128xf32> to vector<16x24x128xbf16>
    %355 = vector.shape_cast %354 : vector<16x24x128xbf16> to vector<384x128xbf16>
    %c0_24 = arith.constant 0 : index
    %c0_25 = arith.constant 0 : index
    %356 = vector.load %arg7[%c0_24, %c0_25] : memref<128x128xbf16, #tpu.memory_space<vmem>>, vector<128x128xbf16>
    %cst_26 = arith.constant dense<0.000000e+00> : vector<384x128xf32>
    %357 = tpu.matmul %355, %356, %cst_26 {dimension_numbers = #tpu.dot_dimension_numbers<[1], [0], [0], [1], [0, 0, 1, 1], [], []>} : vector<384x128xbf16>, vector<128x128xbf16>, vector<384x128xf32> -> vector<384x128xf32>
    %c0_27 = arith.constant 0 : index
    %c0_28 = arith.constant 0 : index
    %358 = vector.load %arg8[%c0_27, %c0_28] : memref<1x128xf32, #tpu.memory_space<vmem>>, vector<1x128xf32>
    %359 = vector.broadcast %358 : vector<1x128xf32> to vector<384x128xf32>
    %360 = arith.addf %357, %359 : vector<384x128xf32>
    %361 = vector.shape_cast %360 : vector<384x128xf32> to vector<16x24x128xf32>
    %c0_29 = arith.constant 0 : index
    %c0_30 = arith.constant 0 : index
    %c0_31 = arith.constant 0 : index
    %c0_32 = arith.constant 0 : index
    %362 = vector.load %arg9[%c0_29, %c0_30, %c0_31, %c0_32] : memref<1x16x24x128xf32, #tpu.memory_space<vmem>>, vector<1x16x24x128xf32>
    %363 = vector.shape_cast %362 : vector<1x16x24x128xf32> to vector<16x24x128xf32>
    %364 = vector.shape_cast %361 : vector<16x24x128xf32> to vector<1x16x24x128xf32>
    tpu.vector_store %arg9[%c0_29, %c0_30, %c0_31, %c0_32], %364 {strides = array<i32>} : memref<1x16x24x128xf32, #tpu.memory_space<vmem>>, vector<1x16x24x128xf32>,
    return
  }
  func.func @transform_1(%arg0: i32, %arg1: i32) -> (i32, i32) {
    %c0_i32 = arith.constant 0 : i32
    %c0_i32_0 = arith.constant 0 : i32
    %c0_i32_1 = arith.constant 0 : i32
    return %c0_i32, %c0_i32_0 : i32, i32
  }
  func.func @transform_2(%arg0: i32, %arg1: i32) -> (i32, i32) {
    %c0_i32 = arith.constant 0 : i32
    %c0_i32_0 = arith.constant 0 : i32
    %c0_i32_1 = arith.constant 0 : i32
    return %c0_i32, %c0_i32_0 : i32, i32
  }
  func.func @transform_3(%arg0: i32, %arg1: i32) -> (i32, i32) {
    %c0_i32 = arith.constant 0 : i32
    %c0_i32_0 = arith.constant 0 : i32
    %c0_i32_1 = arith.constant 0 : i32
    return %c0_i32, %c0_i32_0 : i32, i32
  }
  func.func @transform_4(%arg0: i32, %arg1: i32) -> (i32, i32) {
    %c0_i32 = arith.constant 0 : i32
    %c0_i32_0 = arith.constant 0 : i32
    %c0_i32_1 = arith.constant 0 : i32
    return %c0_i32, %c0_i32_0 : i32, i32
  }
  func.func @transform_5(%arg0: i32, %arg1: i32) -> (i32, i32) {
    %c0_i32 = arith.constant 0 : i32
    %c0_i32_0 = arith.constant 0 : i32
    %c0_i32_1 = arith.constant 0 : i32
    return %c0_i32, %c0_i32_0 : i32, i32
  }
  func.func @transform_6(%arg0: i32, %arg1: i32) -> (i32, i32) {
    %c0_i32 = arith.constant 0 : i32
    %c0_i32_0 = arith.constant 0 : i32
    %c0_i32_1 = arith.constant 0 : i32
    return %c0_i32, %c0_i32_0 : i32, i32
  }
  func.func @transform_7(%arg0: i32, %arg1: i32) -> (i32, i32, i32, i32) {
    %c0_i32 = arith.constant 0 : i32
    %c0_i32_0 = arith.constant 0 : i32
    %c0_i32_1 = arith.constant 0 : i32
    return %arg0, %arg1, %c0_i32, %c0_i32_0 : i32, i32, i32, i32
  }
}

</mosaic_0001>

<llo_original>
// kernel: _lambda_.1
$region0: #{_lambda_.1}
  #allocation0 [shape = 'u32[]', space=smem, size = 0x4, offset = 0x4, fixed_abs, tag = 'smem constant byte address 0x4 - core index']
  #allocation1 [shape = 'u32[72,128]{1,0:T(1,128)}', space=vmem, size = 0x9000, scoped, tag = 'internal scratch']
  #allocation2 [shape = 'bf16[22,24,128]{2,1,0:T(8,128)(2,1)}', space=vmem, size = 0x21000, scoped, tag = 'scratch operand']
  #allocation3 [shape = 's32[1]{0}', space=sflag, size = 0x4, scoped, tag = 'scratch operand']
  #allocation4 [shape = 's32[]', space=sflag, size = 0x4, offset = 0, fixed_abs, tag = 'sflag constant byte address 0x0 - dummy sync flag']
  %s0 = inlined_call_operand.vmem [shape: bf16[2,22,24,128], index: 0, kind: input, shape index: {}]
  %s1 = inlined_call_operand.vmem [shape: bf16[128,128], index: 1, kind: input, shape index: {}]
  %s2 = inlined_call_operand.vmem [shape: f32[1,128], index: 2, kind: input, shape index: {}]
  %s3 = inlined_call_operand.vmem [shape: f32[49,128], index: 3, kind: input, shape index: {}]
  %s4 = inlined_call_operand.vmem [shape: f32[1,128], index: 4, kind: input, shape index: {}]
  %s5 = inlined_call_operand.vmem [shape: bf16[128,128], index: 5, kind: input, shape index: {}]
  %s6 = inlined_call_operand.vmem [shape: f32[1,128], index: 6, kind: input, shape index: {}]
  %s7 = inlined_call_operand.vmem [shape: f32[2,16,24,128], index: 7, kind: output, shape index: {}]
  %s8 = sld [smem:[#allocation0]]
  $region76: #{_lambda_.1} parent=0
    _
  %s10 = ssub.s32 1, %s8
  %s11 = scalar_select 0, %s10, %s8
  loop: start=0, step=1, limit=4
  $region2: #{_lambda_.1} parent=0 // loop_pre_header
    _
  $region3: #{_lambda_.1} parent=0 // loop_header
    %s13 = sphi 0, %s17
    %p14 = scmp.ge.s32.totalorder %s13, 4
    %s20 = sphi 0, %s32
    %s21 = sphi 0, %s28
    %s22 = sphi 0, %s20
    %s23 = sphi 0, %s21
    %s24 = sphi 0, %s22
    %s25 = sphi 0, %s23
    %s33 = sphi 0, %s33
    %s35 = sphi 0, %s33
    %s36 = sphi 0, %s35
    %s50 = sphi 0, %s36
    %s54 = sphi 0, %s54
    %s56 = sphi 0, %s54
    %s57 = sphi 0, %s56
    %s71 = sphi 0, %s57
    %s75 = sphi 0, %s75
    %s77 = sphi 0, %s75
    %s78 = sphi 0, %s77
    %s92 = sphi 0, %s78
    %s96 = sphi 0, %s96
    %s98 = sphi 0, %s96
    %s99 = sphi 0, %s98
    %s113 = sphi 0, %s99
    %s117 = sphi 0, %s117
    %s119 = sphi 0, %s117
    %s120 = sphi 0, %s119
    %s134 = sphi 0, %s120
    %s138 = sphi 0, %s138
    %s140 = sphi 0, %s138
    %s141 = sphi 0, %s140
    %s155 = sphi 0, %s141
    %s163 = sphi 0, %s165
    %s166 = sphi 0, %s163
    %s167 = sphi 0, %s166
    %s183 = sphi 0, %s167
  $region4: #{_lambda_.1} parent=0 // loop_header_branch
    %16 = sbr.rel (%p14) target = $region8
  $region5: #{_lambda_.1} parent=0 // loop_body
    %s18 = ssub.s32 %s13, 1
    %s19 = ssub.s32 %s13, 2
    %s26 = sadd.s32 1, %s21
    %p27 = scmp.ge.s32.totalorder %s26, 1
    %s28 = scalar_select %p27, 0, %s26
    %s29 = sadd.s32 1, %s20
    %s30 = scalar_select %p27, %s29, %s20
    %p31 = scmp.ge.s32.totalorder %s30, 2
    %s32 = scalar_select %p31, 0, %s30
    %s34 = sadd.s32 %s33, 1
    %p37 = scmp.eq.s32.totalorder %s13, 1
    %p38 = scmp.ne.s32.totalorder %s33, %s35
    %p39 = scmp.eq.s32.totalorder %s13, 0
    %p40 = por %p38, %p39
    %p41 = scmp.ne.s32.totalorder %s33, %s35
    %p42 = scmp.eq.s32.totalorder %s18, 1
    %p43 = por %p41, %p42
    %p44 = scmp.ne.s32.totalorder %s35, %s36
    %p45 = scmp.eq.s32.totalorder %s18, 0
    %p46 = por %p44, %p45
    %p47 = scmp.ne.s32.totalorder %s35, %s36
    %p48 = scmp.eq.s32.totalorder %s19, 1
    %p49 = por %p47, %p48
    %p51 = scmp.ne.s32.totalorder %s36, %s50
    %p52 = scmp.eq.s32.totalorder %s19, 0
    %p53 = por %p51, %p52
    %s55 = sadd.s32 %s54, 1
    %p58 = scmp.eq.s32.totalorder %s13, 1
    %p59 = scmp.ne.s32.totalorder %s54, %s56
    %p60 = scmp.eq.s32.totalorder %s13, 0
    %p61 = por %p59, %p60
    %p62 = scmp.ne.s32.totalorder %s54, %s56
    %p63 = scmp.eq.s32.totalorder %s18, 1
    %p64 = por %p62, %p63
    %p65 = scmp.ne.s32.totalorder %s56, %s57
    %p66 = scmp.eq.s32.totalorder %s18, 0
    %p67 = por %p65, %p66
    %p68 = scmp.ne.s32.totalorder %s56, %s57
    %p69 = scmp.eq.s32.totalorder %s19, 1
    %p70 = por %p68, %p69
    %p72 = scmp.ne.s32.totalorder %s57, %s71
    %p73 = scmp.eq.s32.totalorder %s19, 0
    %p74 = por %p72, %p73
    %s76 = sadd.s32 %s75, 1
    %p79 = scmp.eq.s32.totalorder %s13, 1
    %p80 = scmp.ne.s32.totalorder %s75, %s77
    %p81 = scmp.eq.s32.totalorder %s13, 0
    %p82 = por %p80, %p81
    %p83 = scmp.ne.s32.totalorder %s75, %s77
    %p84 = scmp.eq.s32.totalorder %s18, 1
    %p85 = por %p83, %p84
    %p86 = scmp.ne.s32.totalorder %s77, %s78
    %p87 = scmp.eq.s32.totalorder %s18, 0
    %p88 = por %p86, %p87
    %p89 = scmp.ne.s32.totalorder %s77, %s78
    %p90 = scmp.eq.s32.totalorder %s19, 1
    %p91 = por %p89, %p90
    %p93 = scmp.ne.s32.totalorder %s78, %s92
    %p94 = scmp.eq.s32.totalorder %s19, 0
    %p95 = por %p93, %p94
    %s97 = sadd.s32 %s96, 1
    %p100 = scmp.eq.s32.totalorder %s13, 1
    %p101 = scmp.ne.s32.totalorder %s96, %s98
    %p102 = scmp.eq.s32.totalorder %s13, 0
    %p103 = por %p101, %p102
    %p104 = scmp.ne.s32.totalorder %s96, %s98
    %p105 = scmp.eq.s32.totalorder %s18, 1
    %p106 = por %p104, %p105
    %p107 = scmp.ne.s32.totalorder %s98, %s99
    %p108 = scmp.eq.s32.totalorder %s18, 0
    %p109 = por %p107, %p108
    %p110 = scmp.ne.s32.totalorder %s98, %s99
    %p111 = scmp.eq.s32.totalorder %s19, 1
    %p112 = por %p110, %p111
    %p114 = scmp.ne.s32.totalorder %s99, %s113
    %p115 = scmp.eq.s32.totalorder %s19, 0
    %p116 = por %p114, %p115
    %s118 = sadd.s32 %s117, 1
    %p121 = scmp.eq.s32.totalorder %s13, 1
    %p122 = scmp.ne.s32.totalorder %s117, %s119
    %p123 = scmp.eq.s32.totalorder %s13, 0
    %p124 = por %p122, %p123
    %p125 = scmp.ne.s32.totalorder %s117, %s119
    %p126 = scmp.eq.s32.totalorder %s18, 1
    %p127 = por %p125, %p126
    %p128 = scmp.ne.s32.totalorder %s119, %s120
    %p129 = scmp.eq.s32.totalorder %s18, 0
    %p130 = por %p128, %p129
    %p131 = scmp.ne.s32.totalorder %s119, %s120
    %p132 = scmp.eq.s32.totalorder %s19, 1
    %p133 = por %p131, %p132
    %p135 = scmp.ne.s32.totalorder %s120, %s134
    %p136 = scmp.eq.s32.totalorder %s19, 0
    %p137 = por %p135, %p136
    %s139 = sadd.s32 %s138, 1
    %p142 = scmp.eq.s32.totalorder %s13, 1
    %p143 = scmp.ne.s32.totalorder %s138, %s140
    %p144 = scmp.eq.s32.totalorder %s13, 0
    %p145 = por %p143, %p144
    %p146 = scmp.ne.s32.totalorder %s138, %s140
    %p147 = scmp.eq.s32.totalorder %s18, 1
    %p148 = por %p146, %p147
    %p149 = scmp.ne.s32.totalorder %s140, %s141
    %p150 = scmp.eq.s32.totalorder %s18, 0
    %p151 = por %p149, %p150
    %p152 = scmp.ne.s32.totalorder %s140, %s141
    %p153 = scmp.eq.s32.totalorder %s19, 1
    %p154 = por %p152, %p153
    %p156 = scmp.ne.s32.totalorder %s141, %s155
    %p157 = scmp.eq.s32.totalorder %s19, 0
    %p158 = por %p156, %p157
    %s159 = ssub.s32 %s20, %s32
    %s160 = ssub.s32 %s21, %s28
    %s161 = sor.u32 %s159, %s160
    %p162 = scmp.eq.s32.totalorder %s161, 0
    %s164 = sadd.s32 %s163, 1
    %s165 = scalar_select %p162, %s163, %s164
    %p168 = pneg %p162
    %p169 = scmp.eq.s32.totalorder %s13, 1
    %p170 = por %p168, %p169
    %p171 = scmp.ne.s32.totalorder %s163, %s166
    %p172 = scmp.eq.s32.totalorder %s13, 0
    %p173 = por %p171, %p172
    %p174 = scmp.ne.s32.totalorder %s163, %s166
    %p175 = scmp.eq.s32.totalorder %s18, 1
    %p176 = por %p174, %p175
    %p177 = scmp.ne.s32.totalorder %s166, %s167
    %p178 = scmp.eq.s32.totalorder %s18, 0
    %p179 = por %p177, %p178
    %p180 = scmp.ne.s32.totalorder %s166, %s167
    %p181 = scmp.eq.s32.totalorder %s19, 1
    %p182 = por %p180, %p181
    %p184 = scmp.ne.s32.totalorder %s167, %s183
    %p185 = scmp.eq.s32.totalorder %s19, 0
    %p186 = por %p184, %p185
    %p187 = scmp.le.s32.totalorder 1, %s13
    %p188 = scmp.lt.s32.totalorder %s13, 3
    %p189 = pnand %p187, %p188
    %p190 = pneg %p189
    // Predicated region
    $region9: #{_lambda_.1} parent=5 // pred_check
      _
    $region10: #{_lambda_.1} parent=5 // pred_check_branch
      %192 = sbr.rel (%p189) target = $region12
    $region11: #{_lambda_.1} parent=5 // pred_region
      %s193 = ssub.s32 %s13, 1
      // Predicated region
      $region13: #{_lambda_.1} parent=11 // pred_check
        %p194 = pneg %p46
      $region14: #{_lambda_.1} parent=11 // pred_check_branch
        %196 = sbr.rel (%p194) target = $region16
      $region15: #{_lambda_.1} parent=11 // pred_region
        _
      $region16: #{_lambda_.1} parent=11 // pred_fallthru
        _
      // Predicated region
      $region17: #{_lambda_.1} parent=11 // pred_check
        %p197 = pneg %p67
      $region18: #{_lambda_.1} parent=11 // pred_check_branch
        %199 = sbr.rel (%p197) target = $region20
      $region19: #{_lambda_.1} parent=11 // pred_region
        _
      $region20: #{_lambda_.1} parent=11 // pred_fallthru
        _
      // Predicated region
      $region21: #{_lambda_.1} parent=11 // pred_check
        %p200 = pneg %p88
      $region22: #{_lambda_.1} parent=11 // pred_check_branch
        %202 = sbr.rel (%p200) target = $region24
      $region23: #{_lambda_.1} parent=11 // pred_region
        _
      $region24: #{_lambda_.1} parent=11 // pred_fallthru
        _
      // Predicated region
      $region25: #{_lambda_.1} parent=11 // pred_check
        %p203 = pneg %p109
      $region26: #{_lambda_.1} parent=11 // pred_check_branch
        %205 = sbr.rel (%p203) target = $region28
      $region27: #{_lambda_.1} parent=11 // pred_region
        _
      $region28: #{_lambda_.1} parent=11 // pred_fallthru
        _
      // Predicated region
      $region29: #{_lambda_.1} parent=11 // pred_check
        %p206 = pneg %p130
      $region30: #{_lambda_.1} parent=11 // pred_check_branch
        %208 = sbr.rel (%p206) target = $region32
      $region31: #{_lambda_.1} parent=11 // pred_region
        _
      $region32: #{_lambda_.1} parent=11 // pred_fallthru
        _
      // Predicated region
      $region33: #{_lambda_.1} parent=11 // pred_check
        %p209 = pneg %p151
      $region34: #{_lambda_.1} parent=11 // pred_check_branch
        %211 = sbr.rel (%p209) target = $region36
      $region35: #{_lambda_.1} parent=11 // pred_region
        _
      $region36: #{_lambda_.1} parent=11 // pred_fallthru
        _
    $region12: #{_lambda_.1} parent=5 // pred_fallthru
      _
    %p212 = scmp.lt.s32.totalorder %s13, 2
    // Predicated region
    $region37: #{_lambda_.1} parent=5 // pred_check
      %p213 = pneg %p212
    $region38: #{_lambda_.1} parent=5 // pred_check_branch
      %215 = sbr.rel (%p213) target = $region40
    $region39: #{_lambda_.1} parent=5 // pred_region
      _
    $region40: #{_lambda_.1} parent=5 // pred_fallthru
      _
    %p216 = scmp.le.s32.totalorder 1, %s13
    %p217 = scmp.lt.s32.totalorder %s13, 3
    %p218 = pnand %p216, %p217
    %p219 = pneg %p218
    // Predicated region
    $region41: #{_lambda_.1} parent=5 // pred_check
      _
    $region42: #{_lambda_.1} parent=5 // pred_check_branch
      %221 = sbr.rel (%p218) target = $region44
    $region43: #{_lambda_.1} parent=5 // pred_region
      %s222 = ssub.s32 %s13, 1
      %p223 = pneg %p46
      %p224 = pneg %p43
      %p225 = pneg %p67
      %p226 = pneg %p64
      %p227 = pneg %p88
      %p228 = pneg %p85
      %p229 = pneg %p109
      %p230 = pneg %p106
      %p231 = pneg %p130
      %p232 = pneg %p127
      %p233 = pneg %p151
      %p234 = pneg %p148
      %p235 = pneg %p179
      %p236 = pneg %p176
      %s237 = smul.u32 16, %s23
      %p238 = scmp.lt.s32.totalorder %s22, 1
      %s239 = scalar_select %p238, %s22, 1
      %p240 = scmp.lt.s32.totalorder %s237, 15
      %s241 = scalar_select %p240, %s237, 15
      %s242 = smul.addr %s241, 3
      %s243 = smul.addr %s239, 48
      %s244 = sadd.s32 %s242, %s243
      %s245 = smul.addr %s244, 8
      %s246 = scalar_lea.vmem %s7, %s245
      %s247 = smul.u32 16, %s23
      %p248 = scmp.lt.s32.totalorder %s22, 1
      %s249 = scalar_select %p248, %s22, 1
      %p250 = scmp.lt.s32.totalorder %s247, 15
      %s251 = scalar_select %p250, %s247, 15
      %s252 = smul.addr %s251, 3
      %s253 = smul.addr %s249, 48
      %s254 = sadd.s32 %s252, %s253
      %s255 = smul.addr %s254, 8
      %s256 = scalar_lea.vmem %s7, %s255
      %s257 = smul.u32 16, %s23
      %s258 = smul.u32 %s23, 16
      %s259 = smul.u32 %s258, 3
      %s260 = smul.u32 %s22, 66
      %s261 = sadd.s32 %s259, %s260
      %s262 = smul.addr %s261, 4
      %s263 = scalar_lea.vmem %s0, %s262
      // Predicated region
      $region45: #{_lambda_.1} parent=43 // pred_check
        _
      $region46: #{_lambda_.1} parent=43 // pred_check_branch
        %265 = sbr.rel (0) target = $region48
      $region47: #{_lambda_.1} parent=43 // pred_region
        loop: start=0, step=1, limit=1
        $region49: #{_lambda_.1} parent=47 // loop_pre_header
          _
        $region50: #{_lambda_.1} parent=47 // loop_header
          %s267 = sphi 0, %s271
          %p268 = scmp.ge.s32.totalorder %s267, 1
          %s272 = sphi %s263, %s263
          %s273 = sphi [#allocation2], [#allocation2]
        $region51: #{_lambda_.1} parent=47 // loop_header_branch
          %270 = sbr.rel (%p268) target = $region55
        $region52: #{_lambda_.1} parent=47 // loop_body
          %v274 = vld [vmem:[%s272] sm:$0xff]
          %275 = vst [vmem:[%s273] sm:$0xff] %v274
          %v276 = vld [vmem:[%s272 + $0x8] sm:$0xff]
          %277 = vst [vmem:[%s273 + $0x8] sm:$0xff] %v276
          %v278 = vld [vmem:[%s272 + $0x10] sm:$0xff]
          %279 = vst [vmem:[%s273 + $0x10] sm:$0xff] %v278
          %v280 = vld [vmem:[%s272 + $0x18] sm:$0xff]
          %281 = vst [vmem:[%s273 + $0x18] sm:$0xff] %v280
          %v282 = vld [vmem:[%s272 + $0x20] sm:$0xff]
          %283 = vst [vmem:[%s273 + $0x20] sm:$0xff] %v282
          %v284 = vld [vmem:[%s272 + $0x28] sm:$0xff]
          %285 = vst [vmem:[%s273 + $0x28] sm:$0xff] %v284
          %v286 = vld [vmem:[%s272 + $0x30] sm:$0xff]
          %287 = vst [vmem:[%s273 + $0x30] sm:$0xff] %v286
          %v288 = vld [vmem:[%s272 + $0x38] sm:$0xff]
          %289 = vst [vmem:[%s273 + $0x38] sm:$0xff] %v288
          %v290 = vld [vmem:[%s272 + $0x40] sm:$0xff]
          %291 = vst [vmem:[%s273 + $0x40] sm:$0xff] %v290
          %v292 = vld [vmem:[%s272 + $0x48] sm:$0xff]
          %293 = vst [vmem:[%s273 + $0x48] sm:$0xff] %v292
          %v294 = vld [vmem:[%s272 + $0x50] sm:$0xff]
          %295 = vst [vmem:[%s273 + $0x50] sm:$0xff] %v294
          %v296 = vld [vmem:[%s272 + $0x58] sm:$0xff]
          %297 = vst [vmem:[%s273 + $0x58] sm:$0xff] %v296
          %v298 = vld [vmem:[%s272 + $0x60] sm:$0xff]
          %299 = vst [vmem:[%s273 + $0x60] sm:$0xff] %v298
          %v300 = vld [vmem:[%s272 + $0x68] sm:$0xff]
          %301 = vst [vmem:[%s273 + $0x68] sm:$0xff] %v300
          %v302 = vld [vmem:[%s272 + $0x70] sm:$0xff]
          %303 = vst [vmem:[%s273 + $0x70] sm:$0xff] %v302
          %v304 = vld [vmem:[%s272 + $0x78] sm:$0xff]
          %305 = vst [vmem:[%s273 + $0x78] sm:$0xff] %v304
          %v306 = vld [vmem:[%s272 + $0x80] sm:$0xff]
          %307 = vst [vmem:[%s273 + $0x80] sm:$0xff] %v306
          %v308 = vld [vmem:[%s272 + $0x88] sm:$0xff]
          %309 = vst [vmem:[%s273 + $0x88] sm:$0xff] %v308
          %v310 = vld [vmem:[%s272 + $0x90] sm:$0xff]
          %311 = vst [vmem:[%s273 + $0x90] sm:$0xff] %v310
          %v312 = vld [vmem:[%s272 + $0x98] sm:$0xff]
          %313 = vst [vmem:[%s273 + $0x98] sm:$0xff] %v312
          %v314 = vld [vmem:[%s272 + $0xa0] sm:$0xff]
          %315 = vst [vmem:[%s273 + $0xa0] sm:$0xff] %v314
          %v316 = vld [vmem:[%s272 + $0xa8] sm:$0xff]
          %317 = vst [vmem:[%s273 + $0xa8] sm:$0xff] %v316
          %v318 = vld [vmem:[%s272 + $0xb0] sm:$0xff]
          %319 = vst [vmem:[%s273 + $0xb0] sm:$0xff] %v318
          %v320 = vld [vmem:[%s272 + $0xb8] sm:$0xff]
          %321 = vst [vmem:[%s273 + $0xb8] sm:$0xff] %v320
          %v322 = vld [vmem:[%s272 + $0xc0] sm:$0xff]
          %323 = vst [vmem:[%s273 + $0xc0] sm:$0xff] %v322
          %v324 = vld [vmem:[%s272 + $0xc8] sm:$0xff]
          %325 = vst [vmem:[%s273 + $0xc8] sm:$0xff] %v324
          %v326 = vld [vmem:[%s272 + $0xd0] sm:$0xff]
          %327 = vst [vmem:[%s273 + $0xd0] sm:$0xff] %v326
          %v328 = vld [vmem:[%s272 + $0xd8] sm:$0xff]
          %329 = vst [vmem:[%s273 + $0xd8] sm:$0xff] %v328
          %v330 = vld [vmem:[%s272 + $0xe0] sm:$0xff]
          %331 = vst [vmem:[%s273 + $0xe0] sm:$0xff] %v330
          %v332 = vld [vmem:[%s272 + $0xe8] sm:$0xff]
          %333 = vst [vmem:[%s273 + $0xe8] sm:$0xff] %v332
          %v334 = vld [vmem:[%s272 + $0xf0] sm:$0xff]
          %335 = vst [vmem:[%s273 + $0xf0] sm:$0xff] %v334
          %v336 = vld [vmem:[%s272 + $0xf8] sm:$0xff]
          %337 = vst [vmem:[%s273 + $0xf8] sm:$0xff] %v336
          %v338 = vld [vmem:[%s272 + $0x100] sm:$0xff]
          %339 = vst [vmem:[%s273 + $0x100] sm:$0xff] %v338
        $region53: #{_lambda_.1} parent=47 // loop_footer
          %s271 = sadd.s32 1, %s267
        $region54: #{_lambda_.1} parent=47 // loop_footer_branch
          %266 = sbr.rel target = $region50
        $region55: #{_lambda_.1} parent=47 // loop_exit
          _
      $region48: #{_lambda_.1} parent=43 // pred_fallthru
        _
      // Predicated region
      $region56: #{_lambda_.1} parent=43 // pred_check
        _
      $region57: #{_lambda_.1} parent=43 // pred_check_branch
        %341 = sbr.rel target = $region59
      $region58: #{_lambda_.1} parent=43 // pred_region
        _
      $region59: #{_lambda_.1} parent=43 // pred_fallthru
        _
      // Predicated region
      $region60: #{_lambda_.1} parent=43 // pred_check
        _
      $region61: #{_lambda_.1} parent=43 // pred_check_branch
        %344 = sbr.rel (0) target = $region63
      $region62: #{_lambda_.1} parent=43 // pred_region
        %345 = vsyncadd [#allocation3], 4224
      $region63: #{_lambda_.1} parent=43 // pred_fallthru
        _
      %s346 = smul.u32 4, 22
      %s347 = smul.u32 %s346, 3
      %s348 = smul.u32 %s347, 1
      %s349 = sshll.u32 %s348, 4
      %350 = dma.done [#allocation3], %s349
      %v351 = vld [vmem:[#allocation2] sm:$0xf]
      %v352 = vld [vmem:[#allocation2 + $0x4] sm:$0xf]
      %v353 = vld [vmem:[#allocation2 + $0x8] sm:$0xf]
      %v354 = vld [vmem:[#allocation2 + $0xc] sm:$0xf]
      %v355 = vld [vmem:[#allocation2 + $0x10] sm:$0xf]
      %v356 = vld [vmem:[#allocation2 + $0x14] sm:$0xf]
      %v357 = vld [vmem:[#allocation2 + $0x18] sm:$0xf]
      %v358 = vld [vmem:[#allocation2 + $0x1c] sm:$0xf]
      %v359 = vld [vmem:[#allocation2 + $0x20] sm:$0xf]
      %v360 = vld [vmem:[#allocation2 + $0x24] sm:$0xf]
      %v361 = vld [vmem:[#allocation2 + $0x28] sm:$0xf]
      %v362 = vld [vmem:[#allocation2 + $0x2c] sm:$0xf]
      %v363 = vld [vmem:[#allocation2 + $0x30] sm:$0xf]
      %v364 = vld [vmem:[#allocation2 + $0x34] sm:$0xf]
      %v365 = vld [vmem:[#allocation2 + $0x38] sm:$0xf]
      %v366 = vld [vmem:[#allocation2 + $0x3c] sm:$0xf]
      %v367 = vld [vmem:[#allocation2 + $0x40] sm:$0xf]
      %v368 = vld [vmem:[#allocation2 + $0x44] sm:$0xf]
      %v369 = vld [vmem:[#allocation2 + $0x48] sm:$0xf]
      %v370 = vld [vmem:[#allocation2 + $0x4c] sm:$0xf]
      %v371 = vld [vmem:[#allocation2 + $0x50] sm:$0xf]
      %v372 = vld [vmem:[#allocation2 + $0x54] sm:$0xf]
      %v373 = vld [vmem:[#allocation2 + $0x58] sm:$0xf]
      %v374 = vld [vmem:[#allocation2 + $0x5c] sm:$0xf]
      %v375 = vld [vmem:[#allocation2 + $0x60] sm:$0xf]
      %v376 = vld [vmem:[#allocation2 + $0x64] sm:$0xf]
      %v377 = vld [vmem:[#allocation2 + $0x68] sm:$0xf]
      %v378 = vld [vmem:[#allocation2 + $0x6c] sm:$0xf]
      %v379 = vld [vmem:[#allocation2 + $0x70] sm:$0xf]
      %v380 = vld [vmem:[#allocation2 + $0x74] sm:$0xf]
      %v381 = vld [vmem:[#allocation2 + $0x78] sm:$0xf]
      %v382 = vld [vmem:[#allocation2 + $0x7c] sm:$0xf]
      %v383 = vld [vmem:[#allocation2 + $0x80] sm:$0xf]
      %v384 = vld [vmem:[#allocation2 + $0x84] sm:$0xf]
      %v385 = vld [vmem:[#allocation2 + $0x88] sm:$0xf]
      %v386 = vld [vmem:[#allocation2 + $0x8c] sm:$0xf]
      %v387 = vld [vmem:[#allocation2 + $0x90] sm:$0xf]
      %v388 = vld [vmem:[#allocation2 + $0x94] sm:$0xf]
      %v389 = vld [vmem:[#allocation2 + $0x98] sm:$0xf]
      %v390 = vld [vmem:[#allocation2 + $0x9c] sm:$0xf]
      %v391 = vld [vmem:[#allocation2 + $0xa0] sm:$0xf]
      %v392 = vld [vmem:[#allocation2 + $0xa4] sm:$0xf]
      %v393 = vld [vmem:[#allocation2 + $0xa8] sm:$0xf]
      %v394 = vld [vmem:[#allocation2 + $0xac] sm:$0xf]
      %v395 = vld [vmem:[#allocation2 + $0xb0] sm:$0xf]
      %v396 = vld [vmem:[#allocation2 + $0xb4] sm:$0xf]
      %v397 = vld [vmem:[#allocation2 + $0xb8] sm:$0xf]
      %v398 = vld [vmem:[#allocation2 + $0xbc] sm:$0xf]
      %v399 = vld [vmem:[#allocation2 + $0xc0] sm:$0xf]
      %v400 = vld [vmem:[#allocation2 + $0xc4] sm:$0xf]
      %v401 = vld [vmem:[#allocation2 + $0xc8] sm:$0xf]
      %v402 = vld [vmem:[#allocation2 + $0xcc] sm:$0xf]
      %v403 = vld [vmem:[#allocation2 + $0xd0] sm:$0xf]
      %v404 = vld [vmem:[#allocation2 + $0xd4] sm:$0xf]
      %v405 = vld [vmem:[#allocation2 + $0xd8] sm:$0xf]
      %v406 = vld [vmem:[#allocation2 + $0xdc] sm:$0xf]
      %v407 = vld [vmem:[#allocation2 + $0xe0] sm:$0xf]
      %v408 = vld [vmem:[#allocation2 + $0xe4] sm:$0xf]
      %v409 = vld [vmem:[#allocation2 + $0xe8] sm:$0xf]
      %v410 = vld [vmem:[#allocation2 + $0xec] sm:$0xf]
      %v411 = vld [vmem:[#allocation2 + $0xf0] sm:$0xf]
      %v412 = vld [vmem:[#allocation2 + $0xf4] sm:$0xf]
      %v413 = vld [vmem:[#allocation2 + $0xf8] sm:$0xf]
      %v414 = vld [vmem:[#allocation2 + $0xfc] sm:$0xf]
      %v415 = vld [vmem:[#allocation2 + $0x100] sm:$0xf]
      %v416 = vld [vmem:[#allocation2 + $0x104] sm:$0xf]
      %v417 = vld [vmem:[%s1] sm:$0xf]
      %v418 = vld [vmem:[%s1 + $0x4] sm:$0xf]
      %v419 = vld [vmem:[%s1 + $0x8] sm:$0xf]
      %v420 = vld [vmem:[%s1 + $0xc] sm:$0xf]
      %v421 = vld [vmem:[%s1 + $0x10] sm:$0xf]
      %v422 = vld [vmem:[%s1 + $0x14] sm:$0xf]
      %v423 = vld [vmem:[%s1 + $0x18] sm:$0xf]
      %v424 = vld [vmem:[%s1 + $0x1c] sm:$0xf]
      %v425 = vld [vmem:[%s1 + $0x20] sm:$0xf]
      %v426 = vld [vmem:[%s1 + $0x24] sm:$0xf]
      %v427 = vld [vmem:[%s1 + $0x28] sm:$0xf]
      %v428 = vld [vmem:[%s1 + $0x2c] sm:$0xf]
      %v429 = vld [vmem:[%s1 + $0x30] sm:$0xf]
      %v430 = vld [vmem:[%s1 + $0x34] sm:$0xf]
      %v431 = vld [vmem:[%s1 + $0x38] sm:$0xf]
      %v432 = vld [vmem:[%s1 + $0x3c] sm:$0xf]
      %v499 = vunpack.c.l.b16 %v351
      %v500 = vunpack.c.l.b16 %v352
      %v501 = vunpack.c.l.b16 %v353
      %v502 = vunpack.c.l.b16 %v354
      %v503 = vunpack.c.l.b16 %v355
      %v504 = vunpack.c.l.b16 %v356
      %v505 = vunpack.c.l.b16 %v357
      %v506 = vunpack.c.l.b16 %v358
      %v507 = vunpack.c.l.b16 %v359
      %v508 = vunpack.c.l.b16 %v360
      %v509 = vunpack.c.l.b16 %v361
      %v510 = vunpack.c.l.b16 %v362
      %v511 = vunpack.c.l.b16 %v363
      %v512 = vunpack.c.l.b16 %v364
      %v513 = vunpack.c.l.b16 %v365
      %v514 = vunpack.c.l.b16 %v366
      %v515 = vunpack.c.l.b16 %v367
      %v516 = vunpack.c.l.b16 %v368
      %v517 = vunpack.c.l.b16 %v369
      %v518 = vunpack.c.l.b16 %v370
      %v519 = vunpack.c.l.b16 %v371
      %v520 = vunpack.c.l.b16 %v372
      %v521 = vunpack.c.l.b16 %v373
      %v522 = vunpack.c.l.b16 %v374
      %v523 = vunpack.c.l.b16 %v375
      %v524 = vunpack.c.l.b16 %v376
      %v525 = vunpack.c.l.b16 %v377
      %v526 = vunpack.c.l.b16 %v378
      %v527 = vunpack.c.l.b16 %v379
      %v528 = vunpack.c.l.b16 %v380
      %v529 = vunpack.c.l.b16 %v381
      %v530 = vunpack.c.l.b16 %v382
      %v531 = vunpack.c.l.b16 %v383
      %v532 = vunpack.c.l.b16 %v384
      %v533 = vunpack.c.l.b16 %v385
      %v534 = vunpack.c.l.b16 %v386
      %v535 = vunpack.c.l.b16 %v387
      %v536 = vunpack.c.l.b16 %v388
      %v537 = vunpack.c.l.b16 %v389
      %v538 = vunpack.c.l.b16 %v390
      %v539 = vunpack.c.l.b16 %v391
      %v540 = vunpack.c.l.b16 %v392
      %v541 = vunpack.c.l.b16 %v393
      %v542 = vunpack.c.l.b16 %v394
      %v543 = vunpack.c.l.b16 %v395
      %v544 = vunpack.c.l.b16 %v396
      %v545 = vunpack.c.l.b16 %v397
      %v546 = vunpack.c.l.b16 %v398
      %v547 = vunpack.c.l.b16 %v399
      %v548 = vunpack.c.l.b16 %v400
      %v549 = vunpack.c.l.b16 %v401
      %v550 = vunpack.c.l.b16 %v402
      %v551 = vunpack.c.l.b16 %v403
      %v552 = vunpack.c.l.b16 %v404
      %v553 = vunpack.c.l.b16 %v405
      %v554 = vunpack.c.l.b16 %v406
      %v555 = vunpack.c.l.b16 %v407
      %v556 = vunpack.c.l.b16 %v408
      %v557 = vunpack.c.l.b16 %v409
      %v558 = vunpack.c.l.b16 %v410
      %v559 = vunpack.c.l.b16 %v411
      %v560 = vunpack.c.l.b16 %v412
      %v561 = vunpack.c.l.b16 %v413
      %v562 = vunpack.c.l.b16 %v414
      %v563 = vunpack.c.l.b16 %v415
      %v564 = vunpack.c.l.b16 %v416
      %v565 = vpack.c.b16 %v500, %v499
      %v566 = vpack.c.b16 %v502, %v501
      %v567 = vpack.c.b16 %v504, %v503
      %v568 = vpack.c.b16 %v506, %v505
      %v569 = vpack.c.b16 %v508, %v507
      %v570 = vpack.c.b16 %v510, %v509
      %v571 = vpack.c.b16 %v512, %v511
      %v572 = vpack.c.b16 %v514, %v513
      %v573 = vpack.c.b16 %v516, %v515
      %v574 = vpack.c.b16 %v518, %v517
      %v575 = vpack.c.b16 %v520, %v519
      %v576 = vpack.c.b16 %v522, %v521
      %v577 = vpack.c.b16 %v524, %v523
      %v578 = vpack.c.b16 %v526, %v525
      %v579 = vpack.c.b16 %v528, %v527
      %v580 = vpack.c.b16 %v530, %v529
      %v581 = vpack.c.b16 %v532, %v531
      %v582 = vpack.c.b16 %v534, %v533
      %v583 = vpack.c.b16 %v536, %v535
      %v584 = vpack.c.b16 %v538, %v537
      %v585 = vpack.c.b16 %v540, %v539
      %v586 = vpack.c.b16 %v542, %v541
      %v587 = vpack.c.b16 %v544, %v543
      %v588 = vpack.c.b16 %v546, %v545
      %v589 = vpack.c.b16 %v548, %v547
      %v590 = vpack.c.b16 %v550, %v549
      %v591 = vpack.c.b16 %v552, %v551
      %v592 = vpack.c.b16 %v554, %v553
      %v593 = vpack.c.b16 %v556, %v555
      %v594 = vpack.c.b16 %v558, %v557
      %v595 = vpack.c.b16 %v560, %v559
      %v596 = vpack.c.b16 %v562, %v561
      %v597 = vpack.c.b16 %v564, %v563
      %v647 = vunpack.c.l.b16 %v417
      %v648 = vunpack.c.l.b16 %v418
      %v649 = vunpack.c.l.b16 %v419
      %v650 = vunpack.c.l.b16 %v420
      %v651 = vunpack.c.l.b16 %v421
      %v652 = vunpack.c.l.b16 %v422
      %v653 = vunpack.c.l.b16 %v423
      %v654 = vunpack.c.l.b16 %v424
      %v655 = vunpack.c.l.b16 %v425
      %v656 = vunpack.c.l.b16 %v426
      %v657 = vunpack.c.l.b16 %v427
      %v658 = vunpack.c.l.b16 %v428
      %v659 = vunpack.c.l.b16 %v429
      %v660 = vunpack.c.l.b16 %v430
      %v661 = vunpack.c.l.b16 %v431
      %v662 = vunpack.c.l.b16 %v432
      %v663 = vpack.c.b16 %v648, %v647
      %v664 = vpack.c.b16 %v650, %v649
      %v665 = vpack.c.b16 %v652, %v651
      %v666 = vpack.c.b16 %v654, %v653
      %v667 = vpack.c.b16 %v656, %v655
      %v668 = vpack.c.b16 %v658, %v657
      %v669 = vpack.c.b16 %v660, %v659
      %v670 = vpack.c.b16 %v662, %v661
      %679 = vmatpush.bf16.msra.mxu0 %v670
      %680 = vmatpush.bf16.msra.mxu0 %v669
      %681 = vmatpush.bf16.msra.mxu0 %v668
      %682 = vmatpush.bf16.msra.mxu0 %v667
      %683 = vmatpush.bf16.msra.mxu0 %v666
      %684 = vmatpush.bf16.msra.mxu0 %v665
      %685 = vmatpush.bf16.msra.mxu0 %v664
      %686 = vmatpush.bf16.msra.mxu0 %v663
      %687 = vmatmul.bf16.gmra.mxu0 %v565
      %v688 = vpop.f32.mrf.mxu0
      %v689 = vadd.f32 0.0, %v688
      %v690 = vpop.f32.mrf.mxu0
      %v691 = vadd.f32 0.0, %v690
      %692 = vmatmul.bf16.gmra.mxu0 %v566
      %v693 = vpop.f32.mrf.mxu0
      %v694 = vadd.f32 0.0, %v693
      %v695 = vpop.f32.mrf.mxu0
      %v696 = vadd.f32 0.0, %v695
      %697 = vmatmul.bf16.gmra.mxu0 %v567
      %v698 = vpop.f32.mrf.mxu0
      %v699 = vadd.f32 0.0, %v698
      %v700 = vpop.f32.mrf.mxu0
      %v701 = vadd.f32 0.0, %v700
      %702 = vmatmul.bf16.gmra.mxu0 %v568
      %v703 = vpop.f32.mrf.mxu0
      %v704 = vadd.f32 0.0, %v703
      %v705 = vpop.f32.mrf.mxu0
      %v706 = vadd.f32 0.0, %v705
      %707 = vmatmul.bf16.gmra.mxu0 %v569
      %v708 = vpop.f32.mrf.mxu0
      %v709 = vadd.f32 0.0, %v708
      %v710 = vpop.f32.mrf.mxu0
      %v711 = vadd.f32 0.0, %v710
      %712 = vmatmul.bf16.gmra.mxu0 %v570
      %v713 = vpop.f32.mrf.mxu0
      %v714 = vadd.f32 0.0, %v713
      %v715 = vpop.f32.mrf.mxu0
      %v716 = vadd.f32 0.0, %v715
      %717 = vmatmul.bf16.gmra.mxu0 %v571
      %v718 = vpop.f32.mrf.mxu0
      %v719 = vadd.f32 0.0, %v718
      %v720 = vpop.f32.mrf.mxu0
      %v721 = vadd.f32 0.0, %v720
      %722 = vmatmul.bf16.gmra.mxu0 %v572
      %v723 = vpop.f32.mrf.mxu0
      %v724 = vadd.f32 0.0, %v723
      %v725 = vpop.f32.mrf.mxu0
      %v726 = vadd.f32 0.0, %v725
      %727 = vmatmul.bf16.gmra.mxu0 %v573
      %v728 = vpop.f32.mrf.mxu0
      %v729 = vadd.f32 0.0, %v728
      %v730 = vpop.f32.mrf.mxu0
      %v731 = vadd.f32 0.0, %v730
      %732 = vmatmul.bf16.gmra.mxu0 %v574
      %v733 = vpop.f32.mrf.mxu0
      %v734 = vadd.f32 0.0, %v733
      %v735 = vpop.f32.mrf.mxu0
      %v736 = vadd.f32 0.0, %v735
      %737 = vmatmul.bf16.gmra.mxu0 %v575
      %v738 = vpop.f32.mrf.mxu0
      %v739 = vadd.f32 0.0, %v738
      %v740 = vpop.f32.mrf.mxu0
      %v741 = vadd.f32 0.0, %v740
      %742 = vmatmul.bf16.gmra.mxu0 %v576
      %v743 = vpop.f32.mrf.mxu0
      %v744 = vadd.f32 0.0, %v743
      %v745 = vpop.f32.mrf.mxu0
      %v746 = vadd.f32 0.0, %v745
      %747 = vmatmul.bf16.gmra.mxu0 %v577
      %v748 = vpop.f32.mrf.mxu0
      %v749 = vadd.f32 0.0, %v748
      %v750 = vpop.f32.mrf.mxu0
      %v751 = vadd.f32 0.0, %v750
      %752 = vmatmul.bf16.gmra.mxu0 %v578
      %v753 = vpop.f32.mrf.mxu0
      %v754 = vadd.f32 0.0, %v753
      %v755 = vpop.f32.mrf.mxu0
      %v756 = vadd.f32 0.0, %v755
      %757 = vmatmul.bf16.gmra.mxu0 %v579
      %v758 = vpop.f32.mrf.mxu0
      %v759 = vadd.f32 0.0, %v758
      %v760 = vpop.f32.mrf.mxu0
      %v761 = vadd.f32 0.0, %v760
      %762 = vmatmul.bf16.gmra.mxu0 %v580
      %v763 = vpop.f32.mrf.mxu0
      %v764 = vadd.f32 0.0, %v763
      %v765 = vpop.f32.mrf.mxu0
      %v766 = vadd.f32 0.0, %v765
      %767 = vmatmul.bf16.gmra.mxu0 %v581
      %v768 = vpop.f32.mrf.mxu0
      %v769 = vadd.f32 0.0, %v768
      %v770 = vpop.f32.mrf.mxu0
      %v771 = vadd.f32 0.0, %v770
      %772 = vmatmul.bf16.gmra.mxu0 %v582
      %v773 = vpop.f32.mrf.mxu0
      %v774 = vadd.f32 0.0, %v773
      %v775 = vpop.f32.mrf.mxu0
      %v776 = vadd.f32 0.0, %v775
      %777 = vmatmul.bf16.gmra.mxu0 %v583
      %v778 = vpop.f32.mrf.mxu0
      %v779 = vadd.f32 0.0, %v778
      %v780 = vpop.f32.mrf.mxu0
      %v781 = vadd.f32 0.0, %v780
      %782 = vmatmul.bf16.gmra.mxu0 %v584
      %v783 = vpop.f32.mrf.mxu0
      %v784 = vadd.f32 0.0, %v783
      %v785 = vpop.f32.mrf.mxu0
      %v786 = vadd.f32 0.0, %v785
      %787 = vmatmul.bf16.gmra.mxu0 %v585
      %v788 = vpop.f32.mrf.mxu0
      %v789 = vadd.f32 0.0, %v788
      %v790 = vpop.f32.mrf.mxu0
      %v791 = vadd.f32 0.0, %v790
      %792 = vmatmul.bf16.gmra.mxu0 %v586
      %v793 = vpop.f32.mrf.mxu0
      %v794 = vadd.f32 0.0, %v793
      %v795 = vpop.f32.mrf.mxu0
      %v796 = vadd.f32 0.0, %v795
      %797 = vmatmul.bf16.gmra.mxu0 %v587
      %v798 = vpop.f32.mrf.mxu0
      %v799 = vadd.f32 0.0, %v798
      %v800 = vpop.f32.mrf.mxu0
      %v801 = vadd.f32 0.0, %v800
      %802 = vmatmul.bf16.gmra.mxu0 %v588
      %v803 = vpop.f32.mrf.mxu0
      %v804 = vadd.f32 0.0, %v803
      %v805 = vpop.f32.mrf.mxu0
      %v806 = vadd.f32 0.0, %v805
      %807 = vmatmul.bf16.gmra.mxu0 %v589
      %v808 = vpop.f32.mrf.mxu0
      %v809 = vadd.f32 0.0, %v808
      %v810 = vpop.f32.mrf.mxu0
      %v811 = vadd.f32 0.0, %v810
      %812 = vmatmul.bf16.gmra.mxu0 %v590
      %v813 = vpop.f32.mrf.mxu0
      %v814 = vadd.f32 0.0, %v813
      %v815 = vpop.f32.mrf.mxu0
      %v816 = vadd.f32 0.0, %v815
      %817 = vmatmul.bf16.gmra.mxu0 %v591
      %v818 = vpop.f32.mrf.mxu0
      %v819 = vadd.f32 0.0, %v818
      %v820 = vpop.f32.mrf.mxu0
      %v821 = vadd.f32 0.0, %v820
      %822 = vmatmul.bf16.gmra.mxu0 %v592
      %v823 = vpop.f32.mrf.mxu0
      %v824 = vadd.f32 0.0, %v823
      %v825 = vpop.f32.mrf.mxu0
      %v826 = vadd.f32 0.0, %v825
      %827 = vmatmul.bf16.gmra.mxu0 %v593
      %v828 = vpop.f32.mrf.mxu0
      %v829 = vadd.f32 0.0, %v828
      %v830 = vpop.f32.mrf.mxu0
      %v831 = vadd.f32 0.0, %v830
      %832 = vmatmul.bf16.gmra.mxu0 %v594
      %v833 = vpop.f32.mrf.mxu0
      %v834 = vadd.f32 0.0, %v833
      %v835 = vpop.f32.mrf.mxu0
      %v836 = vadd.f32 0.0, %v835
      %837 = vmatmul.bf16.gmra.mxu0 %v595
      %v838 = vpop.f32.mrf.mxu0
      %v839 = vadd.f32 0.0, %v838
      %v840 = vpop.f32.mrf.mxu0
      %v841 = vadd.f32 0.0, %v840
      %842 = vmatmul.bf16.gmra.mxu0 %v596
      %v843 = vpop.f32.mrf.mxu0
      %v844 = vadd.f32 0.0, %v843
      %v845 = vpop.f32.mrf.mxu0
      %v846 = vadd.f32 0.0, %v845
      %847 = vmatmul.bf16.gmra.mxu0 %v597
      %v848 = vpop.f32.mrf.mxu0
      %v849 = vadd.f32 0.0, %v848
      %v850 = vpop.f32.mrf.mxu0
      %v851 = vadd.f32 0.0, %v850
      %852 = vdwg.mxu0
      %v853 = vstv %s258
      %v854 = vadd.s32 %v853, 1
      %v855 = vadd.s32 %v853, 2
      %v856 = vadd.s32 %v853, 3
      %v857 = vadd.s32 %v853, 4
      %v858 = vadd.s32 %v853, 5
      %v859 = vadd.s32 %v853, 6
      %v860 = vadd.s32 %v853, 7
      %v861 = vadd.s32 %v853, 8
      %v862 = vadd.s32 %v853, 9
      %v863 = vadd.s32 %v853, 10
      %v864 = vadd.s32 %v853, 11
      %v865 = vadd.s32 %v853, 12
      %v866 = vadd.s32 %v853, 13
      %v867 = vadd.s32 %v853, 14
      %v868 = vadd.s32 %v853, 15
      %v869 = vadd.s32 %v853, 16
      %v870 = vadd.s32 %v853, 17
      %v871 = vadd.s32 %v853, 18
      %v872 = vadd.s32 %v853, 19
      %v873 = vadd.s32 %v853, 20
      %v874 = vadd.s32 %v853, 21
      %v875 = vlaneseq
      %v876 = vshrl.u32 %v875, 7
      %v877 = vadd.s32 %v876, 8
      %v878 = vadd.s32 %v876, 16
      %vm879 = vcmp.ge.s32.totalorder %v853, 3
      %vm880 = vcmp.ge.s32.totalorder %v854, 3
      %vm881 = vcmp.ge.s32.totalorder %v855, 3
      %vm882 = vcmp.ge.s32.totalorder %v856, 3
      %vm883 = vcmp.ge.s32.totalorder %v857, 3
      %vm884 = vcmp.ge.s32.totalorder %v858, 3
      %vm885 = vcmp.ge.s32.totalorder %v859, 3
      %vm886 = vcmp.ge.s32.totalorder %v860, 3
      %vm887 = vcmp.ge.s32.totalorder %v861, 3
      %vm888 = vcmp.ge.s32.totalorder %v862, 3
      %vm889 = vcmp.ge.s32.totalorder %v863, 3
      %vm890 = vcmp.ge.s32.totalorder %v864, 3
      %vm891 = vcmp.ge.s32.totalorder %v865, 3
      %vm892 = vcmp.ge.s32.totalorder %v866, 3
      %vm893 = vcmp.ge.s32.totalorder %v867, 3
      %vm894 = vcmp.ge.s32.totalorder %v868, 3
      %vm895 = vcmp.ge.s32.totalorder %v869, 3
      %vm896 = vcmp.ge.s32.totalorder %v870, 3
      %vm897 = vcmp.ge.s32.totalorder %v871, 3
      %vm898 = vcmp.ge.s32.totalorder %v872, 3
      %vm899 = vcmp.ge.s32.totalorder %v873, 3
      %vm900 = vcmp.ge.s32.totalorder %v874, 3
      %vm901 = vcmp.lt.s32.totalorder %v853, 19
      %vm902 = vcmp.lt.s32.totalorder %v854, 19
      %vm903 = vcmp.lt.s32.totalorder %v855, 19
      %vm904 = vcmp.lt.s32.totalorder %v856, 19
      %vm905 = vcmp.lt.s32.totalorder %v857, 19
      %vm906 = vcmp.lt.s32.totalorder %v858, 19
      %vm907 = vcmp.lt.s32.totalorder %v859, 19
      %vm908 = vcmp.lt.s32.totalorder %v860, 19
      %vm909 = vcmp.lt.s32.totalorder %v861, 19
      %vm910 = vcmp.lt.s32.totalorder %v862, 19
      %vm911 = vcmp.lt.s32.totalorder %v863, 19
      %vm912 = vcmp.lt.s32.totalorder %v864, 19
      %vm913 = vcmp.lt.s32.totalorder %v865, 19
      %vm914 = vcmp.lt.s32.totalorder %v866, 19
      %vm915 = vcmp.lt.s32.totalorder %v867, 19
      %vm916 = vcmp.lt.s32.totalorder %v868, 19
      %vm917 = vcmp.lt.s32.totalorder %v869, 19
      %vm918 = vcmp.lt.s32.totalorder %v870, 19
      %vm919 = vcmp.lt.s32.totalorder %v871, 19
      %vm920 = vcmp.lt.s32.totalorder %v872, 19
      %vm921 = vcmp.lt.s32.totalorder %v873, 19
      %vm922 = vcmp.lt.s32.totalorder %v874, 19
      %vm923 = vmand %vm879, %vm901
      %vm924 = vmand %vm880, %vm902
      %vm925 = vmand %vm881, %vm903
      %vm926 = vmand %vm882, %vm904
      %vm927 = vmand %vm883, %vm905
      %vm928 = vmand %vm884, %vm906
      %vm929 = vmand %vm885, %vm907
      %vm930 = vmand %vm886, %vm908
      %vm931 = vmand %vm887, %vm909
      %vm932 = vmand %vm888, %vm910
      %vm933 = vmand %vm889, %vm911
      %vm934 = vmand %vm890, %vm912
      %vm935 = vmand %vm891, %vm913
      %vm936 = vmand %vm892, %vm914
      %vm937 = vmand %vm893, %vm915
      %vm938 = vmand %vm894, %vm916
      %vm939 = vmand %vm895, %vm917
      %vm940 = vmand %vm896, %vm918
      %vm941 = vmand %vm897, %vm919
      %vm942 = vmand %vm898, %vm920
      %vm943 = vmand %vm899, %vm921
      %vm944 = vmand %vm900, %vm922
      %vm945 = vcmp.ge.s32.totalorder %v876, 3
      %vm946 = vcmp.ge.s32.totalorder %v877, 3
      %vm947 = vcmp.ge.s32.totalorder %v878, 3
      %vm948 = vcmp.lt.s32.totalorder %v876, 19
      %vm949 = vcmp.lt.s32.totalorder %v877, 19
      %vm950 = vcmp.lt.s32.totalorder %v878, 19
      %vm951 = vmand %vm945, %vm948
      %vm952 = vmand %vm946, %vm949
      %vm953 = vmand %vm947, %vm950
      %vm954 = vmand %vm923, %vm951
      %vm955 = vmand %vm923, %vm952
      %vm956 = vmand %vm923, %vm953
      %vm957 = vmand %vm924, %vm951
      %vm958 = vmand %vm924, %vm952
      %vm959 = vmand %vm924, %vm953
      %vm960 = vmand %vm925, %vm951
      %vm961 = vmand %vm925, %vm952
      %vm962 = vmand %vm925, %vm953
      %vm963 = vmand %vm926, %vm951
      %vm964 = vmand %vm926, %vm952
      %vm965 = vmand %vm926, %vm953
      %vm966 = vmand %vm927, %vm951
      %vm967 = vmand %vm927, %vm952
      %vm968 = vmand %vm927, %vm953
      %vm969 = vmand %vm928, %vm951
      %vm970 = vmand %vm928, %vm952
      %vm971 = vmand %vm928, %vm953
      %vm972 = vmand %vm929, %vm951
      %vm973 = vmand %vm929, %vm952
      %vm974 = vmand %vm929, %vm953
      %vm975 = vmand %vm930, %vm951
      %vm976 = vmand %vm930, %vm952
      %vm977 = vmand %vm930, %vm953
      %vm978 = vmand %vm931, %vm951
      %vm979 = vmand %vm931, %vm952
      %vm980 = vmand %vm931, %vm953
      %vm981 = vmand %vm932, %vm951
      %vm982 = vmand %vm932, %vm952
      %vm983 = vmand %vm932, %vm953
      %vm984 = vmand %vm933, %vm951
      %vm985 = vmand %vm933, %vm952
      %vm986 = vmand %vm933, %vm953
      %vm987 = vmand %vm934, %vm951
      %vm988 = vmand %vm934, %vm952
      %vm989 = vmand %vm934, %vm953
      %vm990 = vmand %vm935, %vm951
      %vm991 = vmand %vm935, %vm952
      %vm992 = vmand %vm935, %vm953
      %vm993 = vmand %vm936, %vm951
      %vm994 = vmand %vm936, %vm952
      %vm995 = vmand %vm936, %vm953
      %vm996 = vmand %vm937, %vm951
      %vm997 = vmand %vm937, %vm952
      %vm998 = vmand %vm937, %vm953
      %vm999 = vmand %vm938, %vm951
      %vm1000 = vmand %vm938, %vm952
      %vm1001 = vmand %vm938, %vm953
      %vm1002 = vmand %vm939, %vm951
      %vm1003 = vmand %vm939, %vm952
      %vm1004 = vmand %vm939, %vm953
      %vm1005 = vmand %vm940, %vm951
      %vm1006 = vmand %vm940, %vm952
      %vm1007 = vmand %vm940, %vm953
      %vm1008 = vmand %vm941, %vm951
      %vm1009 = vmand %vm941, %vm952
      %vm1010 = vmand %vm941, %vm953
      %vm1011 = vmand %vm942, %vm951
      %vm1012 = vmand %vm942, %vm952
      %vm1013 = vmand %vm942, %vm953
      %vm1014 = vmand %vm943, %vm951
      %vm1015 = vmand %vm943, %vm952
      %vm1016 = vmand %vm943, %vm953
      %vm1017 = vmand %vm944, %vm951
      %vm1018 = vmand %vm944, %vm952
      %vm1019 = vmand %vm944, %vm953
      %v1020 = vld [vmem:[%s2] sm:$0x1]
      %v1022 = vperm.slane %v1020, 0
      %v1024 = vadd.f32 %v689, %v1022
      %v1025 = vadd.f32 %v691, %v1022
      %v1026 = vadd.f32 %v694, %v1022
      %v1027 = vadd.f32 %v696, %v1022
      %v1028 = vadd.f32 %v699, %v1022
      %v1029 = vadd.f32 %v701, %v1022
      %v1030 = vadd.f32 %v704, %v1022
      %v1031 = vadd.f32 %v706, %v1022
      %v1032 = vadd.f32 %v709, %v1022
      %v1033 = vadd.f32 %v711, %v1022
      %v1034 = vadd.f32 %v714, %v1022
      %v1035 = vadd.f32 %v716, %v1022
      %v1036 = vadd.f32 %v719, %v1022
      %v1037 = vadd.f32 %v721, %v1022
      %v1038 = vadd.f32 %v724, %v1022
      %v1039 = vadd.f32 %v726, %v1022
      %v1040 = vadd.f32 %v729, %v1022
      %v1041 = vadd.f32 %v731, %v1022
      %v1042 = vadd.f32 %v734, %v1022
      %v1043 = vadd.f32 %v736, %v1022
      %v1044 = vadd.f32 %v739, %v1022
      %v1045 = vadd.f32 %v741, %v1022
      %v1046 = vadd.f32 %v744, %v1022
      %v1047 = vadd.f32 %v746, %v1022
      %v1048 = vadd.f32 %v749, %v1022
      %v1049 = vadd.f32 %v751, %v1022
      %v1050 = vadd.f32 %v754, %v1022
      %v1051 = vadd.f32 %v756, %v1022
      %v1052 = vadd.f32 %v759, %v1022
      %v1053 = vadd.f32 %v761, %v1022
      %v1054 = vadd.f32 %v764, %v1022
      %v1055 = vadd.f32 %v766, %v1022
      %v1056 = vadd.f32 %v769, %v1022
      %v1057 = vadd.f32 %v771, %v1022
      %v1058 = vadd.f32 %v774, %v1022
      %v1059 = vadd.f32 %v776, %v1022
      %v1060 = vadd.f32 %v779, %v1022
      %v1061 = vadd.f32 %v781, %v1022
      %v1062 = vadd.f32 %v784, %v1022
      %v1063 = vadd.f32 %v786, %v1022
      %v1064 = vadd.f32 %v789, %v1022
      %v1065 = vadd.f32 %v791, %v1022
      %v1066 = vadd.f32 %v794, %v1022
      %v1067 = vadd.f32 %v796, %v1022
      %v1068 = vadd.f32 %v799, %v1022
      %v1069 = vadd.f32 %v801, %v1022
      %v1070 = vadd.f32 %v804, %v1022
      %v1071 = vadd.f32 %v806, %v1022
      %v1072 = vadd.f32 %v809, %v1022
      %v1073 = vadd.f32 %v811, %v1022
      %v1074 = vadd.f32 %v814, %v1022
      %v1075 = vadd.f32 %v816, %v1022
      %v1076 = vadd.f32 %v819, %v1022
      %v1077 = vadd.f32 %v821, %v1022
      %v1078 = vadd.f32 %v824, %v1022
      %v1079 = vadd.f32 %v826, %v1022
      %v1080 = vadd.f32 %v829, %v1022
      %v1081 = vadd.f32 %v831, %v1022
      %v1082 = vadd.f32 %v834, %v1022
      %v1083 = vadd.f32 %v836, %v1022
      %v1084 = vadd.f32 %v839, %v1022
      %v1085 = vadd.f32 %v841, %v1022
      %v1086 = vadd.f32 %v844, %v1022
      %v1087 = vadd.f32 %v846, %v1022
      %v1088 = vadd.f32 %v849, %v1022
      %v1089 = vadd.f32 %v851, %v1022
      %v1090 = vsel %vm954, 1, 0
      %v1091 = vsel %vm955, 1, 0
      %v1092 = vsel %vm956, 1, 0
      %v1093 = vsel %vm957, 1, 0
      %v1094 = vsel %vm958, 1, 0
      %v1095 = vsel %vm959, 1, 0
      %v1096 = vsel %vm960, 1, 0
      %v1097 = vsel %vm961, 1, 0
      %v1098 = vsel %vm962, 1, 0
      %v1099 = vsel %vm963, 1, 0
      %v1100 = vsel %vm964, 1, 0
      %v1101 = vsel %vm965, 1, 0
      %v1102 = vsel %vm966, 1, 0
      %v1103 = vsel %vm967, 1, 0
      %v1104 = vsel %vm968, 1, 0
      %v1105 = vsel %vm969, 1, 0
      %v1106 = vsel %vm970, 1, 0
      %v1107 = vsel %vm971, 1, 0
      %v1108 = vsel %vm972, 1, 0
      %v1109 = vsel %vm973, 1, 0
      %v1110 = vsel %vm974, 1, 0
      %v1111 = vsel %vm975, 1, 0
      %v1112 = vsel %vm976, 1, 0
      %v1113 = vsel %vm977, 1, 0
      %v1114 = vsel %vm978, 1, 0
      %v1115 = vsel %vm979, 1, 0
      %v1116 = vsel %vm980, 1, 0
      %v1117 = vsel %vm981, 1, 0
      %v1118 = vsel %vm982, 1, 0
      %v1119 = vsel %vm983, 1, 0
      %v1120 = vsel %vm984, 1, 0
      %v1121 = vsel %vm985, 1, 0
      %v1122 = vsel %vm986, 1, 0
      %v1123 = vsel %vm987, 1, 0
      %v1124 = vsel %vm988, 1, 0
      %v1125 = vsel %vm989, 1, 0
      %v1126 = vsel %vm990, 1, 0
      %v1127 = vsel %vm991, 1, 0
      %v1128 = vsel %vm992, 1, 0
      %v1129 = vsel %vm993, 1, 0
      %v1130 = vsel %vm994, 1, 0
      %v1131 = vsel %vm995, 1, 0
      %v1132 = vsel %vm996, 1, 0
      %v1133 = vsel %vm997, 1, 0
      %v1134 = vsel %vm998, 1, 0
      %v1135 = vsel %vm999, 1, 0
      %v1136 = vsel %vm1000, 1, 0
      %v1137 = vsel %vm1001, 1, 0
      %v1138 = vsel %vm1002, 1, 0
      %v1139 = vsel %vm1003, 1, 0
      %v1140 = vsel %vm1004, 1, 0
      %v1141 = vsel %vm1005, 1, 0
      %v1142 = vsel %vm1006, 1, 0
      %v1143 = vsel %vm1007, 1, 0
      %v1144 = vsel %vm1008, 1, 0
      %v1145 = vsel %vm1009, 1, 0
      %v1146 = vsel %vm1010, 1, 0
      %v1147 = vsel %vm1011, 1, 0
      %v1148 = vsel %vm1012, 1, 0
      %v1149 = vsel %vm1013, 1, 0
      %v1150 = vsel %vm1014, 1, 0
      %v1151 = vsel %vm1015, 1, 0
      %v1152 = vsel %vm1016, 1, 0
      %v1153 = vsel %vm1017, 1, 0
      %v1154 = vsel %vm1018, 1, 0
      %v1155 = vsel %vm1019, 1, 0
      %vm1156 = vcmp.eq.s32.totalorder %v1090, 1
      %vm1157 = vcmp.eq.s32.totalorder %v1091, 1
      %vm1158 = vcmp.eq.s32.totalorder %v1092, 1
      %vm1159 = vcmp.eq.s32.totalorder %v1093, 1
      %vm1160 = vcmp.eq.s32.totalorder %v1094, 1
      %vm1161 = vcmp.eq.s32.totalorder %v1095, 1
      %vm1162 = vcmp.eq.s32.totalorder %v1096, 1
      %vm1163 = vcmp.eq.s32.totalorder %v1097, 1
      %vm1164 = vcmp.eq.s32.totalorder %v1098, 1
      %vm1165 = vcmp.eq.s32.totalorder %v1099, 1
      %vm1166 = vcmp.eq.s32.totalorder %v1100, 1
      %vm1167 = vcmp.eq.s32.totalorder %v1101, 1
      %vm1168 = vcmp.eq.s32.totalorder %v1102, 1
      %vm1169 = vcmp.eq.s32.totalorder %v1103, 1
      %vm1170 = vcmp.eq.s32.totalorder %v1104, 1
      %vm1171 = vcmp.eq.s32.totalorder %v1105, 1
      %vm1172 = vcmp.eq.s32.totalorder %v1106, 1
      %vm1173 = vcmp.eq.s32.totalorder %v1107, 1
      %vm1174 = vcmp.eq.s32.totalorder %v1108, 1
      %vm1175 = vcmp.eq.s32.totalorder %v1109, 1
      %vm1176 = vcmp.eq.s32.totalorder %v1110, 1
      %vm1177 = vcmp.eq.s32.totalorder %v1111, 1
      %vm1178 = vcmp.eq.s32.totalorder %v1112, 1
      %vm1179 = vcmp.eq.s32.totalorder %v1113, 1
      %vm1180 = vcmp.eq.s32.totalorder %v1114, 1
      %vm1181 = vcmp.eq.s32.totalorder %v1115, 1
      %vm1182 = vcmp.eq.s32.totalorder %v1116, 1
      %vm1183 = vcmp.eq.s32.totalorder %v1117, 1
      %vm1184 = vcmp.eq.s32.totalorder %v1118, 1
      %vm1185 = vcmp.eq.s32.totalorder %v1119, 1
      %vm1186 = vcmp.eq.s32.totalorder %v1120, 1
      %vm1187 = vcmp.eq.s32.totalorder %v1121, 1
      %vm1188 = vcmp.eq.s32.totalorder %v1122, 1
      %vm1189 = vcmp.eq.s32.totalorder %v1123, 1
      %vm1190 = vcmp.eq.s32.totalorder %v1124, 1
      %vm1191 = vcmp.eq.s32.totalorder %v1125, 1
      %vm1192 = vcmp.eq.s32.totalorder %v1126, 1
      %vm1193 = vcmp.eq.s32.totalorder %v1127, 1
      %vm1194 = vcmp.eq.s32.totalorder %v1128, 1
      %vm1195 = vcmp.eq.s32.totalorder %v1129, 1
      %vm1196 = vcmp.eq.s32.totalorder %v1130, 1
      %vm1197 = vcmp.eq.s32.totalorder %v1131, 1
      %vm1198 = vcmp.eq.s32.totalorder %v1132, 1
      %vm1199 = vcmp.eq.s32.totalorder %v1133, 1
      %vm1200 = vcmp.eq.s32.totalorder %v1134, 1
      %vm1201 = vcmp.eq.s32.totalorder %v1135, 1
      %vm1202 = vcmp.eq.s32.totalorder %v1136, 1
      %vm1203 = vcmp.eq.s32.totalorder %v1137, 1
      %vm1204 = vcmp.eq.s32.totalorder %v1138, 1
      %vm1205 = vcmp.eq.s32.totalorder %v1139, 1
      %vm1206 = vcmp.eq.s32.totalorder %v1140, 1
      %vm1207 = vcmp.eq.s32.totalorder %v1141, 1
      %vm1208 = vcmp.eq.s32.totalorder %v1142, 1
      %vm1209 = vcmp.eq.s32.totalorder %v1143, 1
      %vm1210 = vcmp.eq.s32.totalorder %v1144, 1
      %vm1211 = vcmp.eq.s32.totalorder %v1145, 1
      %vm1212 = vcmp.eq.s32.totalorder %v1146, 1
      %vm1213 = vcmp.eq.s32.totalorder %v1147, 1
      %vm1214 = vcmp.eq.s32.totalorder %v1148, 1
      %vm1215 = vcmp.eq.s32.totalorder %v1149, 1
      %vm1216 = vcmp.eq.s32.totalorder %v1150, 1
      %vm1217 = vcmp.eq.s32.totalorder %v1151, 1
      %vm1218 = vcmp.eq.s32.totalorder %v1152, 1
      %vm1219 = vcmp.eq.s32.totalorder %v1153, 1
      %vm1220 = vcmp.eq.s32.totalorder %v1154, 1
      %vm1221 = vcmp.eq.s32.totalorder %v1155, 1
      %v1222 = vsel %vm1156, %v1024, 0.0
      %v1223 = vsel %vm1157, %v1025, 0.0
      %v1224 = vsel %vm1158, %v1026, 0.0
      %v1225 = vsel %vm1159, %v1027, 0.0
      %v1226 = vsel %vm1160, %v1028, 0.0
      %v1227 = vsel %vm1161, %v1029, 0.0
      %v1228 = vsel %vm1162, %v1030, 0.0
      %v1229 = vsel %vm1163, %v1031, 0.0
      %v1230 = vsel %vm1164, %v1032, 0.0
      %v1231 = vsel %vm1165, %v1033, 0.0
      %v1232 = vsel %vm1166, %v1034, 0.0
      %v1233 = vsel %vm1167, %v1035, 0.0
      %v1234 = vsel %vm1168, %v1036, 0.0
      %v1235 = vsel %vm1169, %v1037, 0.0
      %v1236 = vsel %vm1170, %v1038, 0.0
      %v1237 = vsel %vm1171, %v1039, 0.0
      %v1238 = vsel %vm1172, %v1040, 0.0
      %v1239 = vsel %vm1173, %v1041, 0.0
      %v1240 = vsel %vm1174, %v1042, 0.0
      %v1241 = vsel %vm1175, %v1043, 0.0
      %v1242 = vsel %vm1176, %v1044, 0.0
      %v1243 = vsel %vm1177, %v1045, 0.0
      %v1244 = vsel %vm1178, %v1046, 0.0
      %v1245 = vsel %vm1179, %v1047, 0.0
      %v1246 = vsel %vm1180, %v1048, 0.0
      %v1247 = vsel %vm1181, %v1049, 0.0
      %v1248 = vsel %vm1182, %v1050, 0.0
      %v1249 = vsel %vm1183, %v1051, 0.0
      %v1250 = vsel %vm1184, %v1052, 0.0
      %v1251 = vsel %vm1185, %v1053, 0.0
      %v1252 = vsel %vm1186, %v1054, 0.0
      %v1253 = vsel %vm1187, %v1055, 0.0
      %v1254 = vsel %vm1188, %v1056, 0.0
      %v1255 = vsel %vm1189, %v1057, 0.0
      %v1256 = vsel %vm1190, %v1058, 0.0
      %v1257 = vsel %vm1191, %v1059, 0.0
      %v1258 = vsel %vm1192, %v1060, 0.0
      %v1259 = vsel %vm1193, %v1061, 0.0
      %v1260 = vsel %vm1194, %v1062, 0.0
      %v1261 = vsel %vm1195, %v1063, 0.0
      %v1262 = vsel %vm1196, %v1064, 0.0
      %v1263 = vsel %vm1197, %v1065, 0.0
      %v1264 = vsel %vm1198, %v1066, 0.0
      %v1265 = vsel %vm1199, %v1067, 0.0
      %v1266 = vsel %vm1200, %v1068, 0.0
      %v1267 = vsel %vm1201, %v1069, 0.0
      %v1268 = vsel %vm1202, %v1070, 0.0
      %v1269 = vsel %vm1203, %v1071, 0.0
      %v1270 = vsel %vm1204, %v1072, 0.0
      %v1271 = vsel %vm1205, %v1073, 0.0
      %v1272 = vsel %vm1206, %v1074, 0.0
      %v1273 = vsel %vm1207, %v1075, 0.0
      %v1274 = vsel %vm1208, %v1076, 0.0
      %v1275 = vsel %vm1209, %v1077, 0.0
      %v1276 = vsel %vm1210, %v1078, 0.0
      %v1277 = vsel %vm1211, %v1079, 0.0
      %v1278 = vsel %vm1212, %v1080, 0.0
      %v1279 = vsel %vm1213, %v1081, 0.0
      %v1280 = vsel %vm1214, %v1082, 0.0
      %v1281 = vsel %vm1215, %v1083, 0.0
      %v1282 = vsel %vm1216, %v1084, 0.0
      %v1283 = vsel %vm1217, %v1085, 0.0
      %v1284 = vsel %vm1218, %v1086, 0.0
      %v1285 = vsel %vm1219, %v1087, 0.0
      %v1286 = vsel %vm1220, %v1088, 0.0
      %v1287 = vsel %vm1221, %v1089, 0.0
      %v1288 = vmax.f32 %v1222, 0.0
      %v1289 = vmax.f32 %v1223, 0.0
      %v1290 = vmax.f32 %v1224, 0.0
      %v1291 = vmax.f32 %v1225, 0.0
      %v1292 = vmax.f32 %v1226, 0.0
      %v1293 = vmax.f32 %v1227, 0.0
      %v1294 = vmax.f32 %v1228, 0.0
      %v1295 = vmax.f32 %v1229, 0.0
      %v1296 = vmax.f32 %v1230, 0.0
      %v1297 = vmax.f32 %v1231, 0.0
      %v1298 = vmax.f32 %v1232, 0.0
      %v1299 = vmax.f32 %v1233, 0.0
      %v1300 = vmax.f32 %v1234, 0.0
      %v1301 = vmax.f32 %v1235, 0.0
      %v1302 = vmax.f32 %v1236, 0.0
      %v1303 = vmax.f32 %v1237, 0.0
      %v1304 = vmax.f32 %v1238, 0.0
      %v1305 = vmax.f32 %v1239, 0.0
      %v1306 = vmax.f32 %v1240, 0.0
      %v1307 = vmax.f32 %v1241, 0.0
      %v1308 = vmax.f32 %v1242, 0.0
      %v1309 = vmax.f32 %v1243, 0.0
      %v1310 = vmax.f32 %v1244, 0.0
      %v1311 = vmax.f32 %v1245, 0.0
      %v1312 = vmax.f32 %v1246, 0.0
      %v1313 = vmax.f32 %v1247, 0.0
      %v1314 = vmax.f32 %v1248, 0.0
      %v1315 = vmax.f32 %v1249, 0.0
      %v1316 = vmax.f32 %v1250, 0.0
      %v1317 = vmax.f32 %v1251, 0.0
      %v1318 = vmax.f32 %v1252, 0.0
      %v1319 = vmax.f32 %v1253, 0.0
      %v1320 = vmax.f32 %v1254, 0.0
      %v1321 = vmax.f32 %v1255, 0.0
      %v1322 = vmax.f32 %v1256, 0.0
      %v1323 = vmax.f32 %v1257, 0.0
      %v1324 = vmax.f32 %v1258, 0.0
      %v1325 = vmax.f32 %v1259, 0.0
      %v1326 = vmax.f32 %v1260, 0.0
      %v1327 = vmax.f32 %v1261, 0.0
      %v1328 = vmax.f32 %v1262, 0.0
      %v1329 = vmax.f32 %v1263, 0.0
      %v1330 = vmax.f32 %v1264, 0.0
      %v1331 = vmax.f32 %v1265, 0.0
      %v1332 = vmax.f32 %v1266, 0.0
      %v1333 = vmax.f32 %v1267, 0.0
      %v1334 = vmax.f32 %v1268, 0.0
      %v1335 = vmax.f32 %v1269, 0.0
      %v1336 = vmax.f32 %v1270, 0.0
      %v1337 = vmax.f32 %v1271, 0.0
      %v1338 = vmax.f32 %v1272, 0.0
      %v1339 = vmax.f32 %v1273, 0.0
      %v1340 = vmax.f32 %v1274, 0.0
      %v1341 = vmax.f32 %v1275, 0.0
      %v1342 = vmax.f32 %v1276, 0.0
      %v1343 = vmax.f32 %v1277, 0.0
      %v1344 = vmax.f32 %v1278, 0.0
      %v1345 = vmax.f32 %v1279, 0.0
      %v1346 = vmax.f32 %v1280, 0.0
      %v1347 = vmax.f32 %v1281, 0.0
      %v1348 = vmax.f32 %v1282, 0.0
      %v1349 = vmax.f32 %v1283, 0.0
      %v1350 = vmax.f32 %v1284, 0.0
      %v1351 = vmax.f32 %v1285, 0.0
      %v1352 = vmax.f32 %v1286, 0.0
      %v1353 = vmax.f32 %v1287, 0.0
      %v1354 = vmin.f32 %v1288, 4.0
      %v1355 = vmin.f32 %v1289, 4.0
      %v1356 = vmin.f32 %v1290, 4.0
      %v1357 = vmin.f32 %v1291, 4.0
      %v1358 = vmin.f32 %v1292, 4.0
      %v1359 = vmin.f32 %v1293, 4.0
      %v1360 = vmin.f32 %v1294, 4.0
      %v1361 = vmin.f32 %v1295, 4.0
      %v1362 = vmin.f32 %v1296, 4.0
      %v1363 = vmin.f32 %v1297, 4.0
      %v1364 = vmin.f32 %v1298, 4.0
      %v1365 = vmin.f32 %v1299, 4.0
      %v1366 = vmin.f32 %v1300, 4.0
      %v1367 = vmin.f32 %v1301, 4.0
      %v1368 = vmin.f32 %v1302, 4.0
      %v1369 = vmin.f32 %v1303, 4.0
      %v1370 = vmin.f32 %v1304, 4.0
      %v1371 = vmin.f32 %v1305, 4.0
      %v1372 = vmin.f32 %v1306, 4.0
      %v1373 = vmin.f32 %v1307, 4.0
      %v1374 = vmin.f32 %v1308, 4.0
      %v1375 = vmin.f32 %v1309, 4.0
      %v1376 = vmin.f32 %v1310, 4.0
      %v1377 = vmin.f32 %v1311, 4.0
      %v1378 = vmin.f32 %v1312, 4.0
      %v1379 = vmin.f32 %v1313, 4.0
      %v1380 = vmin.f32 %v1314, 4.0
      %v1381 = vmin.f32 %v1315, 4.0
      %v1382 = vmin.f32 %v1316, 4.0
      %v1383 = vmin.f32 %v1317, 4.0
      %v1384 = vmin.f32 %v1318, 4.0
      %v1385 = vmin.f32 %v1319, 4.0
      %v1386 = vmin.f32 %v1320, 4.0
      %v1387 = vmin.f32 %v1321, 4.0
      %v1388 = vmin.f32 %v1322, 4.0
      %v1389 = vmin.f32 %v1323, 4.0
      %v1390 = vmin.f32 %v1324, 4.0
      %v1391 = vmin.f32 %v1325, 4.0
      %v1392 = vmin.f32 %v1326, 4.0
      %v1393 = vmin.f32 %v1327, 4.0
      %v1394 = vmin.f32 %v1328, 4.0
      %v1395 = vmin.f32 %v1329, 4.0
      %v1396 = vmin.f32 %v1330, 4.0
      %v1397 = vmin.f32 %v1331, 4.0
      %v1398 = vmin.f32 %v1332, 4.0
      %v1399 = vmin.f32 %v1333, 4.0
      %v1400 = vmin.f32 %v1334, 4.0
      %v1401 = vmin.f32 %v1335, 4.0
      %v1402 = vmin.f32 %v1336, 4.0
      %v1403 = vmin.f32 %v1337, 4.0
      %v1404 = vmin.f32 %v1338, 4.0
      %v1405 = vmin.f32 %v1339, 4.0
      %v1406 = vmin.f32 %v1340, 4.0
      %v1407 = vmin.f32 %v1341, 4.0
      %v1408 = vmin.f32 %v1342, 4.0
      %v1409 = vmin.f32 %v1343, 4.0
      %v1410 = vmin.f32 %v1344, 4.0
      %v1411 = vmin.f32 %v1345, 4.0
      %v1412 = vmin.f32 %v1346, 4.0
      %v1413 = vmin.f32 %v1347, 4.0
      %v1414 = vmin.f32 %v1348, 4.0
      %v1415 = vmin.f32 %v1349, 4.0
      %v1416 = vmin.f32 %v1350, 4.0
      %v1417 = vmin.f32 %v1351, 4.0
      %v1418 = vmin.f32 %v1352, 4.0
      %v1419 = vmin.f32 %v1353, 4.0
      %v1420 = vround.ne.pseudo %v1354
      %v1421 = vround.ne.pseudo %v1355
      %v1422 = vround.ne.pseudo %v1356
      %v1423 = vround.ne.pseudo %v1357
      %v1424 = vround.ne.pseudo %v1358
      %v1425 = vround.ne.pseudo %v1359
      %v1426 = vround.ne.pseudo %v1360
      %v1427 = vround.ne.pseudo %v1361
      %v1428 = vround.ne.pseudo %v1362
      %v1429 = vround.ne.pseudo %v1363
      %v1430 = vround.ne.pseudo %v1364
      %v1431 = vround.ne.pseudo %v1365
      %v1432 = vround.ne.pseudo %v1366
      %v1433 = vround.ne.pseudo %v1367
      %v1434 = vround.ne.pseudo %v1368
      %v1435 = vround.ne.pseudo %v1369
      %v1436 = vround.ne.pseudo %v1370
      %v1437 = vround.ne.pseudo %v1371
      %v1438 = vround.ne.pseudo %v1372
      %v1439 = vround.ne.pseudo %v1373
      %v1440 = vround.ne.pseudo %v1374
      %v1441 = vround.ne.pseudo %v1375
      %v1442 = vround.ne.pseudo %v1376
      %v1443 = vround.ne.pseudo %v1377
      %v1444 = vround.ne.pseudo %v1378
      %v1445 = vround.ne.pseudo %v1379
      %v1446 = vround.ne.pseudo %v1380
      %v1447 = vround.ne.pseudo %v1381
      %v1448 = vround.ne.pseudo %v1382
      %v1449 = vround.ne.pseudo %v1383
      %v1450 = vround.ne.pseudo %v1384
      %v1451 = vround.ne.pseudo %v1385
      %v1452 = vround.ne.pseudo %v1386
      %v1453 = vround.ne.pseudo %v1387
      %v1454 = vround.ne.pseudo %v1388
      %v1455 = vround.ne.pseudo %v1389
      %v1456 = vround.ne.pseudo %v1390
      %v1457 = vround.ne.pseudo %v1391
      %v1458 = vround.ne.pseudo %v1392
      %v1459 = vround.ne.pseudo %v1393
      %v1460 = vround.ne.pseudo %v1394
      %v1461 = vround.ne.pseudo %v1395
      %v1462 = vround.ne.pseudo %v1396
      %v1463 = vround.ne.pseudo %v1397
      %v1464 = vround.ne.pseudo %v1398
      %v1465 = vround.ne.pseudo %v1399
      %v1466 = vround.ne.pseudo %v1400
      %v1467 = vround.ne.pseudo %v1401
      %v1468 = vround.ne.pseudo %v1402
      %v1469 = vround.ne.pseudo %v1403
      %v1470 = vround.ne.pseudo %v1404
      %v1471 = vround.ne.pseudo %v1405
      %v1472 = vround.ne.pseudo %v1406
      %v1473 = vround.ne.pseudo %v1407
      %v1474 = vround.ne.pseudo %v1408
      %v1475 = vround.ne.pseudo %v1409
      %v1476 = vround.ne.pseudo %v1410
      %v1477 = vround.ne.pseudo %v1411
      %v1478 = vround.ne.pseudo %v1412
      %v1479 = vround.ne.pseudo %v1413
      %v1480 = vround.ne.pseudo %v1414
      %v1481 = vround.ne.pseudo %v1415
      %v1482 = vround.ne.pseudo %v1416
      %v1483 = vround.ne.pseudo %v1417
      %v1484 = vround.ne.pseudo %v1418
      %v1485 = vround.ne.pseudo %v1419
      %v1486 = vmul.f32 %v1420, 0.25
      %v1487 = vmul.f32 %v1421, 0.25
      %v1488 = vmul.f32 %v1422, 0.25
      %v1489 = vmul.f32 %v1423, 0.25
      %v1490 = vmul.f32 %v1424, 0.25
      %v1491 = vmul.f32 %v1425, 0.25
      %v1492 = vmul.f32 %v1426, 0.25
      %v1493 = vmul.f32 %v1427, 0.25
      %v1494 = vmul.f32 %v1428, 0.25
      %v1495 = vmul.f32 %v1429, 0.25
      %v1496 = vmul.f32 %v1430, 0.25
      %v1497 = vmul.f32 %v1431, 0.25
      %v1498 = vmul.f32 %v1432, 0.25
      %v1499 = vmul.f32 %v1433, 0.25
      %v1500 = vmul.f32 %v1434, 0.25
      %v1501 = vmul.f32 %v1435, 0.25
      %v1502 = vmul.f32 %v1436, 0.25
      %v1503 = vmul.f32 %v1437, 0.25
      %v1504 = vmul.f32 %v1438, 0.25
      %v1505 = vmul.f32 %v1439, 0.25
      %v1506 = vmul.f32 %v1440, 0.25
      %v1507 = vmul.f32 %v1441, 0.25
      %v1508 = vmul.f32 %v1442, 0.25
      %v1509 = vmul.f32 %v1443, 0.25
      %v1510 = vmul.f32 %v1444, 0.25
      %v1511 = vmul.f32 %v1445, 0.25
      %v1512 = vmul.f32 %v1446, 0.25
      %v1513 = vmul.f32 %v1447, 0.25
      %v1514 = vmul.f32 %v1448, 0.25
      %v1515 = vmul.f32 %v1449, 0.25
      %v1516 = vmul.f32 %v1450, 0.25
      %v1517 = vmul.f32 %v1451, 0.25
      %v1518 = vmul.f32 %v1452, 0.25
      %v1519 = vmul.f32 %v1453, 0.25
      %v1520 = vmul.f32 %v1454, 0.25
      %v1521 = vmul.f32 %v1455, 0.25
      %v1522 = vmul.f32 %v1456, 0.25
      %v1523 = vmul.f32 %v1457, 0.25
      %v1524 = vmul.f32 %v1458, 0.25
      %v1525 = vmul.f32 %v1459, 0.25
      %v1526 = vmul.f32 %v1460, 0.25
      %v1527 = vmul.f32 %v1461, 0.25
      %v1528 = vmul.f32 %v1462, 0.25
      %v1529 = vmul.f32 %v1463, 0.25
      %v1530 = vmul.f32 %v1464, 0.25
      %v1531 = vmul.f32 %v1465, 0.25
      %v1532 = vmul.f32 %v1466, 0.25
      %v1533 = vmul.f32 %v1467, 0.25
      %v1534 = vmul.f32 %v1468, 0.25
      %v1535 = vmul.f32 %v1469, 0.25
      %v1536 = vmul.f32 %v1470, 0.25
      %v1537 = vmul.f32 %v1471, 0.25
      %v1538 = vmul.f32 %v1472, 0.25
      %v1539 = vmul.f32 %v1473, 0.25
      %v1540 = vmul.f32 %v1474, 0.25
      %v1541 = vmul.f32 %v1475, 0.25
      %v1542 = vmul.f32 %v1476, 0.25
      %v1543 = vmul.f32 %v1477, 0.25
      %v1544 = vmul.f32 %v1478, 0.25
      %v1545 = vmul.f32 %v1479, 0.25
      %v1546 = vmul.f32 %v1480, 0.25
      %v1547 = vmul.f32 %v1481, 0.25
      %v1548 = vmul.f32 %v1482, 0.25
      %v1549 = vmul.f32 %v1483, 0.25
      %v1550 = vmul.f32 %v1484, 0.25
      %v1551 = vmul.f32 %v1485, 0.25
      %v1552 = vld [vmem:[%s3] sm:$0xff]
      %v1553 = vld [vmem:[%s3 + $0x8] sm:$0xff]
      %v1554 = vld [vmem:[%s3 + $0x10] sm:$0xff]
      %v1555 = vld [vmem:[%s3 + $0x18] sm:$0xff]
      %v1556 = vld [vmem:[%s3 + $0x20] sm:$0xff]
      %v1557 = vld [vmem:[%s3 + $0x28] sm:$0xff]
      %v1558 = vld [vmem:[%s3 + $0x30] sm:$0x1]
      %v1559 = vperm.slane %v1552, 0
      %v1560 = vmul.f32 %v1486, %v1559
      %v1561 = vmul.f32 %v1487, %v1559
      %v1562 = vmul.f32 %v1488, %v1559
      %v1563 = vmul.f32 %v1489, %v1559
      %v1564 = vmul.f32 %v1490, %v1559
      %v1565 = vmul.f32 %v1491, %v1559
      %v1566 = vmul.f32 %v1492, %v1559
      %v1567 = vmul.f32 %v1493, %v1559
      %v1568 = vmul.f32 %v1494, %v1559
      %v1569 = vmul.f32 %v1495, %v1559
      %v1570 = vmul.f32 %v1496, %v1559
      %v1571 = vmul.f32 %v1497, %v1559
      %v1572 = vmul.f32 %v1498, %v1559
      %v1573 = vmul.f32 %v1499, %v1559
      %v1574 = vmul.f32 %v1500, %v1559
      %v1575 = vmul.f32 %v1501, %v1559
      %v1576 = vmul.f32 %v1502, %v1559
      %v1577 = vmul.f32 %v1503, %v1559
      %v1578 = vmul.f32 %v1504, %v1559
      %v1579 = vmul.f32 %v1505, %v1559
      %v1580 = vmul.f32 %v1506, %v1559
      %v1581 = vmul.f32 %v1507, %v1559
      %v1582 = vmul.f32 %v1508, %v1559
      %v1583 = vmul.f32 %v1509, %v1559
      %v1584 = vmul.f32 %v1510, %v1559
      %v1585 = vmul.f32 %v1511, %v1559
      %v1586 = vmul.f32 %v1512, %v1559
      %v1587 = vmul.f32 %v1513, %v1559
      %v1588 = vmul.f32 %v1514, %v1559
      %v1589 = vmul.f32 %v1515, %v1559
      %v1590 = vmul.f32 %v1516, %v1559
      %v1591 = vmul.f32 %v1517, %v1559
      %v1592 = vmul.f32 %v1518, %v1559
      %v1593 = vmul.f32 %v1519, %v1559
      %v1594 = vmul.f32 %v1520, %v1559
      %v1595 = vmul.f32 %v1521, %v1559
      %v1596 = vmul.f32 %v1522, %v1559
      %v1597 = vmul.f32 %v1523, %v1559
      %v1598 = vmul.f32 %v1524, %v1559
      %v1599 = vmul.f32 %v1525, %v1559
      %v1600 = vmul.f32 %v1526, %v1559
      %v1601 = vmul.f32 %v1527, %v1559
      %v1602 = vmul.f32 %v1528, %v1559
      %v1603 = vmul.f32 %v1529, %v1559
      %v1604 = vmul.f32 %v1530, %v1559
      %v1605 = vmul.f32 %v1531, %v1559
      %v1606 = vmul.f32 %v1532, %v1559
      %v1607 = vmul.f32 %v1533, %v1559
      %v1608 = vadd.f32 %v1560, 0.0
      %v1609 = vadd.f32 %v1561, 0.0
      %v1610 = vadd.f32 %v1562, 0.0
      %v1611 = vadd.f32 %v1563, 0.0
      %v1612 = vadd.f32 %v1564, 0.0
      %v1613 = vadd.f32 %v1565, 0.0
      %v1614 = vadd.f32 %v1566, 0.0
      %v1615 = vadd.f32 %v1567, 0.0
      %v1616 = vadd.f32 %v1568, 0.0
      %v1617 = vadd.f32 %v1569, 0.0
      %v1618 = vadd.f32 %v1570, 0.0
      %v1619 = vadd.f32 %v1571, 0.0
      %v1620 = vadd.f32 %v1572, 0.0
      %v1621 = vadd.f32 %v1573, 0.0
      %v1622 = vadd.f32 %v1574, 0.0
      %v1623 = vadd.f32 %v1575, 0.0
      %v1624 = vadd.f32 %v1576, 0.0
      %v1625 = vadd.f32 %v1577, 0.0
      %v1626 = vadd.f32 %v1578, 0.0
      %v1627 = vadd.f32 %v1579, 0.0
      %v1628 = vadd.f32 %v1580, 0.0
      %v1629 = vadd.f32 %v1581, 0.0
      %v1630 = vadd.f32 %v1582, 0.0
      %v1631 = vadd.f32 %v1583, 0.0
      %v1632 = vadd.f32 %v1584, 0.0
      %v1633 = vadd.f32 %v1585, 0.0
      %v1634 = vadd.f32 %v1586, 0.0
      %v1635 = vadd.f32 %v1587, 0.0
      %v1636 = vadd.f32 %v1588, 0.0
      %v1637 = vadd.f32 %v1589, 0.0
      %v1638 = vadd.f32 %v1590, 0.0
      %v1639 = vadd.f32 %v1591, 0.0
      %v1640 = vadd.f32 %v1592, 0.0
      %v1641 = vadd.f32 %v1593, 0.0
      %v1642 = vadd.f32 %v1594, 0.0
      %v1643 = vadd.f32 %v1595, 0.0
      %v1644 = vadd.f32 %v1596, 0.0
      %v1645 = vadd.f32 %v1597, 0.0
      %v1646 = vadd.f32 %v1598, 0.0
      %v1647 = vadd.f32 %v1599, 0.0
      %v1648 = vadd.f32 %v1600, 0.0
      %v1649 = vadd.f32 %v1601, 0.0
      %v1650 = vadd.f32 %v1602, 0.0
      %v1651 = vadd.f32 %v1603, 0.0
      %v1652 = vadd.f32 %v1604, 0.0
      %v1653 = vadd.f32 %v1605, 0.0
      %v1654 = vadd.f32 %v1606, 0.0
      %v1655 = vadd.f32 %v1607, 0.0
      %v1656 = vperm.slane %v1552, 7
      %v1657 = vmul.f32 %v1489, %v1656
      %v1658 = vmul.f32 %v1490, %v1656
      %v1659 = vmul.f32 %v1491, %v1656
      %v1660 = vmul.f32 %v1492, %v1656
      %v1661 = vmul.f32 %v1493, %v1656
      %v1662 = vmul.f32 %v1494, %v1656
      %v1663 = vmul.f32 %v1495, %v1656
      %v1664 = vmul.f32 %v1496, %v1656
      %v1665 = vmul.f32 %v1497, %v1656
      %v1666 = vmul.f32 %v1498, %v1656
      %v1667 = vmul.f32 %v1499, %v1656
      %v1668 = vmul.f32 %v1500, %v1656
      %v1669 = vmul.f32 %v1501, %v1656
      %v1670 = vmul.f32 %v1502, %v1656
      %v1671 = vmul.f32 %v1503, %v1656
      %v1672 = vmul.f32 %v1504, %v1656
      %v1673 = vmul.f32 %v1505, %v1656
      %v1674 = vmul.f32 %v1506, %v1656
      %v1675 = vmul.f32 %v1507, %v1656
      %v1676 = vmul.f32 %v1508, %v1656
      %v1677 = vmul.f32 %v1509, %v1656
      %v1678 = vmul.f32 %v1510, %v1656
      %v1679 = vmul.f32 %v1511, %v1656
      %v1680 = vmul.f32 %v1512, %v1656
      %v1681 = vmul.f32 %v1513, %v1656
      %v1682 = vmul.f32 %v1514, %v1656
      %v1683 = vmul.f32 %v1515, %v1656
      %v1684 = vmul.f32 %v1516, %v1656
      %v1685 = vmul.f32 %v1517, %v1656
      %v1686 = vmul.f32 %v1518, %v1656
      %v1687 = vmul.f32 %v1519, %v1656
      %v1688 = vmul.f32 %v1520, %v1656
      %v1689 = vmul.f32 %v1521, %v1656
      %v1690 = vmul.f32 %v1522, %v1656
      %v1691 = vmul.f32 %v1523, %v1656
      %v1692 = vmul.f32 %v1524, %v1656
      %v1693 = vmul.f32 %v1525, %v1656
      %v1694 = vmul.f32 %v1526, %v1656
      %v1695 = vmul.f32 %v1527, %v1656
      %v1696 = vmul.f32 %v1528, %v1656
      %v1697 = vmul.f32 %v1529, %v1656
      %v1698 = vmul.f32 %v1530, %v1656
      %v1699 = vmul.f32 %v1531, %v1656
      %v1700 = vmul.f32 %v1532, %v1656
      %v1701 = vmul.f32 %v1533, %v1656
      %v1702 = vmul.f32 %v1534, %v1656
      %v1703 = vmul.f32 %v1535, %v1656
      %v1704 = vmul.f32 %v1536, %v1656
      %v1705 = vadd.f32 %v1608, %v1657
      %v1706 = vadd.f32 %v1609, %v1658
      %v1707 = vadd.f32 %v1610, %v1659
      %v1708 = vadd.f32 %v1611, %v1660
      %v1709 = vadd.f32 %v1612, %v1661
      %v1710 = vadd.f32 %v1613, %v1662
      %v1711 = vadd.f32 %v1614, %v1663
      %v1712 = vadd.f32 %v1615, %v1664
      %v1713 = vadd.f32 %v1616, %v1665
      %v1714 = vadd.f32 %v1617, %v1666
      %v1715 = vadd.f32 %v1618, %v1667
      %v1716 = vadd.f32 %v1619, %v1668
      %v1717 = vadd.f32 %v1620, %v1669
      %v1718 = vadd.f32 %v1621, %v1670
      %v1719 = vadd.f32 %v1622, %v1671
      %v1720 = vadd.f32 %v1623, %v1672
      %v1721 = vadd.f32 %v1624, %v1673
      %v1722 = vadd.f32 %v1625, %v1674
      %v1723 = vadd.f32 %v1626, %v1675
      %v1724 = vadd.f32 %v1627, %v1676
      %v1725 = vadd.f32 %v1628, %v1677
      %v1726 = vadd.f32 %v1629, %v1678
      %v1727 = vadd.f32 %v1630, %v1679
      %v1728 = vadd.f32 %v1631, %v1680
      %v1729 = vadd.f32 %v1632, %v1681
      %v1730 = vadd.f32 %v1633, %v1682
      %v1731 = vadd.f32 %v1634, %v1683
      %v1732 = vadd.f32 %v1635, %v1684
      %v1733 = vadd.f32 %v1636, %v1685
      %v1734 = vadd.f32 %v1637, %v1686
      %v1735 = vadd.f32 %v1638, %v1687
      %v1736 = vadd.f32 %v1639, %v1688
      %v1737 = vadd.f32 %v1640, %v1689
      %v1738 = vadd.f32 %v1641, %v1690
      %v1739 = vadd.f32 %v1642, %v1691
      %v1740 = vadd.f32 %v1643, %v1692
      %v1741 = vadd.f32 %v1644, %v1693
      %v1742 = vadd.f32 %v1645, %v1694
      %v1743 = vadd.f32 %v1646, %v1695
      %v1744 = vadd.f32 %v1647, %v1696
      %v1745 = vadd.f32 %v1648, %v1697
      %v1746 = vadd.f32 %v1649, %v1698
      %v1747 = vadd.f32 %v1650, %v1699
      %v1748 = vadd.f32 %v1651, %v1700
      %v1749 = vadd.f32 %v1652, %v1701
      %v1750 = vadd.f32 %v1653, %v1702
      %v1751 = vadd.f32 %v1654, %v1703
      %v1752 = vadd.f32 %v1655, %v1704
      %v1753 = vperm.slane %v1553, 6
      %v1754 = vmul.f32 %v1492, %v1753
      %v1755 = vmul.f32 %v1493, %v1753
      %v1756 = vmul.f32 %v1494, %v1753
      %v1757 = vmul.f32 %v1495, %v1753
      %v1758 = vmul.f32 %v1496, %v1753
      %v1759 = vmul.f32 %v1497, %v1753
      %v1760 = vmul.f32 %v1498, %v1753
      %v1761 = vmul.f32 %v1499, %v1753
      %v1762 = vmul.f32 %v1500, %v1753
      %v1763 = vmul.f32 %v1501, %v1753
      %v1764 = vmul.f32 %v1502, %v1753
      %v1765 = vmul.f32 %v1503, %v1753
      %v1766 = vmul.f32 %v1504, %v1753
      %v1767 = vmul.f32 %v1505, %v1753
      %v1768 = vmul.f32 %v1506, %v1753
      %v1769 = vmul.f32 %v1507, %v1753
      %v1770 = vmul.f32 %v1508, %v1753
      %v1771 = vmul.f32 %v1509, %v1753
      %v1772 = vmul.f32 %v1510, %v1753
      %v1773 = vmul.f32 %v1511, %v1753
      %v1774 = vmul.f32 %v1512, %v1753
      %v1775 = vmul.f32 %v1513, %v1753
      %v1776 = vmul.f32 %v1514, %v1753
      %v1777 = vmul.f32 %v1515, %v1753
      %v1778 = vmul.f32 %v1516, %v1753
      %v1779 = vmul.f32 %v1517, %v1753
      %v1780 = vmul.f32 %v1518, %v1753
      %v1781 = vmul.f32 %v1519, %v1753
      %v1782 = vmul.f32 %v1520, %v1753
      %v1783 = vmul.f32 %v1521, %v1753
      %v1784 = vmul.f32 %v1522, %v1753
      %v1785 = vmul.f32 %v1523, %v1753
      %v1786 = vmul.f32 %v1524, %v1753
      %v1787 = vmul.f32 %v1525, %v1753
      %v1788 = vmul.f32 %v1526, %v1753
      %v1789 = vmul.f32 %v1527, %v1753
      %v1790 = vmul.f32 %v1528, %v1753
      %v1791 = vmul.f32 %v1529, %v1753
      %v1792 = vmul.f32 %v1530, %v1753
      %v1793 = vmul.f32 %v1531, %v1753
      %v1794 = vmul.f32 %v1532, %v1753
      %v1795 = vmul.f32 %v1533, %v1753
      %v1796 = vmul.f32 %v1534, %v1753
      %v1797 = vmul.f32 %v1535, %v1753
      %v1798 = vmul.f32 %v1536, %v1753
      %v1799 = vmul.f32 %v1537, %v1753
      %v1800 = vmul.f32 %v1538, %v1753
      %v1801 = vmul.f32 %v1539, %v1753
      %v1802 = vadd.f32 %v1705, %v1754
      %v1803 = vadd.f32 %v1706, %v1755
      %v1804 = vadd.f32 %v1707, %v1756
      %v1805 = vadd.f32 %v1708, %v1757
      %v1806 = vadd.f32 %v1709, %v1758
      %v1807 = vadd.f32 %v1710, %v1759
      %v1808 = vadd.f32 %v1711, %v1760
      %v1809 = vadd.f32 %v1712, %v1761
      %v1810 = vadd.f32 %v1713, %v1762
      %v1811 = vadd.f32 %v1714, %v1763
      %v1812 = vadd.f32 %v1715, %v1764
      %v1813 = vadd.f32 %v1716, %v1765
      %v1814 = vadd.f32 %v1717, %v1766
      %v1815 = vadd.f32 %v1718, %v1767
      %v1816 = vadd.f32 %v1719, %v1768
      %v1817 = vadd.f32 %v1720, %v1769
      %v1818 = vadd.f32 %v1721, %v1770
      %v1819 = vadd.f32 %v1722, %v1771
      %v1820 = vadd.f32 %v1723, %v1772
      %v1821 = vadd.f32 %v1724, %v1773
      %v1822 = vadd.f32 %v1725, %v1774
      %v1823 = vadd.f32 %v1726, %v1775
      %v1824 = vadd.f32 %v1727, %v1776
      %v1825 = vadd.f32 %v1728, %v1777
      %v1826 = vadd.f32 %v1729, %v1778
      %v1827 = vadd.f32 %v1730, %v1779
      %v1828 = vadd.f32 %v1731, %v1780
      %v1829 = vadd.f32 %v1732, %v1781
      %v1830 = vadd.f32 %v1733, %v1782
      %v1831 = vadd.f32 %v1734, %v1783
      %v1832 = vadd.f32 %v1735, %v1784
      %v1833 = vadd.f32 %v1736, %v1785
      %v1834 = vadd.f32 %v1737, %v1786
      %v1835 = vadd.f32 %v1738, %v1787
      %v1836 = vadd.f32 %v1739, %v1788
      %v1837 = vadd.f32 %v1740, %v1789
      %v1838 = vadd.f32 %v1741, %v1790
      %v1839 = vadd.f32 %v1742, %v1791
      %v1840 = vadd.f32 %v1743, %v1792
      %v1841 = vadd.f32 %v1744, %v1793
      %v1842 = vadd.f32 %v1745, %v1794
      %v1843 = vadd.f32 %v1746, %v1795
      %v1844 = vadd.f32 %v1747, %v1796
      %v1845 = vadd.f32 %v1748, %v1797
      %v1846 = vadd.f32 %v1749, %v1798
      %v1847 = vadd.f32 %v1750, %v1799
      %v1848 = vadd.f32 %v1751, %v1800
      %v1849 = vadd.f32 %v1752, %v1801
      %v1850 = vperm.slane %v1554, 5
      %v1851 = vmul.f32 %v1495, %v1850
      %v1852 = vmul.f32 %v1496, %v1850
      %v1853 = vmul.f32 %v1497, %v1850
      %v1854 = vmul.f32 %v1498, %v1850
      %v1855 = vmul.f32 %v1499, %v1850
      %v1856 = vmul.f32 %v1500, %v1850
      %v1857 = vmul.f32 %v1501, %v1850
      %v1858 = vmul.f32 %v1502, %v1850
      %v1859 = vmul.f32 %v1503, %v1850
      %v1860 = vmul.f32 %v1504, %v1850
      %v1861 = vmul.f32 %v1505, %v1850
      %v1862 = vmul.f32 %v1506, %v1850
      %v1863 = vmul.f32 %v1507, %v1850
      %v1864 = vmul.f32 %v1508, %v1850
      %v1865 = vmul.f32 %v1509, %v1850
      %v1866 = vmul.f32 %v1510, %v1850
      %v1867 = vmul.f32 %v1511, %v1850
      %v1868 = vmul.f32 %v1512, %v1850
      %v1869 = vmul.f32 %v1513, %v1850
      %v1870 = vmul.f32 %v1514, %v1850
      %v1871 = vmul.f32 %v1515, %v1850
      %v1872 = vmul.f32 %v1516, %v1850
      %v1873 = vmul.f32 %v1517, %v1850
      %v1874 = vmul.f32 %v1518, %v1850
      %v1875 = vmul.f32 %v1519, %v1850
      %v1876 = vmul.f32 %v1520, %v1850
      %v1877 = vmul.f32 %v1521, %v1850
      %v1878 = vmul.f32 %v1522, %v1850
      %v1879 = vmul.f32 %v1523, %v1850
      %v1880 = vmul.f32 %v1524, %v1850
      %v1881 = vmul.f32 %v1525, %v1850
      %v1882 = vmul.f32 %v1526, %v1850
      %v1883 = vmul.f32 %v1527, %v1850
      %v1884 = vmul.f32 %v1528, %v1850
      %v1885 = vmul.f32 %v1529, %v1850
      %v1886 = vmul.f32 %v1530, %v1850
      %v1887 = vmul.f32 %v1531, %v1850
      %v1888 = vmul.f32 %v1532, %v1850
      %v1889 = vmul.f32 %v1533, %v1850
      %v1890 = vmul.f32 %v1534, %v1850
      %v1891 = vmul.f32 %v1535, %v1850
      %v1892 = vmul.f32 %v1536, %v1850
      %v1893 = vmul.f32 %v1537, %v1850
      %v1894 = vmul.f32 %v1538, %v1850
      %v1895 = vmul.f32 %v1539, %v1850
      %v1896 = vmul.f32 %v1540, %v1850
      %v1897 = vmul.f32 %v1541, %v1850
      %v1898 = vmul.f32 %v1542, %v1850
      %v1899 = vadd.f32 %v1802, %v1851
      %v1900 = vadd.f32 %v1803, %v1852
      %v1901 = vadd.f32 %v1804, %v1853
      %v1902 = vadd.f32 %v1805, %v1854
      %v1903 = vadd.f32 %v1806, %v1855
      %v1904 = vadd.f32 %v1807, %v1856
      %v1905 = vadd.f32 %v1808, %v1857
      %v1906 = vadd.f32 %v1809, %v1858
      %v1907 = vadd.f32 %v1810, %v1859
      %v1908 = vadd.f32 %v1811, %v1860
      %v1909 = vadd.f32 %v1812, %v1861
      %v1910 = vadd.f32 %v1813, %v1862
      %v1911 = vadd.f32 %v1814, %v1863
      %v1912 = vadd.f32 %v1815, %v1864
      %v1913 = vadd.f32 %v1816, %v1865
      %v1914 = vadd.f32 %v1817, %v1866
      %v1915 = vadd.f32 %v1818, %v1867
      %v1916 = vadd.f32 %v1819, %v1868
      %v1917 = vadd.f32 %v1820, %v1869
      %v1918 = vadd.f32 %v1821, %v1870
      %v1919 = vadd.f32 %v1822, %v1871
      %v1920 = vadd.f32 %v1823, %v1872
      %v1921 = vadd.f32 %v1824, %v1873
      %v1922 = vadd.f32 %v1825, %v1874
      %v1923 = vadd.f32 %v1826, %v1875
      %v1924 = vadd.f32 %v1827, %v1876
      %v1925 = vadd.f32 %v1828, %v1877
      %v1926 = vadd.f32 %v1829, %v1878
      %v1927 = vadd.f32 %v1830, %v1879
      %v1928 = vadd.f32 %v1831, %v1880
      %v1929 = vadd.f32 %v1832, %v1881
      %v1930 = vadd.f32 %v1833, %v1882
      %v1931 = vadd.f32 %v1834, %v1883
      %v1932 = vadd.f32 %v1835, %v1884
      %v1933 = vadd.f32 %v1836, %v1885
      %v1934 = vadd.f32 %v1837, %v1886
      %v1935 = vadd.f32 %v1838, %v1887
      %v1936 = vadd.f32 %v1839, %v1888
      %v1937 = vadd.f32 %v1840, %v1889
      %v1938 = vadd.f32 %v1841, %v1890
      %v1939 = vadd.f32 %v1842, %v1891
      %v1940 = vadd.f32 %v1843, %v1892
      %v1941 = vadd.f32 %v1844, %v1893
      %v1942 = vadd.f32 %v1845, %v1894
      %v1943 = vadd.f32 %v1846, %v1895
      %v1944 = vadd.f32 %v1847, %v1896
      %v1945 = vadd.f32 %v1848, %v1897
      %v1946 = vadd.f32 %v1849, %v1898
      %v1947 = vperm.slane %v1555, 4
      %v1948 = vmul.f32 %v1498, %v1947
      %v1949 = vmul.f32 %v1499, %v1947
      %v1950 = vmul.f32 %v1500, %v1947
      %v1951 = vmul.f32 %v1501, %v1947
      %v1952 = vmul.f32 %v1502, %v1947
      %v1953 = vmul.f32 %v1503, %v1947
      %v1954 = vmul.f32 %v1504, %v1947
      %v1955 = vmul.f32 %v1505, %v1947
      %v1956 = vmul.f32 %v1506, %v1947
      %v1957 = vmul.f32 %v1507, %v1947
      %v1958 = vmul.f32 %v1508, %v1947
      %v1959 = vmul.f32 %v1509, %v1947
      %v1960 = vmul.f32 %v1510, %v1947
      %v1961 = vmul.f32 %v1511, %v1947
      %v1962 = vmul.f32 %v1512, %v1947
      %v1963 = vmul.f32 %v1513, %v1947
      %v1964 = vmul.f32 %v1514, %v1947
      %v1965 = vmul.f32 %v1515, %v1947
      %v1966 = vmul.f32 %v1516, %v1947
      %v1967 = vmul.f32 %v1517, %v1947
      %v1968 = vmul.f32 %v1518, %v1947
      %v1969 = vmul.f32 %v1519, %v1947
      %v1970 = vmul.f32 %v1520, %v1947
      %v1971 = vmul.f32 %v1521, %v1947
      %v1972 = vmul.f32 %v1522, %v1947
      %v1973 = vmul.f32 %v1523, %v1947
      %v1974 = vmul.f32 %v1524, %v1947
      %v1975 = vmul.f32 %v1525, %v1947
      %v1976 = vmul.f32 %v1526, %v1947
      %v1977 = vmul.f32 %v1527, %v1947
      %v1978 = vmul.f32 %v1528, %v1947
      %v1979 = vmul.f32 %v1529, %v1947
      %v1980 = vmul.f32 %v1530, %v1947
      %v1981 = vmul.f32 %v1531, %v1947
      %v1982 = vmul.f32 %v1532, %v1947
      %v1983 = vmul.f32 %v1533, %v1947
      %v1984 = vmul.f32 %v1534, %v1947
      %v1985 = vmul.f32 %v1535, %v1947
      %v1986 = vmul.f32 %v1536, %v1947
      %v1987 = vmul.f32 %v1537, %v1947
      %v1988 = vmul.f32 %v1538, %v1947
      %v1989 = vmul.f32 %v1539, %v1947
      %v1990 = vmul.f32 %v1540, %v1947
      %v1991 = vmul.f32 %v1541, %v1947
      %v1992 = vmul.f32 %v1542, %v1947
      %v1993 = vmul.f32 %v1543, %v1947
      %v1994 = vmul.f32 %v1544, %v1947
      %v1995 = vmul.f32 %v1545, %v1947
      %v1996 = vadd.f32 %v1899, %v1948
      %v1997 = vadd.f32 %v1900, %v1949
      %v1998 = vadd.f32 %v1901, %v1950
      %v1999 = vadd.f32 %v1902, %v1951
      %v2000 = vadd.f32 %v1903, %v1952
      %v2001 = vadd.f32 %v1904, %v1953
      %v2002 = vadd.f32 %v1905, %v1954
      %v2003 = vadd.f32 %v1906, %v1955
      %v2004 = vadd.f32 %v1907, %v1956
      %v2005 = vadd.f32 %v1908, %v1957
      %v2006 = vadd.f32 %v1909, %v1958
      %v2007 = vadd.f32 %v1910, %v1959
      %v2008 = vadd.f32 %v1911, %v1960
      %v2009 = vadd.f32 %v1912, %v1961
      %v2010 = vadd.f32 %v1913, %v1962
      %v2011 = vadd.f32 %v1914, %v1963
      %v2012 = vadd.f32 %v1915, %v1964
      %v2013 = vadd.f32 %v1916, %v1965
      %v2014 = vadd.f32 %v1917, %v1966
      %v2015 = vadd.f32 %v1918, %v1967
      %v2016 = vadd.f32 %v1919, %v1968
      %v2017 = vadd.f32 %v1920, %v1969
      %v2018 = vadd.f32 %v1921, %v1970
      %v2019 = vadd.f32 %v1922, %v1971
      %v2020 = vadd.f32 %v1923, %v1972
      %v2021 = vadd.f32 %v1924, %v1973
      %v2022 = vadd.f32 %v1925, %v1974
      %v2023 = vadd.f32 %v1926, %v1975
      %v2024 = vadd.f32 %v1927, %v1976
      %v2025 = vadd.f32 %v1928, %v1977
      %v2026 = vadd.f32 %v1929, %v1978
      %v2027 = vadd.f32 %v1930, %v1979
      %v2028 = vadd.f32 %v1931, %v1980
      %v2029 = vadd.f32 %v1932, %v1981
      %v2030 = vadd.f32 %v1933, %v1982
      %v2031 = vadd.f32 %v1934, %v1983
      %v2032 = vadd.f32 %v1935, %v1984
      %v2033 = vadd.f32 %v1936, %v1985
      %v2034 = vadd.f32 %v1937, %v1986
      %v2035 = vadd.f32 %v1938, %v1987
      %v2036 = vadd.f32 %v1939, %v1988
      %v2037 = vadd.f32 %v1940, %v1989
      %v2038 = vadd.f32 %v1941, %v1990
      %v2039 = vadd.f32 %v1942, %v1991
      %v2040 = vadd.f32 %v1943, %v1992
      %v2041 = vadd.f32 %v1944, %v1993
      %v2042 = vadd.f32 %v1945, %v1994
      %v2043 = vadd.f32 %v1946, %v1995
      %v2044 = vperm.slane %v1556, 3
      %v2045 = vmul.f32 %v1501, %v2044
      %v2046 = vmul.f32 %v1502, %v2044
      %v2047 = vmul.f32 %v1503, %v2044
      %v2048 = vmul.f32 %v1504, %v2044
      %v2049 = vmul.f32 %v1505, %v2044
      %v2050 = vmul.f32 %v1506, %v2044
      %v2051 = vmul.f32 %v1507, %v2044
      %v2052 = vmul.f32 %v1508, %v2044
      %v2053 = vmul.f32 %v1509, %v2044
      %v2054 = vmul.f32 %v1510, %v2044
      %v2055 = vmul.f32 %v1511, %v2044
      %v2056 = vmul.f32 %v1512, %v2044
      %v2057 = vmul.f32 %v1513, %v2044
      %v2058 = vmul.f32 %v1514, %v2044
      %v2059 = vmul.f32 %v1515, %v2044
      %v2060 = vmul.f32 %v1516, %v2044
      %v2061 = vmul.f32 %v1517, %v2044
      %v2062 = vmul.f32 %v1518, %v2044
      %v2063 = vmul.f32 %v1519, %v2044
      %v2064 = vmul.f32 %v1520, %v2044
      %v2065 = vmul.f32 %v1521, %v2044
      %v2066 = vmul.f32 %v1522, %v2044
      %v2067 = vmul.f32 %v1523, %v2044
      %v2068 = vmul.f32 %v1524, %v2044
      %v2069 = vmul.f32 %v1525, %v2044
      %v2070 = vmul.f32 %v1526, %v2044
      %v2071 = vmul.f32 %v1527, %v2044
      %v2072 = vmul.f32 %v1528, %v2044
      %v2073 = vmul.f32 %v1529, %v2044
      %v2074 = vmul.f32 %v1530, %v2044
      %v2075 = vmul.f32 %v1531, %v2044
      %v2076 = vmul.f32 %v1532, %v2044
      %v2077 = vmul.f32 %v1533, %v2044
      %v2078 = vmul.f32 %v1534, %v2044
      %v2079 = vmul.f32 %v1535, %v2044
      %v2080 = vmul.f32 %v1536, %v2044
      %v2081 = vmul.f32 %v1537, %v2044
      %v2082 = vmul.f32 %v1538, %v2044
      %v2083 = vmul.f32 %v1539, %v2044
      %v2084 = vmul.f32 %v1540, %v2044
      %v2085 = vmul.f32 %v1541, %v2044
      %v2086 = vmul.f32 %v1542, %v2044
      %v2087 = vmul.f32 %v1543, %v2044
      %v2088 = vmul.f32 %v1544, %v2044
      %v2089 = vmul.f32 %v1545, %v2044
      %v2090 = vmul.f32 %v1546, %v2044
      %v2091 = vmul.f32 %v1547, %v2044
      %v2092 = vmul.f32 %v1548, %v2044
      %v2093 = vadd.f32 %v1996, %v2045
      %v2094 = vadd.f32 %v1997, %v2046
      %v2095 = vadd.f32 %v1998, %v2047
      %v2096 = vadd.f32 %v1999, %v2048
      %v2097 = vadd.f32 %v2000, %v2049
      %v2098 = vadd.f32 %v2001, %v2050
      %v2099 = vadd.f32 %v2002, %v2051
      %v2100 = vadd.f32 %v2003, %v2052
      %v2101 = vadd.f32 %v2004, %v2053
      %v2102 = vadd.f32 %v2005, %v2054
      %v2103 = vadd.f32 %v2006, %v2055
      %v2104 = vadd.f32 %v2007, %v2056
      %v2105 = vadd.f32 %v2008, %v2057
      %v2106 = vadd.f32 %v2009, %v2058
      %v2107 = vadd.f32 %v2010, %v2059
      %v2108 = vadd.f32 %v2011, %v2060
      %v2109 = vadd.f32 %v2012, %v2061
      %v2110 = vadd.f32 %v2013, %v2062
      %v2111 = vadd.f32 %v2014, %v2063
      %v2112 = vadd.f32 %v2015, %v2064
      %v2113 = vadd.f32 %v2016, %v2065
      %v2114 = vadd.f32 %v2017, %v2066
      %v2115 = vadd.f32 %v2018, %v2067
      %v2116 = vadd.f32 %v2019, %v2068
      %v2117 = vadd.f32 %v2020, %v2069
      %v2118 = vadd.f32 %v2021, %v2070
      %v2119 = vadd.f32 %v2022, %v2071
      %v2120 = vadd.f32 %v2023, %v2072
      %v2121 = vadd.f32 %v2024, %v2073
      %v2122 = vadd.f32 %v2025, %v2074
      %v2123 = vadd.f32 %v2026, %v2075
      %v2124 = vadd.f32 %v2027, %v2076
      %v2125 = vadd.f32 %v2028, %v2077
      %v2126 = vadd.f32 %v2029, %v2078
      %v2127 = vadd.f32 %v2030, %v2079
      %v2128 = vadd.f32 %v2031, %v2080
      %v2129 = vadd.f32 %v2032, %v2081
      %v2130 = vadd.f32 %v2033, %v2082
      %v2131 = vadd.f32 %v2034, %v2083
      %v2132 = vadd.f32 %v2035, %v2084
      %v2133 = vadd.f32 %v2036, %v2085
      %v2134 = vadd.f32 %v2037, %v2086
      %v2135 = vadd.f32 %v2038, %v2087
      %v2136 = vadd.f32 %v2039, %v2088
      %v2137 = vadd.f32 %v2040, %v2089
      %v2138 = vadd.f32 %v2041, %v2090
      %v2139 = vadd.f32 %v2042, %v2091
      %v2140 = vadd.f32 %v2043, %v2092
      %v2141 = vperm.slane %v1557, 2
      %v2142 = vmul.f32 %v1504, %v2141
      %v2143 = vmul.f32 %v1505, %v2141
      %v2144 = vmul.f32 %v1506, %v2141
      %v2145 = vmul.f32 %v1507, %v2141
      %v2146 = vmul.f32 %v1508, %v2141
      %v2147 = vmul.f32 %v1509, %v2141
      %v2148 = vmul.f32 %v1510, %v2141
      %v2149 = vmul.f32 %v1511, %v2141
      %v2150 = vmul.f32 %v1512, %v2141
      %v2151 = vmul.f32 %v1513, %v2141
      %v2152 = vmul.f32 %v1514, %v2141
      %v2153 = vmul.f32 %v1515, %v2141
      %v2154 = vmul.f32 %v1516, %v2141
      %v2155 = vmul.f32 %v1517, %v2141
      %v2156 = vmul.f32 %v1518, %v2141
      %v2157 = vmul.f32 %v1519, %v2141
      %v2158 = vmul.f32 %v1520, %v2141
      %v2159 = vmul.f32 %v1521, %v2141
      %v2160 = vmul.f32 %v1522, %v2141
      %v2161 = vmul.f32 %v1523, %v2141
      %v2162 = vmul.f32 %v1524, %v2141
      %v2163 = vmul.f32 %v1525, %v2141
      %v2164 = vmul.f32 %v1526, %v2141
      %v2165 = vmul.f32 %v1527, %v2141
      %v2166 = vmul.f32 %v1528, %v2141
      %v2167 = vmul.f32 %v1529, %v2141
      %v2168 = vmul.f32 %v1530, %v2141
      %v2169 = vmul.f32 %v1531, %v2141
      %v2170 = vmul.f32 %v1532, %v2141
      %v2171 = vmul.f32 %v1533, %v2141
      %v2172 = vmul.f32 %v1534, %v2141
      %v2173 = vmul.f32 %v1535, %v2141
      %v2174 = vmul.f32 %v1536, %v2141
      %v2175 = vmul.f32 %v1537, %v2141
      %v2176 = vmul.f32 %v1538, %v2141
      %v2177 = vmul.f32 %v1539, %v2141
      %v2178 = vmul.f32 %v1540, %v2141
      %v2179 = vmul.f32 %v1541, %v2141
      %v2180 = vmul.f32 %v1542, %v2141
      %v2181 = vmul.f32 %v1543, %v2141
      %v2182 = vmul.f32 %v1544, %v2141
      %v2183 = vmul.f32 %v1545, %v2141
      %v2184 = vmul.f32 %v1546, %v2141
      %v2185 = vmul.f32 %v1547, %v2141
      %v2186 = vmul.f32 %v1548, %v2141
      %v2187 = vmul.f32 %v1549, %v2141
      %v2188 = vmul.f32 %v1550, %v2141
      %v2189 = vmul.f32 %v1551, %v2141
      %v2190 = vadd.f32 %v2093, %v2142
      %v2191 = vadd.f32 %v2094, %v2143
      %v2192 = vadd.f32 %v2095, %v2144
      %v2193 = vadd.f32 %v2096, %v2145
      %v2194 = vadd.f32 %v2097, %v2146
      %v2195 = vadd.f32 %v2098, %v2147
      %v2196 = vadd.f32 %v2099, %v2148
      %v2197 = vadd.f32 %v2100, %v2149
      %v2198 = vadd.f32 %v2101, %v2150
      %v2199 = vadd.f32 %v2102, %v2151
      %v2200 = vadd.f32 %v2103, %v2152
      %v2201 = vadd.f32 %v2104, %v2153
      %v2202 = vadd.f32 %v2105, %v2154
      %v2203 = vadd.f32 %v2106, %v2155
      %v2204 = vadd.f32 %v2107, %v2156
      %v2205 = vadd.f32 %v2108, %v2157
      %v2206 = vadd.f32 %v2109, %v2158
      %v2207 = vadd.f32 %v2110, %v2159
      %v2208 = vadd.f32 %v2111, %v2160
      %v2209 = vadd.f32 %v2112, %v2161
      %v2210 = vadd.f32 %v2113, %v2162
      %v2211 = vadd.f32 %v2114, %v2163
      %v2212 = vadd.f32 %v2115, %v2164
      %v2213 = vadd.f32 %v2116, %v2165
      %v2214 = vadd.f32 %v2117, %v2166
      %v2215 = vadd.f32 %v2118, %v2167
      %v2216 = vadd.f32 %v2119, %v2168
      %v2217 = vadd.f32 %v2120, %v2169
      %v2218 = vadd.f32 %v2121, %v2170
      %v2219 = vadd.f32 %v2122, %v2171
      %v2220 = vadd.f32 %v2123, %v2172
      %v2221 = vadd.f32 %v2124, %v2173
      %v2222 = vadd.f32 %v2125, %v2174
      %v2223 = vadd.f32 %v2126, %v2175
      %v2224 = vadd.f32 %v2127, %v2176
      %v2225 = vadd.f32 %v2128, %v2177
      %v2226 = vadd.f32 %v2129, %v2178
      %v2227 = vadd.f32 %v2130, %v2179
      %v2228 = vadd.f32 %v2131, %v2180
      %v2229 = vadd.f32 %v2132, %v2181
      %v2230 = vadd.f32 %v2133, %v2182
      %v2231 = vadd.f32 %v2134, %v2183
      %v2232 = vadd.f32 %v2135, %v2184
      %v2233 = vadd.f32 %v2136, %v2185
      %v2234 = vadd.f32 %v2137, %v2186
      %v2235 = vadd.f32 %v2138, %v2187
      %v2236 = vadd.f32 %v2139, %v2188
      %v2237 = vadd.f32 %v2140, %v2189
      %v2238 = vrot.slane %v1486, 1
      %v2239 = vrot.slane %v1489, 1
      %v2240 = vrot.slane %v1492, 1
      %v2241 = vrot.slane %v1495, 1
      %v2242 = vrot.slane %v1498, 1
      %v2243 = vrot.slane %v1501, 1
      %v2244 = vrot.slane %v1504, 1
      %v2245 = vrot.slane %v1507, 1
      %v2246 = vrot.slane %v1510, 1
      %v2247 = vrot.slane %v1513, 1
      %v2248 = vrot.slane %v1516, 1
      %v2249 = vrot.slane %v1519, 1
      %v2250 = vrot.slane %v1522, 1
      %v2251 = vrot.slane %v1525, 1
      %v2252 = vrot.slane %v1528, 1
      %v2253 = vrot.slane %v1531, 1
      %v2254 = vrot.slane %v1534, 1
      %v2255 = vrot.slane %v1537, 1
      %v2256 = vrot.slane %v1540, 1
      %v2257 = vrot.slane %v1543, 1
      %v2258 = vrot.slane %v1546, 1
      %v2259 = vrot.slane %v1549, 1
      %v2260 = vrot.slane %v1487, 1
      %v2261 = vrot.slane %v1490, 1
      %v2262 = vrot.slane %v1493, 1
      %v2263 = vrot.slane %v1496, 1
      %v2264 = vrot.slane %v1499, 1
      %v2265 = vrot.slane %v1502, 1
      %v2266 = vrot.slane %v1505, 1
      %v2267 = vrot.slane %v1508, 1
      %v2268 = vrot.slane %v1511, 1
      %v2269 = vrot.slane %v1514, 1
      %v2270 = vrot.slane %v1517, 1
      %v2271 = vrot.slane %v1520, 1
      %v2272 = vrot.slane %v1523, 1
      %v2273 = vrot.slane %v1526, 1
      %v2274 = vrot.slane %v1529, 1
      %v2275 = vrot.slane %v1532, 1
      %v2276 = vrot.slane %v1535, 1
      %v2277 = vrot.slane %v1538, 1
      %v2278 = vrot.slane %v1541, 1
      %v2279 = vrot.slane %v1544, 1
      %v2280 = vrot.slane %v1547, 1
      %v2281 = vrot.slane %v1550, 1
      %v2282 = vrot.slane %v1488, 1
      %v2283 = vrot.slane %v1491, 1
      %v2284 = vrot.slane %v1494, 1
      %v2285 = vrot.slane %v1497, 1
      %v2286 = vrot.slane %v1500, 1
      %v2287 = vrot.slane %v1503, 1
      %v2288 = vrot.slane %v1506, 1
      %v2289 = vrot.slane %v1509, 1
      %v2290 = vrot.slane %v1512, 1
      %v2291 = vrot.slane %v1515, 1
      %v2292 = vrot.slane %v1518, 1
      %v2293 = vrot.slane %v1521, 1
      %v2294 = vrot.slane %v1524, 1
      %v2295 = vrot.slane %v1527, 1
      %v2296 = vrot.slane %v1530, 1
      %v2297 = vrot.slane %v1533, 1
      %v2298 = vrot.slane %v1536, 1
      %v2299 = vrot.slane %v1539, 1
      %v2300 = vrot.slane %v1542, 1
      %v2301 = vrot.slane %v1545, 1
      %v2302 = vrot.slane %v1548, 1
      %v2303 = vrot.slane %v1551, 1
      %vm2304 = vcmp.lt.s32.totalorder %v876, 7
      %v2305 = vsel %vm2304, %v2260, %v2282
      %v2306 = vsel %vm2304, %v2261, %v2283
      %v2307 = vsel %vm2304, %v2262, %v2284
      %v2308 = vsel %vm2304, %v2263, %v2285
      %v2309 = vsel %vm2304, %v2264, %v2286
      %v2310 = vsel %vm2304, %v2265, %v2287
      %v2311 = vsel %vm2304, %v2266, %v2288
      %v2312 = vsel %vm2304, %v2267, %v2289
      %v2313 = vsel %vm2304, %v2268, %v2290
      %v2314 = vsel %vm2304, %v2269, %v2291
      %v2315 = vsel %vm2304, %v2270, %v2292
      %v2316 = vsel %vm2304, %v2271, %v2293
      %v2317 = vsel %vm2304, %v2272, %v2294
      %v2318 = vsel %vm2304, %v2273, %v2295
      %v2319 = vsel %vm2304, %v2274, %v2296
      %v2320 = vsel %vm2304, %v2275, %v2297
      %v2321 = vsel %vm2304, %v2276, %v2298
      %v2322 = vsel %vm2304, %v2277, %v2299
      %v2323 = vsel %vm2304, %v2278, %v2300
      %v2324 = vsel %vm2304, %v2279, %v2301
      %v2325 = vsel %vm2304, %v2280, %v2302
      %v2326 = vsel %vm2304, %v2281, %v2303
      %v2327 = vsel %vm2304, %v2238, %v2260
      %v2328 = vsel %vm2304, %v2239, %v2261
      %v2329 = vsel %vm2304, %v2240, %v2262
      %v2330 = vsel %vm2304, %v2241, %v2263
      %v2331 = vsel %vm2304, %v2242, %v2264
      %v2332 = vsel %vm2304, %v2243, %v2265
      %v2333 = vsel %vm2304, %v2244, %v2266
      %v2334 = vsel %vm2304, %v2245, %v2267
      %v2335 = vsel %vm2304, %v2246, %v2268
      %v2336 = vsel %vm2304, %v2247, %v2269
      %v2337 = vsel %vm2304, %v2248, %v2270
      %v2338 = vsel %vm2304, %v2249, %v2271
      %v2339 = vsel %vm2304, %v2250, %v2272
      %v2340 = vsel %vm2304, %v2251, %v2273
      %v2341 = vsel %vm2304, %v2252, %v2274
      %v2342 = vsel %vm2304, %v2253, %v2275
      %v2343 = vsel %vm2304, %v2254, %v2276
      %v2344 = vsel %vm2304, %v2255, %v2277
      %v2345 = vsel %vm2304, %v2256, %v2278
      %v2346 = vsel %vm2304, %v2257, %v2279
      %v2347 = vsel %vm2304, %v2258, %v2280
      %v2348 = vsel %vm2304, %v2259, %v2281
      %v2349 = vsel %vm2304, %v2282, %v2238
      %v2350 = vsel %vm2304, %v2283, %v2239
      %v2351 = vsel %vm2304, %v2284, %v2240
      %v2352 = vsel %vm2304, %v2285, %v2241
      %v2353 = vsel %vm2304, %v2286, %v2242
      %v2354 = vsel %vm2304, %v2287, %v2243
      %v2355 = vsel %vm2304, %v2288, %v2244
      %v2356 = vsel %vm2304, %v2289, %v2245
      %v2357 = vsel %vm2304, %v2290, %v2246
      %v2358 = vsel %vm2304, %v2291, %v2247
      %v2359 = vsel %vm2304, %v2292, %v2248
      %v2360 = vsel %vm2304, %v2293, %v2249
      %v2361 = vsel %vm2304, %v2294, %v2250
      %v2362 = vsel %vm2304, %v2295, %v2251
      %v2363 = vsel %vm2304, %v2296, %v2252
      %v2364 = vsel %vm2304, %v2297, %v2253
      %v2365 = vsel %vm2304, %v2298, %v2254
      %v2366 = vsel %vm2304, %v2299, %v2255
      %v2367 = vsel %vm2304, %v2300, %v2256
      %v2368 = vsel %vm2304, %v2301, %v2257
      %v2369 = vsel %vm2304, %v2302, %v2258
      %v2370 = vsel %vm2304, %v2303, %v2259
      %v2371 = vperm.slane %v1552, 1
      %v2372 = vmul.f32 %v2327, %v2371
      %v2373 = vmul.f32 %v2305, %v2371
      %v2374 = vmul.f32 %v2349, %v2371
      %v2375 = vmul.f32 %v2328, %v2371
      %v2376 = vmul.f32 %v2306, %v2371
      %v2377 = vmul.f32 %v2350, %v2371
      %v2378 = vmul.f32 %v2329, %v2371
      %v2379 = vmul.f32 %v2307, %v2371
      %v2380 = vmul.f32 %v2351, %v2371
      %v2381 = vmul.f32 %v2330, %v2371
      %v2382 = vmul.f32 %v2308, %v2371
      %v2383 = vmul.f32 %v2352, %v2371
      %v2384 = vmul.f32 %v2331, %v2371
      %v2385 = vmul.f32 %v2309, %v2371
      %v2386 = vmul.f32 %v2353, %v2371
      %v2387 = vmul.f32 %v2332, %v2371
      %v2388 = vmul.f32 %v2310, %v2371
      %v2389 = vmul.f32 %v2354, %v2371
      %v2390 = vmul.f32 %v2333, %v2371
      %v2391 = vmul.f32 %v2311, %v2371
      %v2392 = vmul.f32 %v2355, %v2371
      %v2393 = vmul.f32 %v2334, %v2371
      %v2394 = vmul.f32 %v2312, %v2371
      %v2395 = vmul.f32 %v2356, %v2371
      %v2396 = vmul.f32 %v2335, %v2371
      %v2397 = vmul.f32 %v2313, %v2371
      %v2398 = vmul.f32 %v2357, %v2371
      %v2399 = vmul.f32 %v2336, %v2371
      %v2400 = vmul.f32 %v2314, %v2371
      %v2401 = vmul.f32 %v2358, %v2371
      %v2402 = vmul.f32 %v2337, %v2371
      %v2403 = vmul.f32 %v2315, %v2371
      %v2404 = vmul.f32 %v2359, %v2371
      %v2405 = vmul.f32 %v2338, %v2371
      %v2406 = vmul.f32 %v2316, %v2371
      %v2407 = vmul.f32 %v2360, %v2371
      %v2408 = vmul.f32 %v2339, %v2371
      %v2409 = vmul.f32 %v2317, %v2371
      %v2410 = vmul.f32 %v2361, %v2371
      %v2411 = vmul.f32 %v2340, %v2371
      %v2412 = vmul.f32 %v2318, %v2371
      %v2413 = vmul.f32 %v2362, %v2371
      %v2414 = vmul.f32 %v2341, %v2371
      %v2415 = vmul.f32 %v2319, %v2371
      %v2416 = vmul.f32 %v2363, %v2371
      %v2417 = vmul.f32 %v2342, %v2371
      %v2418 = vmul.f32 %v2320, %v2371
      %v2419 = vmul.f32 %v2364, %v2371
      %v2420 = vadd.f32 %v2190, %v2372
      %v2421 = vadd.f32 %v2191, %v2373
      %v2422 = vadd.f32 %v2192, %v2374
      %v2423 = vadd.f32 %v2193, %v2375
      %v2424 = vadd.f32 %v2194, %v2376
      %v2425 = vadd.f32 %v2195, %v2377
      %v2426 = vadd.f32 %v2196, %v2378
      %v2427 = vadd.f32 %v2197, %v2379
      %v2428 = vadd.f32 %v2198, %v2380
      %v2429 = vadd.f32 %v2199, %v2381
      %v2430 = vadd.f32 %v2200, %v2382
      %v2431 = vadd.f32 %v2201, %v2383
      %v2432 = vadd.f32 %v2202, %v2384
      %v2433 = vadd.f32 %v2203, %v2385
      %v2434 = vadd.f32 %v2204, %v2386
      %v2435 = vadd.f32 %v2205, %v2387
      %v2436 = vadd.f32 %v2206, %v2388
      %v2437 = vadd.f32 %v2207, %v2389
      %v2438 = vadd.f32 %v2208, %v2390
      %v2439 = vadd.f32 %v2209, %v2391
      %v2440 = vadd.f32 %v2210, %v2392
      %v2441 = vadd.f32 %v2211, %v2393
      %v2442 = vadd.f32 %v2212, %v2394
      %v2443 = vadd.f32 %v2213, %v2395
      %v2444 = vadd.f32 %v2214, %v2396
      %v2445 = vadd.f32 %v2215, %v2397
      %v2446 = vadd.f32 %v2216, %v2398
      %v2447 = vadd.f32 %v2217, %v2399
      %v2448 = vadd.f32 %v2218, %v2400
      %v2449 = vadd.f32 %v2219, %v2401
      %v2450 = vadd.f32 %v2220, %v2402
      %v2451 = vadd.f32 %v2221, %v2403
      %v2452 = vadd.f32 %v2222, %v2404
      %v2453 = vadd.f32 %v2223, %v2405
      %v2454 = vadd.f32 %v2224, %v2406
      %v2455 = vadd.f32 %v2225, %v2407
      %v2456 = vadd.f32 %v2226, %v2408
      %v2457 = vadd.f32 %v2227, %v2409
      %v2458 = vadd.f32 %v2228, %v2410
      %v2459 = vadd.f32 %v2229, %v2411
      %v2460 = vadd.f32 %v2230, %v2412
      %v2461 = vadd.f32 %v2231, %v2413
      %v2462 = vadd.f32 %v2232, %v2414
      %v2463 = vadd.f32 %v2233, %v2415
      %v2464 = vadd.f32 %v2234, %v2416
      %v2465 = vadd.f32 %v2235, %v2417
      %v2466 = vadd.f32 %v2236, %v2418
      %v2467 = vadd.f32 %v2237, %v2419
      %v2468 = vperm.slane %v1553, 0
      %v2469 = vmul.f32 %v2328, %v2468
      %v2470 = vmul.f32 %v2306, %v2468
      %v2471 = vmul.f32 %v2350, %v2468
      %v2472 = vmul.f32 %v2329, %v2468
      %v2473 = vmul.f32 %v2307, %v2468
      %v2474 = vmul.f32 %v2351, %v2468
      %v2475 = vmul.f32 %v2330, %v2468
      %v2476 = vmul.f32 %v2308, %v2468
      %v2477 = vmul.f32 %v2352, %v2468
      %v2478 = vmul.f32 %v2331, %v2468
      %v2479 = vmul.f32 %v2309, %v2468
      %v2480 = vmul.f32 %v2353, %v2468
      %v2481 = vmul.f32 %v2332, %v2468
      %v2482 = vmul.f32 %v2310, %v2468
      %v2483 = vmul.f32 %v2354, %v2468
      %v2484 = vmul.f32 %v2333, %v2468
      %v2485 = vmul.f32 %v2311, %v2468
      %v2486 = vmul.f32 %v2355, %v2468
      %v2487 = vmul.f32 %v2334, %v2468
      %v2488 = vmul.f32 %v2312, %v2468
      %v2489 = vmul.f32 %v2356, %v2468
      %v2490 = vmul.f32 %v2335, %v2468
      %v2491 = vmul.f32 %v2313, %v2468
      %v2492 = vmul.f32 %v2357, %v2468
      %v2493 = vmul.f32 %v2336, %v2468
      %v2494 = vmul.f32 %v2314, %v2468
      %v2495 = vmul.f32 %v2358, %v2468
      %v2496 = vmul.f32 %v2337, %v2468
      %v2497 = vmul.f32 %v2315, %v2468
      %v2498 = vmul.f32 %v2359, %v2468
      %v2499 = vmul.f32 %v2338, %v2468
      %v2500 = vmul.f32 %v2316, %v2468
      %v2501 = vmul.f32 %v2360, %v2468
      %v2502 = vmul.f32 %v2339, %v2468
      %v2503 = vmul.f32 %v2317, %v2468
      %v2504 = vmul.f32 %v2361, %v2468
      %v2505 = vmul.f32 %v2340, %v2468
      %v2506 = vmul.f32 %v2318, %v2468
      %v2507 = vmul.f32 %v2362, %v2468
      %v2508 = vmul.f32 %v2341, %v2468
      %v2509 = vmul.f32 %v2319, %v2468
      %v2510 = vmul.f32 %v2363, %v2468
      %v2511 = vmul.f32 %v2342, %v2468
      %v2512 = vmul.f32 %v2320, %v2468
      %v2513 = vmul.f32 %v2364, %v2468
      %v2514 = vmul.f32 %v2343, %v2468
      %v2515 = vmul.f32 %v2321, %v2468
      %v2516 = vmul.f32 %v2365, %v2468
      %v2517 = vadd.f32 %v2420, %v2469
      %v2518 = vadd.f32 %v2421, %v2470
      %v2519 = vadd.f32 %v2422, %v2471
      %v2520 = vadd.f32 %v2423, %v2472
      %v2521 = vadd.f32 %v2424, %v2473
      %v2522 = vadd.f32 %v2425, %v2474
      %v2523 = vadd.f32 %v2426, %v2475
      %v2524 = vadd.f32 %v2427, %v2476
      %v2525 = vadd.f32 %v2428, %v2477
      %v2526 = vadd.f32 %v2429, %v2478
      %v2527 = vadd.f32 %v2430, %v2479
      %v2528 = vadd.f32 %v2431, %v2480
      %v2529 = vadd.f32 %v2432, %v2481
      %v2530 = vadd.f32 %v2433, %v2482
      %v2531 = vadd.f32 %v2434, %v2483
      %v2532 = vadd.f32 %v2435, %v2484
      %v2533 = vadd.f32 %v2436, %v2485
      %v2534 = vadd.f32 %v2437, %v2486
      %v2535 = vadd.f32 %v2438, %v2487
      %v2536 = vadd.f32 %v2439, %v2488
      %v2537 = vadd.f32 %v2440, %v2489
      %v2538 = vadd.f32 %v2441, %v2490
      %v2539 = vadd.f32 %v2442, %v2491
      %v2540 = vadd.f32 %v2443, %v2492
      %v2541 = vadd.f32 %v2444, %v2493
      %v2542 = vadd.f32 %v2445, %v2494
      %v2543 = vadd.f32 %v2446, %v2495
      %v2544 = vadd.f32 %v2447, %v2496
      %v2545 = vadd.f32 %v2448, %v2497
      %v2546 = vadd.f32 %v2449, %v2498
      %v2547 = vadd.f32 %v2450, %v2499
      %v2548 = vadd.f32 %v2451, %v2500
      %v2549 = vadd.f32 %v2452, %v2501
      %v2550 = vadd.f32 %v2453, %v2502
      %v2551 = vadd.f32 %v2454, %v2503
      %v2552 = vadd.f32 %v2455, %v2504
      %v2553 = vadd.f32 %v2456, %v2505
      %v2554 = vadd.f32 %v2457, %v2506
      %v2555 = vadd.f32 %v2458, %v2507
      %v2556 = vadd.f32 %v2459, %v2508
      %v2557 = vadd.f32 %v2460, %v2509
      %v2558 = vadd.f32 %v2461, %v2510
      %v2559 = vadd.f32 %v2462, %v2511
      %v2560 = vadd.f32 %v2463, %v2512
      %v2561 = vadd.f32 %v2464, %v2513
      %v2562 = vadd.f32 %v2465, %v2514
      %v2563 = vadd.f32 %v2466, %v2515
      %v2564 = vadd.f32 %v2467, %v2516
      %v2565 = vperm.slane %v1553, 7
      %v2566 = vmul.f32 %v2329, %v2565
      %v2567 = vmul.f32 %v2307, %v2565
      %v2568 = vmul.f32 %v2351, %v2565
      %v2569 = vmul.f32 %v2330, %v2565
      %v2570 = vmul.f32 %v2308, %v2565
      %v2571 = vmul.f32 %v2352, %v2565
      %v2572 = vmul.f32 %v2331, %v2565
      %v2573 = vmul.f32 %v2309, %v2565
      %v2574 = vmul.f32 %v2353, %v2565
      %v2575 = vmul.f32 %v2332, %v2565
      %v2576 = vmul.f32 %v2310, %v2565
      %v2577 = vmul.f32 %v2354, %v2565
      %v2578 = vmul.f32 %v2333, %v2565
      %v2579 = vmul.f32 %v2311, %v2565
      %v2580 = vmul.f32 %v2355, %v2565
      %v2581 = vmul.f32 %v2334, %v2565
      %v2582 = vmul.f32 %v2312, %v2565
      %v2583 = vmul.f32 %v2356, %v2565
      %v2584 = vmul.f32 %v2335, %v2565
      %v2585 = vmul.f32 %v2313, %v2565
      %v2586 = vmul.f32 %v2357, %v2565
      %v2587 = vmul.f32 %v2336, %v2565
      %v2588 = vmul.f32 %v2314, %v2565
      %v2589 = vmul.f32 %v2358, %v2565
      %v2590 = vmul.f32 %v2337, %v2565
      %v2591 = vmul.f32 %v2315, %v2565
      %v2592 = vmul.f32 %v2359, %v2565
      %v2593 = vmul.f32 %v2338, %v2565
      %v2594 = vmul.f32 %v2316, %v2565
      %v2595 = vmul.f32 %v2360, %v2565
      %v2596 = vmul.f32 %v2339, %v2565
      %v2597 = vmul.f32 %v2317, %v2565
      %v2598 = vmul.f32 %v2361, %v2565
      %v2599 = vmul.f32 %v2340, %v2565
      %v2600 = vmul.f32 %v2318, %v2565
      %v2601 = vmul.f32 %v2362, %v2565
      %v2602 = vmul.f32 %v2341, %v2565
      %v2603 = vmul.f32 %v2319, %v2565
      %v2604 = vmul.f32 %v2363, %v2565
      %v2605 = vmul.f32 %v2342, %v2565
      %v2606 = vmul.f32 %v2320, %v2565
      %v2607 = vmul.f32 %v2364, %v2565
      %v2608 = vmul.f32 %v2343, %v2565
      %v2609 = vmul.f32 %v2321, %v2565
      %v2610 = vmul.f32 %v2365, %v2565
      %v2611 = vmul.f32 %v2344, %v2565
      %v2612 = vmul.f32 %v2322, %v2565
      %v2613 = vmul.f32 %v2366, %v2565
      %v2614 = vadd.f32 %v2517, %v2566
      %v2615 = vadd.f32 %v2518, %v2567
      %v2616 = vadd.f32 %v2519, %v2568
      %v2617 = vadd.f32 %v2520, %v2569
      %v2618 = vadd.f32 %v2521, %v2570
      %v2619 = vadd.f32 %v2522, %v2571
      %v2620 = vadd.f32 %v2523, %v2572
      %v2621 = vadd.f32 %v2524, %v2573
      %v2622 = vadd.f32 %v2525, %v2574
      %v2623 = vadd.f32 %v2526, %v2575
      %v2624 = vadd.f32 %v2527, %v2576
      %v2625 = vadd.f32 %v2528, %v2577
      %v2626 = vadd.f32 %v2529, %v2578
      %v2627 = vadd.f32 %v2530, %v2579
      %v2628 = vadd.f32 %v2531, %v2580
      %v2629 = vadd.f32 %v2532, %v2581
      %v2630 = vadd.f32 %v2533, %v2582
      %v2631 = vadd.f32 %v2534, %v2583
      %v2632 = vadd.f32 %v2535, %v2584
      %v2633 = vadd.f32 %v2536, %v2585
      %v2634 = vadd.f32 %v2537, %v2586
      %v2635 = vadd.f32 %v2538, %v2587
      %v2636 = vadd.f32 %v2539, %v2588
      %v2637 = vadd.f32 %v2540, %v2589
      %v2638 = vadd.f32 %v2541, %v2590
      %v2639 = vadd.f32 %v2542, %v2591
      %v2640 = vadd.f32 %v2543, %v2592
      %v2641 = vadd.f32 %v2544, %v2593
      %v2642 = vadd.f32 %v2545, %v2594
      %v2643 = vadd.f32 %v2546, %v2595
      %v2644 = vadd.f32 %v2547, %v2596
      %v2645 = vadd.f32 %v2548, %v2597
      %v2646 = vadd.f32 %v2549, %v2598
      %v2647 = vadd.f32 %v2550, %v2599
      %v2648 = vadd.f32 %v2551, %v2600
      %v2649 = vadd.f32 %v2552, %v2601
      %v2650 = vadd.f32 %v2553, %v2602
      %v2651 = vadd.f32 %v2554, %v2603
      %v2652 = vadd.f32 %v2555, %v2604
      %v2653 = vadd.f32 %v2556, %v2605
      %v2654 = vadd.f32 %v2557, %v2606
      %v2655 = vadd.f32 %v2558, %v2607
      %v2656 = vadd.f32 %v2559, %v2608
      %v2657 = vadd.f32 %v2560, %v2609
      %v2658 = vadd.f32 %v2561, %v2610
      %v2659 = vadd.f32 %v2562, %v2611
      %v2660 = vadd.f32 %v2563, %v2612
      %v2661 = vadd.f32 %v2564, %v2613
      %v2662 = vperm.slane %v1554, 6
      %v2663 = vmul.f32 %v2330, %v2662
      %v2664 = vmul.f32 %v2308, %v2662
      %v2665 = vmul.f32 %v2352, %v2662
      %v2666 = vmul.f32 %v2331, %v2662
      %v2667 = vmul.f32 %v2309, %v2662
      %v2668 = vmul.f32 %v2353, %v2662
      %v2669 = vmul.f32 %v2332, %v2662
      %v2670 = vmul.f32 %v2310, %v2662
      %v2671 = vmul.f32 %v2354, %v2662
      %v2672 = vmul.f32 %v2333, %v2662
      %v2673 = vmul.f32 %v2311, %v2662
      %v2674 = vmul.f32 %v2355, %v2662
      %v2675 = vmul.f32 %v2334, %v2662
      %v2676 = vmul.f32 %v2312, %v2662
      %v2677 = vmul.f32 %v2356, %v2662
      %v2678 = vmul.f32 %v2335, %v2662
      %v2679 = vmul.f32 %v2313, %v2662
      %v2680 = vmul.f32 %v2357, %v2662
      %v2681 = vmul.f32 %v2336, %v2662
      %v2682 = vmul.f32 %v2314, %v2662
      %v2683 = vmul.f32 %v2358, %v2662
      %v2684 = vmul.f32 %v2337, %v2662
      %v2685 = vmul.f32 %v2315, %v2662
      %v2686 = vmul.f32 %v2359, %v2662
      %v2687 = vmul.f32 %v2338, %v2662
      %v2688 = vmul.f32 %v2316, %v2662
      %v2689 = vmul.f32 %v2360, %v2662
      %v2690 = vmul.f32 %v2339, %v2662
      %v2691 = vmul.f32 %v2317, %v2662
      %v2692 = vmul.f32 %v2361, %v2662
      %v2693 = vmul.f32 %v2340, %v2662
      %v2694 = vmul.f32 %v2318, %v2662
      %v2695 = vmul.f32 %v2362, %v2662
      %v2696 = vmul.f32 %v2341, %v2662
      %v2697 = vmul.f32 %v2319, %v2662
      %v2698 = vmul.f32 %v2363, %v2662
      %v2699 = vmul.f32 %v2342, %v2662
      %v2700 = vmul.f32 %v2320, %v2662
      %v2701 = vmul.f32 %v2364, %v2662
      %v2702 = vmul.f32 %v2343, %v2662
      %v2703 = vmul.f32 %v2321, %v2662
      %v2704 = vmul.f32 %v2365, %v2662
      %v2705 = vmul.f32 %v2344, %v2662
      %v2706 = vmul.f32 %v2322, %v2662
      %v2707 = vmul.f32 %v2366, %v2662
      %v2708 = vmul.f32 %v2345, %v2662
      %v2709 = vmul.f32 %v2323, %v2662
      %v2710 = vmul.f32 %v2367, %v2662
      %v2711 = vadd.f32 %v2614, %v2663
      %v2712 = vadd.f32 %v2615, %v2664
      %v2713 = vadd.f32 %v2616, %v2665
      %v2714 = vadd.f32 %v2617, %v2666
      %v2715 = vadd.f32 %v2618, %v2667
      %v2716 = vadd.f32 %v2619, %v2668
      %v2717 = vadd.f32 %v2620, %v2669
      %v2718 = vadd.f32 %v2621, %v2670
      %v2719 = vadd.f32 %v2622, %v2671
      %v2720 = vadd.f32 %v2623, %v2672
      %v2721 = vadd.f32 %v2624, %v2673
      %v2722 = vadd.f32 %v2625, %v2674
      %v2723 = vadd.f32 %v2626, %v2675
      %v2724 = vadd.f32 %v2627, %v2676
      %v2725 = vadd.f32 %v2628, %v2677
      %v2726 = vadd.f32 %v2629, %v2678
      %v2727 = vadd.f32 %v2630, %v2679
      %v2728 = vadd.f32 %v2631, %v2680
      %v2729 = vadd.f32 %v2632, %v2681
      %v2730 = vadd.f32 %v2633, %v2682
      %v2731 = vadd.f32 %v2634, %v2683
      %v2732 = vadd.f32 %v2635, %v2684
      %v2733 = vadd.f32 %v2636, %v2685
      %v2734 = vadd.f32 %v2637, %v2686
      %v2735 = vadd.f32 %v2638, %v2687
      %v2736 = vadd.f32 %v2639, %v2688
      %v2737 = vadd.f32 %v2640, %v2689
      %v2738 = vadd.f32 %v2641, %v2690
      %v2739 = vadd.f32 %v2642, %v2691
      %v2740 = vadd.f32 %v2643, %v2692
      %v2741 = vadd.f32 %v2644, %v2693
      %v2742 = vadd.f32 %v2645, %v2694
      %v2743 = vadd.f32 %v2646, %v2695
      %v2744 = vadd.f32 %v2647, %v2696
      %v2745 = vadd.f32 %v2648, %v2697
      %v2746 = vadd.f32 %v2649, %v2698
      %v2747 = vadd.f32 %v2650, %v2699
      %v2748 = vadd.f32 %v2651, %v2700
      %v2749 = vadd.f32 %v2652, %v2701
      %v2750 = vadd.f32 %v2653, %v2702
      %v2751 = vadd.f32 %v2654, %v2703
      %v2752 = vadd.f32 %v2655, %v2704
      %v2753 = vadd.f32 %v2656, %v2705
      %v2754 = vadd.f32 %v2657, %v2706
      %v2755 = vadd.f32 %v2658, %v2707
      %v2756 = vadd.f32 %v2659, %v2708
      %v2757 = vadd.f32 %v2660, %v2709
      %v2758 = vadd.f32 %v2661, %v2710
      %v2759 = vperm.slane %v1555, 5
      %v2760 = vmul.f32 %v2331, %v2759
      %v2761 = vmul.f32 %v2309, %v2759
      %v2762 = vmul.f32 %v2353, %v2759
      %v2763 = vmul.f32 %v2332, %v2759
      %v2764 = vmul.f32 %v2310, %v2759
      %v2765 = vmul.f32 %v2354, %v2759
      %v2766 = vmul.f32 %v2333, %v2759
      %v2767 = vmul.f32 %v2311, %v2759
      %v2768 = vmul.f32 %v2355, %v2759
      %v2769 = vmul.f32 %v2334, %v2759
      %v2770 = vmul.f32 %v2312, %v2759
      %v2771 = vmul.f32 %v2356, %v2759
      %v2772 = vmul.f32 %v2335, %v2759
      %v2773 = vmul.f32 %v2313, %v2759
      %v2774 = vmul.f32 %v2357, %v2759
      %v2775 = vmul.f32 %v2336, %v2759
      %v2776 = vmul.f32 %v2314, %v2759
      %v2777 = vmul.f32 %v2358, %v2759
      %v2778 = vmul.f32 %v2337, %v2759
      %v2779 = vmul.f32 %v2315, %v2759
      %v2780 = vmul.f32 %v2359, %v2759
      %v2781 = vmul.f32 %v2338, %v2759
      %v2782 = vmul.f32 %v2316, %v2759
      %v2783 = vmul.f32 %v2360, %v2759
      %v2784 = vmul.f32 %v2339, %v2759
      %v2785 = vmul.f32 %v2317, %v2759
      %v2786 = vmul.f32 %v2361, %v2759
      %v2787 = vmul.f32 %v2340, %v2759
      %v2788 = vmul.f32 %v2318, %v2759
      %v2789 = vmul.f32 %v2362, %v2759
      %v2790 = vmul.f32 %v2341, %v2759
      %v2791 = vmul.f32 %v2319, %v2759
      %v2792 = vmul.f32 %v2363, %v2759
      %v2793 = vmul.f32 %v2342, %v2759
      %v2794 = vmul.f32 %v2320, %v2759
      %v2795 = vmul.f32 %v2364, %v2759
      %v2796 = vmul.f32 %v2343, %v2759
      %v2797 = vmul.f32 %v2321, %v2759
      %v2798 = vmul.f32 %v2365, %v2759
      %v2799 = vmul.f32 %v2344, %v2759
      %v2800 = vmul.f32 %v2322, %v2759
      %v2801 = vmul.f32 %v2366, %v2759
      %v2802 = vmul.f32 %v2345, %v2759
      %v2803 = vmul.f32 %v2323, %v2759
      %v2804 = vmul.f32 %v2367, %v2759
      %v2805 = vmul.f32 %v2346, %v2759
      %v2806 = vmul.f32 %v2324, %v2759
      %v2807 = vmul.f32 %v2368, %v2759
      %v2808 = vadd.f32 %v2711, %v2760
      %v2809 = vadd.f32 %v2712, %v2761
      %v2810 = vadd.f32 %v2713, %v2762
      %v2811 = vadd.f32 %v2714, %v2763
      %v2812 = vadd.f32 %v2715, %v2764
      %v2813 = vadd.f32 %v2716, %v2765
      %v2814 = vadd.f32 %v2717, %v2766
      %v2815 = vadd.f32 %v2718, %v2767
      %v2816 = vadd.f32 %v2719, %v2768
      %v2817 = vadd.f32 %v2720, %v2769
      %v2818 = vadd.f32 %v2721, %v2770
      %v2819 = vadd.f32 %v2722, %v2771
      %v2820 = vadd.f32 %v2723, %v2772
      %v2821 = vadd.f32 %v2724, %v2773
      %v2822 = vadd.f32 %v2725, %v2774
      %v2823 = vadd.f32 %v2726, %v2775
      %v2824 = vadd.f32 %v2727, %v2776
      %v2825 = vadd.f32 %v2728, %v2777
      %v2826 = vadd.f32 %v2729, %v2778
      %v2827 = vadd.f32 %v2730, %v2779
      %v2828 = vadd.f32 %v2731, %v2780
      %v2829 = vadd.f32 %v2732, %v2781
      %v2830 = vadd.f32 %v2733, %v2782
      %v2831 = vadd.f32 %v2734, %v2783
      %v2832 = vadd.f32 %v2735, %v2784
      %v2833 = vadd.f32 %v2736, %v2785
      %v2834 = vadd.f32 %v2737, %v2786
      %v2835 = vadd.f32 %v2738, %v2787
      %v2836 = vadd.f32 %v2739, %v2788
      %v2837 = vadd.f32 %v2740, %v2789
      %v2838 = vadd.f32 %v2741, %v2790
      %v2839 = vadd.f32 %v2742, %v2791
      %v2840 = vadd.f32 %v2743, %v2792
      %v2841 = vadd.f32 %v2744, %v2793
      %v2842 = vadd.f32 %v2745, %v2794
      %v2843 = vadd.f32 %v2746, %v2795
      %v2844 = vadd.f32 %v2747, %v2796
      %v2845 = vadd.f32 %v2748, %v2797
      %v2846 = vadd.f32 %v2749, %v2798
      %v2847 = vadd.f32 %v2750, %v2799
      %v2848 = vadd.f32 %v2751, %v2800
      %v2849 = vadd.f32 %v2752, %v2801
      %v2850 = vadd.f32 %v2753, %v2802
      %v2851 = vadd.f32 %v2754, %v2803
      %v2852 = vadd.f32 %v2755, %v2804
      %v2853 = vadd.f32 %v2756, %v2805
      %v2854 = vadd.f32 %v2757, %v2806
      %v2855 = vadd.f32 %v2758, %v2807
      %v2856 = vperm.slane %v1556, 4
      %v2857 = vmul.f32 %v2332, %v2856
      %v2858 = vmul.f32 %v2310, %v2856
      %v2859 = vmul.f32 %v2354, %v2856
      %v2860 = vmul.f32 %v2333, %v2856
      %v2861 = vmul.f32 %v2311, %v2856
      %v2862 = vmul.f32 %v2355, %v2856
      %v2863 = vmul.f32 %v2334, %v2856
      %v2864 = vmul.f32 %v2312, %v2856
      %v2865 = vmul.f32 %v2356, %v2856
      %v2866 = vmul.f32 %v2335, %v2856
      %v2867 = vmul.f32 %v2313, %v2856
      %v2868 = vmul.f32 %v2357, %v2856
      %v2869 = vmul.f32 %v2336, %v2856
      %v2870 = vmul.f32 %v2314, %v2856
      %v2871 = vmul.f32 %v2358, %v2856
      %v2872 = vmul.f32 %v2337, %v2856
      %v2873 = vmul.f32 %v2315, %v2856
      %v2874 = vmul.f32 %v2359, %v2856
      %v2875 = vmul.f32 %v2338, %v2856
      %v2876 = vmul.f32 %v2316, %v2856
      %v2877 = vmul.f32 %v2360, %v2856
      %v2878 = vmul.f32 %v2339, %v2856
      %v2879 = vmul.f32 %v2317, %v2856
      %v2880 = vmul.f32 %v2361, %v2856
      %v2881 = vmul.f32 %v2340, %v2856
      %v2882 = vmul.f32 %v2318, %v2856
      %v2883 = vmul.f32 %v2362, %v2856
      %v2884 = vmul.f32 %v2341, %v2856
      %v2885 = vmul.f32 %v2319, %v2856
      %v2886 = vmul.f32 %v2363, %v2856
      %v2887 = vmul.f32 %v2342, %v2856
      %v2888 = vmul.f32 %v2320, %v2856
      %v2889 = vmul.f32 %v2364, %v2856
      %v2890 = vmul.f32 %v2343, %v2856
      %v2891 = vmul.f32 %v2321, %v2856
      %v2892 = vmul.f32 %v2365, %v2856
      %v2893 = vmul.f32 %v2344, %v2856
      %v2894 = vmul.f32 %v2322, %v2856
      %v2895 = vmul.f32 %v2366, %v2856
      %v2896 = vmul.f32 %v2345, %v2856
      %v2897 = vmul.f32 %v2323, %v2856
      %v2898 = vmul.f32 %v2367, %v2856
      %v2899 = vmul.f32 %v2346, %v2856
      %v2900 = vmul.f32 %v2324, %v2856
      %v2901 = vmul.f32 %v2368, %v2856
      %v2902 = vmul.f32 %v2347, %v2856
      %v2903 = vmul.f32 %v2325, %v2856
      %v2904 = vmul.f32 %v2369, %v2856
      %v2905 = vadd.f32 %v2808, %v2857
      %v2906 = vadd.f32 %v2809, %v2858
      %v2907 = vadd.f32 %v2810, %v2859
      %v2908 = vadd.f32 %v2811, %v2860
      %v2909 = vadd.f32 %v2812, %v2861
      %v2910 = vadd.f32 %v2813, %v2862
      %v2911 = vadd.f32 %v2814, %v2863
      %v2912 = vadd.f32 %v2815, %v2864
      %v2913 = vadd.f32 %v2816, %v2865
      %v2914 = vadd.f32 %v2817, %v2866
      %v2915 = vadd.f32 %v2818, %v2867
      %v2916 = vadd.f32 %v2819, %v2868
      %v2917 = vadd.f32 %v2820, %v2869
      %v2918 = vadd.f32 %v2821, %v2870
      %v2919 = vadd.f32 %v2822, %v2871
      %v2920 = vadd.f32 %v2823, %v2872
      %v2921 = vadd.f32 %v2824, %v2873
      %v2922 = vadd.f32 %v2825, %v2874
      %v2923 = vadd.f32 %v2826, %v2875
      %v2924 = vadd.f32 %v2827, %v2876
      %v2925 = vadd.f32 %v2828, %v2877
      %v2926 = vadd.f32 %v2829, %v2878
      %v2927 = vadd.f32 %v2830, %v2879
      %v2928 = vadd.f32 %v2831, %v2880
      %v2929 = vadd.f32 %v2832, %v2881
      %v2930 = vadd.f32 %v2833, %v2882
      %v2931 = vadd.f32 %v2834, %v2883
      %v2932 = vadd.f32 %v2835, %v2884
      %v2933 = vadd.f32 %v2836, %v2885
      %v2934 = vadd.f32 %v2837, %v2886
      %v2935 = vadd.f32 %v2838, %v2887
      %v2936 = vadd.f32 %v2839, %v2888
      %v2937 = vadd.f32 %v2840, %v2889
      %v2938 = vadd.f32 %v2841, %v2890
      %v2939 = vadd.f32 %v2842, %v2891
      %v2940 = vadd.f32 %v2843, %v2892
      %v2941 = vadd.f32 %v2844, %v2893
      %v2942 = vadd.f32 %v2845, %v2894
      %v2943 = vadd.f32 %v2846, %v2895
      %v2944 = vadd.f32 %v2847, %v2896
      %v2945 = vadd.f32 %v2848, %v2897
      %v2946 = vadd.f32 %v2849, %v2898
      %v2947 = vadd.f32 %v2850, %v2899
      %v2948 = vadd.f32 %v2851, %v2900
      %v2949 = vadd.f32 %v2852, %v2901
      %v2950 = vadd.f32 %v2853, %v2902
      %v2951 = vadd.f32 %v2854, %v2903
      %v2952 = vadd.f32 %v2855, %v2904
      %v2953 = vperm.slane %v1557, 3
      %v2954 = vmul.f32 %v2333, %v2953
      %v2955 = vmul.f32 %v2311, %v2953
      %v2956 = vmul.f32 %v2355, %v2953
      %v2957 = vmul.f32 %v2334, %v2953
      %v2958 = vmul.f32 %v2312, %v2953
      %v2959 = vmul.f32 %v2356, %v2953
      %v2960 = vmul.f32 %v2335, %v2953
      %v2961 = vmul.f32 %v2313, %v2953
      %v2962 = vmul.f32 %v2357, %v2953
      %v2963 = vmul.f32 %v2336, %v2953
      %v2964 = vmul.f32 %v2314, %v2953
      %v2965 = vmul.f32 %v2358, %v2953
      %v2966 = vmul.f32 %v2337, %v2953
      %v2967 = vmul.f32 %v2315, %v2953
      %v2968 = vmul.f32 %v2359, %v2953
      %v2969 = vmul.f32 %v2338, %v2953
      %v2970 = vmul.f32 %v2316, %v2953
      %v2971 = vmul.f32 %v2360, %v2953
      %v2972 = vmul.f32 %v2339, %v2953
      %v2973 = vmul.f32 %v2317, %v2953
      %v2974 = vmul.f32 %v2361, %v2953
      %v2975 = vmul.f32 %v2340, %v2953
      %v2976 = vmul.f32 %v2318, %v2953
      %v2977 = vmul.f32 %v2362, %v2953
      %v2978 = vmul.f32 %v2341, %v2953
      %v2979 = vmul.f32 %v2319, %v2953
      %v2980 = vmul.f32 %v2363, %v2953
      %v2981 = vmul.f32 %v2342, %v2953
      %v2982 = vmul.f32 %v2320, %v2953
      %v2983 = vmul.f32 %v2364, %v2953
      %v2984 = vmul.f32 %v2343, %v2953
      %v2985 = vmul.f32 %v2321, %v2953
      %v2986 = vmul.f32 %v2365, %v2953
      %v2987 = vmul.f32 %v2344, %v2953
      %v2988 = vmul.f32 %v2322, %v2953
      %v2989 = vmul.f32 %v2366, %v2953
      %v2990 = vmul.f32 %v2345, %v2953
      %v2991 = vmul.f32 %v2323, %v2953
      %v2992 = vmul.f32 %v2367, %v2953
      %v2993 = vmul.f32 %v2346, %v2953
      %v2994 = vmul.f32 %v2324, %v2953
      %v2995 = vmul.f32 %v2368, %v2953
      %v2996 = vmul.f32 %v2347, %v2953
      %v2997 = vmul.f32 %v2325, %v2953
      %v2998 = vmul.f32 %v2369, %v2953
      %v2999 = vmul.f32 %v2348, %v2953
      %v3000 = vmul.f32 %v2326, %v2953
      %v3001 = vmul.f32 %v2370, %v2953
      %v3002 = vadd.f32 %v2905, %v2954
      %v3003 = vadd.f32 %v2906, %v2955
      %v3004 = vadd.f32 %v2907, %v2956
      %v3005 = vadd.f32 %v2908, %v2957
      %v3006 = vadd.f32 %v2909, %v2958
      %v3007 = vadd.f32 %v2910, %v2959
      %v3008 = vadd.f32 %v2911, %v2960
      %v3009 = vadd.f32 %v2912, %v2961
      %v3010 = vadd.f32 %v2913, %v2962
      %v3011 = vadd.f32 %v2914, %v2963
      %v3012 = vadd.f32 %v2915, %v2964
      %v3013 = vadd.f32 %v2916, %v2965
      %v3014 = vadd.f32 %v2917, %v2966
      %v3015 = vadd.f32 %v2918, %v2967
      %v3016 = vadd.f32 %v2919, %v2968
      %v3017 = vadd.f32 %v2920, %v2969
      %v3018 = vadd.f32 %v2921, %v2970
      %v3019 = vadd.f32 %v2922, %v2971
      %v3020 = vadd.f32 %v2923, %v2972
      %v3021 = vadd.f32 %v2924, %v2973
      %v3022 = vadd.f32 %v2925, %v2974
      %v3023 = vadd.f32 %v2926, %v2975
      %v3024 = vadd.f32 %v2927, %v2976
      %v3025 = vadd.f32 %v2928, %v2977
      %v3026 = vadd.f32 %v2929, %v2978
      %v3027 = vadd.f32 %v2930, %v2979
      %v3028 = vadd.f32 %v2931, %v2980
      %v3029 = vadd.f32 %v2932, %v2981
      %v3030 = vadd.f32 %v2933, %v2982
      %v3031 = vadd.f32 %v2934, %v2983
      %v3032 = vadd.f32 %v2935, %v2984
      %v3033 = vadd.f32 %v2936, %v2985
      %v3034 = vadd.f32 %v2937, %v2986
      %v3035 = vadd.f32 %v2938, %v2987
      %v3036 = vadd.f32 %v2939, %v2988
      %v3037 = vadd.f32 %v2940, %v2989
      %v3038 = vadd.f32 %v2941, %v2990
      %v3039 = vadd.f32 %v2942, %v2991
      %v3040 = vadd.f32 %v2943, %v2992
      %v3041 = vadd.f32 %v2944, %v2993
      %v3042 = vadd.f32 %v2945, %v2994
      %v3043 = vadd.f32 %v2946, %v2995
      %v3044 = vadd.f32 %v2947, %v2996
      %v3045 = vadd.f32 %v2948, %v2997
      %v3046 = vadd.f32 %v2949, %v2998
      %v3047 = vadd.f32 %v2950, %v2999
      %v3048 = vadd.f32 %v2951, %v3000
      %v3049 = vadd.f32 %v2952, %v3001
      %v3050 = vrot.slane %v1486, 2
      %v3051 = vrot.slane %v1489, 2
      %v3052 = vrot.slane %v1492, 2
      %v3053 = vrot.slane %v1495, 2
      %v3054 = vrot.slane %v1498, 2
      %v3055 = vrot.slane %v1501, 2
      %v3056 = vrot.slane %v1504, 2
      %v3057 = vrot.slane %v1507, 2
      %v3058 = vrot.slane %v1510, 2
      %v3059 = vrot.slane %v1513, 2
      %v3060 = vrot.slane %v1516, 2
      %v3061 = vrot.slane %v1519, 2
      %v3062 = vrot.slane %v1522, 2
      %v3063 = vrot.slane %v1525, 2
      %v3064 = vrot.slane %v1528, 2
      %v3065 = vrot.slane %v1531, 2
      %v3066 = vrot.slane %v1534, 2
      %v3067 = vrot.slane %v1537, 2
      %v3068 = vrot.slane %v1540, 2
      %v3069 = vrot.slane %v1543, 2
      %v3070 = vrot.slane %v1546, 2
      %v3071 = vrot.slane %v1549, 2
      %v3072 = vrot.slane %v1487, 2
      %v3073 = vrot.slane %v1490, 2
      %v3074 = vrot.slane %v1493, 2
      %v3075 = vrot.slane %v1496, 2
      %v3076 = vrot.slane %v1499, 2
      %v3077 = vrot.slane %v1502, 2
      %v3078 = vrot.slane %v1505, 2
      %v3079 = vrot.slane %v1508, 2
      %v3080 = vrot.slane %v1511, 2
      %v3081 = vrot.slane %v1514, 2
      %v3082 = vrot.slane %v1517, 2
      %v3083 = vrot.slane %v1520, 2
      %v3084 = vrot.slane %v1523, 2
      %v3085 = vrot.slane %v1526, 2
      %v3086 = vrot.slane %v1529, 2
      %v3087 = vrot.slane %v1532, 2
      %v3088 = vrot.slane %v1535, 2
      %v3089 = vrot.slane %v1538, 2
      %v3090 = vrot.slane %v1541, 2
      %v3091 = vrot.slane %v1544, 2
      %v3092 = vrot.slane %v1547, 2
      %v3093 = vrot.slane %v1550, 2
      %v3094 = vrot.slane %v1488, 2
      %v3095 = vrot.slane %v1491, 2
      %v3096 = vrot.slane %v1494, 2
      %v3097 = vrot.slane %v1497, 2
      %v3098 = vrot.slane %v1500, 2
      %v3099 = vrot.slane %v1503, 2
      %v3100 = vrot.slane %v1506, 2
      %v3101 = vrot.slane %v1509, 2
      %v3102 = vrot.slane %v1512, 2
      %v3103 = vrot.slane %v1515, 2
      %v3104 = vrot.slane %v1518, 2
      %v3105 = vrot.slane %v1521, 2
      %v3106 = vrot.slane %v1524, 2
      %v3107 = vrot.slane %v1527, 2
      %v3108 = vrot.slane %v1530, 2
      %v3109 = vrot.slane %v1533, 2
      %v3110 = vrot.slane %v1536, 2
      %v3111 = vrot.slane %v1539, 2
      %v3112 = vrot.slane %v1542, 2
      %v3113 = vrot.slane %v1545, 2
      %v3114 = vrot.slane %v1548, 2
      %v3115 = vrot.slane %v1551, 2
      %vm3116 = vcmp.lt.s32.totalorder %v876, 6
      %v3117 = vsel %vm3116, %v3072, %v3094
      %v3118 = vsel %vm3116, %v3073, %v3095
      %v3119 = vsel %vm3116, %v3074, %v3096
      %v3120 = vsel %vm3116, %v3075, %v3097
      %v3121 = vsel %vm3116, %v3076, %v3098
      %v3122 = vsel %vm3116, %v3077, %v3099
      %v3123 = vsel %vm3116, %v3078, %v3100
      %v3124 = vsel %vm3116, %v3079, %v3101
      %v3125 = vsel %vm3116, %v3080, %v3102
      %v3126 = vsel %vm3116, %v3081, %v3103
      %v3127 = vsel %vm3116, %v3082, %v3104
      %v3128 = vsel %vm3116, %v3083, %v3105
      %v3129 = vsel %vm3116, %v3084, %v3106
      %v3130 = vsel %vm3116, %v3085, %v3107
      %v3131 = vsel %vm3116, %v3086, %v3108
      %v3132 = vsel %vm3116, %v3087, %v3109
      %v3133 = vsel %vm3116, %v3088, %v3110
      %v3134 = vsel %vm3116, %v3089, %v3111
      %v3135 = vsel %vm3116, %v3090, %v3112
      %v3136 = vsel %vm3116, %v3091, %v3113
      %v3137 = vsel %vm3116, %v3092, %v3114
      %v3138 = vsel %vm3116, %v3093, %v3115
      %v3139 = vsel %vm3116, %v3050, %v3072
      %v3140 = vsel %vm3116, %v3051, %v3073
      %v3141 = vsel %vm3116, %v3052, %v3074
      %v3142 = vsel %vm3116, %v3053, %v3075
      %v3143 = vsel %vm3116, %v3054, %v3076
      %v3144 = vsel %vm3116, %v3055, %v3077
      %v3145 = vsel %vm3116, %v3056, %v3078
      %v3146 = vsel %vm3116, %v3057, %v3079
      %v3147 = vsel %vm3116, %v3058, %v3080
      %v3148 = vsel %vm3116, %v3059, %v3081
      %v3149 = vsel %vm3116, %v3060, %v3082
      %v3150 = vsel %vm3116, %v3061, %v3083
      %v3151 = vsel %vm3116, %v3062, %v3084
      %v3152 = vsel %vm3116, %v3063, %v3085
      %v3153 = vsel %vm3116, %v3064, %v3086
      %v3154 = vsel %vm3116, %v3065, %v3087
      %v3155 = vsel %vm3116, %v3066, %v3088
      %v3156 = vsel %vm3116, %v3067, %v3089
      %v3157 = vsel %vm3116, %v3068, %v3090
      %v3158 = vsel %vm3116, %v3069, %v3091
      %v3159 = vsel %vm3116, %v3070, %v3092
      %v3160 = vsel %vm3116, %v3071, %v3093
      %v3161 = vsel %vm3116, %v3094, %v3050
      %v3162 = vsel %vm3116, %v3095, %v3051
      %v3163 = vsel %vm3116, %v3096, %v3052
      %v3164 = vsel %vm3116, %v3097, %v3053
      %v3165 = vsel %vm3116, %v3098, %v3054
      %v3166 = vsel %vm3116, %v3099, %v3055
      %v3167 = vsel %vm3116, %v3100, %v3056
      %v3168 = vsel %vm3116, %v3101, %v3057
      %v3169 = vsel %vm3116, %v3102, %v3058
      %v3170 = vsel %vm3116, %v3103, %v3059
      %v3171 = vsel %vm3116, %v3104, %v3060
      %v3172 = vsel %vm3116, %v3105, %v3061
      %v3173 = vsel %vm3116, %v3106, %v3062
      %v3174 = vsel %vm3116, %v3107, %v3063
      %v3175 = vsel %vm3116, %v3108, %v3064
      %v3176 = vsel %vm3116, %v3109, %v3065
      %v3177 = vsel %vm3116, %v3110, %v3066
      %v3178 = vsel %vm3116, %v3111, %v3067
      %v3179 = vsel %vm3116, %v3112, %v3068
      %v3180 = vsel %vm3116, %v3113, %v3069
      %v3181 = vsel %vm3116, %v3114, %v3070
      %v3182 = vsel %vm3116, %v3115, %v3071
      %v3183 = vperm.slane %v1552, 2
      %v3184 = vmul.f32 %v3139, %v3183
      %v3185 = vmul.f32 %v3117, %v3183
      %v3186 = vmul.f32 %v3161, %v3183
      %v3187 = vmul.f32 %v3140, %v3183
      %v3188 = vmul.f32 %v3118, %v3183
      %v3189 = vmul.f32 %v3162, %v3183
      %v3190 = vmul.f32 %v3141, %v3183
      %v3191 = vmul.f32 %v3119, %v3183
      %v3192 = vmul.f32 %v3163, %v3183
      %v3193 = vmul.f32 %v3142, %v3183
      %v3194 = vmul.f32 %v3120, %v3183
      %v3195 = vmul.f32 %v3164, %v3183
      %v3196 = vmul.f32 %v3143, %v3183
      %v3197 = vmul.f32 %v3121, %v3183
      %v3198 = vmul.f32 %v3165, %v3183
      %v3199 = vmul.f32 %v3144, %v3183
      %v3200 = vmul.f32 %v3122, %v3183
      %v3201 = vmul.f32 %v3166, %v3183
      %v3202 = vmul.f32 %v3145, %v3183
      %v3203 = vmul.f32 %v3123, %v3183
      %v3204 = vmul.f32 %v3167, %v3183
      %v3205 = vmul.f32 %v3146, %v3183
      %v3206 = vmul.f32 %v3124, %v3183
      %v3207 = vmul.f32 %v3168, %v3183
      %v3208 = vmul.f32 %v3147, %v3183
      %v3209 = vmul.f32 %v3125, %v3183
      %v3210 = vmul.f32 %v3169, %v3183
      %v3211 = vmul.f32 %v3148, %v3183
      %v3212 = vmul.f32 %v3126, %v3183
      %v3213 = vmul.f32 %v3170, %v3183
      %v3214 = vmul.f32 %v3149, %v3183
      %v3215 = vmul.f32 %v3127, %v3183
      %v3216 = vmul.f32 %v3171, %v3183
      %v3217 = vmul.f32 %v3150, %v3183
      %v3218 = vmul.f32 %v3128, %v3183
      %v3219 = vmul.f32 %v3172, %v3183
      %v3220 = vmul.f32 %v3151, %v3183
      %v3221 = vmul.f32 %v3129, %v3183
      %v3222 = vmul.f32 %v3173, %v3183
      %v3223 = vmul.f32 %v3152, %v3183
      %v3224 = vmul.f32 %v3130, %v3183
      %v3225 = vmul.f32 %v3174, %v3183
      %v3226 = vmul.f32 %v3153, %v3183
      %v3227 = vmul.f32 %v3131, %v3183
      %v3228 = vmul.f32 %v3175, %v3183
      %v3229 = vmul.f32 %v3154, %v3183
      %v3230 = vmul.f32 %v3132, %v3183
      %v3231 = vmul.f32 %v3176, %v3183
      %v3232 = vadd.f32 %v3002, %v3184
      %v3233 = vadd.f32 %v3003, %v3185
      %v3234 = vadd.f32 %v3004, %v3186
      %v3235 = vadd.f32 %v3005, %v3187
      %v3236 = vadd.f32 %v3006, %v3188
      %v3237 = vadd.f32 %v3007, %v3189
      %v3238 = vadd.f32 %v3008, %v3190
      %v3239 = vadd.f32 %v3009, %v3191
      %v3240 = vadd.f32 %v3010, %v3192
      %v3241 = vadd.f32 %v3011, %v3193
      %v3242 = vadd.f32 %v3012, %v3194
      %v3243 = vadd.f32 %v3013, %v3195
      %v3244 = vadd.f32 %v3014, %v3196
      %v3245 = vadd.f32 %v3015, %v3197
      %v3246 = vadd.f32 %v3016, %v3198
      %v3247 = vadd.f32 %v3017, %v3199
      %v3248 = vadd.f32 %v3018, %v3200
      %v3249 = vadd.f32 %v3019, %v3201
      %v3250 = vadd.f32 %v3020, %v3202
      %v3251 = vadd.f32 %v3021, %v3203
      %v3252 = vadd.f32 %v3022, %v3204
      %v3253 = vadd.f32 %v3023, %v3205
      %v3254 = vadd.f32 %v3024, %v3206
      %v3255 = vadd.f32 %v3025, %v3207
      %v3256 = vadd.f32 %v3026, %v3208
      %v3257 = vadd.f32 %v3027, %v3209
      %v3258 = vadd.f32 %v3028, %v3210
      %v3259 = vadd.f32 %v3029, %v3211
      %v3260 = vadd.f32 %v3030, %v3212
      %v3261 = vadd.f32 %v3031, %v3213
      %v3262 = vadd.f32 %v3032, %v3214
      %v3263 = vadd.f32 %v3033, %v3215
      %v3264 = vadd.f32 %v3034, %v3216
      %v3265 = vadd.f32 %v3035, %v3217
      %v3266 = vadd.f32 %v3036, %v3218
      %v3267 = vadd.f32 %v3037, %v3219
      %v3268 = vadd.f32 %v3038, %v3220
      %v3269 = vadd.f32 %v3039, %v3221
      %v3270 = vadd.f32 %v3040, %v3222
      %v3271 = vadd.f32 %v3041, %v3223
      %v3272 = vadd.f32 %v3042, %v3224
      %v3273 = vadd.f32 %v3043, %v3225
      %v3274 = vadd.f32 %v3044, %v3226
      %v3275 = vadd.f32 %v3045, %v3227
      %v3276 = vadd.f32 %v3046, %v3228
      %v3277 = vadd.f32 %v3047, %v3229
      %v3278 = vadd.f32 %v3048, %v3230
      %v3279 = vadd.f32 %v3049, %v3231
      %v3280 = vperm.slane %v1553, 1
      %v3281 = vmul.f32 %v3140, %v3280
      %v3282 = vmul.f32 %v3118, %v3280
      %v3283 = vmul.f32 %v3162, %v3280
      %v3284 = vmul.f32 %v3141, %v3280
      %v3285 = vmul.f32 %v3119, %v3280
      %v3286 = vmul.f32 %v3163, %v3280
      %v3287 = vmul.f32 %v3142, %v3280
      %v3288 = vmul.f32 %v3120, %v3280
      %v3289 = vmul.f32 %v3164, %v3280
      %v3290 = vmul.f32 %v3143, %v3280
      %v3291 = vmul.f32 %v3121, %v3280
      %v3292 = vmul.f32 %v3165, %v3280
      %v3293 = vmul.f32 %v3144, %v3280
      %v3294 = vmul.f32 %v3122, %v3280
      %v3295 = vmul.f32 %v3166, %v3280
      %v3296 = vmul.f32 %v3145, %v3280
      %v3297 = vmul.f32 %v3123, %v3280
      %v3298 = vmul.f32 %v3167, %v3280
      %v3299 = vmul.f32 %v3146, %v3280
      %v3300 = vmul.f32 %v3124, %v3280
      %v3301 = vmul.f32 %v3168, %v3280
      %v3302 = vmul.f32 %v3147, %v3280
      %v3303 = vmul.f32 %v3125, %v3280
      %v3304 = vmul.f32 %v3169, %v3280
      %v3305 = vmul.f32 %v3148, %v3280
      %v3306 = vmul.f32 %v3126, %v3280
      %v3307 = vmul.f32 %v3170, %v3280
      %v3308 = vmul.f32 %v3149, %v3280
      %v3309 = vmul.f32 %v3127, %v3280
      %v3310 = vmul.f32 %v3171, %v3280
      %v3311 = vmul.f32 %v3150, %v3280
      %v3312 = vmul.f32 %v3128, %v3280
      %v3313 = vmul.f32 %v3172, %v3280
      %v3314 = vmul.f32 %v3151, %v3280
      %v3315 = vmul.f32 %v3129, %v3280
      %v3316 = vmul.f32 %v3173, %v3280
      %v3317 = vmul.f32 %v3152, %v3280
      %v3318 = vmul.f32 %v3130, %v3280
      %v3319 = vmul.f32 %v3174, %v3280
      %v3320 = vmul.f32 %v3153, %v3280
      %v3321 = vmul.f32 %v3131, %v3280
      %v3322 = vmul.f32 %v3175, %v3280
      %v3323 = vmul.f32 %v3154, %v3280
      %v3324 = vmul.f32 %v3132, %v3280
      %v3325 = vmul.f32 %v3176, %v3280
      %v3326 = vmul.f32 %v3155, %v3280
      %v3327 = vmul.f32 %v3133, %v3280
      %v3328 = vmul.f32 %v3177, %v3280
      %v3329 = vadd.f32 %v3232, %v3281
      %v3330 = vadd.f32 %v3233, %v3282
      %v3331 = vadd.f32 %v3234, %v3283
      %v3332 = vadd.f32 %v3235, %v3284
      %v3333 = vadd.f32 %v3236, %v3285
      %v3334 = vadd.f32 %v3237, %v3286
      %v3335 = vadd.f32 %v3238, %v3287
      %v3336 = vadd.f32 %v3239, %v3288
      %v3337 = vadd.f32 %v3240, %v3289
      %v3338 = vadd.f32 %v3241, %v3290
      %v3339 = vadd.f32 %v3242, %v3291
      %v3340 = vadd.f32 %v3243, %v3292
      %v3341 = vadd.f32 %v3244, %v3293
      %v3342 = vadd.f32 %v3245, %v3294
      %v3343 = vadd.f32 %v3246, %v3295
      %v3344 = vadd.f32 %v3247, %v3296
      %v3345 = vadd.f32 %v3248, %v3297
      %v3346 = vadd.f32 %v3249, %v3298
      %v3347 = vadd.f32 %v3250, %v3299
      %v3348 = vadd.f32 %v3251, %v3300
      %v3349 = vadd.f32 %v3252, %v3301
      %v3350 = vadd.f32 %v3253, %v3302
      %v3351 = vadd.f32 %v3254, %v3303
      %v3352 = vadd.f32 %v3255, %v3304
      %v3353 = vadd.f32 %v3256, %v3305
      %v3354 = vadd.f32 %v3257, %v3306
      %v3355 = vadd.f32 %v3258, %v3307
      %v3356 = vadd.f32 %v3259, %v3308
      %v3357 = vadd.f32 %v3260, %v3309
      %v3358 = vadd.f32 %v3261, %v3310
      %v3359 = vadd.f32 %v3262, %v3311
      %v3360 = vadd.f32 %v3263, %v3312
      %v3361 = vadd.f32 %v3264, %v3313
      %v3362 = vadd.f32 %v3265, %v3314
      %v3363 = vadd.f32 %v3266, %v3315
      %v3364 = vadd.f32 %v3267, %v3316
      %v3365 = vadd.f32 %v3268, %v3317
      %v3366 = vadd.f32 %v3269, %v3318
      %v3367 = vadd.f32 %v3270, %v3319
      %v3368 = vadd.f32 %v3271, %v3320
      %v3369 = vadd.f32 %v3272, %v3321
      %v3370 = vadd.f32 %v3273, %v3322
      %v3371 = vadd.f32 %v3274, %v3323
      %v3372 = vadd.f32 %v3275, %v3324
      %v3373 = vadd.f32 %v3276, %v3325
      %v3374 = vadd.f32 %v3277, %v3326
      %v3375 = vadd.f32 %v3278, %v3327
      %v3376 = vadd.f32 %v3279, %v3328
      %v3377 = vperm.slane %v1554, 0
      %v3378 = vmul.f32 %v3141, %v3377
      %v3379 = vmul.f32 %v3119, %v3377
      %v3380 = vmul.f32 %v3163, %v3377
      %v3381 = vmul.f32 %v3142, %v3377
      %v3382 = vmul.f32 %v3120, %v3377
      %v3383 = vmul.f32 %v3164, %v3377
      %v3384 = vmul.f32 %v3143, %v3377
      %v3385 = vmul.f32 %v3121, %v3377
      %v3386 = vmul.f32 %v3165, %v3377
      %v3387 = vmul.f32 %v3144, %v3377
      %v3388 = vmul.f32 %v3122, %v3377
      %v3389 = vmul.f32 %v3166, %v3377
      %v3390 = vmul.f32 %v3145, %v3377
      %v3391 = vmul.f32 %v3123, %v3377
      %v3392 = vmul.f32 %v3167, %v3377
      %v3393 = vmul.f32 %v3146, %v3377
      %v3394 = vmul.f32 %v3124, %v3377
      %v3395 = vmul.f32 %v3168, %v3377
      %v3396 = vmul.f32 %v3147, %v3377
      %v3397 = vmul.f32 %v3125, %v3377
      %v3398 = vmul.f32 %v3169, %v3377
      %v3399 = vmul.f32 %v3148, %v3377
      %v3400 = vmul.f32 %v3126, %v3377
      %v3401 = vmul.f32 %v3170, %v3377
      %v3402 = vmul.f32 %v3149, %v3377
      %v3403 = vmul.f32 %v3127, %v3377
      %v3404 = vmul.f32 %v3171, %v3377
      %v3405 = vmul.f32 %v3150, %v3377
      %v3406 = vmul.f32 %v3128, %v3377
      %v3407 = vmul.f32 %v3172, %v3377
      %v3408 = vmul.f32 %v3151, %v3377
      %v3409 = vmul.f32 %v3129, %v3377
      %v3410 = vmul.f32 %v3173, %v3377
      %v3411 = vmul.f32 %v3152, %v3377
      %v3412 = vmul.f32 %v3130, %v3377
      %v3413 = vmul.f32 %v3174, %v3377
      %v3414 = vmul.f32 %v3153, %v3377
      %v3415 = vmul.f32 %v3131, %v3377
      %v3416 = vmul.f32 %v3175, %v3377
      %v3417 = vmul.f32 %v3154, %v3377
      %v3418 = vmul.f32 %v3132, %v3377
      %v3419 = vmul.f32 %v3176, %v3377
      %v3420 = vmul.f32 %v3155, %v3377
      %v3421 = vmul.f32 %v3133, %v3377
      %v3422 = vmul.f32 %v3177, %v3377
      %v3423 = vmul.f32 %v3156, %v3377
      %v3424 = vmul.f32 %v3134, %v3377
      %v3425 = vmul.f32 %v3178, %v3377
      %v3426 = vadd.f32 %v3329, %v3378
      %v3427 = vadd.f32 %v3330, %v3379
      %v3428 = vadd.f32 %v3331, %v3380
      %v3429 = vadd.f32 %v3332, %v3381
      %v3430 = vadd.f32 %v3333, %v3382
      %v3431 = vadd.f32 %v3334, %v3383
      %v3432 = vadd.f32 %v3335, %v3384
      %v3433 = vadd.f32 %v3336, %v3385
      %v3434 = vadd.f32 %v3337, %v3386
      %v3435 = vadd.f32 %v3338, %v3387
      %v3436 = vadd.f32 %v3339, %v3388
      %v3437 = vadd.f32 %v3340, %v3389
      %v3438 = vadd.f32 %v3341, %v3390
      %v3439 = vadd.f32 %v3342, %v3391
      %v3440 = vadd.f32 %v3343, %v3392
      %v3441 = vadd.f32 %v3344, %v3393
      %v3442 = vadd.f32 %v3345, %v3394
      %v3443 = vadd.f32 %v3346, %v3395
      %v3444 = vadd.f32 %v3347, %v3396
      %v3445 = vadd.f32 %v3348, %v3397
      %v3446 = vadd.f32 %v3349, %v3398
      %v3447 = vadd.f32 %v3350, %v3399
      %v3448 = vadd.f32 %v3351, %v3400
      %v3449 = vadd.f32 %v3352, %v3401
      %v3450 = vadd.f32 %v3353, %v3402
      %v3451 = vadd.f32 %v3354, %v3403
      %v3452 = vadd.f32 %v3355, %v3404
      %v3453 = vadd.f32 %v3356, %v3405
      %v3454 = vadd.f32 %v3357, %v3406
      %v3455 = vadd.f32 %v3358, %v3407
      %v3456 = vadd.f32 %v3359, %v3408
      %v3457 = vadd.f32 %v3360, %v3409
      %v3458 = vadd.f32 %v3361, %v3410
      %v3459 = vadd.f32 %v3362, %v3411
      %v3460 = vadd.f32 %v3363, %v3412
      %v3461 = vadd.f32 %v3364, %v3413
      %v3462 = vadd.f32 %v3365, %v3414
      %v3463 = vadd.f32 %v3366, %v3415
      %v3464 = vadd.f32 %v3367, %v3416
      %v3465 = vadd.f32 %v3368, %v3417
      %v3466 = vadd.f32 %v3369, %v3418
      %v3467 = vadd.f32 %v3370, %v3419
      %v3468 = vadd.f32 %v3371, %v3420
      %v3469 = vadd.f32 %v3372, %v3421
      %v3470 = vadd.f32 %v3373, %v3422
      %v3471 = vadd.f32 %v3374, %v3423
      %v3472 = vadd.f32 %v3375, %v3424
      %v3473 = vadd.f32 %v3376, %v3425
      %v3474 = vperm.slane %v1554, 7
      %v3475 = vmul.f32 %v3142, %v3474
      %v3476 = vmul.f32 %v3120, %v3474
      %v3477 = vmul.f32 %v3164, %v3474
      %v3478 = vmul.f32 %v3143, %v3474
      %v3479 = vmul.f32 %v3121, %v3474
      %v3480 = vmul.f32 %v3165, %v3474
      %v3481 = vmul.f32 %v3144, %v3474
      %v3482 = vmul.f32 %v3122, %v3474
      %v3483 = vmul.f32 %v3166, %v3474
      %v3484 = vmul.f32 %v3145, %v3474
      %v3485 = vmul.f32 %v3123, %v3474
      %v3486 = vmul.f32 %v3167, %v3474
      %v3487 = vmul.f32 %v3146, %v3474
      %v3488 = vmul.f32 %v3124, %v3474
      %v3489 = vmul.f32 %v3168, %v3474
      %v3490 = vmul.f32 %v3147, %v3474
      %v3491 = vmul.f32 %v3125, %v3474
      %v3492 = vmul.f32 %v3169, %v3474
      %v3493 = vmul.f32 %v3148, %v3474
      %v3494 = vmul.f32 %v3126, %v3474
      %v3495 = vmul.f32 %v3170, %v3474
      %v3496 = vmul.f32 %v3149, %v3474
      %v3497 = vmul.f32 %v3127, %v3474
      %v3498 = vmul.f32 %v3171, %v3474
      %v3499 = vmul.f32 %v3150, %v3474
      %v3500 = vmul.f32 %v3128, %v3474
      %v3501 = vmul.f32 %v3172, %v3474
      %v3502 = vmul.f32 %v3151, %v3474
      %v3503 = vmul.f32 %v3129, %v3474
      %v3504 = vmul.f32 %v3173, %v3474
      %v3505 = vmul.f32 %v3152, %v3474
      %v3506 = vmul.f32 %v3130, %v3474
      %v3507 = vmul.f32 %v3174, %v3474
      %v3508 = vmul.f32 %v3153, %v3474
      %v3509 = vmul.f32 %v3131, %v3474
      %v3510 = vmul.f32 %v3175, %v3474
      %v3511 = vmul.f32 %v3154, %v3474
      %v3512 = vmul.f32 %v3132, %v3474
      %v3513 = vmul.f32 %v3176, %v3474
      %v3514 = vmul.f32 %v3155, %v3474
      %v3515 = vmul.f32 %v3133, %v3474
      %v3516 = vmul.f32 %v3177, %v3474
      %v3517 = vmul.f32 %v3156, %v3474
      %v3518 = vmul.f32 %v3134, %v3474
      %v3519 = vmul.f32 %v3178, %v3474
      %v3520 = vmul.f32 %v3157, %v3474
      %v3521 = vmul.f32 %v3135, %v3474
      %v3522 = vmul.f32 %v3179, %v3474
      %v3523 = vadd.f32 %v3426, %v3475
      %v3524 = vadd.f32 %v3427, %v3476
      %v3525 = vadd.f32 %v3428, %v3477
      %v3526 = vadd.f32 %v3429, %v3478
      %v3527 = vadd.f32 %v3430, %v3479
      %v3528 = vadd.f32 %v3431, %v3480
      %v3529 = vadd.f32 %v3432, %v3481
      %v3530 = vadd.f32 %v3433, %v3482
      %v3531 = vadd.f32 %v3434, %v3483
      %v3532 = vadd.f32 %v3435, %v3484
      %v3533 = vadd.f32 %v3436, %v3485
      %v3534 = vadd.f32 %v3437, %v3486
      %v3535 = vadd.f32 %v3438, %v3487
      %v3536 = vadd.f32 %v3439, %v3488
      %v3537 = vadd.f32 %v3440, %v3489
      %v3538 = vadd.f32 %v3441, %v3490
      %v3539 = vadd.f32 %v3442, %v3491
      %v3540 = vadd.f32 %v3443, %v3492
      %v3541 = vadd.f32 %v3444, %v3493
      %v3542 = vadd.f32 %v3445, %v3494
      %v3543 = vadd.f32 %v3446, %v3495
      %v3544 = vadd.f32 %v3447, %v3496
      %v3545 = vadd.f32 %v3448, %v3497
      %v3546 = vadd.f32 %v3449, %v3498
      %v3547 = vadd.f32 %v3450, %v3499
      %v3548 = vadd.f32 %v3451, %v3500
      %v3549 = vadd.f32 %v3452, %v3501
      %v3550 = vadd.f32 %v3453, %v3502
      %v3551 = vadd.f32 %v3454, %v3503
      %v3552 = vadd.f32 %v3455, %v3504
      %v3553 = vadd.f32 %v3456, %v3505
      %v3554 = vadd.f32 %v3457, %v3506
      %v3555 = vadd.f32 %v3458, %v3507
      %v3556 = vadd.f32 %v3459, %v3508
      %v3557 = vadd.f32 %v3460, %v3509
      %v3558 = vadd.f32 %v3461, %v3510
      %v3559 = vadd.f32 %v3462, %v3511
      %v3560 = vadd.f32 %v3463, %v3512
      %v3561 = vadd.f32 %v3464, %v3513
      %v3562 = vadd.f32 %v3465, %v3514
      %v3563 = vadd.f32 %v3466, %v3515
      %v3564 = vadd.f32 %v3467, %v3516
      %v3565 = vadd.f32 %v3468, %v3517
      %v3566 = vadd.f32 %v3469, %v3518
      %v3567 = vadd.f32 %v3470, %v3519
      %v3568 = vadd.f32 %v3471, %v3520
      %v3569 = vadd.f32 %v3472, %v3521
      %v3570 = vadd.f32 %v3473, %v3522
      %v3571 = vperm.slane %v1555, 6
      %v3572 = vmul.f32 %v3143, %v3571
      %v3573 = vmul.f32 %v3121, %v3571
      %v3574 = vmul.f32 %v3165, %v3571
      %v3575 = vmul.f32 %v3144, %v3571
      %v3576 = vmul.f32 %v3122, %v3571
      %v3577 = vmul.f32 %v3166, %v3571
      %v3578 = vmul.f32 %v3145, %v3571
      %v3579 = vmul.f32 %v3123, %v3571
      %v3580 = vmul.f32 %v3167, %v3571
      %v3581 = vmul.f32 %v3146, %v3571
      %v3582 = vmul.f32 %v3124, %v3571
      %v3583 = vmul.f32 %v3168, %v3571
      %v3584 = vmul.f32 %v3147, %v3571
      %v3585 = vmul.f32 %v3125, %v3571
      %v3586 = vmul.f32 %v3169, %v3571
      %v3587 = vmul.f32 %v3148, %v3571
      %v3588 = vmul.f32 %v3126, %v3571
      %v3589 = vmul.f32 %v3170, %v3571
      %v3590 = vmul.f32 %v3149, %v3571
      %v3591 = vmul.f32 %v3127, %v3571
      %v3592 = vmul.f32 %v3171, %v3571
      %v3593 = vmul.f32 %v3150, %v3571
      %v3594 = vmul.f32 %v3128, %v3571
      %v3595 = vmul.f32 %v3172, %v3571
      %v3596 = vmul.f32 %v3151, %v3571
      %v3597 = vmul.f32 %v3129, %v3571
      %v3598 = vmul.f32 %v3173, %v3571
      %v3599 = vmul.f32 %v3152, %v3571
      %v3600 = vmul.f32 %v3130, %v3571
      %v3601 = vmul.f32 %v3174, %v3571
      %v3602 = vmul.f32 %v3153, %v3571
      %v3603 = vmul.f32 %v3131, %v3571
      %v3604 = vmul.f32 %v3175, %v3571
      %v3605 = vmul.f32 %v3154, %v3571
      %v3606 = vmul.f32 %v3132, %v3571
      %v3607 = vmul.f32 %v3176, %v3571
      %v3608 = vmul.f32 %v3155, %v3571
      %v3609 = vmul.f32 %v3133, %v3571
      %v3610 = vmul.f32 %v3177, %v3571
      %v3611 = vmul.f32 %v3156, %v3571
      %v3612 = vmul.f32 %v3134, %v3571
      %v3613 = vmul.f32 %v3178, %v3571
      %v3614 = vmul.f32 %v3157, %v3571
      %v3615 = vmul.f32 %v3135, %v3571
      %v3616 = vmul.f32 %v3179, %v3571
      %v3617 = vmul.f32 %v3158, %v3571
      %v3618 = vmul.f32 %v3136, %v3571
      %v3619 = vmul.f32 %v3180, %v3571
      %v3620 = vadd.f32 %v3523, %v3572
      %v3621 = vadd.f32 %v3524, %v3573
      %v3622 = vadd.f32 %v3525, %v3574
      %v3623 = vadd.f32 %v3526, %v3575
      %v3624 = vadd.f32 %v3527, %v3576
      %v3625 = vadd.f32 %v3528, %v3577
      %v3626 = vadd.f32 %v3529, %v3578
      %v3627 = vadd.f32 %v3530, %v3579
      %v3628 = vadd.f32 %v3531, %v3580
      %v3629 = vadd.f32 %v3532, %v3581
      %v3630 = vadd.f32 %v3533, %v3582
      %v3631 = vadd.f32 %v3534, %v3583
      %v3632 = vadd.f32 %v3535, %v3584
      %v3633 = vadd.f32 %v3536, %v3585
      %v3634 = vadd.f32 %v3537, %v3586
      %v3635 = vadd.f32 %v3538, %v3587
      %v3636 = vadd.f32 %v3539, %v3588
      %v3637 = vadd.f32 %v3540, %v3589
      %v3638 = vadd.f32 %v3541, %v3590
      %v3639 = vadd.f32 %v3542, %v3591
      %v3640 = vadd.f32 %v3543, %v3592
      %v3641 = vadd.f32 %v3544, %v3593
      %v3642 = vadd.f32 %v3545, %v3594
      %v3643 = vadd.f32 %v3546, %v3595
      %v3644 = vadd.f32 %v3547, %v3596
      %v3645 = vadd.f32 %v3548, %v3597
      %v3646 = vadd.f32 %v3549, %v3598
      %v3647 = vadd.f32 %v3550, %v3599
      %v3648 = vadd.f32 %v3551, %v3600
      %v3649 = vadd.f32 %v3552, %v3601
      %v3650 = vadd.f32 %v3553, %v3602
      %v3651 = vadd.f32 %v3554, %v3603
      %v3652 = vadd.f32 %v3555, %v3604
      %v3653 = vadd.f32 %v3556, %v3605
      %v3654 = vadd.f32 %v3557, %v3606
      %v3655 = vadd.f32 %v3558, %v3607
      %v3656 = vadd.f32 %v3559, %v3608
      %v3657 = vadd.f32 %v3560, %v3609
      %v3658 = vadd.f32 %v3561, %v3610
      %v3659 = vadd.f32 %v3562, %v3611
      %v3660 = vadd.f32 %v3563, %v3612
      %v3661 = vadd.f32 %v3564, %v3613
      %v3662 = vadd.f32 %v3565, %v3614
      %v3663 = vadd.f32 %v3566, %v3615
      %v3664 = vadd.f32 %v3567, %v3616
      %v3665 = vadd.f32 %v3568, %v3617
      %v3666 = vadd.f32 %v3569, %v3618
      %v3667 = vadd.f32 %v3570, %v3619
      %v3668 = vperm.slane %v1556, 5
      %v3669 = vmul.f32 %v3144, %v3668
      %v3670 = vmul.f32 %v3122, %v3668
      %v3671 = vmul.f32 %v3166, %v3668
      %v3672 = vmul.f32 %v3145, %v3668
      %v3673 = vmul.f32 %v3123, %v3668
      %v3674 = vmul.f32 %v3167, %v3668
      %v3675 = vmul.f32 %v3146, %v3668
      %v3676 = vmul.f32 %v3124, %v3668
      %v3677 = vmul.f32 %v3168, %v3668
      %v3678 = vmul.f32 %v3147, %v3668
      %v3679 = vmul.f32 %v3125, %v3668
      %v3680 = vmul.f32 %v3169, %v3668
      %v3681 = vmul.f32 %v3148, %v3668
      %v3682 = vmul.f32 %v3126, %v3668
      %v3683 = vmul.f32 %v3170, %v3668
      %v3684 = vmul.f32 %v3149, %v3668
      %v3685 = vmul.f32 %v3127, %v3668
      %v3686 = vmul.f32 %v3171, %v3668
      %v3687 = vmul.f32 %v3150, %v3668
      %v3688 = vmul.f32 %v3128, %v3668
      %v3689 = vmul.f32 %v3172, %v3668
      %v3690 = vmul.f32 %v3151, %v3668
      %v3691 = vmul.f32 %v3129, %v3668
      %v3692 = vmul.f32 %v3173, %v3668
      %v3693 = vmul.f32 %v3152, %v3668
      %v3694 = vmul.f32 %v3130, %v3668
      %v3695 = vmul.f32 %v3174, %v3668
      %v3696 = vmul.f32 %v3153, %v3668
      %v3697 = vmul.f32 %v3131, %v3668
      %v3698 = vmul.f32 %v3175, %v3668
      %v3699 = vmul.f32 %v3154, %v3668
      %v3700 = vmul.f32 %v3132, %v3668
      %v3701 = vmul.f32 %v3176, %v3668
      %v3702 = vmul.f32 %v3155, %v3668
      %v3703 = vmul.f32 %v3133, %v3668
      %v3704 = vmul.f32 %v3177, %v3668
      %v3705 = vmul.f32 %v3156, %v3668
      %v3706 = vmul.f32 %v3134, %v3668
      %v3707 = vmul.f32 %v3178, %v3668
      %v3708 = vmul.f32 %v3157, %v3668
      %v3709 = vmul.f32 %v3135, %v3668
      %v3710 = vmul.f32 %v3179, %v3668
      %v3711 = vmul.f32 %v3158, %v3668
      %v3712 = vmul.f32 %v3136, %v3668
      %v3713 = vmul.f32 %v3180, %v3668
      %v3714 = vmul.f32 %v3159, %v3668
      %v3715 = vmul.f32 %v3137, %v3668
      %v3716 = vmul.f32 %v3181, %v3668
      %v3717 = vadd.f32 %v3620, %v3669
      %v3718 = vadd.f32 %v3621, %v3670
      %v3719 = vadd.f32 %v3622, %v3671
      %v3720 = vadd.f32 %v3623, %v3672
      %v3721 = vadd.f32 %v3624, %v3673
      %v3722 = vadd.f32 %v3625, %v3674
      %v3723 = vadd.f32 %v3626, %v3675
      %v3724 = vadd.f32 %v3627, %v3676
      %v3725 = vadd.f32 %v3628, %v3677
      %v3726 = vadd.f32 %v3629, %v3678
      %v3727 = vadd.f32 %v3630, %v3679
      %v3728 = vadd.f32 %v3631, %v3680
      %v3729 = vadd.f32 %v3632, %v3681
      %v3730 = vadd.f32 %v3633, %v3682
      %v3731 = vadd.f32 %v3634, %v3683
      %v3732 = vadd.f32 %v3635, %v3684
      %v3733 = vadd.f32 %v3636, %v3685
      %v3734 = vadd.f32 %v3637, %v3686
      %v3735 = vadd.f32 %v3638, %v3687
      %v3736 = vadd.f32 %v3639, %v3688
      %v3737 = vadd.f32 %v3640, %v3689
      %v3738 = vadd.f32 %v3641, %v3690
      %v3739 = vadd.f32 %v3642, %v3691
      %v3740 = vadd.f32 %v3643, %v3692
      %v3741 = vadd.f32 %v3644, %v3693
      %v3742 = vadd.f32 %v3645, %v3694
      %v3743 = vadd.f32 %v3646, %v3695
      %v3744 = vadd.f32 %v3647, %v3696
      %v3745 = vadd.f32 %v3648, %v3697
      %v3746 = vadd.f32 %v3649, %v3698
      %v3747 = vadd.f32 %v3650, %v3699
      %v3748 = vadd.f32 %v3651, %v3700
      %v3749 = vadd.f32 %v3652, %v3701
      %v3750 = vadd.f32 %v3653, %v3702
      %v3751 = vadd.f32 %v3654, %v3703
      %v3752 = vadd.f32 %v3655, %v3704
      %v3753 = vadd.f32 %v3656, %v3705
      %v3754 = vadd.f32 %v3657, %v3706
      %v3755 = vadd.f32 %v3658, %v3707
      %v3756 = vadd.f32 %v3659, %v3708
      %v3757 = vadd.f32 %v3660, %v3709
      %v3758 = vadd.f32 %v3661, %v3710
      %v3759 = vadd.f32 %v3662, %v3711
      %v3760 = vadd.f32 %v3663, %v3712
      %v3761 = vadd.f32 %v3664, %v3713
      %v3762 = vadd.f32 %v3665, %v3714
      %v3763 = vadd.f32 %v3666, %v3715
      %v3764 = vadd.f32 %v3667, %v3716
      %v3765 = vperm.slane %v1557, 4
      %v3766 = vmul.f32 %v3145, %v3765
      %v3767 = vmul.f32 %v3123, %v3765
      %v3768 = vmul.f32 %v3167, %v3765
      %v3769 = vmul.f32 %v3146, %v3765
      %v3770 = vmul.f32 %v3124, %v3765
      %v3771 = vmul.f32 %v3168, %v3765
      %v3772 = vmul.f32 %v3147, %v3765
      %v3773 = vmul.f32 %v3125, %v3765
      %v3774 = vmul.f32 %v3169, %v3765
      %v3775 = vmul.f32 %v3148, %v3765
      %v3776 = vmul.f32 %v3126, %v3765
      %v3777 = vmul.f32 %v3170, %v3765
      %v3778 = vmul.f32 %v3149, %v3765
      %v3779 = vmul.f32 %v3127, %v3765
      %v3780 = vmul.f32 %v3171, %v3765
      %v3781 = vmul.f32 %v3150, %v3765
      %v3782 = vmul.f32 %v3128, %v3765
      %v3783 = vmul.f32 %v3172, %v3765
      %v3784 = vmul.f32 %v3151, %v3765
      %v3785 = vmul.f32 %v3129, %v3765
      %v3786 = vmul.f32 %v3173, %v3765
      %v3787 = vmul.f32 %v3152, %v3765
      %v3788 = vmul.f32 %v3130, %v3765
      %v3789 = vmul.f32 %v3174, %v3765
      %v3790 = vmul.f32 %v3153, %v3765
      %v3791 = vmul.f32 %v3131, %v3765
      %v3792 = vmul.f32 %v3175, %v3765
      %v3793 = vmul.f32 %v3154, %v3765
      %v3794 = vmul.f32 %v3132, %v3765
      %v3795 = vmul.f32 %v3176, %v3765
      %v3796 = vmul.f32 %v3155, %v3765
      %v3797 = vmul.f32 %v3133, %v3765
      %v3798 = vmul.f32 %v3177, %v3765
      %v3799 = vmul.f32 %v3156, %v3765
      %v3800 = vmul.f32 %v3134, %v3765
      %v3801 = vmul.f32 %v3178, %v3765
      %v3802 = vmul.f32 %v3157, %v3765
      %v3803 = vmul.f32 %v3135, %v3765
      %v3804 = vmul.f32 %v3179, %v3765
      %v3805 = vmul.f32 %v3158, %v3765
      %v3806 = vmul.f32 %v3136, %v3765
      %v3807 = vmul.f32 %v3180, %v3765
      %v3808 = vmul.f32 %v3159, %v3765
      %v3809 = vmul.f32 %v3137, %v3765
      %v3810 = vmul.f32 %v3181, %v3765
      %v3811 = vmul.f32 %v3160, %v3765
      %v3812 = vmul.f32 %v3138, %v3765
      %v3813 = vmul.f32 %v3182, %v3765
      %v3814 = vadd.f32 %v3717, %v3766
      %v3815 = vadd.f32 %v3718, %v3767
      %v3816 = vadd.f32 %v3719, %v3768
      %v3817 = vadd.f32 %v3720, %v3769
      %v3818 = vadd.f32 %v3721, %v3770
      %v3819 = vadd.f32 %v3722, %v3771
      %v3820 = vadd.f32 %v3723, %v3772
      %v3821 = vadd.f32 %v3724, %v3773
      %v3822 = vadd.f32 %v3725, %v3774
      %v3823 = vadd.f32 %v3726, %v3775
      %v3824 = vadd.f32 %v3727, %v3776
      %v3825 = vadd.f32 %v3728, %v3777
      %v3826 = vadd.f32 %v3729, %v3778
      %v3827 = vadd.f32 %v3730, %v3779
      %v3828 = vadd.f32 %v3731, %v3780
      %v3829 = vadd.f32 %v3732, %v3781
      %v3830 = vadd.f32 %v3733, %v3782
      %v3831 = vadd.f32 %v3734, %v3783
      %v3832 = vadd.f32 %v3735, %v3784
      %v3833 = vadd.f32 %v3736, %v3785
      %v3834 = vadd.f32 %v3737, %v3786
      %v3835 = vadd.f32 %v3738, %v3787
      %v3836 = vadd.f32 %v3739, %v3788
      %v3837 = vadd.f32 %v3740, %v3789
      %v3838 = vadd.f32 %v3741, %v3790
      %v3839 = vadd.f32 %v3742, %v3791
      %v3840 = vadd.f32 %v3743, %v3792
      %v3841 = vadd.f32 %v3744, %v3793
      %v3842 = vadd.f32 %v3745, %v3794
      %v3843 = vadd.f32 %v3746, %v3795
      %v3844 = vadd.f32 %v3747, %v3796
      %v3845 = vadd.f32 %v3748, %v3797
      %v3846 = vadd.f32 %v3749, %v3798
      %v3847 = vadd.f32 %v3750, %v3799
      %v3848 = vadd.f32 %v3751, %v3800
      %v3849 = vadd.f32 %v3752, %v3801
      %v3850 = vadd.f32 %v3753, %v3802
      %v3851 = vadd.f32 %v3754, %v3803
      %v3852 = vadd.f32 %v3755, %v3804
      %v3853 = vadd.f32 %v3756, %v3805
      %v3854 = vadd.f32 %v3757, %v3806
      %v3855 = vadd.f32 %v3758, %v3807
      %v3856 = vadd.f32 %v3759, %v3808
      %v3857 = vadd.f32 %v3760, %v3809
      %v3858 = vadd.f32 %v3761, %v3810
      %v3859 = vadd.f32 %v3762, %v3811
      %v3860 = vadd.f32 %v3763, %v3812
      %v3861 = vadd.f32 %v3764, %v3813
      %v3862 = vrot.slane %v1486, 3
      %v3863 = vrot.slane %v1489, 3
      %v3864 = vrot.slane %v1492, 3
      %v3865 = vrot.slane %v1495, 3
      %v3866 = vrot.slane %v1498, 3
      %v3867 = vrot.slane %v1501, 3
      %v3868 = vrot.slane %v1504, 3
      %v3869 = vrot.slane %v1507, 3
      %v3870 = vrot.slane %v1510, 3
      %v3871 = vrot.slane %v1513, 3
      %v3872 = vrot.slane %v1516, 3
      %v3873 = vrot.slane %v1519, 3
      %v3874 = vrot.slane %v1522, 3
      %v3875 = vrot.slane %v1525, 3
      %v3876 = vrot.slane %v1528, 3
      %v3877 = vrot.slane %v1531, 3
      %v3878 = vrot.slane %v1534, 3
      %v3879 = vrot.slane %v1537, 3
      %v3880 = vrot.slane %v1540, 3
      %v3881 = vrot.slane %v1543, 3
      %v3882 = vrot.slane %v1546, 3
      %v3883 = vrot.slane %v1549, 3
      %v3884 = vrot.slane %v1487, 3
      %v3885 = vrot.slane %v1490, 3
      %v3886 = vrot.slane %v1493, 3
      %v3887 = vrot.slane %v1496, 3
      %v3888 = vrot.slane %v1499, 3
      %v3889 = vrot.slane %v1502, 3
      %v3890 = vrot.slane %v1505, 3
      %v3891 = vrot.slane %v1508, 3
      %v3892 = vrot.slane %v1511, 3
      %v3893 = vrot.slane %v1514, 3
      %v3894 = vrot.slane %v1517, 3
      %v3895 = vrot.slane %v1520, 3
      %v3896 = vrot.slane %v1523, 3
      %v3897 = vrot.slane %v1526, 3
      %v3898 = vrot.slane %v1529, 3
      %v3899 = vrot.slane %v1532, 3
      %v3900 = vrot.slane %v1535, 3
      %v3901 = vrot.slane %v1538, 3
      %v3902 = vrot.slane %v1541, 3
      %v3903 = vrot.slane %v1544, 3
      %v3904 = vrot.slane %v1547, 3
      %v3905 = vrot.slane %v1550, 3
      %v3906 = vrot.slane %v1488, 3
      %v3907 = vrot.slane %v1491, 3
      %v3908 = vrot.slane %v1494, 3
      %v3909 = vrot.slane %v1497, 3
      %v3910 = vrot.slane %v1500, 3
      %v3911 = vrot.slane %v1503, 3
      %v3912 = vrot.slane %v1506, 3
      %v3913 = vrot.slane %v1509, 3
      %v3914 = vrot.slane %v1512, 3
      %v3915 = vrot.slane %v1515, 3
      %v3916 = vrot.slane %v1518, 3
      %v3917 = vrot.slane %v1521, 3
      %v3918 = vrot.slane %v1524, 3
      %v3919 = vrot.slane %v1527, 3
      %v3920 = vrot.slane %v1530, 3
      %v3921 = vrot.slane %v1533, 3
      %v3922 = vrot.slane %v1536, 3
      %v3923 = vrot.slane %v1539, 3
      %v3924 = vrot.slane %v1542, 3
      %v3925 = vrot.slane %v1545, 3
      %v3926 = vrot.slane %v1548, 3
      %v3927 = vrot.slane %v1551, 3
      %vm3928 = vcmp.lt.s32.totalorder %v876, 5
      %v3929 = vsel %vm3928, %v3884, %v3906
      %v3930 = vsel %vm3928, %v3885, %v3907
      %v3931 = vsel %vm3928, %v3886, %v3908
      %v3932 = vsel %vm3928, %v3887, %v3909
      %v3933 = vsel %vm3928, %v3888, %v3910
      %v3934 = vsel %vm3928, %v3889, %v3911
      %v3935 = vsel %vm3928, %v3890, %v3912
      %v3936 = vsel %vm3928, %v3891, %v3913
      %v3937 = vsel %vm3928, %v3892, %v3914
      %v3938 = vsel %vm3928, %v3893, %v3915
      %v3939 = vsel %vm3928, %v3894, %v3916
      %v3940 = vsel %vm3928, %v3895, %v3917
      %v3941 = vsel %vm3928, %v3896, %v3918
      %v3942 = vsel %vm3928, %v3897, %v3919
      %v3943 = vsel %vm3928, %v3898, %v3920
      %v3944 = vsel %vm3928, %v3899, %v3921
      %v3945 = vsel %vm3928, %v3900, %v3922
      %v3946 = vsel %vm3928, %v3901, %v3923
      %v3947 = vsel %vm3928, %v3902, %v3924
      %v3948 = vsel %vm3928, %v3903, %v3925
      %v3949 = vsel %vm3928, %v3904, %v3926
      %v3950 = vsel %vm3928, %v3905, %v3927
      %v3951 = vsel %vm3928, %v3862, %v3884
      %v3952 = vsel %vm3928, %v3863, %v3885
      %v3953 = vsel %vm3928, %v3864, %v3886
      %v3954 = vsel %vm3928, %v3865, %v3887
      %v3955 = vsel %vm3928, %v3866, %v3888
      %v3956 = vsel %vm3928, %v3867, %v3889
      %v3957 = vsel %vm3928, %v3868, %v3890
      %v3958 = vsel %vm3928, %v3869, %v3891
      %v3959 = vsel %vm3928, %v3870, %v3892
      %v3960 = vsel %vm3928, %v3871, %v3893
      %v3961 = vsel %vm3928, %v3872, %v3894
      %v3962 = vsel %vm3928, %v3873, %v3895
      %v3963 = vsel %vm3928, %v3874, %v3896
      %v3964 = vsel %vm3928, %v3875, %v3897
      %v3965 = vsel %vm3928, %v3876, %v3898
      %v3966 = vsel %vm3928, %v3877, %v3899
      %v3967 = vsel %vm3928, %v3878, %v3900
      %v3968 = vsel %vm3928, %v3879, %v3901
      %v3969 = vsel %vm3928, %v3880, %v3902
      %v3970 = vsel %vm3928, %v3881, %v3903
      %v3971 = vsel %vm3928, %v3882, %v3904
      %v3972 = vsel %vm3928, %v3883, %v3905
      %v3973 = vsel %vm3928, %v3906, %v3862
      %v3974 = vsel %vm3928, %v3907, %v3863
      %v3975 = vsel %vm3928, %v3908, %v3864
      %v3976 = vsel %vm3928, %v3909, %v3865
      %v3977 = vsel %vm3928, %v3910, %v3866
      %v3978 = vsel %vm3928, %v3911, %v3867
      %v3979 = vsel %vm3928, %v3912, %v3868
      %v3980 = vsel %vm3928, %v3913, %v3869
      %v3981 = vsel %vm3928, %v3914, %v3870
      %v3982 = vsel %vm3928, %v3915, %v3871
      %v3983 = vsel %vm3928, %v3916, %v3872
      %v3984 = vsel %vm3928, %v3917, %v3873
      %v3985 = vsel %vm3928, %v3918, %v3874
      %v3986 = vsel %vm3928, %v3919, %v3875
      %v3987 = vsel %vm3928, %v3920, %v3876
      %v3988 = vsel %vm3928, %v3921, %v3877
      %v3989 = vsel %vm3928, %v3922, %v3878
      %v3990 = vsel %vm3928, %v3923, %v3879
      %v3991 = vsel %vm3928, %v3924, %v3880
      %v3992 = vsel %vm3928, %v3925, %v3881
      %v3993 = vsel %vm3928, %v3926, %v3882
      %v3994 = vsel %vm3928, %v3927, %v3883
      %v3995 = vperm.slane %v1552, 3
      %v3996 = vmul.f32 %v3951, %v3995
      %v3997 = vmul.f32 %v3929, %v3995
      %v3998 = vmul.f32 %v3973, %v3995
      %v3999 = vmul.f32 %v3952, %v3995
      %v4000 = vmul.f32 %v3930, %v3995
      %v4001 = vmul.f32 %v3974, %v3995
      %v4002 = vmul.f32 %v3953, %v3995
      %v4003 = vmul.f32 %v3931, %v3995
      %v4004 = vmul.f32 %v3975, %v3995
      %v4005 = vmul.f32 %v3954, %v3995
      %v4006 = vmul.f32 %v3932, %v3995
      %v4007 = vmul.f32 %v3976, %v3995
      %v4008 = vmul.f32 %v3955, %v3995
      %v4009 = vmul.f32 %v3933, %v3995
      %v4010 = vmul.f32 %v3977, %v3995
      %v4011 = vmul.f32 %v3956, %v3995
      %v4012 = vmul.f32 %v3934, %v3995
      %v4013 = vmul.f32 %v3978, %v3995
      %v4014 = vmul.f32 %v3957, %v3995
      %v4015 = vmul.f32 %v3935, %v3995
      %v4016 = vmul.f32 %v3979, %v3995
      %v4017 = vmul.f32 %v3958, %v3995
      %v4018 = vmul.f32 %v3936, %v3995
      %v4019 = vmul.f32 %v3980, %v3995
      %v4020 = vmul.f32 %v3959, %v3995
      %v4021 = vmul.f32 %v3937, %v3995
      %v4022 = vmul.f32 %v3981, %v3995
      %v4023 = vmul.f32 %v3960, %v3995
      %v4024 = vmul.f32 %v3938, %v3995
      %v4025 = vmul.f32 %v3982, %v3995
      %v4026 = vmul.f32 %v3961, %v3995
      %v4027 = vmul.f32 %v3939, %v3995
      %v4028 = vmul.f32 %v3983, %v3995
      %v4029 = vmul.f32 %v3962, %v3995
      %v4030 = vmul.f32 %v3940, %v3995
      %v4031 = vmul.f32 %v3984, %v3995
      %v4032 = vmul.f32 %v3963, %v3995
      %v4033 = vmul.f32 %v3941, %v3995
      %v4034 = vmul.f32 %v3985, %v3995
      %v4035 = vmul.f32 %v3964, %v3995
      %v4036 = vmul.f32 %v3942, %v3995
      %v4037 = vmul.f32 %v3986, %v3995
      %v4038 = vmul.f32 %v3965, %v3995
      %v4039 = vmul.f32 %v3943, %v3995
      %v4040 = vmul.f32 %v3987, %v3995
      %v4041 = vmul.f32 %v3966, %v3995
      %v4042 = vmul.f32 %v3944, %v3995
      %v4043 = vmul.f32 %v3988, %v3995
      %v4044 = vadd.f32 %v3814, %v3996
      %v4045 = vadd.f32 %v3815, %v3997
      %v4046 = vadd.f32 %v3816, %v3998
      %v4047 = vadd.f32 %v3817, %v3999
      %v4048 = vadd.f32 %v3818, %v4000
      %v4049 = vadd.f32 %v3819, %v4001
      %v4050 = vadd.f32 %v3820, %v4002
      %v4051 = vadd.f32 %v3821, %v4003
      %v4052 = vadd.f32 %v3822, %v4004
      %v4053 = vadd.f32 %v3823, %v4005
      %v4054 = vadd.f32 %v3824, %v4006
      %v4055 = vadd.f32 %v3825, %v4007
      %v4056 = vadd.f32 %v3826, %v4008
      %v4057 = vadd.f32 %v3827, %v4009
      %v4058 = vadd.f32 %v3828, %v4010
      %v4059 = vadd.f32 %v3829, %v4011
      %v4060 = vadd.f32 %v3830, %v4012
      %v4061 = vadd.f32 %v3831, %v4013
      %v4062 = vadd.f32 %v3832, %v4014
      %v4063 = vadd.f32 %v3833, %v4015
      %v4064 = vadd.f32 %v3834, %v4016
      %v4065 = vadd.f32 %v3835, %v4017
      %v4066 = vadd.f32 %v3836, %v4018
      %v4067 = vadd.f32 %v3837, %v4019
      %v4068 = vadd.f32 %v3838, %v4020
      %v4069 = vadd.f32 %v3839, %v4021
      %v4070 = vadd.f32 %v3840, %v4022
      %v4071 = vadd.f32 %v3841, %v4023
      %v4072 = vadd.f32 %v3842, %v4024
      %v4073 = vadd.f32 %v3843, %v4025
      %v4074 = vadd.f32 %v3844, %v4026
      %v4075 = vadd.f32 %v3845, %v4027
      %v4076 = vadd.f32 %v3846, %v4028
      %v4077 = vadd.f32 %v3847, %v4029
      %v4078 = vadd.f32 %v3848, %v4030
      %v4079 = vadd.f32 %v3849, %v4031
      %v4080 = vadd.f32 %v3850, %v4032
      %v4081 = vadd.f32 %v3851, %v4033
      %v4082 = vadd.f32 %v3852, %v4034
      %v4083 = vadd.f32 %v3853, %v4035
      %v4084 = vadd.f32 %v3854, %v4036
      %v4085 = vadd.f32 %v3855, %v4037
      %v4086 = vadd.f32 %v3856, %v4038
      %v4087 = vadd.f32 %v3857, %v4039
      %v4088 = vadd.f32 %v3858, %v4040
      %v4089 = vadd.f32 %v3859, %v4041
      %v4090 = vadd.f32 %v3860, %v4042
      %v4091 = vadd.f32 %v3861, %v4043
      %v4092 = vperm.slane %v1553, 2
      %v4093 = vmul.f32 %v3952, %v4092
      %v4094 = vmul.f32 %v3930, %v4092
      %v4095 = vmul.f32 %v3974, %v4092
      %v4096 = vmul.f32 %v3953, %v4092
      %v4097 = vmul.f32 %v3931, %v4092
      %v4098 = vmul.f32 %v3975, %v4092
      %v4099 = vmul.f32 %v3954, %v4092
      %v4100 = vmul.f32 %v3932, %v4092
      %v4101 = vmul.f32 %v3976, %v4092
      %v4102 = vmul.f32 %v3955, %v4092
      %v4103 = vmul.f32 %v3933, %v4092
      %v4104 = vmul.f32 %v3977, %v4092
      %v4105 = vmul.f32 %v3956, %v4092
      %v4106 = vmul.f32 %v3934, %v4092
      %v4107 = vmul.f32 %v3978, %v4092
      %v4108 = vmul.f32 %v3957, %v4092
      %v4109 = vmul.f32 %v3935, %v4092
      %v4110 = vmul.f32 %v3979, %v4092
      %v4111 = vmul.f32 %v3958, %v4092
      %v4112 = vmul.f32 %v3936, %v4092
      %v4113 = vmul.f32 %v3980, %v4092
      %v4114 = vmul.f32 %v3959, %v4092
      %v4115 = vmul.f32 %v3937, %v4092
      %v4116 = vmul.f32 %v3981, %v4092
      %v4117 = vmul.f32 %v3960, %v4092
      %v4118 = vmul.f32 %v3938, %v4092
      %v4119 = vmul.f32 %v3982, %v4092
      %v4120 = vmul.f32 %v3961, %v4092
      %v4121 = vmul.f32 %v3939, %v4092
      %v4122 = vmul.f32 %v3983, %v4092
      %v4123 = vmul.f32 %v3962, %v4092
      %v4124 = vmul.f32 %v3940, %v4092
      %v4125 = vmul.f32 %v3984, %v4092
      %v4126 = vmul.f32 %v3963, %v4092
      %v4127 = vmul.f32 %v3941, %v4092
      %v4128 = vmul.f32 %v3985, %v4092
      %v4129 = vmul.f32 %v3964, %v4092
      %v4130 = vmul.f32 %v3942, %v4092
      %v4131 = vmul.f32 %v3986, %v4092
      %v4132 = vmul.f32 %v3965, %v4092
      %v4133 = vmul.f32 %v3943, %v4092
      %v4134 = vmul.f32 %v3987, %v4092
      %v4135 = vmul.f32 %v3966, %v4092
      %v4136 = vmul.f32 %v3944, %v4092
      %v4137 = vmul.f32 %v3988, %v4092
      %v4138 = vmul.f32 %v3967, %v4092
      %v4139 = vmul.f32 %v3945, %v4092
      %v4140 = vmul.f32 %v3989, %v4092
      %v4141 = vadd.f32 %v4044, %v4093
      %v4142 = vadd.f32 %v4045, %v4094
      %v4143 = vadd.f32 %v4046, %v4095
      %v4144 = vadd.f32 %v4047, %v4096
      %v4145 = vadd.f32 %v4048, %v4097
      %v4146 = vadd.f32 %v4049, %v4098
      %v4147 = vadd.f32 %v4050, %v4099
      %v4148 = vadd.f32 %v4051, %v4100
      %v4149 = vadd.f32 %v4052, %v4101
      %v4150 = vadd.f32 %v4053, %v4102
      %v4151 = vadd.f32 %v4054, %v4103
      %v4152 = vadd.f32 %v4055, %v4104
      %v4153 = vadd.f32 %v4056, %v4105
      %v4154 = vadd.f32 %v4057, %v4106
      %v4155 = vadd.f32 %v4058, %v4107
      %v4156 = vadd.f32 %v4059, %v4108
      %v4157 = vadd.f32 %v4060, %v4109
      %v4158 = vadd.f32 %v4061, %v4110
      %v4159 = vadd.f32 %v4062, %v4111
      %v4160 = vadd.f32 %v4063, %v4112
      %v4161 = vadd.f32 %v4064, %v4113
      %v4162 = vadd.f32 %v4065, %v4114
      %v4163 = vadd.f32 %v4066, %v4115
      %v4164 = vadd.f32 %v4067, %v4116
      %v4165 = vadd.f32 %v4068, %v4117
      %v4166 = vadd.f32 %v4069, %v4118
      %v4167 = vadd.f32 %v4070, %v4119
      %v4168 = vadd.f32 %v4071, %v4120
      %v4169 = vadd.f32 %v4072, %v4121
      %v4170 = vadd.f32 %v4073, %v4122
      %v4171 = vadd.f32 %v4074, %v4123
      %v4172 = vadd.f32 %v4075, %v4124
      %v4173 = vadd.f32 %v4076, %v4125
      %v4174 = vadd.f32 %v4077, %v4126
      %v4175 = vadd.f32 %v4078, %v4127
      %v4176 = vadd.f32 %v4079, %v4128
      %v4177 = vadd.f32 %v4080, %v4129
      %v4178 = vadd.f32 %v4081, %v4130
      %v4179 = vadd.f32 %v4082, %v4131
      %v4180 = vadd.f32 %v4083, %v4132
      %v4181 = vadd.f32 %v4084, %v4133
      %v4182 = vadd.f32 %v4085, %v4134
      %v4183 = vadd.f32 %v4086, %v4135
      %v4184 = vadd.f32 %v4087, %v4136
      %v4185 = vadd.f32 %v4088, %v4137
      %v4186 = vadd.f32 %v4089, %v4138
      %v4187 = vadd.f32 %v4090, %v4139
      %v4188 = vadd.f32 %v4091, %v4140
      %v4189 = vperm.slane %v1554, 1
      %v4190 = vmul.f32 %v3953, %v4189
      %v4191 = vmul.f32 %v3931, %v4189
      %v4192 = vmul.f32 %v3975, %v4189
      %v4193 = vmul.f32 %v3954, %v4189
      %v4194 = vmul.f32 %v3932, %v4189
      %v4195 = vmul.f32 %v3976, %v4189
      %v4196 = vmul.f32 %v3955, %v4189
      %v4197 = vmul.f32 %v3933, %v4189
      %v4198 = vmul.f32 %v3977, %v4189
      %v4199 = vmul.f32 %v3956, %v4189
      %v4200 = vmul.f32 %v3934, %v4189
      %v4201 = vmul.f32 %v3978, %v4189
      %v4202 = vmul.f32 %v3957, %v4189
      %v4203 = vmul.f32 %v3935, %v4189
      %v4204 = vmul.f32 %v3979, %v4189
      %v4205 = vmul.f32 %v3958, %v4189
      %v4206 = vmul.f32 %v3936, %v4189
      %v4207 = vmul.f32 %v3980, %v4189
      %v4208 = vmul.f32 %v3959, %v4189
      %v4209 = vmul.f32 %v3937, %v4189
      %v4210 = vmul.f32 %v3981, %v4189
      %v4211 = vmul.f32 %v3960, %v4189
      %v4212 = vmul.f32 %v3938, %v4189
      %v4213 = vmul.f32 %v3982, %v4189
      %v4214 = vmul.f32 %v3961, %v4189
      %v4215 = vmul.f32 %v3939, %v4189
      %v4216 = vmul.f32 %v3983, %v4189
      %v4217 = vmul.f32 %v3962, %v4189
      %v4218 = vmul.f32 %v3940, %v4189
      %v4219 = vmul.f32 %v3984, %v4189
      %v4220 = vmul.f32 %v3963, %v4189
      %v4221 = vmul.f32 %v3941, %v4189
      %v4222 = vmul.f32 %v3985, %v4189
      %v4223 = vmul.f32 %v3964, %v4189
      %v4224 = vmul.f32 %v3942, %v4189
      %v4225 = vmul.f32 %v3986, %v4189
      %v4226 = vmul.f32 %v3965, %v4189
      %v4227 = vmul.f32 %v3943, %v4189
      %v4228 = vmul.f32 %v3987, %v4189
      %v4229 = vmul.f32 %v3966, %v4189
      %v4230 = vmul.f32 %v3944, %v4189
      %v4231 = vmul.f32 %v3988, %v4189
      %v4232 = vmul.f32 %v3967, %v4189
      %v4233 = vmul.f32 %v3945, %v4189
      %v4234 = vmul.f32 %v3989, %v4189
      %v4235 = vmul.f32 %v3968, %v4189
      %v4236 = vmul.f32 %v3946, %v4189
      %v4237 = vmul.f32 %v3990, %v4189
      %v4238 = vadd.f32 %v4141, %v4190
      %v4239 = vadd.f32 %v4142, %v4191
      %v4240 = vadd.f32 %v4143, %v4192
      %v4241 = vadd.f32 %v4144, %v4193
      %v4242 = vadd.f32 %v4145, %v4194
      %v4243 = vadd.f32 %v4146, %v4195
      %v4244 = vadd.f32 %v4147, %v4196
      %v4245 = vadd.f32 %v4148, %v4197
      %v4246 = vadd.f32 %v4149, %v4198
      %v4247 = vadd.f32 %v4150, %v4199
      %v4248 = vadd.f32 %v4151, %v4200
      %v4249 = vadd.f32 %v4152, %v4201
      %v4250 = vadd.f32 %v4153, %v4202
      %v4251 = vadd.f32 %v4154, %v4203
      %v4252 = vadd.f32 %v4155, %v4204
      %v4253 = vadd.f32 %v4156, %v4205
      %v4254 = vadd.f32 %v4157, %v4206
      %v4255 = vadd.f32 %v4158, %v4207
      %v4256 = vadd.f32 %v4159, %v4208
      %v4257 = vadd.f32 %v4160, %v4209
      %v4258 = vadd.f32 %v4161, %v4210
      %v4259 = vadd.f32 %v4162, %v4211
      %v4260 = vadd.f32 %v4163, %v4212
      %v4261 = vadd.f32 %v4164, %v4213
      %v4262 = vadd.f32 %v4165, %v4214
      %v4263 = vadd.f32 %v4166, %v4215
      %v4264 = vadd.f32 %v4167, %v4216
      %v4265 = vadd.f32 %v4168, %v4217
      %v4266 = vadd.f32 %v4169, %v4218
      %v4267 = vadd.f32 %v4170, %v4219
      %v4268 = vadd.f32 %v4171, %v4220
      %v4269 = vadd.f32 %v4172, %v4221
      %v4270 = vadd.f32 %v4173, %v4222
      %v4271 = vadd.f32 %v4174, %v4223
      %v4272 = vadd.f32 %v4175, %v4224
      %v4273 = vadd.f32 %v4176, %v4225
      %v4274 = vadd.f32 %v4177, %v4226
      %v4275 = vadd.f32 %v4178, %v4227
      %v4276 = vadd.f32 %v4179, %v4228
      %v4277 = vadd.f32 %v4180, %v4229
      %v4278 = vadd.f32 %v4181, %v4230
      %v4279 = vadd.f32 %v4182, %v4231
      %v4280 = vadd.f32 %v4183, %v4232
      %v4281 = vadd.f32 %v4184, %v4233
      %v4282 = vadd.f32 %v4185, %v4234
      %v4283 = vadd.f32 %v4186, %v4235
      %v4284 = vadd.f32 %v4187, %v4236
      %v4285 = vadd.f32 %v4188, %v4237
      %v4286 = vperm.slane %v1555, 0
      %v4287 = vmul.f32 %v3954, %v4286
      %v4288 = vmul.f32 %v3932, %v4286
      %v4289 = vmul.f32 %v3976, %v4286
      %v4290 = vmul.f32 %v3955, %v4286
      %v4291 = vmul.f32 %v3933, %v4286
      %v4292 = vmul.f32 %v3977, %v4286
      %v4293 = vmul.f32 %v3956, %v4286
      %v4294 = vmul.f32 %v3934, %v4286
      %v4295 = vmul.f32 %v3978, %v4286
      %v4296 = vmul.f32 %v3957, %v4286
      %v4297 = vmul.f32 %v3935, %v4286
      %v4298 = vmul.f32 %v3979, %v4286
      %v4299 = vmul.f32 %v3958, %v4286
      %v4300 = vmul.f32 %v3936, %v4286
      %v4301 = vmul.f32 %v3980, %v4286
      %v4302 = vmul.f32 %v3959, %v4286
      %v4303 = vmul.f32 %v3937, %v4286
      %v4304 = vmul.f32 %v3981, %v4286
      %v4305 = vmul.f32 %v3960, %v4286
      %v4306 = vmul.f32 %v3938, %v4286
      %v4307 = vmul.f32 %v3982, %v4286
      %v4308 = vmul.f32 %v3961, %v4286
      %v4309 = vmul.f32 %v3939, %v4286
      %v4310 = vmul.f32 %v3983, %v4286
      %v4311 = vmul.f32 %v3962, %v4286
      %v4312 = vmul.f32 %v3940, %v4286
      %v4313 = vmul.f32 %v3984, %v4286
      %v4314 = vmul.f32 %v3963, %v4286
      %v4315 = vmul.f32 %v3941, %v4286
      %v4316 = vmul.f32 %v3985, %v4286
      %v4317 = vmul.f32 %v3964, %v4286
      %v4318 = vmul.f32 %v3942, %v4286
      %v4319 = vmul.f32 %v3986, %v4286
      %v4320 = vmul.f32 %v3965, %v4286
      %v4321 = vmul.f32 %v3943, %v4286
      %v4322 = vmul.f32 %v3987, %v4286
      %v4323 = vmul.f32 %v3966, %v4286
      %v4324 = vmul.f32 %v3944, %v4286
      %v4325 = vmul.f32 %v3988, %v4286
      %v4326 = vmul.f32 %v3967, %v4286
      %v4327 = vmul.f32 %v3945, %v4286
      %v4328 = vmul.f32 %v3989, %v4286
      %v4329 = vmul.f32 %v3968, %v4286
      %v4330 = vmul.f32 %v3946, %v4286
      %v4331 = vmul.f32 %v3990, %v4286
      %v4332 = vmul.f32 %v3969, %v4286
      %v4333 = vmul.f32 %v3947, %v4286
      %v4334 = vmul.f32 %v3991, %v4286
      %v4335 = vadd.f32 %v4238, %v4287
      %v4336 = vadd.f32 %v4239, %v4288
      %v4337 = vadd.f32 %v4240, %v4289
      %v4338 = vadd.f32 %v4241, %v4290
      %v4339 = vadd.f32 %v4242, %v4291
      %v4340 = vadd.f32 %v4243, %v4292
      %v4341 = vadd.f32 %v4244, %v4293
      %v4342 = vadd.f32 %v4245, %v4294
      %v4343 = vadd.f32 %v4246, %v4295
      %v4344 = vadd.f32 %v4247, %v4296
      %v4345 = vadd.f32 %v4248, %v4297
      %v4346 = vadd.f32 %v4249, %v4298
      %v4347 = vadd.f32 %v4250, %v4299
      %v4348 = vadd.f32 %v4251, %v4300
      %v4349 = vadd.f32 %v4252, %v4301
      %v4350 = vadd.f32 %v4253, %v4302
      %v4351 = vadd.f32 %v4254, %v4303
      %v4352 = vadd.f32 %v4255, %v4304
      %v4353 = vadd.f32 %v4256, %v4305
      %v4354 = vadd.f32 %v4257, %v4306
      %v4355 = vadd.f32 %v4258, %v4307
      %v4356 = vadd.f32 %v4259, %v4308
      %v4357 = vadd.f32 %v4260, %v4309
      %v4358 = vadd.f32 %v4261, %v4310
      %v4359 = vadd.f32 %v4262, %v4311
      %v4360 = vadd.f32 %v4263, %v4312
      %v4361 = vadd.f32 %v4264, %v4313
      %v4362 = vadd.f32 %v4265, %v4314
      %v4363 = vadd.f32 %v4266, %v4315
      %v4364 = vadd.f32 %v4267, %v4316
      %v4365 = vadd.f32 %v4268, %v4317
      %v4366 = vadd.f32 %v4269, %v4318
      %v4367 = vadd.f32 %v4270, %v4319
      %v4368 = vadd.f32 %v4271, %v4320
      %v4369 = vadd.f32 %v4272, %v4321
      %v4370 = vadd.f32 %v4273, %v4322
      %v4371 = vadd.f32 %v4274, %v4323
      %v4372 = vadd.f32 %v4275, %v4324
      %v4373 = vadd.f32 %v4276, %v4325
      %v4374 = vadd.f32 %v4277, %v4326
      %v4375 = vadd.f32 %v4278, %v4327
      %v4376 = vadd.f32 %v4279, %v4328
      %v4377 = vadd.f32 %v4280, %v4329
      %v4378 = vadd.f32 %v4281, %v4330
      %v4379 = vadd.f32 %v4282, %v4331
      %v4380 = vadd.f32 %v4283, %v4332
      %v4381 = vadd.f32 %v4284, %v4333
      %v4382 = vadd.f32 %v4285, %v4334
      %v4383 = vperm.slane %v1555, 7
      %v4384 = vmul.f32 %v3955, %v4383
      %v4385 = vmul.f32 %v3933, %v4383
      %v4386 = vmul.f32 %v3977, %v4383
      %v4387 = vmul.f32 %v3956, %v4383
      %v4388 = vmul.f32 %v3934, %v4383
      %v4389 = vmul.f32 %v3978, %v4383
      %v4390 = vmul.f32 %v3957, %v4383
      %v4391 = vmul.f32 %v3935, %v4383
      %v4392 = vmul.f32 %v3979, %v4383
      %v4393 = vmul.f32 %v3958, %v4383
      %v4394 = vmul.f32 %v3936, %v4383
      %v4395 = vmul.f32 %v3980, %v4383
      %v4396 = vmul.f32 %v3959, %v4383
      %v4397 = vmul.f32 %v3937, %v4383
      %v4398 = vmul.f32 %v3981, %v4383
      %v4399 = vmul.f32 %v3960, %v4383
      %v4400 = vmul.f32 %v3938, %v4383
      %v4401 = vmul.f32 %v3982, %v4383
      %v4402 = vmul.f32 %v3961, %v4383
      %v4403 = vmul.f32 %v3939, %v4383
      %v4404 = vmul.f32 %v3983, %v4383
      %v4405 = vmul.f32 %v3962, %v4383
      %v4406 = vmul.f32 %v3940, %v4383
      %v4407 = vmul.f32 %v3984, %v4383
      %v4408 = vmul.f32 %v3963, %v4383
      %v4409 = vmul.f32 %v3941, %v4383
      %v4410 = vmul.f32 %v3985, %v4383
      %v4411 = vmul.f32 %v3964, %v4383
      %v4412 = vmul.f32 %v3942, %v4383
      %v4413 = vmul.f32 %v3986, %v4383
      %v4414 = vmul.f32 %v3965, %v4383
      %v4415 = vmul.f32 %v3943, %v4383
      %v4416 = vmul.f32 %v3987, %v4383
      %v4417 = vmul.f32 %v3966, %v4383
      %v4418 = vmul.f32 %v3944, %v4383
      %v4419 = vmul.f32 %v3988, %v4383
      %v4420 = vmul.f32 %v3967, %v4383
      %v4421 = vmul.f32 %v3945, %v4383
      %v4422 = vmul.f32 %v3989, %v4383
      %v4423 = vmul.f32 %v3968, %v4383
      %v4424 = vmul.f32 %v3946, %v4383
      %v4425 = vmul.f32 %v3990, %v4383
      %v4426 = vmul.f32 %v3969, %v4383
      %v4427 = vmul.f32 %v3947, %v4383
      %v4428 = vmul.f32 %v3991, %v4383
      %v4429 = vmul.f32 %v3970, %v4383
      %v4430 = vmul.f32 %v3948, %v4383
      %v4431 = vmul.f32 %v3992, %v4383
      %v4432 = vadd.f32 %v4335, %v4384
      %v4433 = vadd.f32 %v4336, %v4385
      %v4434 = vadd.f32 %v4337, %v4386
      %v4435 = vadd.f32 %v4338, %v4387
      %v4436 = vadd.f32 %v4339, %v4388
      %v4437 = vadd.f32 %v4340, %v4389
      %v4438 = vadd.f32 %v4341, %v4390
      %v4439 = vadd.f32 %v4342, %v4391
      %v4440 = vadd.f32 %v4343, %v4392
      %v4441 = vadd.f32 %v4344, %v4393
      %v4442 = vadd.f32 %v4345, %v4394
      %v4443 = vadd.f32 %v4346, %v4395
      %v4444 = vadd.f32 %v4347, %v4396
      %v4445 = vadd.f32 %v4348, %v4397
      %v4446 = vadd.f32 %v4349, %v4398
      %v4447 = vadd.f32 %v4350, %v4399
      %v4448 = vadd.f32 %v4351, %v4400
      %v4449 = vadd.f32 %v4352, %v4401
      %v4450 = vadd.f32 %v4353, %v4402
      %v4451 = vadd.f32 %v4354, %v4403
      %v4452 = vadd.f32 %v4355, %v4404
      %v4453 = vadd.f32 %v4356, %v4405
      %v4454 = vadd.f32 %v4357, %v4406
      %v4455 = vadd.f32 %v4358, %v4407
      %v4456 = vadd.f32 %v4359, %v4408
      %v4457 = vadd.f32 %v4360, %v4409
      %v4458 = vadd.f32 %v4361, %v4410
      %v4459 = vadd.f32 %v4362, %v4411
      %v4460 = vadd.f32 %v4363, %v4412
      %v4461 = vadd.f32 %v4364, %v4413
      %v4462 = vadd.f32 %v4365, %v4414
      %v4463 = vadd.f32 %v4366, %v4415
      %v4464 = vadd.f32 %v4367, %v4416
      %v4465 = vadd.f32 %v4368, %v4417
      %v4466 = vadd.f32 %v4369, %v4418
      %v4467 = vadd.f32 %v4370, %v4419
      %v4468 = vadd.f32 %v4371, %v4420
      %v4469 = vadd.f32 %v4372, %v4421
      %v4470 = vadd.f32 %v4373, %v4422
      %v4471 = vadd.f32 %v4374, %v4423
      %v4472 = vadd.f32 %v4375, %v4424
      %v4473 = vadd.f32 %v4376, %v4425
      %v4474 = vadd.f32 %v4377, %v4426
      %v4475 = vadd.f32 %v4378, %v4427
      %v4476 = vadd.f32 %v4379, %v4428
      %v4477 = vadd.f32 %v4380, %v4429
      %v4478 = vadd.f32 %v4381, %v4430
      %v4479 = vadd.f32 %v4382, %v4431
      %v4480 = vperm.slane %v1556, 6
      %v4481 = vmul.f32 %v3956, %v4480
      %v4482 = vmul.f32 %v3934, %v4480
      %v4483 = vmul.f32 %v3978, %v4480
      %v4484 = vmul.f32 %v3957, %v4480
      %v4485 = vmul.f32 %v3935, %v4480
      %v4486 = vmul.f32 %v3979, %v4480
      %v4487 = vmul.f32 %v3958, %v4480
      %v4488 = vmul.f32 %v3936, %v4480
      %v4489 = vmul.f32 %v3980, %v4480
      %v4490 = vmul.f32 %v3959, %v4480
      %v4491 = vmul.f32 %v3937, %v4480
      %v4492 = vmul.f32 %v3981, %v4480
      %v4493 = vmul.f32 %v3960, %v4480
      %v4494 = vmul.f32 %v3938, %v4480
      %v4495 = vmul.f32 %v3982, %v4480
      %v4496 = vmul.f32 %v3961, %v4480
      %v4497 = vmul.f32 %v3939, %v4480
      %v4498 = vmul.f32 %v3983, %v4480
      %v4499 = vmul.f32 %v3962, %v4480
      %v4500 = vmul.f32 %v3940, %v4480
      %v4501 = vmul.f32 %v3984, %v4480
      %v4502 = vmul.f32 %v3963, %v4480
      %v4503 = vmul.f32 %v3941, %v4480
      %v4504 = vmul.f32 %v3985, %v4480
      %v4505 = vmul.f32 %v3964, %v4480
      %v4506 = vmul.f32 %v3942, %v4480
      %v4507 = vmul.f32 %v3986, %v4480
      %v4508 = vmul.f32 %v3965, %v4480
      %v4509 = vmul.f32 %v3943, %v4480
      %v4510 = vmul.f32 %v3987, %v4480
      %v4511 = vmul.f32 %v3966, %v4480
      %v4512 = vmul.f32 %v3944, %v4480
      %v4513 = vmul.f32 %v3988, %v4480
      %v4514 = vmul.f32 %v3967, %v4480
      %v4515 = vmul.f32 %v3945, %v4480
      %v4516 = vmul.f32 %v3989, %v4480
      %v4517 = vmul.f32 %v3968, %v4480
      %v4518 = vmul.f32 %v3946, %v4480
      %v4519 = vmul.f32 %v3990, %v4480
      %v4520 = vmul.f32 %v3969, %v4480
      %v4521 = vmul.f32 %v3947, %v4480
      %v4522 = vmul.f32 %v3991, %v4480
      %v4523 = vmul.f32 %v3970, %v4480
      %v4524 = vmul.f32 %v3948, %v4480
      %v4525 = vmul.f32 %v3992, %v4480
      %v4526 = vmul.f32 %v3971, %v4480
      %v4527 = vmul.f32 %v3949, %v4480
      %v4528 = vmul.f32 %v3993, %v4480
      %v4529 = vadd.f32 %v4432, %v4481
      %v4530 = vadd.f32 %v4433, %v4482
      %v4531 = vadd.f32 %v4434, %v4483
      %v4532 = vadd.f32 %v4435, %v4484
      %v4533 = vadd.f32 %v4436, %v4485
      %v4534 = vadd.f32 %v4437, %v4486
      %v4535 = vadd.f32 %v4438, %v4487
      %v4536 = vadd.f32 %v4439, %v4488
      %v4537 = vadd.f32 %v4440, %v4489
      %v4538 = vadd.f32 %v4441, %v4490
      %v4539 = vadd.f32 %v4442, %v4491
      %v4540 = vadd.f32 %v4443, %v4492
      %v4541 = vadd.f32 %v4444, %v4493
      %v4542 = vadd.f32 %v4445, %v4494
      %v4543 = vadd.f32 %v4446, %v4495
      %v4544 = vadd.f32 %v4447, %v4496
      %v4545 = vadd.f32 %v4448, %v4497
      %v4546 = vadd.f32 %v4449, %v4498
      %v4547 = vadd.f32 %v4450, %v4499
      %v4548 = vadd.f32 %v4451, %v4500
      %v4549 = vadd.f32 %v4452, %v4501
      %v4550 = vadd.f32 %v4453, %v4502
      %v4551 = vadd.f32 %v4454, %v4503
      %v4552 = vadd.f32 %v4455, %v4504
      %v4553 = vadd.f32 %v4456, %v4505
      %v4554 = vadd.f32 %v4457, %v4506
      %v4555 = vadd.f32 %v4458, %v4507
      %v4556 = vadd.f32 %v4459, %v4508
      %v4557 = vadd.f32 %v4460, %v4509
      %v4558 = vadd.f32 %v4461, %v4510
      %v4559 = vadd.f32 %v4462, %v4511
      %v4560 = vadd.f32 %v4463, %v4512
      %v4561 = vadd.f32 %v4464, %v4513
      %v4562 = vadd.f32 %v4465, %v4514
      %v4563 = vadd.f32 %v4466, %v4515
      %v4564 = vadd.f32 %v4467, %v4516
      %v4565 = vadd.f32 %v4468, %v4517
      %v4566 = vadd.f32 %v4469, %v4518
      %v4567 = vadd.f32 %v4470, %v4519
      %v4568 = vadd.f32 %v4471, %v4520
      %v4569 = vadd.f32 %v4472, %v4521
      %v4570 = vadd.f32 %v4473, %v4522
      %v4571 = vadd.f32 %v4474, %v4523
      %v4572 = vadd.f32 %v4475, %v4524
      %v4573 = vadd.f32 %v4476, %v4525
      %v4574 = vadd.f32 %v4477, %v4526
      %v4575 = vadd.f32 %v4478, %v4527
      %v4576 = vadd.f32 %v4479, %v4528
      %v4577 = vperm.slane %v1557, 5
      %v4578 = vmul.f32 %v3957, %v4577
      %v4579 = vmul.f32 %v3935, %v4577
      %v4580 = vmul.f32 %v3979, %v4577
      %v4581 = vmul.f32 %v3958, %v4577
      %v4582 = vmul.f32 %v3936, %v4577
      %v4583 = vmul.f32 %v3980, %v4577
      %v4584 = vmul.f32 %v3959, %v4577
      %v4585 = vmul.f32 %v3937, %v4577
      %v4586 = vmul.f32 %v3981, %v4577
      %v4587 = vmul.f32 %v3960, %v4577
      %v4588 = vmul.f32 %v3938, %v4577
      %v4589 = vmul.f32 %v3982, %v4577
      %v4590 = vmul.f32 %v3961, %v4577
      %v4591 = vmul.f32 %v3939, %v4577
      %v4592 = vmul.f32 %v3983, %v4577
      %v4593 = vmul.f32 %v3962, %v4577
      %v4594 = vmul.f32 %v3940, %v4577
      %v4595 = vmul.f32 %v3984, %v4577
      %v4596 = vmul.f32 %v3963, %v4577
      %v4597 = vmul.f32 %v3941, %v4577
      %v4598 = vmul.f32 %v3985, %v4577
      %v4599 = vmul.f32 %v3964, %v4577
      %v4600 = vmul.f32 %v3942, %v4577
      %v4601 = vmul.f32 %v3986, %v4577
      %v4602 = vmul.f32 %v3965, %v4577
      %v4603 = vmul.f32 %v3943, %v4577
      %v4604 = vmul.f32 %v3987, %v4577
      %v4605 = vmul.f32 %v3966, %v4577
      %v4606 = vmul.f32 %v3944, %v4577
      %v4607 = vmul.f32 %v3988, %v4577
      %v4608 = vmul.f32 %v3967, %v4577
      %v4609 = vmul.f32 %v3945, %v4577
      %v4610 = vmul.f32 %v3989, %v4577
      %v4611 = vmul.f32 %v3968, %v4577
      %v4612 = vmul.f32 %v3946, %v4577
      %v4613 = vmul.f32 %v3990, %v4577
      %v4614 = vmul.f32 %v3969, %v4577
      %v4615 = vmul.f32 %v3947, %v4577
      %v4616 = vmul.f32 %v3991, %v4577
      %v4617 = vmul.f32 %v3970, %v4577
      %v4618 = vmul.f32 %v3948, %v4577
      %v4619 = vmul.f32 %v3992, %v4577
      %v4620 = vmul.f32 %v3971, %v4577
      %v4621 = vmul.f32 %v3949, %v4577
      %v4622 = vmul.f32 %v3993, %v4577
      %v4623 = vmul.f32 %v3972, %v4577
      %v4624 = vmul.f32 %v3950, %v4577
      %v4625 = vmul.f32 %v3994, %v4577
      %v4626 = vadd.f32 %v4529, %v4578
      %v4627 = vadd.f32 %v4530, %v4579
      %v4628 = vadd.f32 %v4531, %v4580
      %v4629 = vadd.f32 %v4532, %v4581
      %v4630 = vadd.f32 %v4533, %v4582
      %v4631 = vadd.f32 %v4534, %v4583
      %v4632 = vadd.f32 %v4535, %v4584
      %v4633 = vadd.f32 %v4536, %v4585
      %v4634 = vadd.f32 %v4537, %v4586
      %v4635 = vadd.f32 %v4538, %v4587
      %v4636 = vadd.f32 %v4539, %v4588
      %v4637 = vadd.f32 %v4540, %v4589
      %v4638 = vadd.f32 %v4541, %v4590
      %v4639 = vadd.f32 %v4542, %v4591
      %v4640 = vadd.f32 %v4543, %v4592
      %v4641 = vadd.f32 %v4544, %v4593
      %v4642 = vadd.f32 %v4545, %v4594
      %v4643 = vadd.f32 %v4546, %v4595
      %v4644 = vadd.f32 %v4547, %v4596
      %v4645 = vadd.f32 %v4548, %v4597
      %v4646 = vadd.f32 %v4549, %v4598
      %v4647 = vadd.f32 %v4550, %v4599
      %v4648 = vadd.f32 %v4551, %v4600
      %v4649 = vadd.f32 %v4552, %v4601
      %v4650 = vadd.f32 %v4553, %v4602
      %v4651 = vadd.f32 %v4554, %v4603
      %v4652 = vadd.f32 %v4555, %v4604
      %v4653 = vadd.f32 %v4556, %v4605
      %v4654 = vadd.f32 %v4557, %v4606
      %v4655 = vadd.f32 %v4558, %v4607
      %v4656 = vadd.f32 %v4559, %v4608
      %v4657 = vadd.f32 %v4560, %v4609
      %v4658 = vadd.f32 %v4561, %v4610
      %v4659 = vadd.f32 %v4562, %v4611
      %v4660 = vadd.f32 %v4563, %v4612
      %v4661 = vadd.f32 %v4564, %v4613
      %v4662 = vadd.f32 %v4565, %v4614
      %v4663 = vadd.f32 %v4566, %v4615
      %v4664 = vadd.f32 %v4567, %v4616
      %v4665 = vadd.f32 %v4568, %v4617
      %v4666 = vadd.f32 %v4569, %v4618
      %v4667 = vadd.f32 %v4570, %v4619
      %v4668 = vadd.f32 %v4571, %v4620
      %v4669 = vadd.f32 %v4572, %v4621
      %v4670 = vadd.f32 %v4573, %v4622
      %v4671 = vadd.f32 %v4574, %v4623
      %v4672 = vadd.f32 %v4575, %v4624
      %v4673 = vadd.f32 %v4576, %v4625
      %v4674 = vrot.slane %v1486, 4
      %v4675 = vrot.slane %v1489, 4
      %v4676 = vrot.slane %v1492, 4
      %v4677 = vrot.slane %v1495, 4
      %v4678 = vrot.slane %v1498, 4
      %v4679 = vrot.slane %v1501, 4
      %v4680 = vrot.slane %v1504, 4
      %v4681 = vrot.slane %v1507, 4
      %v4682 = vrot.slane %v1510, 4
      %v4683 = vrot.slane %v1513, 4
      %v4684 = vrot.slane %v1516, 4
      %v4685 = vrot.slane %v1519, 4
      %v4686 = vrot.slane %v1522, 4
      %v4687 = vrot.slane %v1525, 4
      %v4688 = vrot.slane %v1528, 4
      %v4689 = vrot.slane %v1531, 4
      %v4690 = vrot.slane %v1534, 4
      %v4691 = vrot.slane %v1537, 4
      %v4692 = vrot.slane %v1540, 4
      %v4693 = vrot.slane %v1543, 4
      %v4694 = vrot.slane %v1546, 4
      %v4695 = vrot.slane %v1549, 4
      %v4696 = vrot.slane %v1487, 4
      %v4697 = vrot.slane %v1490, 4
      %v4698 = vrot.slane %v1493, 4
      %v4699 = vrot.slane %v1496, 4
      %v4700 = vrot.slane %v1499, 4
      %v4701 = vrot.slane %v1502, 4
      %v4702 = vrot.slane %v1505, 4
      %v4703 = vrot.slane %v1508, 4
      %v4704 = vrot.slane %v1511, 4
      %v4705 = vrot.slane %v1514, 4
      %v4706 = vrot.slane %v1517, 4
      %v4707 = vrot.slane %v1520, 4
      %v4708 = vrot.slane %v1523, 4
      %v4709 = vrot.slane %v1526, 4
      %v4710 = vrot.slane %v1529, 4
      %v4711 = vrot.slane %v1532, 4
      %v4712 = vrot.slane %v1535, 4
      %v4713 = vrot.slane %v1538, 4
      %v4714 = vrot.slane %v1541, 4
      %v4715 = vrot.slane %v1544, 4
      %v4716 = vrot.slane %v1547, 4
      %v4717 = vrot.slane %v1550, 4
      %v4718 = vrot.slane %v1488, 4
      %v4719 = vrot.slane %v1491, 4
      %v4720 = vrot.slane %v1494, 4
      %v4721 = vrot.slane %v1497, 4
      %v4722 = vrot.slane %v1500, 4
      %v4723 = vrot.slane %v1503, 4
      %v4724 = vrot.slane %v1506, 4
      %v4725 = vrot.slane %v1509, 4
      %v4726 = vrot.slane %v1512, 4
      %v4727 = vrot.slane %v1515, 4
      %v4728 = vrot.slane %v1518, 4
      %v4729 = vrot.slane %v1521, 4
      %v4730 = vrot.slane %v1524, 4
      %v4731 = vrot.slane %v1527, 4
      %v4732 = vrot.slane %v1530, 4
      %v4733 = vrot.slane %v1533, 4
      %v4734 = vrot.slane %v1536, 4
      %v4735 = vrot.slane %v1539, 4
      %v4736 = vrot.slane %v1542, 4
      %v4737 = vrot.slane %v1545, 4
      %v4738 = vrot.slane %v1548, 4
      %v4739 = vrot.slane %v1551, 4
      %vm4740 = vcmp.lt.s32.totalorder %v876, 4
      %v4741 = vsel %vm4740, %v4696, %v4718
      %v4742 = vsel %vm4740, %v4697, %v4719
      %v4743 = vsel %vm4740, %v4698, %v4720
      %v4744 = vsel %vm4740, %v4699, %v4721
      %v4745 = vsel %vm4740, %v4700, %v4722
      %v4746 = vsel %vm4740, %v4701, %v4723
      %v4747 = vsel %vm4740, %v4702, %v4724
      %v4748 = vsel %vm4740, %v4703, %v4725
      %v4749 = vsel %vm4740, %v4704, %v4726
      %v4750 = vsel %vm4740, %v4705, %v4727
      %v4751 = vsel %vm4740, %v4706, %v4728
      %v4752 = vsel %vm4740, %v4707, %v4729
      %v4753 = vsel %vm4740, %v4708, %v4730
      %v4754 = vsel %vm4740, %v4709, %v4731
      %v4755 = vsel %vm4740, %v4710, %v4732
      %v4756 = vsel %vm4740, %v4711, %v4733
      %v4757 = vsel %vm4740, %v4712, %v4734
      %v4758 = vsel %vm4740, %v4713, %v4735
      %v4759 = vsel %vm4740, %v4714, %v4736
      %v4760 = vsel %vm4740, %v4715, %v4737
      %v4761 = vsel %vm4740, %v4716, %v4738
      %v4762 = vsel %vm4740, %v4717, %v4739
      %v4763 = vsel %vm4740, %v4674, %v4696
      %v4764 = vsel %vm4740, %v4675, %v4697
      %v4765 = vsel %vm4740, %v4676, %v4698
      %v4766 = vsel %vm4740, %v4677, %v4699
      %v4767 = vsel %vm4740, %v4678, %v4700
      %v4768 = vsel %vm4740, %v4679, %v4701
      %v4769 = vsel %vm4740, %v4680, %v4702
      %v4770 = vsel %vm4740, %v4681, %v4703
      %v4771 = vsel %vm4740, %v4682, %v4704
      %v4772 = vsel %vm4740, %v4683, %v4705
      %v4773 = vsel %vm4740, %v4684, %v4706
      %v4774 = vsel %vm4740, %v4685, %v4707
      %v4775 = vsel %vm4740, %v4686, %v4708
      %v4776 = vsel %vm4740, %v4687, %v4709
      %v4777 = vsel %vm4740, %v4688, %v4710
      %v4778 = vsel %vm4740, %v4689, %v4711
      %v4779 = vsel %vm4740, %v4690, %v4712
      %v4780 = vsel %vm4740, %v4691, %v4713
      %v4781 = vsel %vm4740, %v4692, %v4714
      %v4782 = vsel %vm4740, %v4693, %v4715
      %v4783 = vsel %vm4740, %v4694, %v4716
      %v4784 = vsel %vm4740, %v4695, %v4717
      %v4785 = vsel %vm4740, %v4718, %v4674
      %v4786 = vsel %vm4740, %v4719, %v4675
      %v4787 = vsel %vm4740, %v4720, %v4676
      %v4788 = vsel %vm4740, %v4721, %v4677
      %v4789 = vsel %vm4740, %v4722, %v4678
      %v4790 = vsel %vm4740, %v4723, %v4679
      %v4791 = vsel %vm4740, %v4724, %v4680
      %v4792 = vsel %vm4740, %v4725, %v4681
      %v4793 = vsel %vm4740, %v4726, %v4682
      %v4794 = vsel %vm4740, %v4727, %v4683
      %v4795 = vsel %vm4740, %v4728, %v4684
      %v4796 = vsel %vm4740, %v4729, %v4685
      %v4797 = vsel %vm4740, %v4730, %v4686
      %v4798 = vsel %vm4740, %v4731, %v4687
      %v4799 = vsel %vm4740, %v4732, %v4688
      %v4800 = vsel %vm4740, %v4733, %v4689
      %v4801 = vsel %vm4740, %v4734, %v4690
      %v4802 = vsel %vm4740, %v4735, %v4691
      %v4803 = vsel %vm4740, %v4736, %v4692
      %v4804 = vsel %vm4740, %v4737, %v4693
      %v4805 = vsel %vm4740, %v4738, %v4694
      %v4806 = vsel %vm4740, %v4739, %v4695
      %v4807 = vperm.slane %v1552, 4
      %v4808 = vmul.f32 %v4763, %v4807
      %v4809 = vmul.f32 %v4741, %v4807
      %v4810 = vmul.f32 %v4785, %v4807
      %v4811 = vmul.f32 %v4764, %v4807
      %v4812 = vmul.f32 %v4742, %v4807
      %v4813 = vmul.f32 %v4786, %v4807
      %v4814 = vmul.f32 %v4765, %v4807
      %v4815 = vmul.f32 %v4743, %v4807
      %v4816 = vmul.f32 %v4787, %v4807
      %v4817 = vmul.f32 %v4766, %v4807
      %v4818 = vmul.f32 %v4744, %v4807
      %v4819 = vmul.f32 %v4788, %v4807
      %v4820 = vmul.f32 %v4767, %v4807
      %v4821 = vmul.f32 %v4745, %v4807
      %v4822 = vmul.f32 %v4789, %v4807
      %v4823 = vmul.f32 %v4768, %v4807
      %v4824 = vmul.f32 %v4746, %v4807
      %v4825 = vmul.f32 %v4790, %v4807
      %v4826 = vmul.f32 %v4769, %v4807
      %v4827 = vmul.f32 %v4747, %v4807
      %v4828 = vmul.f32 %v4791, %v4807
      %v4829 = vmul.f32 %v4770, %v4807
      %v4830 = vmul.f32 %v4748, %v4807
      %v4831 = vmul.f32 %v4792, %v4807
      %v4832 = vmul.f32 %v4771, %v4807
      %v4833 = vmul.f32 %v4749, %v4807
      %v4834 = vmul.f32 %v4793, %v4807
      %v4835 = vmul.f32 %v4772, %v4807
      %v4836 = vmul.f32 %v4750, %v4807
      %v4837 = vmul.f32 %v4794, %v4807
      %v4838 = vmul.f32 %v4773, %v4807
      %v4839 = vmul.f32 %v4751, %v4807
      %v4840 = vmul.f32 %v4795, %v4807
      %v4841 = vmul.f32 %v4774, %v4807
      %v4842 = vmul.f32 %v4752, %v4807
      %v4843 = vmul.f32 %v4796, %v4807
      %v4844 = vmul.f32 %v4775, %v4807
      %v4845 = vmul.f32 %v4753, %v4807
      %v4846 = vmul.f32 %v4797, %v4807
      %v4847 = vmul.f32 %v4776, %v4807
      %v4848 = vmul.f32 %v4754, %v4807
      %v4849 = vmul.f32 %v4798, %v4807
      %v4850 = vmul.f32 %v4777, %v4807
      %v4851 = vmul.f32 %v4755, %v4807
      %v4852 = vmul.f32 %v4799, %v4807
      %v4853 = vmul.f32 %v4778, %v4807
      %v4854 = vmul.f32 %v4756, %v4807
      %v4855 = vmul.f32 %v4800, %v4807
      %v4856 = vadd.f32 %v4626, %v4808
      %v4857 = vadd.f32 %v4627, %v4809
      %v4858 = vadd.f32 %v4628, %v4810
      %v4859 = vadd.f32 %v4629, %v4811
      %v4860 = vadd.f32 %v4630, %v4812
      %v4861 = vadd.f32 %v4631, %v4813
      %v4862 = vadd.f32 %v4632, %v4814
      %v4863 = vadd.f32 %v4633, %v4815
      %v4864 = vadd.f32 %v4634, %v4816
      %v4865 = vadd.f32 %v4635, %v4817
      %v4866 = vadd.f32 %v4636, %v4818
      %v4867 = vadd.f32 %v4637, %v4819
      %v4868 = vadd.f32 %v4638, %v4820
      %v4869 = vadd.f32 %v4639, %v4821
      %v4870 = vadd.f32 %v4640, %v4822
      %v4871 = vadd.f32 %v4641, %v4823
      %v4872 = vadd.f32 %v4642, %v4824
      %v4873 = vadd.f32 %v4643, %v4825
      %v4874 = vadd.f32 %v4644, %v4826
      %v4875 = vadd.f32 %v4645, %v4827
      %v4876 = vadd.f32 %v4646, %v4828
      %v4877 = vadd.f32 %v4647, %v4829
      %v4878 = vadd.f32 %v4648, %v4830
      %v4879 = vadd.f32 %v4649, %v4831
      %v4880 = vadd.f32 %v4650, %v4832
      %v4881 = vadd.f32 %v4651, %v4833
      %v4882 = vadd.f32 %v4652, %v4834
      %v4883 = vadd.f32 %v4653, %v4835
      %v4884 = vadd.f32 %v4654, %v4836
      %v4885 = vadd.f32 %v4655, %v4837
      %v4886 = vadd.f32 %v4656, %v4838
      %v4887 = vadd.f32 %v4657, %v4839
      %v4888 = vadd.f32 %v4658, %v4840
      %v4889 = vadd.f32 %v4659, %v4841
      %v4890 = vadd.f32 %v4660, %v4842
      %v4891 = vadd.f32 %v4661, %v4843
      %v4892 = vadd.f32 %v4662, %v4844
      %v4893 = vadd.f32 %v4663, %v4845
      %v4894 = vadd.f32 %v4664, %v4846
      %v4895 = vadd.f32 %v4665, %v4847
      %v4896 = vadd.f32 %v4666, %v4848
      %v4897 = vadd.f32 %v4667, %v4849
      %v4898 = vadd.f32 %v4668, %v4850
      %v4899 = vadd.f32 %v4669, %v4851
      %v4900 = vadd.f32 %v4670, %v4852
      %v4901 = vadd.f32 %v4671, %v4853
      %v4902 = vadd.f32 %v4672, %v4854
      %v4903 = vadd.f32 %v4673, %v4855
      %v4904 = vperm.slane %v1553, 3
      %v4905 = vmul.f32 %v4764, %v4904
      %v4906 = vmul.f32 %v4742, %v4904
      %v4907 = vmul.f32 %v4786, %v4904
      %v4908 = vmul.f32 %v4765, %v4904
      %v4909 = vmul.f32 %v4743, %v4904
      %v4910 = vmul.f32 %v4787, %v4904
      %v4911 = vmul.f32 %v4766, %v4904
      %v4912 = vmul.f32 %v4744, %v4904
      %v4913 = vmul.f32 %v4788, %v4904
      %v4914 = vmul.f32 %v4767, %v4904
      %v4915 = vmul.f32 %v4745, %v4904
      %v4916 = vmul.f32 %v4789, %v4904
      %v4917 = vmul.f32 %v4768, %v4904
      %v4918 = vmul.f32 %v4746, %v4904
      %v4919 = vmul.f32 %v4790, %v4904
      %v4920 = vmul.f32 %v4769, %v4904
      %v4921 = vmul.f32 %v4747, %v4904
      %v4922 = vmul.f32 %v4791, %v4904
      %v4923 = vmul.f32 %v4770, %v4904
      %v4924 = vmul.f32 %v4748, %v4904
      %v4925 = vmul.f32 %v4792, %v4904
      %v4926 = vmul.f32 %v4771, %v4904
      %v4927 = vmul.f32 %v4749, %v4904
      %v4928 = vmul.f32 %v4793, %v4904
      %v4929 = vmul.f32 %v4772, %v4904
      %v4930 = vmul.f32 %v4750, %v4904
      %v4931 = vmul.f32 %v4794, %v4904
      %v4932 = vmul.f32 %v4773, %v4904
      %v4933 = vmul.f32 %v4751, %v4904
      %v4934 = vmul.f32 %v4795, %v4904
      %v4935 = vmul.f32 %v4774, %v4904
      %v4936 = vmul.f32 %v4752, %v4904
      %v4937 = vmul.f32 %v4796, %v4904
      %v4938 = vmul.f32 %v4775, %v4904
      %v4939 = vmul.f32 %v4753, %v4904
      %v4940 = vmul.f32 %v4797, %v4904
      %v4941 = vmul.f32 %v4776, %v4904
      %v4942 = vmul.f32 %v4754, %v4904
      %v4943 = vmul.f32 %v4798, %v4904
      %v4944 = vmul.f32 %v4777, %v4904
      %v4945 = vmul.f32 %v4755, %v4904
      %v4946 = vmul.f32 %v4799, %v4904
      %v4947 = vmul.f32 %v4778, %v4904
      %v4948 = vmul.f32 %v4756, %v4904
      %v4949 = vmul.f32 %v4800, %v4904
      %v4950 = vmul.f32 %v4779, %v4904
      %v4951 = vmul.f32 %v4757, %v4904
      %v4952 = vmul.f32 %v4801, %v4904
      %v4953 = vadd.f32 %v4856, %v4905
      %v4954 = vadd.f32 %v4857, %v4906
      %v4955 = vadd.f32 %v4858, %v4907
      %v4956 = vadd.f32 %v4859, %v4908
      %v4957 = vadd.f32 %v4860, %v4909
      %v4958 = vadd.f32 %v4861, %v4910
      %v4959 = vadd.f32 %v4862, %v4911
      %v4960 = vadd.f32 %v4863, %v4912
      %v4961 = vadd.f32 %v4864, %v4913
      %v4962 = vadd.f32 %v4865, %v4914
      %v4963 = vadd.f32 %v4866, %v4915
      %v4964 = vadd.f32 %v4867, %v4916
      %v4965 = vadd.f32 %v4868, %v4917
      %v4966 = vadd.f32 %v4869, %v4918
      %v4967 = vadd.f32 %v4870, %v4919
      %v4968 = vadd.f32 %v4871, %v4920
      %v4969 = vadd.f32 %v4872, %v4921
      %v4970 = vadd.f32 %v4873, %v4922
      %v4971 = vadd.f32 %v4874, %v4923
      %v4972 = vadd.f32 %v4875, %v4924
      %v4973 = vadd.f32 %v4876, %v4925
      %v4974 = vadd.f32 %v4877, %v4926
      %v4975 = vadd.f32 %v4878, %v4927
      %v4976 = vadd.f32 %v4879, %v4928
      %v4977 = vadd.f32 %v4880, %v4929
      %v4978 = vadd.f32 %v4881, %v4930
      %v4979 = vadd.f32 %v4882, %v4931
      %v4980 = vadd.f32 %v4883, %v4932
      %v4981 = vadd.f32 %v4884, %v4933
      %v4982 = vadd.f32 %v4885, %v4934
      %v4983 = vadd.f32 %v4886, %v4935
      %v4984 = vadd.f32 %v4887, %v4936
      %v4985 = vadd.f32 %v4888, %v4937
      %v4986 = vadd.f32 %v4889, %v4938
      %v4987 = vadd.f32 %v4890, %v4939
      %v4988 = vadd.f32 %v4891, %v4940
      %v4989 = vadd.f32 %v4892, %v4941
      %v4990 = vadd.f32 %v4893, %v4942
      %v4991 = vadd.f32 %v4894, %v4943
      %v4992 = vadd.f32 %v4895, %v4944
      %v4993 = vadd.f32 %v4896, %v4945
      %v4994 = vadd.f32 %v4897, %v4946
      %v4995 = vadd.f32 %v4898, %v4947
      %v4996 = vadd.f32 %v4899, %v4948
      %v4997 = vadd.f32 %v4900, %v4949
      %v4998 = vadd.f32 %v4901, %v4950
      %v4999 = vadd.f32 %v4902, %v4951
      %v5000 = vadd.f32 %v4903, %v4952
      %v5001 = vperm.slane %v1554, 2
      %v5002 = vmul.f32 %v4765, %v5001
      %v5003 = vmul.f32 %v4743, %v5001
      %v5004 = vmul.f32 %v4787, %v5001
      %v5005 = vmul.f32 %v4766, %v5001
      %v5006 = vmul.f32 %v4744, %v5001
      %v5007 = vmul.f32 %v4788, %v5001
      %v5008 = vmul.f32 %v4767, %v5001
      %v5009 = vmul.f32 %v4745, %v5001
      %v5010 = vmul.f32 %v4789, %v5001
      %v5011 = vmul.f32 %v4768, %v5001
      %v5012 = vmul.f32 %v4746, %v5001
      %v5013 = vmul.f32 %v4790, %v5001
      %v5014 = vmul.f32 %v4769, %v5001
      %v5015 = vmul.f32 %v4747, %v5001
      %v5016 = vmul.f32 %v4791, %v5001
      %v5017 = vmul.f32 %v4770, %v5001
      %v5018 = vmul.f32 %v4748, %v5001
      %v5019 = vmul.f32 %v4792, %v5001
      %v5020 = vmul.f32 %v4771, %v5001
      %v5021 = vmul.f32 %v4749, %v5001
      %v5022 = vmul.f32 %v4793, %v5001
      %v5023 = vmul.f32 %v4772, %v5001
      %v5024 = vmul.f32 %v4750, %v5001
      %v5025 = vmul.f32 %v4794, %v5001
      %v5026 = vmul.f32 %v4773, %v5001
      %v5027 = vmul.f32 %v4751, %v5001
      %v5028 = vmul.f32 %v4795, %v5001
      %v5029 = vmul.f32 %v4774, %v5001
      %v5030 = vmul.f32 %v4752, %v5001
      %v5031 = vmul.f32 %v4796, %v5001
      %v5032 = vmul.f32 %v4775, %v5001
      %v5033 = vmul.f32 %v4753, %v5001
      %v5034 = vmul.f32 %v4797, %v5001
      %v5035 = vmul.f32 %v4776, %v5001
      %v5036 = vmul.f32 %v4754, %v5001
      %v5037 = vmul.f32 %v4798, %v5001
      %v5038 = vmul.f32 %v4777, %v5001
      %v5039 = vmul.f32 %v4755, %v5001
      %v5040 = vmul.f32 %v4799, %v5001
      %v5041 = vmul.f32 %v4778, %v5001
      %v5042 = vmul.f32 %v4756, %v5001
      %v5043 = vmul.f32 %v4800, %v5001
      %v5044 = vmul.f32 %v4779, %v5001
      %v5045 = vmul.f32 %v4757, %v5001
      %v5046 = vmul.f32 %v4801, %v5001
      %v5047 = vmul.f32 %v4780, %v5001
      %v5048 = vmul.f32 %v4758, %v5001
      %v5049 = vmul.f32 %v4802, %v5001
      %v5050 = vadd.f32 %v4953, %v5002
      %v5051 = vadd.f32 %v4954, %v5003
      %v5052 = vadd.f32 %v4955, %v5004
      %v5053 = vadd.f32 %v4956, %v5005
      %v5054 = vadd.f32 %v4957, %v5006
      %v5055 = vadd.f32 %v4958, %v5007
      %v5056 = vadd.f32 %v4959, %v5008
      %v5057 = vadd.f32 %v4960, %v5009
      %v5058 = vadd.f32 %v4961, %v5010
      %v5059 = vadd.f32 %v4962, %v5011
      %v5060 = vadd.f32 %v4963, %v5012
      %v5061 = vadd.f32 %v4964, %v5013
      %v5062 = vadd.f32 %v4965, %v5014
      %v5063 = vadd.f32 %v4966, %v5015
      %v5064 = vadd.f32 %v4967, %v5016
      %v5065 = vadd.f32 %v4968, %v5017
      %v5066 = vadd.f32 %v4969, %v5018
      %v5067 = vadd.f32 %v4970, %v5019
      %v5068 = vadd.f32 %v4971, %v5020
      %v5069 = vadd.f32 %v4972, %v5021
      %v5070 = vadd.f32 %v4973, %v5022
      %v5071 = vadd.f32 %v4974, %v5023
      %v5072 = vadd.f32 %v4975, %v5024
      %v5073 = vadd.f32 %v4976, %v5025
      %v5074 = vadd.f32 %v4977, %v5026
      %v5075 = vadd.f32 %v4978, %v5027
      %v5076 = vadd.f32 %v4979, %v5028
      %v5077 = vadd.f32 %v4980, %v5029
      %v5078 = vadd.f32 %v4981, %v5030
      %v5079 = vadd.f32 %v4982, %v5031
      %v5080 = vadd.f32 %v4983, %v5032
      %v5081 = vadd.f32 %v4984, %v5033
      %v5082 = vadd.f32 %v4985, %v5034
      %v5083 = vadd.f32 %v4986, %v5035
      %v5084 = vadd.f32 %v4987, %v5036
      %v5085 = vadd.f32 %v4988, %v5037
      %v5086 = vadd.f32 %v4989, %v5038
      %v5087 = vadd.f32 %v4990, %v5039
      %v5088 = vadd.f32 %v4991, %v5040
      %v5089 = vadd.f32 %v4992, %v5041
      %v5090 = vadd.f32 %v4993, %v5042
      %v5091 = vadd.f32 %v4994, %v5043
      %v5092 = vadd.f32 %v4995, %v5044
      %v5093 = vadd.f32 %v4996, %v5045
      %v5094 = vadd.f32 %v4997, %v5046
      %v5095 = vadd.f32 %v4998, %v5047
      %v5096 = vadd.f32 %v4999, %v5048
      %v5097 = vadd.f32 %v5000, %v5049
      %v5098 = vperm.slane %v1555, 1
      %v5099 = vmul.f32 %v4766, %v5098
      %v5100 = vmul.f32 %v4744, %v5098
      %v5101 = vmul.f32 %v4788, %v5098
      %v5102 = vmul.f32 %v4767, %v5098
      %v5103 = vmul.f32 %v4745, %v5098
      %v5104 = vmul.f32 %v4789, %v5098
      %v5105 = vmul.f32 %v4768, %v5098
      %v5106 = vmul.f32 %v4746, %v5098
      %v5107 = vmul.f32 %v4790, %v5098
      %v5108 = vmul.f32 %v4769, %v5098
      %v5109 = vmul.f32 %v4747, %v5098
      %v5110 = vmul.f32 %v4791, %v5098
      %v5111 = vmul.f32 %v4770, %v5098
      %v5112 = vmul.f32 %v4748, %v5098
      %v5113 = vmul.f32 %v4792, %v5098
      %v5114 = vmul.f32 %v4771, %v5098
      %v5115 = vmul.f32 %v4749, %v5098
      %v5116 = vmul.f32 %v4793, %v5098
      %v5117 = vmul.f32 %v4772, %v5098
      %v5118 = vmul.f32 %v4750, %v5098
      %v5119 = vmul.f32 %v4794, %v5098
      %v5120 = vmul.f32 %v4773, %v5098
      %v5121 = vmul.f32 %v4751, %v5098
      %v5122 = vmul.f32 %v4795, %v5098
      %v5123 = vmul.f32 %v4774, %v5098
      %v5124 = vmul.f32 %v4752, %v5098
      %v5125 = vmul.f32 %v4796, %v5098
      %v5126 = vmul.f32 %v4775, %v5098
      %v5127 = vmul.f32 %v4753, %v5098
      %v5128 = vmul.f32 %v4797, %v5098
      %v5129 = vmul.f32 %v4776, %v5098
      %v5130 = vmul.f32 %v4754, %v5098
      %v5131 = vmul.f32 %v4798, %v5098
      %v5132 = vmul.f32 %v4777, %v5098
      %v5133 = vmul.f32 %v4755, %v5098
      %v5134 = vmul.f32 %v4799, %v5098
      %v5135 = vmul.f32 %v4778, %v5098
      %v5136 = vmul.f32 %v4756, %v5098
      %v5137 = vmul.f32 %v4800, %v5098
      %v5138 = vmul.f32 %v4779, %v5098
      %v5139 = vmul.f32 %v4757, %v5098
      %v5140 = vmul.f32 %v4801, %v5098
      %v5141 = vmul.f32 %v4780, %v5098
      %v5142 = vmul.f32 %v4758, %v5098
      %v5143 = vmul.f32 %v4802, %v5098
      %v5144 = vmul.f32 %v4781, %v5098
      %v5145 = vmul.f32 %v4759, %v5098
      %v5146 = vmul.f32 %v4803, %v5098
      %v5147 = vadd.f32 %v5050, %v5099
      %v5148 = vadd.f32 %v5051, %v5100
      %v5149 = vadd.f32 %v5052, %v5101
      %v5150 = vadd.f32 %v5053, %v5102
      %v5151 = vadd.f32 %v5054, %v5103
      %v5152 = vadd.f32 %v5055, %v5104
      %v5153 = vadd.f32 %v5056, %v5105
      %v5154 = vadd.f32 %v5057, %v5106
      %v5155 = vadd.f32 %v5058, %v5107
      %v5156 = vadd.f32 %v5059, %v5108
      %v5157 = vadd.f32 %v5060, %v5109
      %v5158 = vadd.f32 %v5061, %v5110
      %v5159 = vadd.f32 %v5062, %v5111
      %v5160 = vadd.f32 %v5063, %v5112
      %v5161 = vadd.f32 %v5064, %v5113
      %v5162 = vadd.f32 %v5065, %v5114
      %v5163 = vadd.f32 %v5066, %v5115
      %v5164 = vadd.f32 %v5067, %v5116
      %v5165 = vadd.f32 %v5068, %v5117
      %v5166 = vadd.f32 %v5069, %v5118
      %v5167 = vadd.f32 %v5070, %v5119
      %v5168 = vadd.f32 %v5071, %v5120
      %v5169 = vadd.f32 %v5072, %v5121
      %v5170 = vadd.f32 %v5073, %v5122
      %v5171 = vadd.f32 %v5074, %v5123
      %v5172 = vadd.f32 %v5075, %v5124
      %v5173 = vadd.f32 %v5076, %v5125
      %v5174 = vadd.f32 %v5077, %v5126
      %v5175 = vadd.f32 %v5078, %v5127
      %v5176 = vadd.f32 %v5079, %v5128
      %v5177 = vadd.f32 %v5080, %v5129
      %v5178 = vadd.f32 %v5081, %v5130
      %v5179 = vadd.f32 %v5082, %v5131
      %v5180 = vadd.f32 %v5083, %v5132
      %v5181 = vadd.f32 %v5084, %v5133
      %v5182 = vadd.f32 %v5085, %v5134
      %v5183 = vadd.f32 %v5086, %v5135
      %v5184 = vadd.f32 %v5087, %v5136
      %v5185 = vadd.f32 %v5088, %v5137
      %v5186 = vadd.f32 %v5089, %v5138
      %v5187 = vadd.f32 %v5090, %v5139
      %v5188 = vadd.f32 %v5091, %v5140
      %v5189 = vadd.f32 %v5092, %v5141
      %v5190 = vadd.f32 %v5093, %v5142
      %v5191 = vadd.f32 %v5094, %v5143
      %v5192 = vadd.f32 %v5095, %v5144
      %v5193 = vadd.f32 %v5096, %v5145
      %v5194 = vadd.f32 %v5097, %v5146
      %v5195 = vperm.slane %v1556, 0
      %v5196 = vmul.f32 %v4767, %v5195
      %v5197 = vmul.f32 %v4745, %v5195
      %v5198 = vmul.f32 %v4789, %v5195
      %v5199 = vmul.f32 %v4768, %v5195
      %v5200 = vmul.f32 %v4746, %v5195
      %v5201 = vmul.f32 %v4790, %v5195
      %v5202 = vmul.f32 %v4769, %v5195
      %v5203 = vmul.f32 %v4747, %v5195
      %v5204 = vmul.f32 %v4791, %v5195
      %v5205 = vmul.f32 %v4770, %v5195
      %v5206 = vmul.f32 %v4748, %v5195
      %v5207 = vmul.f32 %v4792, %v5195
      %v5208 = vmul.f32 %v4771, %v5195
      %v5209 = vmul.f32 %v4749, %v5195
      %v5210 = vmul.f32 %v4793, %v5195
      %v5211 = vmul.f32 %v4772, %v5195
      %v5212 = vmul.f32 %v4750, %v5195
      %v5213 = vmul.f32 %v4794, %v5195
      %v5214 = vmul.f32 %v4773, %v5195
      %v5215 = vmul.f32 %v4751, %v5195
      %v5216 = vmul.f32 %v4795, %v5195
      %v5217 = vmul.f32 %v4774, %v5195
      %v5218 = vmul.f32 %v4752, %v5195
      %v5219 = vmul.f32 %v4796, %v5195
      %v5220 = vmul.f32 %v4775, %v5195
      %v5221 = vmul.f32 %v4753, %v5195
      %v5222 = vmul.f32 %v4797, %v5195
      %v5223 = vmul.f32 %v4776, %v5195
      %v5224 = vmul.f32 %v4754, %v5195
      %v5225 = vmul.f32 %v4798, %v5195
      %v5226 = vmul.f32 %v4777, %v5195
      %v5227 = vmul.f32 %v4755, %v5195
      %v5228 = vmul.f32 %v4799, %v5195
      %v5229 = vmul.f32 %v4778, %v5195
      %v5230 = vmul.f32 %v4756, %v5195
      %v5231 = vmul.f32 %v4800, %v5195
      %v5232 = vmul.f32 %v4779, %v5195
      %v5233 = vmul.f32 %v4757, %v5195
      %v5234 = vmul.f32 %v4801, %v5195
      %v5235 = vmul.f32 %v4780, %v5195
      %v5236 = vmul.f32 %v4758, %v5195
      %v5237 = vmul.f32 %v4802, %v5195
      %v5238 = vmul.f32 %v4781, %v5195
      %v5239 = vmul.f32 %v4759, %v5195
      %v5240 = vmul.f32 %v4803, %v5195
      %v5241 = vmul.f32 %v4782, %v5195
      %v5242 = vmul.f32 %v4760, %v5195
      %v5243 = vmul.f32 %v4804, %v5195
      %v5244 = vadd.f32 %v5147, %v5196
      %v5245 = vadd.f32 %v5148, %v5197
      %v5246 = vadd.f32 %v5149, %v5198
      %v5247 = vadd.f32 %v5150, %v5199
      %v5248 = vadd.f32 %v5151, %v5200
      %v5249 = vadd.f32 %v5152, %v5201
      %v5250 = vadd.f32 %v5153, %v5202
      %v5251 = vadd.f32 %v5154, %v5203
      %v5252 = vadd.f32 %v5155, %v5204
      %v5253 = vadd.f32 %v5156, %v5205
      %v5254 = vadd.f32 %v5157, %v5206
      %v5255 = vadd.f32 %v5158, %v5207
      %v5256 = vadd.f32 %v5159, %v5208
      %v5257 = vadd.f32 %v5160, %v5209
      %v5258 = vadd.f32 %v5161, %v5210
      %v5259 = vadd.f32 %v5162, %v5211
      %v5260 = vadd.f32 %v5163, %v5212
      %v5261 = vadd.f32 %v5164, %v5213
      %v5262 = vadd.f32 %v5165, %v5214
      %v5263 = vadd.f32 %v5166, %v5215
      %v5264 = vadd.f32 %v5167, %v5216
      %v5265 = vadd.f32 %v5168, %v5217
      %v5266 = vadd.f32 %v5169, %v5218
      %v5267 = vadd.f32 %v5170, %v5219
      %v5268 = vadd.f32 %v5171, %v5220
      %v5269 = vadd.f32 %v5172, %v5221
      %v5270 = vadd.f32 %v5173, %v5222
      %v5271 = vadd.f32 %v5174, %v5223
      %v5272 = vadd.f32 %v5175, %v5224
      %v5273 = vadd.f32 %v5176, %v5225
      %v5274 = vadd.f32 %v5177, %v5226
      %v5275 = vadd.f32 %v5178, %v5227
      %v5276 = vadd.f32 %v5179, %v5228
      %v5277 = vadd.f32 %v5180, %v5229
      %v5278 = vadd.f32 %v5181, %v5230
      %v5279 = vadd.f32 %v5182, %v5231
      %v5280 = vadd.f32 %v5183, %v5232
      %v5281 = vadd.f32 %v5184, %v5233
      %v5282 = vadd.f32 %v5185, %v5234
      %v5283 = vadd.f32 %v5186, %v5235
      %v5284 = vadd.f32 %v5187, %v5236
      %v5285 = vadd.f32 %v5188, %v5237
      %v5286 = vadd.f32 %v5189, %v5238
      %v5287 = vadd.f32 %v5190, %v5239
      %v5288 = vadd.f32 %v5191, %v5240
      %v5289 = vadd.f32 %v5192, %v5241
      %v5290 = vadd.f32 %v5193, %v5242
      %v5291 = vadd.f32 %v5194, %v5243
      %v5292 = vperm.slane %v1556, 7
      %v5293 = vmul.f32 %v4768, %v5292
      %v5294 = vmul.f32 %v4746, %v5292
      %v5295 = vmul.f32 %v4790, %v5292
      %v5296 = vmul.f32 %v4769, %v5292
      %v5297 = vmul.f32 %v4747, %v5292
      %v5298 = vmul.f32 %v4791, %v5292
      %v5299 = vmul.f32 %v4770, %v5292
      %v5300 = vmul.f32 %v4748, %v5292
      %v5301 = vmul.f32 %v4792, %v5292
      %v5302 = vmul.f32 %v4771, %v5292
      %v5303 = vmul.f32 %v4749, %v5292
      %v5304 = vmul.f32 %v4793, %v5292
      %v5305 = vmul.f32 %v4772, %v5292
      %v5306 = vmul.f32 %v4750, %v5292
      %v5307 = vmul.f32 %v4794, %v5292
      %v5308 = vmul.f32 %v4773, %v5292
      %v5309 = vmul.f32 %v4751, %v5292
      %v5310 = vmul.f32 %v4795, %v5292
      %v5311 = vmul.f32 %v4774, %v5292
      %v5312 = vmul.f32 %v4752, %v5292
      %v5313 = vmul.f32 %v4796, %v5292
      %v5314 = vmul.f32 %v4775, %v5292
      %v5315 = vmul.f32 %v4753, %v5292
      %v5316 = vmul.f32 %v4797, %v5292
      %v5317 = vmul.f32 %v4776, %v5292
      %v5318 = vmul.f32 %v4754, %v5292
      %v5319 = vmul.f32 %v4798, %v5292
      %v5320 = vmul.f32 %v4777, %v5292
      %v5321 = vmul.f32 %v4755, %v5292
      %v5322 = vmul.f32 %v4799, %v5292
      %v5323 = vmul.f32 %v4778, %v5292
      %v5324 = vmul.f32 %v4756, %v5292
      %v5325 = vmul.f32 %v4800, %v5292
      %v5326 = vmul.f32 %v4779, %v5292
      %v5327 = vmul.f32 %v4757, %v5292
      %v5328 = vmul.f32 %v4801, %v5292
      %v5329 = vmul.f32 %v4780, %v5292
      %v5330 = vmul.f32 %v4758, %v5292
      %v5331 = vmul.f32 %v4802, %v5292
      %v5332 = vmul.f32 %v4781, %v5292
      %v5333 = vmul.f32 %v4759, %v5292
      %v5334 = vmul.f32 %v4803, %v5292
      %v5335 = vmul.f32 %v4782, %v5292
      %v5336 = vmul.f32 %v4760, %v5292
      %v5337 = vmul.f32 %v4804, %v5292
      %v5338 = vmul.f32 %v4783, %v5292
      %v5339 = vmul.f32 %v4761, %v5292
      %v5340 = vmul.f32 %v4805, %v5292
      %v5341 = vadd.f32 %v5244, %v5293
      %v5342 = vadd.f32 %v5245, %v5294
      %v5343 = vadd.f32 %v5246, %v5295
      %v5344 = vadd.f32 %v5247, %v5296
      %v5345 = vadd.f32 %v5248, %v5297
      %v5346 = vadd.f32 %v5249, %v5298
      %v5347 = vadd.f32 %v5250, %v5299
      %v5348 = vadd.f32 %v5251, %v5300
      %v5349 = vadd.f32 %v5252, %v5301
      %v5350 = vadd.f32 %v5253, %v5302
      %v5351 = vadd.f32 %v5254, %v5303
      %v5352 = vadd.f32 %v5255, %v5304
      %v5353 = vadd.f32 %v5256, %v5305
      %v5354 = vadd.f32 %v5257, %v5306
      %v5355 = vadd.f32 %v5258, %v5307
      %v5356 = vadd.f32 %v5259, %v5308
      %v5357 = vadd.f32 %v5260, %v5309
      %v5358 = vadd.f32 %v5261, %v5310
      %v5359 = vadd.f32 %v5262, %v5311
      %v5360 = vadd.f32 %v5263, %v5312
      %v5361 = vadd.f32 %v5264, %v5313
      %v5362 = vadd.f32 %v5265, %v5314
      %v5363 = vadd.f32 %v5266, %v5315
      %v5364 = vadd.f32 %v5267, %v5316
      %v5365 = vadd.f32 %v5268, %v5317
      %v5366 = vadd.f32 %v5269, %v5318
      %v5367 = vadd.f32 %v5270, %v5319
      %v5368 = vadd.f32 %v5271, %v5320
      %v5369 = vadd.f32 %v5272, %v5321
      %v5370 = vadd.f32 %v5273, %v5322
      %v5371 = vadd.f32 %v5274, %v5323
      %v5372 = vadd.f32 %v5275, %v5324
      %v5373 = vadd.f32 %v5276, %v5325
      %v5374 = vadd.f32 %v5277, %v5326
      %v5375 = vadd.f32 %v5278, %v5327
      %v5376 = vadd.f32 %v5279, %v5328
      %v5377 = vadd.f32 %v5280, %v5329
      %v5378 = vadd.f32 %v5281, %v5330
      %v5379 = vadd.f32 %v5282, %v5331
      %v5380 = vadd.f32 %v5283, %v5332
      %v5381 = vadd.f32 %v5284, %v5333
      %v5382 = vadd.f32 %v5285, %v5334
      %v5383 = vadd.f32 %v5286, %v5335
      %v5384 = vadd.f32 %v5287, %v5336
      %v5385 = vadd.f32 %v5288, %v5337
      %v5386 = vadd.f32 %v5289, %v5338
      %v5387 = vadd.f32 %v5290, %v5339
      %v5388 = vadd.f32 %v5291, %v5340
      %v5389 = vperm.slane %v1557, 6
      %v5390 = vmul.f32 %v4769, %v5389
      %v5391 = vmul.f32 %v4747, %v5389
      %v5392 = vmul.f32 %v4791, %v5389
      %v5393 = vmul.f32 %v4770, %v5389
      %v5394 = vmul.f32 %v4748, %v5389
      %v5395 = vmul.f32 %v4792, %v5389
      %v5396 = vmul.f32 %v4771, %v5389
      %v5397 = vmul.f32 %v4749, %v5389
      %v5398 = vmul.f32 %v4793, %v5389
      %v5399 = vmul.f32 %v4772, %v5389
      %v5400 = vmul.f32 %v4750, %v5389
      %v5401 = vmul.f32 %v4794, %v5389
      %v5402 = vmul.f32 %v4773, %v5389
      %v5403 = vmul.f32 %v4751, %v5389
      %v5404 = vmul.f32 %v4795, %v5389
      %v5405 = vmul.f32 %v4774, %v5389
      %v5406 = vmul.f32 %v4752, %v5389
      %v5407 = vmul.f32 %v4796, %v5389
      %v5408 = vmul.f32 %v4775, %v5389
      %v5409 = vmul.f32 %v4753, %v5389
      %v5410 = vmul.f32 %v4797, %v5389
      %v5411 = vmul.f32 %v4776, %v5389
      %v5412 = vmul.f32 %v4754, %v5389
      %v5413 = vmul.f32 %v4798, %v5389
      %v5414 = vmul.f32 %v4777, %v5389
      %v5415 = vmul.f32 %v4755, %v5389
      %v5416 = vmul.f32 %v4799, %v5389
      %v5417 = vmul.f32 %v4778, %v5389
      %v5418 = vmul.f32 %v4756, %v5389
      %v5419 = vmul.f32 %v4800, %v5389
      %v5420 = vmul.f32 %v4779, %v5389
      %v5421 = vmul.f32 %v4757, %v5389
      %v5422 = vmul.f32 %v4801, %v5389
      %v5423 = vmul.f32 %v4780, %v5389
      %v5424 = vmul.f32 %v4758, %v5389
      %v5425 = vmul.f32 %v4802, %v5389
      %v5426 = vmul.f32 %v4781, %v5389
      %v5427 = vmul.f32 %v4759, %v5389
      %v5428 = vmul.f32 %v4803, %v5389
      %v5429 = vmul.f32 %v4782, %v5389
      %v5430 = vmul.f32 %v4760, %v5389
      %v5431 = vmul.f32 %v4804, %v5389
      %v5432 = vmul.f32 %v4783, %v5389
      %v5433 = vmul.f32 %v4761, %v5389
      %v5434 = vmul.f32 %v4805, %v5389
      %v5435 = vmul.f32 %v4784, %v5389
      %v5436 = vmul.f32 %v4762, %v5389
      %v5437 = vmul.f32 %v4806, %v5389
      %v5438 = vadd.f32 %v5341, %v5390
      %v5439 = vadd.f32 %v5342, %v5391
      %v5440 = vadd.f32 %v5343, %v5392
      %v5441 = vadd.f32 %v5344, %v5393
      %v5442 = vadd.f32 %v5345, %v5394
      %v5443 = vadd.f32 %v5346, %v5395
      %v5444 = vadd.f32 %v5347, %v5396
      %v5445 = vadd.f32 %v5348, %v5397
      %v5446 = vadd.f32 %v5349, %v5398
      %v5447 = vadd.f32 %v5350, %v5399
      %v5448 = vadd.f32 %v5351, %v5400
      %v5449 = vadd.f32 %v5352, %v5401
      %v5450 = vadd.f32 %v5353, %v5402
      %v5451 = vadd.f32 %v5354, %v5403
      %v5452 = vadd.f32 %v5355, %v5404
      %v5453 = vadd.f32 %v5356, %v5405
      %v5454 = vadd.f32 %v5357, %v5406
      %v5455 = vadd.f32 %v5358, %v5407
      %v5456 = vadd.f32 %v5359, %v5408
      %v5457 = vadd.f32 %v5360, %v5409
      %v5458 = vadd.f32 %v5361, %v5410
      %v5459 = vadd.f32 %v5362, %v5411
      %v5460 = vadd.f32 %v5363, %v5412
      %v5461 = vadd.f32 %v5364, %v5413
      %v5462 = vadd.f32 %v5365, %v5414
      %v5463 = vadd.f32 %v5366, %v5415
      %v5464 = vadd.f32 %v5367, %v5416
      %v5465 = vadd.f32 %v5368, %v5417
      %v5466 = vadd.f32 %v5369, %v5418
      %v5467 = vadd.f32 %v5370, %v5419
      %v5468 = vadd.f32 %v5371, %v5420
      %v5469 = vadd.f32 %v5372, %v5421
      %v5470 = vadd.f32 %v5373, %v5422
      %v5471 = vadd.f32 %v5374, %v5423
      %v5472 = vadd.f32 %v5375, %v5424
      %v5473 = vadd.f32 %v5376, %v5425
      %v5474 = vadd.f32 %v5377, %v5426
      %v5475 = vadd.f32 %v5378, %v5427
      %v5476 = vadd.f32 %v5379, %v5428
      %v5477 = vadd.f32 %v5380, %v5429
      %v5478 = vadd.f32 %v5381, %v5430
      %v5479 = vadd.f32 %v5382, %v5431
      %v5480 = vadd.f32 %v5383, %v5432
      %v5481 = vadd.f32 %v5384, %v5433
      %v5482 = vadd.f32 %v5385, %v5434
      %v5483 = vadd.f32 %v5386, %v5435
      %v5484 = vadd.f32 %v5387, %v5436
      %v5485 = vadd.f32 %v5388, %v5437
      %v5486 = vrot.slane %v1486, 5
      %v5487 = vrot.slane %v1489, 5
      %v5488 = vrot.slane %v1492, 5
      %v5489 = vrot.slane %v1495, 5
      %v5490 = vrot.slane %v1498, 5
      %v5491 = vrot.slane %v1501, 5
      %v5492 = vrot.slane %v1504, 5
      %v5493 = vrot.slane %v1507, 5
      %v5494 = vrot.slane %v1510, 5
      %v5495 = vrot.slane %v1513, 5
      %v5496 = vrot.slane %v1516, 5
      %v5497 = vrot.slane %v1519, 5
      %v5498 = vrot.slane %v1522, 5
      %v5499 = vrot.slane %v1525, 5
      %v5500 = vrot.slane %v1528, 5
      %v5501 = vrot.slane %v1531, 5
      %v5502 = vrot.slane %v1534, 5
      %v5503 = vrot.slane %v1537, 5
      %v5504 = vrot.slane %v1540, 5
      %v5505 = vrot.slane %v1543, 5
      %v5506 = vrot.slane %v1546, 5
      %v5507 = vrot.slane %v1549, 5
      %v5508 = vrot.slane %v1487, 5
      %v5509 = vrot.slane %v1490, 5
      %v5510 = vrot.slane %v1493, 5
      %v5511 = vrot.slane %v1496, 5
      %v5512 = vrot.slane %v1499, 5
      %v5513 = vrot.slane %v1502, 5
      %v5514 = vrot.slane %v1505, 5
      %v5515 = vrot.slane %v1508, 5
      %v5516 = vrot.slane %v1511, 5
      %v5517 = vrot.slane %v1514, 5
      %v5518 = vrot.slane %v1517, 5
      %v5519 = vrot.slane %v1520, 5
      %v5520 = vrot.slane %v1523, 5
      %v5521 = vrot.slane %v1526, 5
      %v5522 = vrot.slane %v1529, 5
      %v5523 = vrot.slane %v1532, 5
      %v5524 = vrot.slane %v1535, 5
      %v5525 = vrot.slane %v1538, 5
      %v5526 = vrot.slane %v1541, 5
      %v5527 = vrot.slane %v1544, 5
      %v5528 = vrot.slane %v1547, 5
      %v5529 = vrot.slane %v1550, 5
      %v5530 = vrot.slane %v1488, 5
      %v5531 = vrot.slane %v1491, 5
      %v5532 = vrot.slane %v1494, 5
      %v5533 = vrot.slane %v1497, 5
      %v5534 = vrot.slane %v1500, 5
      %v5535 = vrot.slane %v1503, 5
      %v5536 = vrot.slane %v1506, 5
      %v5537 = vrot.slane %v1509, 5
      %v5538 = vrot.slane %v1512, 5
      %v5539 = vrot.slane %v1515, 5
      %v5540 = vrot.slane %v1518, 5
      %v5541 = vrot.slane %v1521, 5
      %v5542 = vrot.slane %v1524, 5
      %v5543 = vrot.slane %v1527, 5
      %v5544 = vrot.slane %v1530, 5
      %v5545 = vrot.slane %v1533, 5
      %v5546 = vrot.slane %v1536, 5
      %v5547 = vrot.slane %v1539, 5
      %v5548 = vrot.slane %v1542, 5
      %v5549 = vrot.slane %v1545, 5
      %v5550 = vrot.slane %v1548, 5
      %v5551 = vrot.slane %v1551, 5
      %vm5552 = vcmp.lt.s32.totalorder %v876, 3
      %v5553 = vsel %vm5552, %v5508, %v5530
      %v5554 = vsel %vm5552, %v5509, %v5531
      %v5555 = vsel %vm5552, %v5510, %v5532
      %v5556 = vsel %vm5552, %v5511, %v5533
      %v5557 = vsel %vm5552, %v5512, %v5534
      %v5558 = vsel %vm5552, %v5513, %v5535
      %v5559 = vsel %vm5552, %v5514, %v5536
      %v5560 = vsel %vm5552, %v5515, %v5537
      %v5561 = vsel %vm5552, %v5516, %v5538
      %v5562 = vsel %vm5552, %v5517, %v5539
      %v5563 = vsel %vm5552, %v5518, %v5540
      %v5564 = vsel %vm5552, %v5519, %v5541
      %v5565 = vsel %vm5552, %v5520, %v5542
      %v5566 = vsel %vm5552, %v5521, %v5543
      %v5567 = vsel %vm5552, %v5522, %v5544
      %v5568 = vsel %vm5552, %v5523, %v5545
      %v5569 = vsel %vm5552, %v5524, %v5546
      %v5570 = vsel %vm5552, %v5525, %v5547
      %v5571 = vsel %vm5552, %v5526, %v5548
      %v5572 = vsel %vm5552, %v5527, %v5549
      %v5573 = vsel %vm5552, %v5528, %v5550
      %v5574 = vsel %vm5552, %v5529, %v5551
      %v5575 = vsel %vm5552, %v5486, %v5508
      %v5576 = vsel %vm5552, %v5487, %v5509
      %v5577 = vsel %vm5552, %v5488, %v5510
      %v5578 = vsel %vm5552, %v5489, %v5511
      %v5579 = vsel %vm5552, %v5490, %v5512
      %v5580 = vsel %vm5552, %v5491, %v5513
      %v5581 = vsel %vm5552, %v5492, %v5514
      %v5582 = vsel %vm5552, %v5493, %v5515
      %v5583 = vsel %vm5552, %v5494, %v5516
      %v5584 = vsel %vm5552, %v5495, %v5517
      %v5585 = vsel %vm5552, %v5496, %v5518
      %v5586 = vsel %vm5552, %v5497, %v5519
      %v5587 = vsel %vm5552, %v5498, %v5520
      %v5588 = vsel %vm5552, %v5499, %v5521
      %v5589 = vsel %vm5552, %v5500, %v5522
      %v5590 = vsel %vm5552, %v5501, %v5523
      %v5591 = vsel %vm5552, %v5502, %v5524
      %v5592 = vsel %vm5552, %v5503, %v5525
      %v5593 = vsel %vm5552, %v5504, %v5526
      %v5594 = vsel %vm5552, %v5505, %v5527
      %v5595 = vsel %vm5552, %v5506, %v5528
      %v5596 = vsel %vm5552, %v5507, %v5529
      %v5597 = vsel %vm5552, %v5530, %v5486
      %v5598 = vsel %vm5552, %v5531, %v5487
      %v5599 = vsel %vm5552, %v5532, %v5488
      %v5600 = vsel %vm5552, %v5533, %v5489
      %v5601 = vsel %vm5552, %v5534, %v5490
      %v5602 = vsel %vm5552, %v5535, %v5491
      %v5603 = vsel %vm5552, %v5536, %v5492
      %v5604 = vsel %vm5552, %v5537, %v5493
      %v5605 = vsel %vm5552, %v5538, %v5494
      %v5606 = vsel %vm5552, %v5539, %v5495
      %v5607 = vsel %vm5552, %v5540, %v5496
      %v5608 = vsel %vm5552, %v5541, %v5497
      %v5609 = vsel %vm5552, %v5542, %v5498
      %v5610 = vsel %vm5552, %v5543, %v5499
      %v5611 = vsel %vm5552, %v5544, %v5500
      %v5612 = vsel %vm5552, %v5545, %v5501
      %v5613 = vsel %vm5552, %v5546, %v5502
      %v5614 = vsel %vm5552, %v5547, %v5503
      %v5615 = vsel %vm5552, %v5548, %v5504
      %v5616 = vsel %vm5552, %v5549, %v5505
      %v5617 = vsel %vm5552, %v5550, %v5506
      %v5618 = vsel %vm5552, %v5551, %v5507
      %v5619 = vperm.slane %v1552, 5
      %v5620 = vmul.f32 %v5575, %v5619
      %v5621 = vmul.f32 %v5553, %v5619
      %v5622 = vmul.f32 %v5597, %v5619
      %v5623 = vmul.f32 %v5576, %v5619
      %v5624 = vmul.f32 %v5554, %v5619
      %v5625 = vmul.f32 %v5598, %v5619
      %v5626 = vmul.f32 %v5577, %v5619
      %v5627 = vmul.f32 %v5555, %v5619
      %v5628 = vmul.f32 %v5599, %v5619
      %v5629 = vmul.f32 %v5578, %v5619
      %v5630 = vmul.f32 %v5556, %v5619
      %v5631 = vmul.f32 %v5600, %v5619
      %v5632 = vmul.f32 %v5579, %v5619
      %v5633 = vmul.f32 %v5557, %v5619
      %v5634 = vmul.f32 %v5601, %v5619
      %v5635 = vmul.f32 %v5580, %v5619
      %v5636 = vmul.f32 %v5558, %v5619
      %v5637 = vmul.f32 %v5602, %v5619
      %v5638 = vmul.f32 %v5581, %v5619
      %v5639 = vmul.f32 %v5559, %v5619
      %v5640 = vmul.f32 %v5603, %v5619
      %v5641 = vmul.f32 %v5582, %v5619
      %v5642 = vmul.f32 %v5560, %v5619
      %v5643 = vmul.f32 %v5604, %v5619
      %v5644 = vmul.f32 %v5583, %v5619
      %v5645 = vmul.f32 %v5561, %v5619
      %v5646 = vmul.f32 %v5605, %v5619
      %v5647 = vmul.f32 %v5584, %v5619
      %v5648 = vmul.f32 %v5562, %v5619
      %v5649 = vmul.f32 %v5606, %v5619
      %v5650 = vmul.f32 %v5585, %v5619
      %v5651 = vmul.f32 %v5563, %v5619
      %v5652 = vmul.f32 %v5607, %v5619
      %v5653 = vmul.f32 %v5586, %v5619
      %v5654 = vmul.f32 %v5564, %v5619
      %v5655 = vmul.f32 %v5608, %v5619
      %v5656 = vmul.f32 %v5587, %v5619
      %v5657 = vmul.f32 %v5565, %v5619
      %v5658 = vmul.f32 %v5609, %v5619
      %v5659 = vmul.f32 %v5588, %v5619
      %v5660 = vmul.f32 %v5566, %v5619
      %v5661 = vmul.f32 %v5610, %v5619
      %v5662 = vmul.f32 %v5589, %v5619
      %v5663 = vmul.f32 %v5567, %v5619
      %v5664 = vmul.f32 %v5611, %v5619
      %v5665 = vmul.f32 %v5590, %v5619
      %v5666 = vmul.f32 %v5568, %v5619
      %v5667 = vmul.f32 %v5612, %v5619
      %v5668 = vadd.f32 %v5438, %v5620
      %v5669 = vadd.f32 %v5439, %v5621
      %v5670 = vadd.f32 %v5440, %v5622
      %v5671 = vadd.f32 %v5441, %v5623
      %v5672 = vadd.f32 %v5442, %v5624
      %v5673 = vadd.f32 %v5443, %v5625
      %v5674 = vadd.f32 %v5444, %v5626
      %v5675 = vadd.f32 %v5445, %v5627
      %v5676 = vadd.f32 %v5446, %v5628
      %v5677 = vadd.f32 %v5447, %v5629
      %v5678 = vadd.f32 %v5448, %v5630
      %v5679 = vadd.f32 %v5449, %v5631
      %v5680 = vadd.f32 %v5450, %v5632
      %v5681 = vadd.f32 %v5451, %v5633
      %v5682 = vadd.f32 %v5452, %v5634
      %v5683 = vadd.f32 %v5453, %v5635
      %v5684 = vadd.f32 %v5454, %v5636
      %v5685 = vadd.f32 %v5455, %v5637
      %v5686 = vadd.f32 %v5456, %v5638
      %v5687 = vadd.f32 %v5457, %v5639
      %v5688 = vadd.f32 %v5458, %v5640
      %v5689 = vadd.f32 %v5459, %v5641
      %v5690 = vadd.f32 %v5460, %v5642
      %v5691 = vadd.f32 %v5461, %v5643
      %v5692 = vadd.f32 %v5462, %v5644
      %v5693 = vadd.f32 %v5463, %v5645
      %v5694 = vadd.f32 %v5464, %v5646
      %v5695 = vadd.f32 %v5465, %v5647
      %v5696 = vadd.f32 %v5466, %v5648
      %v5697 = vadd.f32 %v5467, %v5649
      %v5698 = vadd.f32 %v5468, %v5650
      %v5699 = vadd.f32 %v5469, %v5651
      %v5700 = vadd.f32 %v5470, %v5652
      %v5701 = vadd.f32 %v5471, %v5653
      %v5702 = vadd.f32 %v5472, %v5654
      %v5703 = vadd.f32 %v5473, %v5655
      %v5704 = vadd.f32 %v5474, %v5656
      %v5705 = vadd.f32 %v5475, %v5657
      %v5706 = vadd.f32 %v5476, %v5658
      %v5707 = vadd.f32 %v5477, %v5659
      %v5708 = vadd.f32 %v5478, %v5660
      %v5709 = vadd.f32 %v5479, %v5661
      %v5710 = vadd.f32 %v5480, %v5662
      %v5711 = vadd.f32 %v5481, %v5663
      %v5712 = vadd.f32 %v5482, %v5664
      %v5713 = vadd.f32 %v5483, %v5665
      %v5714 = vadd.f32 %v5484, %v5666
      %v5715 = vadd.f32 %v5485, %v5667
      %v5716 = vperm.slane %v1553, 4
      %v5717 = vmul.f32 %v5576, %v5716
      %v5718 = vmul.f32 %v5554, %v5716
      %v5719 = vmul.f32 %v5598, %v5716
      %v5720 = vmul.f32 %v5577, %v5716
      %v5721 = vmul.f32 %v5555, %v5716
      %v5722 = vmul.f32 %v5599, %v5716
      %v5723 = vmul.f32 %v5578, %v5716
      %v5724 = vmul.f32 %v5556, %v5716
      %v5725 = vmul.f32 %v5600, %v5716
      %v5726 = vmul.f32 %v5579, %v5716
      %v5727 = vmul.f32 %v5557, %v5716
      %v5728 = vmul.f32 %v5601, %v5716
      %v5729 = vmul.f32 %v5580, %v5716
      %v5730 = vmul.f32 %v5558, %v5716
      %v5731 = vmul.f32 %v5602, %v5716
      %v5732 = vmul.f32 %v5581, %v5716
      %v5733 = vmul.f32 %v5559, %v5716
      %v5734 = vmul.f32 %v5603, %v5716
      %v5735 = vmul.f32 %v5582, %v5716
      %v5736 = vmul.f32 %v5560, %v5716
      %v5737 = vmul.f32 %v5604, %v5716
      %v5738 = vmul.f32 %v5583, %v5716
      %v5739 = vmul.f32 %v5561, %v5716
      %v5740 = vmul.f32 %v5605, %v5716
      %v5741 = vmul.f32 %v5584, %v5716
      %v5742 = vmul.f32 %v5562, %v5716
      %v5743 = vmul.f32 %v5606, %v5716
      %v5744 = vmul.f32 %v5585, %v5716
      %v5745 = vmul.f32 %v5563, %v5716
      %v5746 = vmul.f32 %v5607, %v5716
      %v5747 = vmul.f32 %v5586, %v5716
      %v5748 = vmul.f32 %v5564, %v5716
      %v5749 = vmul.f32 %v5608, %v5716
      %v5750 = vmul.f32 %v5587, %v5716
      %v5751 = vmul.f32 %v5565, %v5716
      %v5752 = vmul.f32 %v5609, %v5716
      %v5753 = vmul.f32 %v5588, %v5716
      %v5754 = vmul.f32 %v5566, %v5716
      %v5755 = vmul.f32 %v5610, %v5716
      %v5756 = vmul.f32 %v5589, %v5716
      %v5757 = vmul.f32 %v5567, %v5716
      %v5758 = vmul.f32 %v5611, %v5716
      %v5759 = vmul.f32 %v5590, %v5716
      %v5760 = vmul.f32 %v5568, %v5716
      %v5761 = vmul.f32 %v5612, %v5716
      %v5762 = vmul.f32 %v5591, %v5716
      %v5763 = vmul.f32 %v5569, %v5716
      %v5764 = vmul.f32 %v5613, %v5716
      %v5765 = vadd.f32 %v5668, %v5717
      %v5766 = vadd.f32 %v5669, %v5718
      %v5767 = vadd.f32 %v5670, %v5719
      %v5768 = vadd.f32 %v5671, %v5720
      %v5769 = vadd.f32 %v5672, %v5721
      %v5770 = vadd.f32 %v5673, %v5722
      %v5771 = vadd.f32 %v5674, %v5723
      %v5772 = vadd.f32 %v5675, %v5724
      %v5773 = vadd.f32 %v5676, %v5725
      %v5774 = vadd.f32 %v5677, %v5726
      %v5775 = vadd.f32 %v5678, %v5727
      %v5776 = vadd.f32 %v5679, %v5728
      %v5777 = vadd.f32 %v5680, %v5729
      %v5778 = vadd.f32 %v5681, %v5730
      %v5779 = vadd.f32 %v5682, %v5731
      %v5780 = vadd.f32 %v5683, %v5732
      %v5781 = vadd.f32 %v5684, %v5733
      %v5782 = vadd.f32 %v5685, %v5734
      %v5783 = vadd.f32 %v5686, %v5735
      %v5784 = vadd.f32 %v5687, %v5736
      %v5785 = vadd.f32 %v5688, %v5737
      %v5786 = vadd.f32 %v5689, %v5738
      %v5787 = vadd.f32 %v5690, %v5739
      %v5788 = vadd.f32 %v5691, %v5740
      %v5789 = vadd.f32 %v5692, %v5741
      %v5790 = vadd.f32 %v5693, %v5742
      %v5791 = vadd.f32 %v5694, %v5743
      %v5792 = vadd.f32 %v5695, %v5744
      %v5793 = vadd.f32 %v5696, %v5745
      %v5794 = vadd.f32 %v5697, %v5746
      %v5795 = vadd.f32 %v5698, %v5747
      %v5796 = vadd.f32 %v5699, %v5748
      %v5797 = vadd.f32 %v5700, %v5749
      %v5798 = vadd.f32 %v5701, %v5750
      %v5799 = vadd.f32 %v5702, %v5751
      %v5800 = vadd.f32 %v5703, %v5752
      %v5801 = vadd.f32 %v5704, %v5753
      %v5802 = vadd.f32 %v5705, %v5754
      %v5803 = vadd.f32 %v5706, %v5755
      %v5804 = vadd.f32 %v5707, %v5756
      %v5805 = vadd.f32 %v5708, %v5757
      %v5806 = vadd.f32 %v5709, %v5758
      %v5807 = vadd.f32 %v5710, %v5759
      %v5808 = vadd.f32 %v5711, %v5760
      %v5809 = vadd.f32 %v5712, %v5761
      %v5810 = vadd.f32 %v5713, %v5762
      %v5811 = vadd.f32 %v5714, %v5763
      %v5812 = vadd.f32 %v5715, %v5764
      %v5813 = vperm.slane %v1554, 3
      %v5814 = vmul.f32 %v5577, %v5813
      %v5815 = vmul.f32 %v5555, %v5813
      %v5816 = vmul.f32 %v5599, %v5813
      %v5817 = vmul.f32 %v5578, %v5813
      %v5818 = vmul.f32 %v5556, %v5813
      %v5819 = vmul.f32 %v5600, %v5813
      %v5820 = vmul.f32 %v5579, %v5813
      %v5821 = vmul.f32 %v5557, %v5813
      %v5822 = vmul.f32 %v5601, %v5813
      %v5823 = vmul.f32 %v5580, %v5813
      %v5824 = vmul.f32 %v5558, %v5813
      %v5825 = vmul.f32 %v5602, %v5813
      %v5826 = vmul.f32 %v5581, %v5813
      %v5827 = vmul.f32 %v5559, %v5813
      %v5828 = vmul.f32 %v5603, %v5813
      %v5829 = vmul.f32 %v5582, %v5813
      %v5830 = vmul.f32 %v5560, %v5813
      %v5831 = vmul.f32 %v5604, %v5813
      %v5832 = vmul.f32 %v5583, %v5813
      %v5833 = vmul.f32 %v5561, %v5813
      %v5834 = vmul.f32 %v5605, %v5813
      %v5835 = vmul.f32 %v5584, %v5813
      %v5836 = vmul.f32 %v5562, %v5813
      %v5837 = vmul.f32 %v5606, %v5813
      %v5838 = vmul.f32 %v5585, %v5813
      %v5839 = vmul.f32 %v5563, %v5813
      %v5840 = vmul.f32 %v5607, %v5813
      %v5841 = vmul.f32 %v5586, %v5813
      %v5842 = vmul.f32 %v5564, %v5813
      %v5843 = vmul.f32 %v5608, %v5813
      %v5844 = vmul.f32 %v5587, %v5813
      %v5845 = vmul.f32 %v5565, %v5813
      %v5846 = vmul.f32 %v5609, %v5813
      %v5847 = vmul.f32 %v5588, %v5813
      %v5848 = vmul.f32 %v5566, %v5813
      %v5849 = vmul.f32 %v5610, %v5813
      %v5850 = vmul.f32 %v5589, %v5813
      %v5851 = vmul.f32 %v5567, %v5813
      %v5852 = vmul.f32 %v5611, %v5813
      %v5853 = vmul.f32 %v5590, %v5813
      %v5854 = vmul.f32 %v5568, %v5813
      %v5855 = vmul.f32 %v5612, %v5813
      %v5856 = vmul.f32 %v5591, %v5813
      %v5857 = vmul.f32 %v5569, %v5813
      %v5858 = vmul.f32 %v5613, %v5813
      %v5859 = vmul.f32 %v5592, %v5813
      %v5860 = vmul.f32 %v5570, %v5813
      %v5861 = vmul.f32 %v5614, %v5813
      %v5862 = vadd.f32 %v5765, %v5814
      %v5863 = vadd.f32 %v5766, %v5815
      %v5864 = vadd.f32 %v5767, %v5816
      %v5865 = vadd.f32 %v5768, %v5817
      %v5866 = vadd.f32 %v5769, %v5818
      %v5867 = vadd.f32 %v5770, %v5819
      %v5868 = vadd.f32 %v5771, %v5820
      %v5869 = vadd.f32 %v5772, %v5821
      %v5870 = vadd.f32 %v5773, %v5822
      %v5871 = vadd.f32 %v5774, %v5823
      %v5872 = vadd.f32 %v5775, %v5824
      %v5873 = vadd.f32 %v5776, %v5825
      %v5874 = vadd.f32 %v5777, %v5826
      %v5875 = vadd.f32 %v5778, %v5827
      %v5876 = vadd.f32 %v5779, %v5828
      %v5877 = vadd.f32 %v5780, %v5829
      %v5878 = vadd.f32 %v5781, %v5830
      %v5879 = vadd.f32 %v5782, %v5831
      %v5880 = vadd.f32 %v5783, %v5832
      %v5881 = vadd.f32 %v5784, %v5833
      %v5882 = vadd.f32 %v5785, %v5834
      %v5883 = vadd.f32 %v5786, %v5835
      %v5884 = vadd.f32 %v5787, %v5836
      %v5885 = vadd.f32 %v5788, %v5837
      %v5886 = vadd.f32 %v5789, %v5838
      %v5887 = vadd.f32 %v5790, %v5839
      %v5888 = vadd.f32 %v5791, %v5840
      %v5889 = vadd.f32 %v5792, %v5841
      %v5890 = vadd.f32 %v5793, %v5842
      %v5891 = vadd.f32 %v5794, %v5843
      %v5892 = vadd.f32 %v5795, %v5844
      %v5893 = vadd.f32 %v5796, %v5845
      %v5894 = vadd.f32 %v5797, %v5846
      %v5895 = vadd.f32 %v5798, %v5847
      %v5896 = vadd.f32 %v5799, %v5848
      %v5897 = vadd.f32 %v5800, %v5849
      %v5898 = vadd.f32 %v5801, %v5850
      %v5899 = vadd.f32 %v5802, %v5851
      %v5900 = vadd.f32 %v5803, %v5852
      %v5901 = vadd.f32 %v5804, %v5853
      %v5902 = vadd.f32 %v5805, %v5854
      %v5903 = vadd.f32 %v5806, %v5855
      %v5904 = vadd.f32 %v5807, %v5856
      %v5905 = vadd.f32 %v5808, %v5857
      %v5906 = vadd.f32 %v5809, %v5858
      %v5907 = vadd.f32 %v5810, %v5859
      %v5908 = vadd.f32 %v5811, %v5860
      %v5909 = vadd.f32 %v5812, %v5861
      %v5910 = vperm.slane %v1555, 2
      %v5911 = vmul.f32 %v5578, %v5910
      %v5912 = vmul.f32 %v5556, %v5910
      %v5913 = vmul.f32 %v5600, %v5910
      %v5914 = vmul.f32 %v5579, %v5910
      %v5915 = vmul.f32 %v5557, %v5910
      %v5916 = vmul.f32 %v5601, %v5910
      %v5917 = vmul.f32 %v5580, %v5910
      %v5918 = vmul.f32 %v5558, %v5910
      %v5919 = vmul.f32 %v5602, %v5910
      %v5920 = vmul.f32 %v5581, %v5910
      %v5921 = vmul.f32 %v5559, %v5910
      %v5922 = vmul.f32 %v5603, %v5910
      %v5923 = vmul.f32 %v5582, %v5910
      %v5924 = vmul.f32 %v5560, %v5910
      %v5925 = vmul.f32 %v5604, %v5910
      %v5926 = vmul.f32 %v5583, %v5910
      %v5927 = vmul.f32 %v5561, %v5910
      %v5928 = vmul.f32 %v5605, %v5910
      %v5929 = vmul.f32 %v5584, %v5910
      %v5930 = vmul.f32 %v5562, %v5910
      %v5931 = vmul.f32 %v5606, %v5910
      %v5932 = vmul.f32 %v5585, %v5910
      %v5933 = vmul.f32 %v5563, %v5910
      %v5934 = vmul.f32 %v5607, %v5910
      %v5935 = vmul.f32 %v5586, %v5910
      %v5936 = vmul.f32 %v5564, %v5910
      %v5937 = vmul.f32 %v5608, %v5910
      %v5938 = vmul.f32 %v5587, %v5910
      %v5939 = vmul.f32 %v5565, %v5910
      %v5940 = vmul.f32 %v5609, %v5910
      %v5941 = vmul.f32 %v5588, %v5910
      %v5942 = vmul.f32 %v5566, %v5910
      %v5943 = vmul.f32 %v5610, %v5910
      %v5944 = vmul.f32 %v5589, %v5910
      %v5945 = vmul.f32 %v5567, %v5910
      %v5946 = vmul.f32 %v5611, %v5910
      %v5947 = vmul.f32 %v5590, %v5910
      %v5948 = vmul.f32 %v5568, %v5910
      %v5949 = vmul.f32 %v5612, %v5910
      %v5950 = vmul.f32 %v5591, %v5910
      %v5951 = vmul.f32 %v5569, %v5910
      %v5952 = vmul.f32 %v5613, %v5910
      %v5953 = vmul.f32 %v5592, %v5910
      %v5954 = vmul.f32 %v5570, %v5910
      %v5955 = vmul.f32 %v5614, %v5910
      %v5956 = vmul.f32 %v5593, %v5910
      %v5957 = vmul.f32 %v5571, %v5910
      %v5958 = vmul.f32 %v5615, %v5910
      %v5959 = vadd.f32 %v5862, %v5911
      %v5960 = vadd.f32 %v5863, %v5912
      %v5961 = vadd.f32 %v5864, %v5913
      %v5962 = vadd.f32 %v5865, %v5914
      %v5963 = vadd.f32 %v5866, %v5915
      %v5964 = vadd.f32 %v5867, %v5916
      %v5965 = vadd.f32 %v5868, %v5917
      %v5966 = vadd.f32 %v5869, %v5918
      %v5967 = vadd.f32 %v5870, %v5919
      %v5968 = vadd.f32 %v5871, %v5920
      %v5969 = vadd.f32 %v5872, %v5921
      %v5970 = vadd.f32 %v5873, %v5922
      %v5971 = vadd.f32 %v5874, %v5923
      %v5972 = vadd.f32 %v5875, %v5924
      %v5973 = vadd.f32 %v5876, %v5925
      %v5974 = vadd.f32 %v5877, %v5926
      %v5975 = vadd.f32 %v5878, %v5927
      %v5976 = vadd.f32 %v5879, %v5928
      %v5977 = vadd.f32 %v5880, %v5929
      %v5978 = vadd.f32 %v5881, %v5930
      %v5979 = vadd.f32 %v5882, %v5931
      %v5980 = vadd.f32 %v5883, %v5932
      %v5981 = vadd.f32 %v5884, %v5933
      %v5982 = vadd.f32 %v5885, %v5934
      %v5983 = vadd.f32 %v5886, %v5935
      %v5984 = vadd.f32 %v5887, %v5936
      %v5985 = vadd.f32 %v5888, %v5937
      %v5986 = vadd.f32 %v5889, %v5938
      %v5987 = vadd.f32 %v5890, %v5939
      %v5988 = vadd.f32 %v5891, %v5940
      %v5989 = vadd.f32 %v5892, %v5941
      %v5990 = vadd.f32 %v5893, %v5942
      %v5991 = vadd.f32 %v5894, %v5943
      %v5992 = vadd.f32 %v5895, %v5944
      %v5993 = vadd.f32 %v5896, %v5945
      %v5994 = vadd.f32 %v5897, %v5946
      %v5995 = vadd.f32 %v5898, %v5947
      %v5996 = vadd.f32 %v5899, %v5948
      %v5997 = vadd.f32 %v5900, %v5949
      %v5998 = vadd.f32 %v5901, %v5950
      %v5999 = vadd.f32 %v5902, %v5951
      %v6000 = vadd.f32 %v5903, %v5952
      %v6001 = vadd.f32 %v5904, %v5953
      %v6002 = vadd.f32 %v5905, %v5954
      %v6003 = vadd.f32 %v5906, %v5955
      %v6004 = vadd.f32 %v5907, %v5956
      %v6005 = vadd.f32 %v5908, %v5957
      %v6006 = vadd.f32 %v5909, %v5958
      %v6007 = vperm.slane %v1556, 1
      %v6008 = vmul.f32 %v5579, %v6007
      %v6009 = vmul.f32 %v5557, %v6007
      %v6010 = vmul.f32 %v5601, %v6007
      %v6011 = vmul.f32 %v5580, %v6007
      %v6012 = vmul.f32 %v5558, %v6007
      %v6013 = vmul.f32 %v5602, %v6007
      %v6014 = vmul.f32 %v5581, %v6007
      %v6015 = vmul.f32 %v5559, %v6007
      %v6016 = vmul.f32 %v5603, %v6007
      %v6017 = vmul.f32 %v5582, %v6007
      %v6018 = vmul.f32 %v5560, %v6007
      %v6019 = vmul.f32 %v5604, %v6007
      %v6020 = vmul.f32 %v5583, %v6007
      %v6021 = vmul.f32 %v5561, %v6007
      %v6022 = vmul.f32 %v5605, %v6007
      %v6023 = vmul.f32 %v5584, %v6007
      %v6024 = vmul.f32 %v5562, %v6007
      %v6025 = vmul.f32 %v5606, %v6007
      %v6026 = vmul.f32 %v5585, %v6007
      %v6027 = vmul.f32 %v5563, %v6007
      %v6028 = vmul.f32 %v5607, %v6007
      %v6029 = vmul.f32 %v5586, %v6007
      %v6030 = vmul.f32 %v5564, %v6007
      %v6031 = vmul.f32 %v5608, %v6007
      %v6032 = vmul.f32 %v5587, %v6007
      %v6033 = vmul.f32 %v5565, %v6007
      %v6034 = vmul.f32 %v5609, %v6007
      %v6035 = vmul.f32 %v5588, %v6007
      %v6036 = vmul.f32 %v5566, %v6007
      %v6037 = vmul.f32 %v5610, %v6007
      %v6038 = vmul.f32 %v5589, %v6007
      %v6039 = vmul.f32 %v5567, %v6007
      %v6040 = vmul.f32 %v5611, %v6007
      %v6041 = vmul.f32 %v5590, %v6007
      %v6042 = vmul.f32 %v5568, %v6007
      %v6043 = vmul.f32 %v5612, %v6007
      %v6044 = vmul.f32 %v5591, %v6007
      %v6045 = vmul.f32 %v5569, %v6007
      %v6046 = vmul.f32 %v5613, %v6007
      %v6047 = vmul.f32 %v5592, %v6007
      %v6048 = vmul.f32 %v5570, %v6007
      %v6049 = vmul.f32 %v5614, %v6007
      %v6050 = vmul.f32 %v5593, %v6007
      %v6051 = vmul.f32 %v5571, %v6007
      %v6052 = vmul.f32 %v5615, %v6007
      %v6053 = vmul.f32 %v5594, %v6007
      %v6054 = vmul.f32 %v5572, %v6007
      %v6055 = vmul.f32 %v5616, %v6007
      %v6056 = vadd.f32 %v5959, %v6008
      %v6057 = vadd.f32 %v5960, %v6009
      %v6058 = vadd.f32 %v5961, %v6010
      %v6059 = vadd.f32 %v5962, %v6011
      %v6060 = vadd.f32 %v5963, %v6012
      %v6061 = vadd.f32 %v5964, %v6013
      %v6062 = vadd.f32 %v5965, %v6014
      %v6063 = vadd.f32 %v5966, %v6015
      %v6064 = vadd.f32 %v5967, %v6016
      %v6065 = vadd.f32 %v5968, %v6017
      %v6066 = vadd.f32 %v5969, %v6018
      %v6067 = vadd.f32 %v5970, %v6019
      %v6068 = vadd.f32 %v5971, %v6020
      %v6069 = vadd.f32 %v5972, %v6021
      %v6070 = vadd.f32 %v5973, %v6022
      %v6071 = vadd.f32 %v5974, %v6023
      %v6072 = vadd.f32 %v5975, %v6024
      %v6073 = vadd.f32 %v5976, %v6025
      %v6074 = vadd.f32 %v5977, %v6026
      %v6075 = vadd.f32 %v5978, %v6027
      %v6076 = vadd.f32 %v5979, %v6028
      %v6077 = vadd.f32 %v5980, %v6029
      %v6078 = vadd.f32 %v5981, %v6030
      %v6079 = vadd.f32 %v5982, %v6031
      %v6080 = vadd.f32 %v5983, %v6032
      %v6081 = vadd.f32 %v5984, %v6033
      %v6082 = vadd.f32 %v5985, %v6034
      %v6083 = vadd.f32 %v5986, %v6035
      %v6084 = vadd.f32 %v5987, %v6036
      %v6085 = vadd.f32 %v5988, %v6037
      %v6086 = vadd.f32 %v5989, %v6038
      %v6087 = vadd.f32 %v5990, %v6039
      %v6088 = vadd.f32 %v5991, %v6040
      %v6089 = vadd.f32 %v5992, %v6041
      %v6090 = vadd.f32 %v5993, %v6042
      %v6091 = vadd.f32 %v5994, %v6043
      %v6092 = vadd.f32 %v5995, %v6044
      %v6093 = vadd.f32 %v5996, %v6045
      %v6094 = vadd.f32 %v5997, %v6046
      %v6095 = vadd.f32 %v5998, %v6047
      %v6096 = vadd.f32 %v5999, %v6048
      %v6097 = vadd.f32 %v6000, %v6049
      %v6098 = vadd.f32 %v6001, %v6050
      %v6099 = vadd.f32 %v6002, %v6051
      %v6100 = vadd.f32 %v6003, %v6052
      %v6101 = vadd.f32 %v6004, %v6053
      %v6102 = vadd.f32 %v6005, %v6054
      %v6103 = vadd.f32 %v6006, %v6055
      %v6104 = vperm.slane %v1557, 0
      %v6105 = vmul.f32 %v5580, %v6104
      %v6106 = vmul.f32 %v5558, %v6104
      %v6107 = vmul.f32 %v5602, %v6104
      %v6108 = vmul.f32 %v5581, %v6104
      %v6109 = vmul.f32 %v5559, %v6104
      %v6110 = vmul.f32 %v5603, %v6104
      %v6111 = vmul.f32 %v5582, %v6104
      %v6112 = vmul.f32 %v5560, %v6104
      %v6113 = vmul.f32 %v5604, %v6104
      %v6114 = vmul.f32 %v5583, %v6104
      %v6115 = vmul.f32 %v5561, %v6104
      %v6116 = vmul.f32 %v5605, %v6104
      %v6117 = vmul.f32 %v5584, %v6104
      %v6118 = vmul.f32 %v5562, %v6104
      %v6119 = vmul.f32 %v5606, %v6104
      %v6120 = vmul.f32 %v5585, %v6104
      %v6121 = vmul.f32 %v5563, %v6104
      %v6122 = vmul.f32 %v5607, %v6104
      %v6123 = vmul.f32 %v5586, %v6104
      %v6124 = vmul.f32 %v5564, %v6104
      %v6125 = vmul.f32 %v5608, %v6104
      %v6126 = vmul.f32 %v5587, %v6104
      %v6127 = vmul.f32 %v5565, %v6104
      %v6128 = vmul.f32 %v5609, %v6104
      %v6129 = vmul.f32 %v5588, %v6104
      %v6130 = vmul.f32 %v5566, %v6104
      %v6131 = vmul.f32 %v5610, %v6104
      %v6132 = vmul.f32 %v5589, %v6104
      %v6133 = vmul.f32 %v5567, %v6104
      %v6134 = vmul.f32 %v5611, %v6104
      %v6135 = vmul.f32 %v5590, %v6104
      %v6136 = vmul.f32 %v5568, %v6104
      %v6137 = vmul.f32 %v5612, %v6104
      %v6138 = vmul.f32 %v5591, %v6104
      %v6139 = vmul.f32 %v5569, %v6104
      %v6140 = vmul.f32 %v5613, %v6104
      %v6141 = vmul.f32 %v5592, %v6104
      %v6142 = vmul.f32 %v5570, %v6104
      %v6143 = vmul.f32 %v5614, %v6104
      %v6144 = vmul.f32 %v5593, %v6104
      %v6145 = vmul.f32 %v5571, %v6104
      %v6146 = vmul.f32 %v5615, %v6104
      %v6147 = vmul.f32 %v5594, %v6104
      %v6148 = vmul.f32 %v5572, %v6104
      %v6149 = vmul.f32 %v5616, %v6104
      %v6150 = vmul.f32 %v5595, %v6104
      %v6151 = vmul.f32 %v5573, %v6104
      %v6152 = vmul.f32 %v5617, %v6104
      %v6153 = vadd.f32 %v6056, %v6105
      %v6154 = vadd.f32 %v6057, %v6106
      %v6155 = vadd.f32 %v6058, %v6107
      %v6156 = vadd.f32 %v6059, %v6108
      %v6157 = vadd.f32 %v6060, %v6109
      %v6158 = vadd.f32 %v6061, %v6110
      %v6159 = vadd.f32 %v6062, %v6111
      %v6160 = vadd.f32 %v6063, %v6112
      %v6161 = vadd.f32 %v6064, %v6113
      %v6162 = vadd.f32 %v6065, %v6114
      %v6163 = vadd.f32 %v6066, %v6115
      %v6164 = vadd.f32 %v6067, %v6116
      %v6165 = vadd.f32 %v6068, %v6117
      %v6166 = vadd.f32 %v6069, %v6118
      %v6167 = vadd.f32 %v6070, %v6119
      %v6168 = vadd.f32 %v6071, %v6120
      %v6169 = vadd.f32 %v6072, %v6121
      %v6170 = vadd.f32 %v6073, %v6122
      %v6171 = vadd.f32 %v6074, %v6123
      %v6172 = vadd.f32 %v6075, %v6124
      %v6173 = vadd.f32 %v6076, %v6125
      %v6174 = vadd.f32 %v6077, %v6126
      %v6175 = vadd.f32 %v6078, %v6127
      %v6176 = vadd.f32 %v6079, %v6128
      %v6177 = vadd.f32 %v6080, %v6129
      %v6178 = vadd.f32 %v6081, %v6130
      %v6179 = vadd.f32 %v6082, %v6131
      %v6180 = vadd.f32 %v6083, %v6132
      %v6181 = vadd.f32 %v6084, %v6133
      %v6182 = vadd.f32 %v6085, %v6134
      %v6183 = vadd.f32 %v6086, %v6135
      %v6184 = vadd.f32 %v6087, %v6136
      %v6185 = vadd.f32 %v6088, %v6137
      %v6186 = vadd.f32 %v6089, %v6138
      %v6187 = vadd.f32 %v6090, %v6139
      %v6188 = vadd.f32 %v6091, %v6140
      %v6189 = vadd.f32 %v6092, %v6141
      %v6190 = vadd.f32 %v6093, %v6142
      %v6191 = vadd.f32 %v6094, %v6143
      %v6192 = vadd.f32 %v6095, %v6144
      %v6193 = vadd.f32 %v6096, %v6145
      %v6194 = vadd.f32 %v6097, %v6146
      %v6195 = vadd.f32 %v6098, %v6147
      %v6196 = vadd.f32 %v6099, %v6148
      %v6197 = vadd.f32 %v6100, %v6149
      %v6198 = vadd.f32 %v6101, %v6150
      %v6199 = vadd.f32 %v6102, %v6151
      %v6200 = vadd.f32 %v6103, %v6152
      %v6201 = vperm.slane %v1557, 7
      %v6202 = vmul.f32 %v5581, %v6201
      %v6203 = vmul.f32 %v5559, %v6201
      %v6204 = vmul.f32 %v5603, %v6201
      %v6205 = vmul.f32 %v5582, %v6201
      %v6206 = vmul.f32 %v5560, %v6201
      %v6207 = vmul.f32 %v5604, %v6201
      %v6208 = vmul.f32 %v5583, %v6201
      %v6209 = vmul.f32 %v5561, %v6201
      %v6210 = vmul.f32 %v5605, %v6201
      %v6211 = vmul.f32 %v5584, %v6201
      %v6212 = vmul.f32 %v5562, %v6201
      %v6213 = vmul.f32 %v5606, %v6201
      %v6214 = vmul.f32 %v5585, %v6201
      %v6215 = vmul.f32 %v5563, %v6201
      %v6216 = vmul.f32 %v5607, %v6201
      %v6217 = vmul.f32 %v5586, %v6201
      %v6218 = vmul.f32 %v5564, %v6201
      %v6219 = vmul.f32 %v5608, %v6201
      %v6220 = vmul.f32 %v5587, %v6201
      %v6221 = vmul.f32 %v5565, %v6201
      %v6222 = vmul.f32 %v5609, %v6201
      %v6223 = vmul.f32 %v5588, %v6201
      %v6224 = vmul.f32 %v5566, %v6201
      %v6225 = vmul.f32 %v5610, %v6201
      %v6226 = vmul.f32 %v5589, %v6201
      %v6227 = vmul.f32 %v5567, %v6201
      %v6228 = vmul.f32 %v5611, %v6201
      %v6229 = vmul.f32 %v5590, %v6201
      %v6230 = vmul.f32 %v5568, %v6201
      %v6231 = vmul.f32 %v5612, %v6201
      %v6232 = vmul.f32 %v5591, %v6201
      %v6233 = vmul.f32 %v5569, %v6201
      %v6234 = vmul.f32 %v5613, %v6201
      %v6235 = vmul.f32 %v5592, %v6201
      %v6236 = vmul.f32 %v5570, %v6201
      %v6237 = vmul.f32 %v5614, %v6201
      %v6238 = vmul.f32 %v5593, %v6201
      %v6239 = vmul.f32 %v5571, %v6201
      %v6240 = vmul.f32 %v5615, %v6201
      %v6241 = vmul.f32 %v5594, %v6201
      %v6242 = vmul.f32 %v5572, %v6201
      %v6243 = vmul.f32 %v5616, %v6201
      %v6244 = vmul.f32 %v5595, %v6201
      %v6245 = vmul.f32 %v5573, %v6201
      %v6246 = vmul.f32 %v5617, %v6201
      %v6247 = vmul.f32 %v5596, %v6201
      %v6248 = vmul.f32 %v5574, %v6201
      %v6249 = vmul.f32 %v5618, %v6201
      %v6250 = vadd.f32 %v6153, %v6202
      %v6251 = vadd.f32 %v6154, %v6203
      %v6252 = vadd.f32 %v6155, %v6204
      %v6253 = vadd.f32 %v6156, %v6205
      %v6254 = vadd.f32 %v6157, %v6206
      %v6255 = vadd.f32 %v6158, %v6207
      %v6256 = vadd.f32 %v6159, %v6208
      %v6257 = vadd.f32 %v6160, %v6209
      %v6258 = vadd.f32 %v6161, %v6210
      %v6259 = vadd.f32 %v6162, %v6211
      %v6260 = vadd.f32 %v6163, %v6212
      %v6261 = vadd.f32 %v6164, %v6213
      %v6262 = vadd.f32 %v6165, %v6214
      %v6263 = vadd.f32 %v6166, %v6215
      %v6264 = vadd.f32 %v6167, %v6216
      %v6265 = vadd.f32 %v6168, %v6217
      %v6266 = vadd.f32 %v6169, %v6218
      %v6267 = vadd.f32 %v6170, %v6219
      %v6268 = vadd.f32 %v6171, %v6220
      %v6269 = vadd.f32 %v6172, %v6221
      %v6270 = vadd.f32 %v6173, %v6222
      %v6271 = vadd.f32 %v6174, %v6223
      %v6272 = vadd.f32 %v6175, %v6224
      %v6273 = vadd.f32 %v6176, %v6225
      %v6274 = vadd.f32 %v6177, %v6226
      %v6275 = vadd.f32 %v6178, %v6227
      %v6276 = vadd.f32 %v6179, %v6228
      %v6277 = vadd.f32 %v6180, %v6229
      %v6278 = vadd.f32 %v6181, %v6230
      %v6279 = vadd.f32 %v6182, %v6231
      %v6280 = vadd.f32 %v6183, %v6232
      %v6281 = vadd.f32 %v6184, %v6233
      %v6282 = vadd.f32 %v6185, %v6234
      %v6283 = vadd.f32 %v6186, %v6235
      %v6284 = vadd.f32 %v6187, %v6236
      %v6285 = vadd.f32 %v6188, %v6237
      %v6286 = vadd.f32 %v6189, %v6238
      %v6287 = vadd.f32 %v6190, %v6239
      %v6288 = vadd.f32 %v6191, %v6240
      %v6289 = vadd.f32 %v6192, %v6241
      %v6290 = vadd.f32 %v6193, %v6242
      %v6291 = vadd.f32 %v6194, %v6243
      %v6292 = vadd.f32 %v6195, %v6244
      %v6293 = vadd.f32 %v6196, %v6245
      %v6294 = vadd.f32 %v6197, %v6246
      %v6295 = vadd.f32 %v6198, %v6247
      %v6296 = vadd.f32 %v6199, %v6248
      %v6297 = vadd.f32 %v6200, %v6249
      %v6298 = vrot.slane %v1486, 6
      %v6299 = vrot.slane %v1489, 6
      %v6300 = vrot.slane %v1492, 6
      %v6301 = vrot.slane %v1495, 6
      %v6302 = vrot.slane %v1498, 6
      %v6303 = vrot.slane %v1501, 6
      %v6304 = vrot.slane %v1504, 6
      %v6305 = vrot.slane %v1507, 6
      %v6306 = vrot.slane %v1510, 6
      %v6307 = vrot.slane %v1513, 6
      %v6308 = vrot.slane %v1516, 6
      %v6309 = vrot.slane %v1519, 6
      %v6310 = vrot.slane %v1522, 6
      %v6311 = vrot.slane %v1525, 6
      %v6312 = vrot.slane %v1528, 6
      %v6313 = vrot.slane %v1531, 6
      %v6314 = vrot.slane %v1534, 6
      %v6315 = vrot.slane %v1537, 6
      %v6316 = vrot.slane %v1540, 6
      %v6317 = vrot.slane %v1543, 6
      %v6318 = vrot.slane %v1546, 6
      %v6319 = vrot.slane %v1549, 6
      %v6320 = vrot.slane %v1487, 6
      %v6321 = vrot.slane %v1490, 6
      %v6322 = vrot.slane %v1493, 6
      %v6323 = vrot.slane %v1496, 6
      %v6324 = vrot.slane %v1499, 6
      %v6325 = vrot.slane %v1502, 6
      %v6326 = vrot.slane %v1505, 6
      %v6327 = vrot.slane %v1508, 6
      %v6328 = vrot.slane %v1511, 6
      %v6329 = vrot.slane %v1514, 6
      %v6330 = vrot.slane %v1517, 6
      %v6331 = vrot.slane %v1520, 6
      %v6332 = vrot.slane %v1523, 6
      %v6333 = vrot.slane %v1526, 6
      %v6334 = vrot.slane %v1529, 6
      %v6335 = vrot.slane %v1532, 6
      %v6336 = vrot.slane %v1535, 6
      %v6337 = vrot.slane %v1538, 6
      %v6338 = vrot.slane %v1541, 6
      %v6339 = vrot.slane %v1544, 6
      %v6340 = vrot.slane %v1547, 6
      %v6341 = vrot.slane %v1550, 6
      %v6342 = vrot.slane %v1488, 6
      %v6343 = vrot.slane %v1491, 6
      %v6344 = vrot.slane %v1494, 6
      %v6345 = vrot.slane %v1497, 6
      %v6346 = vrot.slane %v1500, 6
      %v6347 = vrot.slane %v1503, 6
      %v6348 = vrot.slane %v1506, 6
      %v6349 = vrot.slane %v1509, 6
      %v6350 = vrot.slane %v1512, 6
      %v6351 = vrot.slane %v1515, 6
      %v6352 = vrot.slane %v1518, 6
      %v6353 = vrot.slane %v1521, 6
      %v6354 = vrot.slane %v1524, 6
      %v6355 = vrot.slane %v1527, 6
      %v6356 = vrot.slane %v1530, 6
      %v6357 = vrot.slane %v1533, 6
      %v6358 = vrot.slane %v1536, 6
      %v6359 = vrot.slane %v1539, 6
      %v6360 = vrot.slane %v1542, 6
      %v6361 = vrot.slane %v1545, 6
      %v6362 = vrot.slane %v1548, 6
      %v6363 = vrot.slane %v1551, 6
      %vm6364 = vcmp.lt.s32.totalorder %v876, 2
      %v6365 = vsel %vm6364, %v6320, %v6342
      %v6366 = vsel %vm6364, %v6321, %v6343
      %v6367 = vsel %vm6364, %v6322, %v6344
      %v6368 = vsel %vm6364, %v6323, %v6345
      %v6369 = vsel %vm6364, %v6324, %v6346
      %v6370 = vsel %vm6364, %v6325, %v6347
      %v6371 = vsel %vm6364, %v6326, %v6348
      %v6372 = vsel %vm6364, %v6327, %v6349
      %v6373 = vsel %vm6364, %v6328, %v6350
      %v6374 = vsel %vm6364, %v6329, %v6351
      %v6375 = vsel %vm6364, %v6330, %v6352
      %v6376 = vsel %vm6364, %v6331, %v6353
      %v6377 = vsel %vm6364, %v6332, %v6354
      %v6378 = vsel %vm6364, %v6333, %v6355
      %v6379 = vsel %vm6364, %v6334, %v6356
      %v6380 = vsel %vm6364, %v6335, %v6357
      %v6381 = vsel %vm6364, %v6336, %v6358
      %v6382 = vsel %vm6364, %v6337, %v6359
      %v6383 = vsel %vm6364, %v6338, %v6360
      %v6384 = vsel %vm6364, %v6339, %v6361
      %v6385 = vsel %vm6364, %v6340, %v6362
      %v6386 = vsel %vm6364, %v6341, %v6363
      %v6387 = vsel %vm6364, %v6298, %v6320
      %v6388 = vsel %vm6364, %v6299, %v6321
      %v6389 = vsel %vm6364, %v6300, %v6322
      %v6390 = vsel %vm6364, %v6301, %v6323
      %v6391 = vsel %vm6364, %v6302, %v6324
      %v6392 = vsel %vm6364, %v6303, %v6325
      %v6393 = vsel %vm6364, %v6304, %v6326
      %v6394 = vsel %vm6364, %v6305, %v6327
      %v6395 = vsel %vm6364, %v6306, %v6328
      %v6396 = vsel %vm6364, %v6307, %v6329
      %v6397 = vsel %vm6364, %v6308, %v6330
      %v6398 = vsel %vm6364, %v6309, %v6331
      %v6399 = vsel %vm6364, %v6310, %v6332
      %v6400 = vsel %vm6364, %v6311, %v6333
      %v6401 = vsel %vm6364, %v6312, %v6334
      %v6402 = vsel %vm6364, %v6313, %v6335
      %v6403 = vsel %vm6364, %v6314, %v6336
      %v6404 = vsel %vm6364, %v6315, %v6337
      %v6405 = vsel %vm6364, %v6316, %v6338
      %v6406 = vsel %vm6364, %v6317, %v6339
      %v6407 = vsel %vm6364, %v6318, %v6340
      %v6408 = vsel %vm6364, %v6319, %v6341
      %v6409 = vsel %vm6364, %v6342, %v6298
      %v6410 = vsel %vm6364, %v6343, %v6299
      %v6411 = vsel %vm6364, %v6344, %v6300
      %v6412 = vsel %vm6364, %v6345, %v6301
      %v6413 = vsel %vm6364, %v6346, %v6302
      %v6414 = vsel %vm6364, %v6347, %v6303
      %v6415 = vsel %vm6364, %v6348, %v6304
      %v6416 = vsel %vm6364, %v6349, %v6305
      %v6417 = vsel %vm6364, %v6350, %v6306
      %v6418 = vsel %vm6364, %v6351, %v6307
      %v6419 = vsel %vm6364, %v6352, %v6308
      %v6420 = vsel %vm6364, %v6353, %v6309
      %v6421 = vsel %vm6364, %v6354, %v6310
      %v6422 = vsel %vm6364, %v6355, %v6311
      %v6423 = vsel %vm6364, %v6356, %v6312
      %v6424 = vsel %vm6364, %v6357, %v6313
      %v6425 = vsel %vm6364, %v6358, %v6314
      %v6426 = vsel %vm6364, %v6359, %v6315
      %v6427 = vsel %vm6364, %v6360, %v6316
      %v6428 = vsel %vm6364, %v6361, %v6317
      %v6429 = vsel %vm6364, %v6362, %v6318
      %v6430 = vsel %vm6364, %v6363, %v6319
      %v6431 = vperm.slane %v1552, 6
      %v6432 = vmul.f32 %v6387, %v6431
      %v6433 = vmul.f32 %v6365, %v6431
      %v6434 = vmul.f32 %v6409, %v6431
      %v6435 = vmul.f32 %v6388, %v6431
      %v6436 = vmul.f32 %v6366, %v6431
      %v6437 = vmul.f32 %v6410, %v6431
      %v6438 = vmul.f32 %v6389, %v6431
      %v6439 = vmul.f32 %v6367, %v6431
      %v6440 = vmul.f32 %v6411, %v6431
      %v6441 = vmul.f32 %v6390, %v6431
      %v6442 = vmul.f32 %v6368, %v6431
      %v6443 = vmul.f32 %v6412, %v6431
      %v6444 = vmul.f32 %v6391, %v6431
      %v6445 = vmul.f32 %v6369, %v6431
      %v6446 = vmul.f32 %v6413, %v6431
      %v6447 = vmul.f32 %v6392, %v6431
      %v6448 = vmul.f32 %v6370, %v6431
      %v6449 = vmul.f32 %v6414, %v6431
      %v6450 = vmul.f32 %v6393, %v6431
      %v6451 = vmul.f32 %v6371, %v6431
      %v6452 = vmul.f32 %v6415, %v6431
      %v6453 = vmul.f32 %v6394, %v6431
      %v6454 = vmul.f32 %v6372, %v6431
      %v6455 = vmul.f32 %v6416, %v6431
      %v6456 = vmul.f32 %v6395, %v6431
      %v6457 = vmul.f32 %v6373, %v6431
      %v6458 = vmul.f32 %v6417, %v6431
      %v6459 = vmul.f32 %v6396, %v6431
      %v6460 = vmul.f32 %v6374, %v6431
      %v6461 = vmul.f32 %v6418, %v6431
      %v6462 = vmul.f32 %v6397, %v6431
      %v6463 = vmul.f32 %v6375, %v6431
      %v6464 = vmul.f32 %v6419, %v6431
      %v6465 = vmul.f32 %v6398, %v6431
      %v6466 = vmul.f32 %v6376, %v6431
      %v6467 = vmul.f32 %v6420, %v6431
      %v6468 = vmul.f32 %v6399, %v6431
      %v6469 = vmul.f32 %v6377, %v6431
      %v6470 = vmul.f32 %v6421, %v6431
      %v6471 = vmul.f32 %v6400, %v6431
      %v6472 = vmul.f32 %v6378, %v6431
      %v6473 = vmul.f32 %v6422, %v6431
      %v6474 = vmul.f32 %v6401, %v6431
      %v6475 = vmul.f32 %v6379, %v6431
      %v6476 = vmul.f32 %v6423, %v6431
      %v6477 = vmul.f32 %v6402, %v6431
      %v6478 = vmul.f32 %v6380, %v6431
      %v6479 = vmul.f32 %v6424, %v6431
      %v6480 = vadd.f32 %v6250, %v6432
      %v6481 = vadd.f32 %v6251, %v6433
      %v6482 = vadd.f32 %v6252, %v6434
      %v6483 = vadd.f32 %v6253, %v6435
      %v6484 = vadd.f32 %v6254, %v6436
      %v6485 = vadd.f32 %v6255, %v6437
      %v6486 = vadd.f32 %v6256, %v6438
      %v6487 = vadd.f32 %v6257, %v6439
      %v6488 = vadd.f32 %v6258, %v6440
      %v6489 = vadd.f32 %v6259, %v6441
      %v6490 = vadd.f32 %v6260, %v6442
      %v6491 = vadd.f32 %v6261, %v6443
      %v6492 = vadd.f32 %v6262, %v6444
      %v6493 = vadd.f32 %v6263, %v6445
      %v6494 = vadd.f32 %v6264, %v6446
      %v6495 = vadd.f32 %v6265, %v6447
      %v6496 = vadd.f32 %v6266, %v6448
      %v6497 = vadd.f32 %v6267, %v6449
      %v6498 = vadd.f32 %v6268, %v6450
      %v6499 = vadd.f32 %v6269, %v6451
      %v6500 = vadd.f32 %v6270, %v6452
      %v6501 = vadd.f32 %v6271, %v6453
      %v6502 = vadd.f32 %v6272, %v6454
      %v6503 = vadd.f32 %v6273, %v6455
      %v6504 = vadd.f32 %v6274, %v6456
      %v6505 = vadd.f32 %v6275, %v6457
      %v6506 = vadd.f32 %v6276, %v6458
      %v6507 = vadd.f32 %v6277, %v6459
      %v6508 = vadd.f32 %v6278, %v6460
      %v6509 = vadd.f32 %v6279, %v6461
      %v6510 = vadd.f32 %v6280, %v6462
      %v6511 = vadd.f32 %v6281, %v6463
      %v6512 = vadd.f32 %v6282, %v6464
      %v6513 = vadd.f32 %v6283, %v6465
      %v6514 = vadd.f32 %v6284, %v6466
      %v6515 = vadd.f32 %v6285, %v6467
      %v6516 = vadd.f32 %v6286, %v6468
      %v6517 = vadd.f32 %v6287, %v6469
      %v6518 = vadd.f32 %v6288, %v6470
      %v6519 = vadd.f32 %v6289, %v6471
      %v6520 = vadd.f32 %v6290, %v6472
      %v6521 = vadd.f32 %v6291, %v6473
      %v6522 = vadd.f32 %v6292, %v6474
      %v6523 = vadd.f32 %v6293, %v6475
      %v6524 = vadd.f32 %v6294, %v6476
      %v6525 = vadd.f32 %v6295, %v6477
      %v6526 = vadd.f32 %v6296, %v6478
      %v6527 = vadd.f32 %v6297, %v6479
      %v6528 = vperm.slane %v1553, 5
      %v6529 = vmul.f32 %v6388, %v6528
      %v6530 = vmul.f32 %v6366, %v6528
      %v6531 = vmul.f32 %v6410, %v6528
      %v6532 = vmul.f32 %v6389, %v6528
      %v6533 = vmul.f32 %v6367, %v6528
      %v6534 = vmul.f32 %v6411, %v6528
      %v6535 = vmul.f32 %v6390, %v6528
      %v6536 = vmul.f32 %v6368, %v6528
      %v6537 = vmul.f32 %v6412, %v6528
      %v6538 = vmul.f32 %v6391, %v6528
      %v6539 = vmul.f32 %v6369, %v6528
      %v6540 = vmul.f32 %v6413, %v6528
      %v6541 = vmul.f32 %v6392, %v6528
      %v6542 = vmul.f32 %v6370, %v6528
      %v6543 = vmul.f32 %v6414, %v6528
      %v6544 = vmul.f32 %v6393, %v6528
      %v6545 = vmul.f32 %v6371, %v6528
      %v6546 = vmul.f32 %v6415, %v6528
      %v6547 = vmul.f32 %v6394, %v6528
      %v6548 = vmul.f32 %v6372, %v6528
      %v6549 = vmul.f32 %v6416, %v6528
      %v6550 = vmul.f32 %v6395, %v6528
      %v6551 = vmul.f32 %v6373, %v6528
      %v6552 = vmul.f32 %v6417, %v6528
      %v6553 = vmul.f32 %v6396, %v6528
      %v6554 = vmul.f32 %v6374, %v6528
      %v6555 = vmul.f32 %v6418, %v6528
      %v6556 = vmul.f32 %v6397, %v6528
      %v6557 = vmul.f32 %v6375, %v6528
      %v6558 = vmul.f32 %v6419, %v6528
      %v6559 = vmul.f32 %v6398, %v6528
      %v6560 = vmul.f32 %v6376, %v6528
      %v6561 = vmul.f32 %v6420, %v6528
      %v6562 = vmul.f32 %v6399, %v6528
      %v6563 = vmul.f32 %v6377, %v6528
      %v6564 = vmul.f32 %v6421, %v6528
      %v6565 = vmul.f32 %v6400, %v6528
      %v6566 = vmul.f32 %v6378, %v6528
      %v6567 = vmul.f32 %v6422, %v6528
      %v6568 = vmul.f32 %v6401, %v6528
      %v6569 = vmul.f32 %v6379, %v6528
      %v6570 = vmul.f32 %v6423, %v6528
      %v6571 = vmul.f32 %v6402, %v6528
      %v6572 = vmul.f32 %v6380, %v6528
      %v6573 = vmul.f32 %v6424, %v6528
      %v6574 = vmul.f32 %v6403, %v6528
      %v6575 = vmul.f32 %v6381, %v6528
      %v6576 = vmul.f32 %v6425, %v6528
      %v6577 = vadd.f32 %v6480, %v6529
      %v6578 = vadd.f32 %v6481, %v6530
      %v6579 = vadd.f32 %v6482, %v6531
      %v6580 = vadd.f32 %v6483, %v6532
      %v6581 = vadd.f32 %v6484, %v6533
      %v6582 = vadd.f32 %v6485, %v6534
      %v6583 = vadd.f32 %v6486, %v6535
      %v6584 = vadd.f32 %v6487, %v6536
      %v6585 = vadd.f32 %v6488, %v6537
      %v6586 = vadd.f32 %v6489, %v6538
      %v6587 = vadd.f32 %v6490, %v6539
      %v6588 = vadd.f32 %v6491, %v6540
      %v6589 = vadd.f32 %v6492, %v6541
      %v6590 = vadd.f32 %v6493, %v6542
      %v6591 = vadd.f32 %v6494, %v6543
      %v6592 = vadd.f32 %v6495, %v6544
      %v6593 = vadd.f32 %v6496, %v6545
      %v6594 = vadd.f32 %v6497, %v6546
      %v6595 = vadd.f32 %v6498, %v6547
      %v6596 = vadd.f32 %v6499, %v6548
      %v6597 = vadd.f32 %v6500, %v6549
      %v6598 = vadd.f32 %v6501, %v6550
      %v6599 = vadd.f32 %v6502, %v6551
      %v6600 = vadd.f32 %v6503, %v6552
      %v6601 = vadd.f32 %v6504, %v6553
      %v6602 = vadd.f32 %v6505, %v6554
      %v6603 = vadd.f32 %v6506, %v6555
      %v6604 = vadd.f32 %v6507, %v6556
      %v6605 = vadd.f32 %v6508, %v6557
      %v6606 = vadd.f32 %v6509, %v6558
      %v6607 = vadd.f32 %v6510, %v6559
      %v6608 = vadd.f32 %v6511, %v6560
      %v6609 = vadd.f32 %v6512, %v6561
      %v6610 = vadd.f32 %v6513, %v6562
      %v6611 = vadd.f32 %v6514, %v6563
      %v6612 = vadd.f32 %v6515, %v6564
      %v6613 = vadd.f32 %v6516, %v6565
      %v6614 = vadd.f32 %v6517, %v6566
      %v6615 = vadd.f32 %v6518, %v6567
      %v6616 = vadd.f32 %v6519, %v6568
      %v6617 = vadd.f32 %v6520, %v6569
      %v6618 = vadd.f32 %v6521, %v6570
      %v6619 = vadd.f32 %v6522, %v6571
      %v6620 = vadd.f32 %v6523, %v6572
      %v6621 = vadd.f32 %v6524, %v6573
      %v6622 = vadd.f32 %v6525, %v6574
      %v6623 = vadd.f32 %v6526, %v6575
      %v6624 = vadd.f32 %v6527, %v6576
      %v6625 = vperm.slane %v1554, 4
      %v6626 = vmul.f32 %v6389, %v6625
      %v6627 = vmul.f32 %v6367, %v6625
      %v6628 = vmul.f32 %v6411, %v6625
      %v6629 = vmul.f32 %v6390, %v6625
      %v6630 = vmul.f32 %v6368, %v6625
      %v6631 = vmul.f32 %v6412, %v6625
      %v6632 = vmul.f32 %v6391, %v6625
      %v6633 = vmul.f32 %v6369, %v6625
      %v6634 = vmul.f32 %v6413, %v6625
      %v6635 = vmul.f32 %v6392, %v6625
      %v6636 = vmul.f32 %v6370, %v6625
      %v6637 = vmul.f32 %v6414, %v6625
      %v6638 = vmul.f32 %v6393, %v6625
      %v6639 = vmul.f32 %v6371, %v6625
      %v6640 = vmul.f32 %v6415, %v6625
      %v6641 = vmul.f32 %v6394, %v6625
      %v6642 = vmul.f32 %v6372, %v6625
      %v6643 = vmul.f32 %v6416, %v6625
      %v6644 = vmul.f32 %v6395, %v6625
      %v6645 = vmul.f32 %v6373, %v6625
      %v6646 = vmul.f32 %v6417, %v6625
      %v6647 = vmul.f32 %v6396, %v6625
      %v6648 = vmul.f32 %v6374, %v6625
      %v6649 = vmul.f32 %v6418, %v6625
      %v6650 = vmul.f32 %v6397, %v6625
      %v6651 = vmul.f32 %v6375, %v6625
      %v6652 = vmul.f32 %v6419, %v6625
      %v6653 = vmul.f32 %v6398, %v6625
      %v6654 = vmul.f32 %v6376, %v6625
      %v6655 = vmul.f32 %v6420, %v6625
      %v6656 = vmul.f32 %v6399, %v6625
      %v6657 = vmul.f32 %v6377, %v6625
      %v6658 = vmul.f32 %v6421, %v6625
      %v6659 = vmul.f32 %v6400, %v6625
      %v6660 = vmul.f32 %v6378, %v6625
      %v6661 = vmul.f32 %v6422, %v6625
      %v6662 = vmul.f32 %v6401, %v6625
      %v6663 = vmul.f32 %v6379, %v6625
      %v6664 = vmul.f32 %v6423, %v6625
      %v6665 = vmul.f32 %v6402, %v6625
      %v6666 = vmul.f32 %v6380, %v6625
      %v6667 = vmul.f32 %v6424, %v6625
      %v6668 = vmul.f32 %v6403, %v6625
      %v6669 = vmul.f32 %v6381, %v6625
      %v6670 = vmul.f32 %v6425, %v6625
      %v6671 = vmul.f32 %v6404, %v6625
      %v6672 = vmul.f32 %v6382, %v6625
      %v6673 = vmul.f32 %v6426, %v6625
      %v6674 = vadd.f32 %v6577, %v6626
      %v6675 = vadd.f32 %v6578, %v6627
      %v6676 = vadd.f32 %v6579, %v6628
      %v6677 = vadd.f32 %v6580, %v6629
      %v6678 = vadd.f32 %v6581, %v6630
      %v6679 = vadd.f32 %v6582, %v6631
      %v6680 = vadd.f32 %v6583, %v6632
      %v6681 = vadd.f32 %v6584, %v6633
      %v6682 = vadd.f32 %v6585, %v6634
      %v6683 = vadd.f32 %v6586, %v6635
      %v6684 = vadd.f32 %v6587, %v6636
      %v6685 = vadd.f32 %v6588, %v6637
      %v6686 = vadd.f32 %v6589, %v6638
      %v6687 = vadd.f32 %v6590, %v6639
      %v6688 = vadd.f32 %v6591, %v6640
      %v6689 = vadd.f32 %v6592, %v6641
      %v6690 = vadd.f32 %v6593, %v6642
      %v6691 = vadd.f32 %v6594, %v6643
      %v6692 = vadd.f32 %v6595, %v6644
      %v6693 = vadd.f32 %v6596, %v6645
      %v6694 = vadd.f32 %v6597, %v6646
      %v6695 = vadd.f32 %v6598, %v6647
      %v6696 = vadd.f32 %v6599, %v6648
      %v6697 = vadd.f32 %v6600, %v6649
      %v6698 = vadd.f32 %v6601, %v6650
      %v6699 = vadd.f32 %v6602, %v6651
      %v6700 = vadd.f32 %v6603, %v6652
      %v6701 = vadd.f32 %v6604, %v6653
      %v6702 = vadd.f32 %v6605, %v6654
      %v6703 = vadd.f32 %v6606, %v6655
      %v6704 = vadd.f32 %v6607, %v6656
      %v6705 = vadd.f32 %v6608, %v6657
      %v6706 = vadd.f32 %v6609, %v6658
      %v6707 = vadd.f32 %v6610, %v6659
      %v6708 = vadd.f32 %v6611, %v6660
      %v6709 = vadd.f32 %v6612, %v6661
      %v6710 = vadd.f32 %v6613, %v6662
      %v6711 = vadd.f32 %v6614, %v6663
      %v6712 = vadd.f32 %v6615, %v6664
      %v6713 = vadd.f32 %v6616, %v6665
      %v6714 = vadd.f32 %v6617, %v6666
      %v6715 = vadd.f32 %v6618, %v6667
      %v6716 = vadd.f32 %v6619, %v6668
      %v6717 = vadd.f32 %v6620, %v6669
      %v6718 = vadd.f32 %v6621, %v6670
      %v6719 = vadd.f32 %v6622, %v6671
      %v6720 = vadd.f32 %v6623, %v6672
      %v6721 = vadd.f32 %v6624, %v6673
      %v6722 = vperm.slane %v1555, 3
      %v6723 = vmul.f32 %v6390, %v6722
      %v6724 = vmul.f32 %v6368, %v6722
      %v6725 = vmul.f32 %v6412, %v6722
      %v6726 = vmul.f32 %v6391, %v6722
      %v6727 = vmul.f32 %v6369, %v6722
      %v6728 = vmul.f32 %v6413, %v6722
      %v6729 = vmul.f32 %v6392, %v6722
      %v6730 = vmul.f32 %v6370, %v6722
      %v6731 = vmul.f32 %v6414, %v6722
      %v6732 = vmul.f32 %v6393, %v6722
      %v6733 = vmul.f32 %v6371, %v6722
      %v6734 = vmul.f32 %v6415, %v6722
      %v6735 = vmul.f32 %v6394, %v6722
      %v6736 = vmul.f32 %v6372, %v6722
      %v6737 = vmul.f32 %v6416, %v6722
      %v6738 = vmul.f32 %v6395, %v6722
      %v6739 = vmul.f32 %v6373, %v6722
      %v6740 = vmul.f32 %v6417, %v6722
      %v6741 = vmul.f32 %v6396, %v6722
      %v6742 = vmul.f32 %v6374, %v6722
      %v6743 = vmul.f32 %v6418, %v6722
      %v6744 = vmul.f32 %v6397, %v6722
      %v6745 = vmul.f32 %v6375, %v6722
      %v6746 = vmul.f32 %v6419, %v6722
      %v6747 = vmul.f32 %v6398, %v6722
      %v6748 = vmul.f32 %v6376, %v6722
      %v6749 = vmul.f32 %v6420, %v6722
      %v6750 = vmul.f32 %v6399, %v6722
      %v6751 = vmul.f32 %v6377, %v6722
      %v6752 = vmul.f32 %v6421, %v6722
      %v6753 = vmul.f32 %v6400, %v6722
      %v6754 = vmul.f32 %v6378, %v6722
      %v6755 = vmul.f32 %v6422, %v6722
      %v6756 = vmul.f32 %v6401, %v6722
      %v6757 = vmul.f32 %v6379, %v6722
      %v6758 = vmul.f32 %v6423, %v6722
      %v6759 = vmul.f32 %v6402, %v6722
      %v6760 = vmul.f32 %v6380, %v6722
      %v6761 = vmul.f32 %v6424, %v6722
      %v6762 = vmul.f32 %v6403, %v6722
      %v6763 = vmul.f32 %v6381, %v6722
      %v6764 = vmul.f32 %v6425, %v6722
      %v6765 = vmul.f32 %v6404, %v6722
      %v6766 = vmul.f32 %v6382, %v6722
      %v6767 = vmul.f32 %v6426, %v6722
      %v6768 = vmul.f32 %v6405, %v6722
      %v6769 = vmul.f32 %v6383, %v6722
      %v6770 = vmul.f32 %v6427, %v6722
      %v6771 = vadd.f32 %v6674, %v6723
      %v6772 = vadd.f32 %v6675, %v6724
      %v6773 = vadd.f32 %v6676, %v6725
      %v6774 = vadd.f32 %v6677, %v6726
      %v6775 = vadd.f32 %v6678, %v6727
      %v6776 = vadd.f32 %v6679, %v6728
      %v6777 = vadd.f32 %v6680, %v6729
      %v6778 = vadd.f32 %v6681, %v6730
      %v6779 = vadd.f32 %v6682, %v6731
      %v6780 = vadd.f32 %v6683, %v6732
      %v6781 = vadd.f32 %v6684, %v6733
      %v6782 = vadd.f32 %v6685, %v6734
      %v6783 = vadd.f32 %v6686, %v6735
      %v6784 = vadd.f32 %v6687, %v6736
      %v6785 = vadd.f32 %v6688, %v6737
      %v6786 = vadd.f32 %v6689, %v6738
      %v6787 = vadd.f32 %v6690, %v6739
      %v6788 = vadd.f32 %v6691, %v6740
      %v6789 = vadd.f32 %v6692, %v6741
      %v6790 = vadd.f32 %v6693, %v6742
      %v6791 = vadd.f32 %v6694, %v6743
      %v6792 = vadd.f32 %v6695, %v6744
      %v6793 = vadd.f32 %v6696, %v6745
      %v6794 = vadd.f32 %v6697, %v6746
      %v6795 = vadd.f32 %v6698, %v6747
      %v6796 = vadd.f32 %v6699, %v6748
      %v6797 = vadd.f32 %v6700, %v6749
      %v6798 = vadd.f32 %v6701, %v6750
      %v6799 = vadd.f32 %v6702, %v6751
      %v6800 = vadd.f32 %v6703, %v6752
      %v6801 = vadd.f32 %v6704, %v6753
      %v6802 = vadd.f32 %v6705, %v6754
      %v6803 = vadd.f32 %v6706, %v6755
      %v6804 = vadd.f32 %v6707, %v6756
      %v6805 = vadd.f32 %v6708, %v6757
      %v6806 = vadd.f32 %v6709, %v6758
      %v6807 = vadd.f32 %v6710, %v6759
      %v6808 = vadd.f32 %v6711, %v6760
      %v6809 = vadd.f32 %v6712, %v6761
      %v6810 = vadd.f32 %v6713, %v6762
      %v6811 = vadd.f32 %v6714, %v6763
      %v6812 = vadd.f32 %v6715, %v6764
      %v6813 = vadd.f32 %v6716, %v6765
      %v6814 = vadd.f32 %v6717, %v6766
      %v6815 = vadd.f32 %v6718, %v6767
      %v6816 = vadd.f32 %v6719, %v6768
      %v6817 = vadd.f32 %v6720, %v6769
      %v6818 = vadd.f32 %v6721, %v6770
      %v6819 = vperm.slane %v1556, 2
      %v6820 = vmul.f32 %v6391, %v6819
      %v6821 = vmul.f32 %v6369, %v6819
      %v6822 = vmul.f32 %v6413, %v6819
      %v6823 = vmul.f32 %v6392, %v6819
      %v6824 = vmul.f32 %v6370, %v6819
      %v6825 = vmul.f32 %v6414, %v6819
      %v6826 = vmul.f32 %v6393, %v6819
      %v6827 = vmul.f32 %v6371, %v6819
      %v6828 = vmul.f32 %v6415, %v6819
      %v6829 = vmul.f32 %v6394, %v6819
      %v6830 = vmul.f32 %v6372, %v6819
      %v6831 = vmul.f32 %v6416, %v6819
      %v6832 = vmul.f32 %v6395, %v6819
      %v6833 = vmul.f32 %v6373, %v6819
      %v6834 = vmul.f32 %v6417, %v6819
      %v6835 = vmul.f32 %v6396, %v6819
      %v6836 = vmul.f32 %v6374, %v6819
      %v6837 = vmul.f32 %v6418, %v6819
      %v6838 = vmul.f32 %v6397, %v6819
      %v6839 = vmul.f32 %v6375, %v6819
      %v6840 = vmul.f32 %v6419, %v6819
      %v6841 = vmul.f32 %v6398, %v6819
      %v6842 = vmul.f32 %v6376, %v6819
      %v6843 = vmul.f32 %v6420, %v6819
      %v6844 = vmul.f32 %v6399, %v6819
      %v6845 = vmul.f32 %v6377, %v6819
      %v6846 = vmul.f32 %v6421, %v6819
      %v6847 = vmul.f32 %v6400, %v6819
      %v6848 = vmul.f32 %v6378, %v6819
      %v6849 = vmul.f32 %v6422, %v6819
      %v6850 = vmul.f32 %v6401, %v6819
      %v6851 = vmul.f32 %v6379, %v6819
      %v6852 = vmul.f32 %v6423, %v6819
      %v6853 = vmul.f32 %v6402, %v6819
      %v6854 = vmul.f32 %v6380, %v6819
      %v6855 = vmul.f32 %v6424, %v6819
      %v6856 = vmul.f32 %v6403, %v6819
      %v6857 = vmul.f32 %v6381, %v6819
      %v6858 = vmul.f32 %v6425, %v6819
      %v6859 = vmul.f32 %v6404, %v6819
      %v6860 = vmul.f32 %v6382, %v6819
      %v6861 = vmul.f32 %v6426, %v6819
      %v6862 = vmul.f32 %v6405, %v6819
      %v6863 = vmul.f32 %v6383, %v6819
      %v6864 = vmul.f32 %v6427, %v6819
      %v6865 = vmul.f32 %v6406, %v6819
      %v6866 = vmul.f32 %v6384, %v6819
      %v6867 = vmul.f32 %v6428, %v6819
      %v6868 = vadd.f32 %v6771, %v6820
      %v6869 = vadd.f32 %v6772, %v6821
      %v6870 = vadd.f32 %v6773, %v6822
      %v6871 = vadd.f32 %v6774, %v6823
      %v6872 = vadd.f32 %v6775, %v6824
      %v6873 = vadd.f32 %v6776, %v6825
      %v6874 = vadd.f32 %v6777, %v6826
      %v6875 = vadd.f32 %v6778, %v6827
      %v6876 = vadd.f32 %v6779, %v6828
      %v6877 = vadd.f32 %v6780, %v6829
      %v6878 = vadd.f32 %v6781, %v6830
      %v6879 = vadd.f32 %v6782, %v6831
      %v6880 = vadd.f32 %v6783, %v6832
      %v6881 = vadd.f32 %v6784, %v6833
      %v6882 = vadd.f32 %v6785, %v6834
      %v6883 = vadd.f32 %v6786, %v6835
      %v6884 = vadd.f32 %v6787, %v6836
      %v6885 = vadd.f32 %v6788, %v6837
      %v6886 = vadd.f32 %v6789, %v6838
      %v6887 = vadd.f32 %v6790, %v6839
      %v6888 = vadd.f32 %v6791, %v6840
      %v6889 = vadd.f32 %v6792, %v6841
      %v6890 = vadd.f32 %v6793, %v6842
      %v6891 = vadd.f32 %v6794, %v6843
      %v6892 = vadd.f32 %v6795, %v6844
      %v6893 = vadd.f32 %v6796, %v6845
      %v6894 = vadd.f32 %v6797, %v6846
      %v6895 = vadd.f32 %v6798, %v6847
      %v6896 = vadd.f32 %v6799, %v6848
      %v6897 = vadd.f32 %v6800, %v6849
      %v6898 = vadd.f32 %v6801, %v6850
      %v6899 = vadd.f32 %v6802, %v6851
      %v6900 = vadd.f32 %v6803, %v6852
      %v6901 = vadd.f32 %v6804, %v6853
      %v6902 = vadd.f32 %v6805, %v6854
      %v6903 = vadd.f32 %v6806, %v6855
      %v6904 = vadd.f32 %v6807, %v6856
      %v6905 = vadd.f32 %v6808, %v6857
      %v6906 = vadd.f32 %v6809, %v6858
      %v6907 = vadd.f32 %v6810, %v6859
      %v6908 = vadd.f32 %v6811, %v6860
      %v6909 = vadd.f32 %v6812, %v6861
      %v6910 = vadd.f32 %v6813, %v6862
      %v6911 = vadd.f32 %v6814, %v6863
      %v6912 = vadd.f32 %v6815, %v6864
      %v6913 = vadd.f32 %v6816, %v6865
      %v6914 = vadd.f32 %v6817, %v6866
      %v6915 = vadd.f32 %v6818, %v6867
      %v6916 = vperm.slane %v1557, 1
      %v6917 = vmul.f32 %v6392, %v6916
      %v6918 = vmul.f32 %v6370, %v6916
      %v6919 = vmul.f32 %v6414, %v6916
      %v6920 = vmul.f32 %v6393, %v6916
      %v6921 = vmul.f32 %v6371, %v6916
      %v6922 = vmul.f32 %v6415, %v6916
      %v6923 = vmul.f32 %v6394, %v6916
      %v6924 = vmul.f32 %v6372, %v6916
      %v6925 = vmul.f32 %v6416, %v6916
      %v6926 = vmul.f32 %v6395, %v6916
      %v6927 = vmul.f32 %v6373, %v6916
      %v6928 = vmul.f32 %v6417, %v6916
      %v6929 = vmul.f32 %v6396, %v6916
      %v6930 = vmul.f32 %v6374, %v6916
      %v6931 = vmul.f32 %v6418, %v6916
      %v6932 = vmul.f32 %v6397, %v6916
      %v6933 = vmul.f32 %v6375, %v6916
      %v6934 = vmul.f32 %v6419, %v6916
      %v6935 = vmul.f32 %v6398, %v6916
      %v6936 = vmul.f32 %v6376, %v6916
      %v6937 = vmul.f32 %v6420, %v6916
      %v6938 = vmul.f32 %v6399, %v6916
      %v6939 = vmul.f32 %v6377, %v6916
      %v6940 = vmul.f32 %v6421, %v6916
      %v6941 = vmul.f32 %v6400, %v6916
      %v6942 = vmul.f32 %v6378, %v6916
      %v6943 = vmul.f32 %v6422, %v6916
      %v6944 = vmul.f32 %v6401, %v6916
      %v6945 = vmul.f32 %v6379, %v6916
      %v6946 = vmul.f32 %v6423, %v6916
      %v6947 = vmul.f32 %v6402, %v6916
      %v6948 = vmul.f32 %v6380, %v6916
      %v6949 = vmul.f32 %v6424, %v6916
      %v6950 = vmul.f32 %v6403, %v6916
      %v6951 = vmul.f32 %v6381, %v6916
      %v6952 = vmul.f32 %v6425, %v6916
      %v6953 = vmul.f32 %v6404, %v6916
      %v6954 = vmul.f32 %v6382, %v6916
      %v6955 = vmul.f32 %v6426, %v6916
      %v6956 = vmul.f32 %v6405, %v6916
      %v6957 = vmul.f32 %v6383, %v6916
      %v6958 = vmul.f32 %v6427, %v6916
      %v6959 = vmul.f32 %v6406, %v6916
      %v6960 = vmul.f32 %v6384, %v6916
      %v6961 = vmul.f32 %v6428, %v6916
      %v6962 = vmul.f32 %v6407, %v6916
      %v6963 = vmul.f32 %v6385, %v6916
      %v6964 = vmul.f32 %v6429, %v6916
      %v6965 = vadd.f32 %v6868, %v6917
      %v6966 = vadd.f32 %v6869, %v6918
      %v6967 = vadd.f32 %v6870, %v6919
      %v6968 = vadd.f32 %v6871, %v6920
      %v6969 = vadd.f32 %v6872, %v6921
      %v6970 = vadd.f32 %v6873, %v6922
      %v6971 = vadd.f32 %v6874, %v6923
      %v6972 = vadd.f32 %v6875, %v6924
      %v6973 = vadd.f32 %v6876, %v6925
      %v6974 = vadd.f32 %v6877, %v6926
      %v6975 = vadd.f32 %v6878, %v6927
      %v6976 = vadd.f32 %v6879, %v6928
      %v6977 = vadd.f32 %v6880, %v6929
      %v6978 = vadd.f32 %v6881, %v6930
      %v6979 = vadd.f32 %v6882, %v6931
      %v6980 = vadd.f32 %v6883, %v6932
      %v6981 = vadd.f32 %v6884, %v6933
      %v6982 = vadd.f32 %v6885, %v6934
      %v6983 = vadd.f32 %v6886, %v6935
      %v6984 = vadd.f32 %v6887, %v6936
      %v6985 = vadd.f32 %v6888, %v6937
      %v6986 = vadd.f32 %v6889, %v6938
      %v6987 = vadd.f32 %v6890, %v6939
      %v6988 = vadd.f32 %v6891, %v6940
      %v6989 = vadd.f32 %v6892, %v6941
      %v6990 = vadd.f32 %v6893, %v6942
      %v6991 = vadd.f32 %v6894, %v6943
      %v6992 = vadd.f32 %v6895, %v6944
      %v6993 = vadd.f32 %v6896, %v6945
      %v6994 = vadd.f32 %v6897, %v6946
      %v6995 = vadd.f32 %v6898, %v6947
      %v6996 = vadd.f32 %v6899, %v6948
      %v6997 = vadd.f32 %v6900, %v6949
      %v6998 = vadd.f32 %v6901, %v6950
      %v6999 = vadd.f32 %v6902, %v6951
      %v7000 = vadd.f32 %v6903, %v6952
      %v7001 = vadd.f32 %v6904, %v6953
      %v7002 = vadd.f32 %v6905, %v6954
      %v7003 = vadd.f32 %v6906, %v6955
      %v7004 = vadd.f32 %v6907, %v6956
      %v7005 = vadd.f32 %v6908, %v6957
      %v7006 = vadd.f32 %v6909, %v6958
      %v7007 = vadd.f32 %v6910, %v6959
      %v7008 = vadd.f32 %v6911, %v6960
      %v7009 = vadd.f32 %v6912, %v6961
      %v7010 = vadd.f32 %v6913, %v6962
      %v7011 = vadd.f32 %v6914, %v6963
      %v7012 = vadd.f32 %v6915, %v6964
      %v7013 = vperm.slane %v1558, 0
      %v7014 = vmul.f32 %v6393, %v7013
      %v7015 = vmul.f32 %v6371, %v7013
      %v7016 = vmul.f32 %v6415, %v7013
      %v7017 = vmul.f32 %v6394, %v7013
      %v7018 = vmul.f32 %v6372, %v7013
      %v7019 = vmul.f32 %v6416, %v7013
      %v7020 = vmul.f32 %v6395, %v7013
      %v7021 = vmul.f32 %v6373, %v7013
      %v7022 = vmul.f32 %v6417, %v7013
      %v7023 = vmul.f32 %v6396, %v7013
      %v7024 = vmul.f32 %v6374, %v7013
      %v7025 = vmul.f32 %v6418, %v7013
      %v7026 = vmul.f32 %v6397, %v7013
      %v7027 = vmul.f32 %v6375, %v7013
      %v7028 = vmul.f32 %v6419, %v7013
      %v7029 = vmul.f32 %v6398, %v7013
      %v7030 = vmul.f32 %v6376, %v7013
      %v7031 = vmul.f32 %v6420, %v7013
      %v7032 = vmul.f32 %v6399, %v7013
      %v7033 = vmul.f32 %v6377, %v7013
      %v7034 = vmul.f32 %v6421, %v7013
      %v7035 = vmul.f32 %v6400, %v7013
      %v7036 = vmul.f32 %v6378, %v7013
      %v7037 = vmul.f32 %v6422, %v7013
      %v7038 = vmul.f32 %v6401, %v7013
      %v7039 = vmul.f32 %v6379, %v7013
      %v7040 = vmul.f32 %v6423, %v7013
      %v7041 = vmul.f32 %v6402, %v7013
      %v7042 = vmul.f32 %v6380, %v7013
      %v7043 = vmul.f32 %v6424, %v7013
      %v7044 = vmul.f32 %v6403, %v7013
      %v7045 = vmul.f32 %v6381, %v7013
      %v7046 = vmul.f32 %v6425, %v7013
      %v7047 = vmul.f32 %v6404, %v7013
      %v7048 = vmul.f32 %v6382, %v7013
      %v7049 = vmul.f32 %v6426, %v7013
      %v7050 = vmul.f32 %v6405, %v7013
      %v7051 = vmul.f32 %v6383, %v7013
      %v7052 = vmul.f32 %v6427, %v7013
      %v7053 = vmul.f32 %v6406, %v7013
      %v7054 = vmul.f32 %v6384, %v7013
      %v7055 = vmul.f32 %v6428, %v7013
      %v7056 = vmul.f32 %v6407, %v7013
      %v7057 = vmul.f32 %v6385, %v7013
      %v7058 = vmul.f32 %v6429, %v7013
      %v7059 = vmul.f32 %v6408, %v7013
      %v7060 = vmul.f32 %v6386, %v7013
      %v7061 = vmul.f32 %v6430, %v7013
      %v7062 = vadd.f32 %v6965, %v7014
      %v7063 = vadd.f32 %v6966, %v7015
      %v7064 = vadd.f32 %v6967, %v7016
      %v7065 = vadd.f32 %v6968, %v7017
      %v7066 = vadd.f32 %v6969, %v7018
      %v7067 = vadd.f32 %v6970, %v7019
      %v7068 = vadd.f32 %v6971, %v7020
      %v7069 = vadd.f32 %v6972, %v7021
      %v7070 = vadd.f32 %v6973, %v7022
      %v7071 = vadd.f32 %v6974, %v7023
      %v7072 = vadd.f32 %v6975, %v7024
      %v7073 = vadd.f32 %v6976, %v7025
      %v7074 = vadd.f32 %v6977, %v7026
      %v7075 = vadd.f32 %v6978, %v7027
      %v7076 = vadd.f32 %v6979, %v7028
      %v7077 = vadd.f32 %v6980, %v7029
      %v7078 = vadd.f32 %v6981, %v7030
      %v7079 = vadd.f32 %v6982, %v7031
      %v7080 = vadd.f32 %v6983, %v7032
      %v7081 = vadd.f32 %v6984, %v7033
      %v7082 = vadd.f32 %v6985, %v7034
      %v7083 = vadd.f32 %v6986, %v7035
      %v7084 = vadd.f32 %v6987, %v7036
      %v7085 = vadd.f32 %v6988, %v7037
      %v7086 = vadd.f32 %v6989, %v7038
      %v7087 = vadd.f32 %v6990, %v7039
      %v7088 = vadd.f32 %v6991, %v7040
      %v7089 = vadd.f32 %v6992, %v7041
      %v7090 = vadd.f32 %v6993, %v7042
      %v7091 = vadd.f32 %v6994, %v7043
      %v7092 = vadd.f32 %v6995, %v7044
      %v7093 = vadd.f32 %v6996, %v7045
      %v7094 = vadd.f32 %v6997, %v7046
      %v7095 = vadd.f32 %v6998, %v7047
      %v7096 = vadd.f32 %v6999, %v7048
      %v7097 = vadd.f32 %v7000, %v7049
      %v7098 = vadd.f32 %v7001, %v7050
      %v7099 = vadd.f32 %v7002, %v7051
      %v7100 = vadd.f32 %v7003, %v7052
      %v7101 = vadd.f32 %v7004, %v7053
      %v7102 = vadd.f32 %v7005, %v7054
      %v7103 = vadd.f32 %v7006, %v7055
      %v7104 = vadd.f32 %v7007, %v7056
      %v7105 = vadd.f32 %v7008, %v7057
      %v7106 = vadd.f32 %v7009, %v7058
      %v7107 = vadd.f32 %v7010, %v7059
      %v7108 = vadd.f32 %v7011, %v7060
      %v7109 = vadd.f32 %v7012, %v7061
      %v7110 = vld [vmem:[%s4] sm:$0x1]
      %v7112 = vperm.slane %v7110, 0
      %v7114 = vadd.f32 %v7062, %v7112
      %v7115 = vadd.f32 %v7063, %v7112
      %v7116 = vadd.f32 %v7064, %v7112
      %v7117 = vadd.f32 %v7065, %v7112
      %v7118 = vadd.f32 %v7066, %v7112
      %v7119 = vadd.f32 %v7067, %v7112
      %v7120 = vadd.f32 %v7068, %v7112
      %v7121 = vadd.f32 %v7069, %v7112
      %v7122 = vadd.f32 %v7070, %v7112
      %v7123 = vadd.f32 %v7071, %v7112
      %v7124 = vadd.f32 %v7072, %v7112
      %v7125 = vadd.f32 %v7073, %v7112
      %v7126 = vadd.f32 %v7074, %v7112
      %v7127 = vadd.f32 %v7075, %v7112
      %v7128 = vadd.f32 %v7076, %v7112
      %v7129 = vadd.f32 %v7077, %v7112
      %v7130 = vadd.f32 %v7078, %v7112
      %v7131 = vadd.f32 %v7079, %v7112
      %v7132 = vadd.f32 %v7080, %v7112
      %v7133 = vadd.f32 %v7081, %v7112
      %v7134 = vadd.f32 %v7082, %v7112
      %v7135 = vadd.f32 %v7083, %v7112
      %v7136 = vadd.f32 %v7084, %v7112
      %v7137 = vadd.f32 %v7085, %v7112
      %v7138 = vadd.f32 %v7086, %v7112
      %v7139 = vadd.f32 %v7087, %v7112
      %v7140 = vadd.f32 %v7088, %v7112
      %v7141 = vadd.f32 %v7089, %v7112
      %v7142 = vadd.f32 %v7090, %v7112
      %v7143 = vadd.f32 %v7091, %v7112
      %v7144 = vadd.f32 %v7092, %v7112
      %v7145 = vadd.f32 %v7093, %v7112
      %v7146 = vadd.f32 %v7094, %v7112
      %v7147 = vadd.f32 %v7095, %v7112
      %v7148 = vadd.f32 %v7096, %v7112
      %v7149 = vadd.f32 %v7097, %v7112
      %v7150 = vadd.f32 %v7098, %v7112
      %v7151 = vadd.f32 %v7099, %v7112
      %v7152 = vadd.f32 %v7100, %v7112
      %v7153 = vadd.f32 %v7101, %v7112
      %v7154 = vadd.f32 %v7102, %v7112
      %v7155 = vadd.f32 %v7103, %v7112
      %v7156 = vadd.f32 %v7104, %v7112
      %v7157 = vadd.f32 %v7105, %v7112
      %v7158 = vadd.f32 %v7106, %v7112
      %v7159 = vadd.f32 %v7107, %v7112
      %v7160 = vadd.f32 %v7108, %v7112
      %v7161 = vadd.f32 %v7109, %v7112
      %v7162 = vmax.f32 %v7114, 0.0
      %v7163 = vmax.f32 %v7115, 0.0
      %v7164 = vmax.f32 %v7116, 0.0
      %v7165 = vmax.f32 %v7117, 0.0
      %v7166 = vmax.f32 %v7118, 0.0
      %v7167 = vmax.f32 %v7119, 0.0
      %v7168 = vmax.f32 %v7120, 0.0
      %v7169 = vmax.f32 %v7121, 0.0
      %v7170 = vmax.f32 %v7122, 0.0
      %v7171 = vmax.f32 %v7123, 0.0
      %v7172 = vmax.f32 %v7124, 0.0
      %v7173 = vmax.f32 %v7125, 0.0
      %v7174 = vmax.f32 %v7126, 0.0
      %v7175 = vmax.f32 %v7127, 0.0
      %v7176 = vmax.f32 %v7128, 0.0
      %v7177 = vmax.f32 %v7129, 0.0
      %v7178 = vmax.f32 %v7130, 0.0
      %v7179 = vmax.f32 %v7131, 0.0
      %v7180 = vmax.f32 %v7132, 0.0
      %v7181 = vmax.f32 %v7133, 0.0
      %v7182 = vmax.f32 %v7134, 0.0
      %v7183 = vmax.f32 %v7135, 0.0
      %v7184 = vmax.f32 %v7136, 0.0
      %v7185 = vmax.f32 %v7137, 0.0
      %v7186 = vmax.f32 %v7138, 0.0
      %v7187 = vmax.f32 %v7139, 0.0
      %v7188 = vmax.f32 %v7140, 0.0
      %v7189 = vmax.f32 %v7141, 0.0
      %v7190 = vmax.f32 %v7142, 0.0
      %v7191 = vmax.f32 %v7143, 0.0
      %v7192 = vmax.f32 %v7144, 0.0
      %v7193 = vmax.f32 %v7145, 0.0
      %v7194 = vmax.f32 %v7146, 0.0
      %v7195 = vmax.f32 %v7147, 0.0
      %v7196 = vmax.f32 %v7148, 0.0
      %v7197 = vmax.f32 %v7149, 0.0
      %v7198 = vmax.f32 %v7150, 0.0
      %v7199 = vmax.f32 %v7151, 0.0
      %v7200 = vmax.f32 %v7152, 0.0
      %v7201 = vmax.f32 %v7153, 0.0
      %v7202 = vmax.f32 %v7154, 0.0
      %v7203 = vmax.f32 %v7155, 0.0
      %v7204 = vmax.f32 %v7156, 0.0
      %v7205 = vmax.f32 %v7157, 0.0
      %v7206 = vmax.f32 %v7158, 0.0
      %v7207 = vmax.f32 %v7159, 0.0
      %v7208 = vmax.f32 %v7160, 0.0
      %v7209 = vmax.f32 %v7161, 0.0
      %v7210 = vmin.f32 %v7162, 4.0
      %v7211 = vmin.f32 %v7163, 4.0
      %v7212 = vmin.f32 %v7164, 4.0
      %v7213 = vmin.f32 %v7165, 4.0
      %v7214 = vmin.f32 %v7166, 4.0
      %v7215 = vmin.f32 %v7167, 4.0
      %v7216 = vmin.f32 %v7168, 4.0
      %v7217 = vmin.f32 %v7169, 4.0
      %v7218 = vmin.f32 %v7170, 4.0
      %v7219 = vmin.f32 %v7171, 4.0
      %v7220 = vmin.f32 %v7172, 4.0
      %v7221 = vmin.f32 %v7173, 4.0
      %v7222 = vmin.f32 %v7174, 4.0
      %v7223 = vmin.f32 %v7175, 4.0
      %v7224 = vmin.f32 %v7176, 4.0
      %v7225 = vmin.f32 %v7177, 4.0
      %v7226 = vmin.f32 %v7178, 4.0
      %v7227 = vmin.f32 %v7179, 4.0
      %v7228 = vmin.f32 %v7180, 4.0
      %v7229 = vmin.f32 %v7181, 4.0
      %v7230 = vmin.f32 %v7182, 4.0
      %v7231 = vmin.f32 %v7183, 4.0
      %v7232 = vmin.f32 %v7184, 4.0
      %v7233 = vmin.f32 %v7185, 4.0
      %v7234 = vmin.f32 %v7186, 4.0
      %v7235 = vmin.f32 %v7187, 4.0
      %v7236 = vmin.f32 %v7188, 4.0
      %v7237 = vmin.f32 %v7189, 4.0
      %v7238 = vmin.f32 %v7190, 4.0
      %v7239 = vmin.f32 %v7191, 4.0
      %v7240 = vmin.f32 %v7192, 4.0
      %v7241 = vmin.f32 %v7193, 4.0
      %v7242 = vmin.f32 %v7194, 4.0
      %v7243 = vmin.f32 %v7195, 4.0
      %v7244 = vmin.f32 %v7196, 4.0
      %v7245 = vmin.f32 %v7197, 4.0
      %v7246 = vmin.f32 %v7198, 4.0
      %v7247 = vmin.f32 %v7199, 4.0
      %v7248 = vmin.f32 %v7200, 4.0
      %v7249 = vmin.f32 %v7201, 4.0
      %v7250 = vmin.f32 %v7202, 4.0
      %v7251 = vmin.f32 %v7203, 4.0
      %v7252 = vmin.f32 %v7204, 4.0
      %v7253 = vmin.f32 %v7205, 4.0
      %v7254 = vmin.f32 %v7206, 4.0
      %v7255 = vmin.f32 %v7207, 4.0
      %v7256 = vmin.f32 %v7208, 4.0
      %v7257 = vmin.f32 %v7209, 4.0
      %v7258 = vround.ne.pseudo %v7210
      %v7259 = vround.ne.pseudo %v7211
      %v7260 = vround.ne.pseudo %v7212
      %v7261 = vround.ne.pseudo %v7213
      %v7262 = vround.ne.pseudo %v7214
      %v7263 = vround.ne.pseudo %v7215
      %v7264 = vround.ne.pseudo %v7216
      %v7265 = vround.ne.pseudo %v7217
      %v7266 = vround.ne.pseudo %v7218
      %v7267 = vround.ne.pseudo %v7219
      %v7268 = vround.ne.pseudo %v7220
      %v7269 = vround.ne.pseudo %v7221
      %v7270 = vround.ne.pseudo %v7222
      %v7271 = vround.ne.pseudo %v7223
      %v7272 = vround.ne.pseudo %v7224
      %v7273 = vround.ne.pseudo %v7225
      %v7274 = vround.ne.pseudo %v7226
      %v7275 = vround.ne.pseudo %v7227
      %v7276 = vround.ne.pseudo %v7228
      %v7277 = vround.ne.pseudo %v7229
      %v7278 = vround.ne.pseudo %v7230
      %v7279 = vround.ne.pseudo %v7231
      %v7280 = vround.ne.pseudo %v7232
      %v7281 = vround.ne.pseudo %v7233
      %v7282 = vround.ne.pseudo %v7234
      %v7283 = vround.ne.pseudo %v7235
      %v7284 = vround.ne.pseudo %v7236
      %v7285 = vround.ne.pseudo %v7237
      %v7286 = vround.ne.pseudo %v7238
      %v7287 = vround.ne.pseudo %v7239
      %v7288 = vround.ne.pseudo %v7240
      %v7289 = vround.ne.pseudo %v7241
      %v7290 = vround.ne.pseudo %v7242
      %v7291 = vround.ne.pseudo %v7243
      %v7292 = vround.ne.pseudo %v7244
      %v7293 = vround.ne.pseudo %v7245
      %v7294 = vround.ne.pseudo %v7246
      %v7295 = vround.ne.pseudo %v7247
      %v7296 = vround.ne.pseudo %v7248
      %v7297 = vround.ne.pseudo %v7249
      %v7298 = vround.ne.pseudo %v7250
      %v7299 = vround.ne.pseudo %v7251
      %v7300 = vround.ne.pseudo %v7252
      %v7301 = vround.ne.pseudo %v7253
      %v7302 = vround.ne.pseudo %v7254
      %v7303 = vround.ne.pseudo %v7255
      %v7304 = vround.ne.pseudo %v7256
      %v7305 = vround.ne.pseudo %v7257
      %v7306 = vmul.f32 %v7258, 0.25
      %v7307 = vmul.f32 %v7259, 0.25
      %v7308 = vmul.f32 %v7260, 0.25
      %v7309 = vmul.f32 %v7261, 0.25
      %v7310 = vmul.f32 %v7262, 0.25
      %v7311 = vmul.f32 %v7263, 0.25
      %v7312 = vmul.f32 %v7264, 0.25
      %v7313 = vmul.f32 %v7265, 0.25
      %v7314 = vmul.f32 %v7266, 0.25
      %v7315 = vmul.f32 %v7267, 0.25
      %v7316 = vmul.f32 %v7268, 0.25
      %v7317 = vmul.f32 %v7269, 0.25
      %v7318 = vmul.f32 %v7270, 0.25
      %v7319 = vmul.f32 %v7271, 0.25
      %v7320 = vmul.f32 %v7272, 0.25
      %v7321 = vmul.f32 %v7273, 0.25
      %v7322 = vmul.f32 %v7274, 0.25
      %v7323 = vmul.f32 %v7275, 0.25
      %v7324 = vmul.f32 %v7276, 0.25
      %v7325 = vmul.f32 %v7277, 0.25
      %v7326 = vmul.f32 %v7278, 0.25
      %v7327 = vmul.f32 %v7279, 0.25
      %v7328 = vmul.f32 %v7280, 0.25
      %v7329 = vmul.f32 %v7281, 0.25
      %v7330 = vmul.f32 %v7282, 0.25
      %v7331 = vmul.f32 %v7283, 0.25
      %v7332 = vmul.f32 %v7284, 0.25
      %v7333 = vmul.f32 %v7285, 0.25
      %v7334 = vmul.f32 %v7286, 0.25
      %v7335 = vmul.f32 %v7287, 0.25
      %v7336 = vmul.f32 %v7288, 0.25
      %v7337 = vmul.f32 %v7289, 0.25
      %v7338 = vmul.f32 %v7290, 0.25
      %v7339 = vmul.f32 %v7291, 0.25
      %v7340 = vmul.f32 %v7292, 0.25
      %v7341 = vmul.f32 %v7293, 0.25
      %v7342 = vmul.f32 %v7294, 0.25
      %v7343 = vmul.f32 %v7295, 0.25
      %v7344 = vmul.f32 %v7296, 0.25
      %v7345 = vmul.f32 %v7297, 0.25
      %v7346 = vmul.f32 %v7298, 0.25
      %v7347 = vmul.f32 %v7299, 0.25
      %v7348 = vmul.f32 %v7300, 0.25
      %v7349 = vmul.f32 %v7301, 0.25
      %v7350 = vmul.f32 %v7302, 0.25
      %v7351 = vmul.f32 %v7303, 0.25
      %v7352 = vmul.f32 %v7304, 0.25
      %v7353 = vmul.f32 %v7305, 0.25
      %v7354 = vpack.c.bf16 %v7306, %v7306
      %v7355 = vpack.c.bf16 %v7307, %v7307
      %v7356 = vpack.c.bf16 %v7308, %v7308
      %v7357 = vpack.c.bf16 %v7309, %v7309
      %v7358 = vpack.c.bf16 %v7310, %v7310
      %v7359 = vpack.c.bf16 %v7311, %v7311
      %v7360 = vpack.c.bf16 %v7312, %v7312
      %v7361 = vpack.c.bf16 %v7313, %v7313
      %v7362 = vpack.c.bf16 %v7314, %v7314
      %v7363 = vpack.c.bf16 %v7315, %v7315
      %v7364 = vpack.c.bf16 %v7316, %v7316
      %v7365 = vpack.c.bf16 %v7317, %v7317
      %v7366 = vpack.c.bf16 %v7318, %v7318
      %v7367 = vpack.c.bf16 %v7319, %v7319
      %v7368 = vpack.c.bf16 %v7320, %v7320
      %v7369 = vpack.c.bf16 %v7321, %v7321
      %v7370 = vpack.c.bf16 %v7322, %v7322
      %v7371 = vpack.c.bf16 %v7323, %v7323
      %v7372 = vpack.c.bf16 %v7324, %v7324
      %v7373 = vpack.c.bf16 %v7325, %v7325
      %v7374 = vpack.c.bf16 %v7326, %v7326
      %v7375 = vpack.c.bf16 %v7327, %v7327
      %v7376 = vpack.c.bf16 %v7328, %v7328
      %v7377 = vpack.c.bf16 %v7329, %v7329
      %v7378 = vpack.c.bf16 %v7330, %v7330
      %v7379 = vpack.c.bf16 %v7331, %v7331
      %v7380 = vpack.c.bf16 %v7332, %v7332
      %v7381 = vpack.c.bf16 %v7333, %v7333
      %v7382 = vpack.c.bf16 %v7334, %v7334
      %v7383 = vpack.c.bf16 %v7335, %v7335
      %v7384 = vpack.c.bf16 %v7336, %v7336
      %v7385 = vpack.c.bf16 %v7337, %v7337
      %v7386 = vpack.c.bf16 %v7338, %v7338
      %v7387 = vpack.c.bf16 %v7339, %v7339
      %v7388 = vpack.c.bf16 %v7340, %v7340
      %v7389 = vpack.c.bf16 %v7341, %v7341
      %v7390 = vpack.c.bf16 %v7342, %v7342
      %v7391 = vpack.c.bf16 %v7343, %v7343
      %v7392 = vpack.c.bf16 %v7344, %v7344
      %v7393 = vpack.c.bf16 %v7345, %v7345
      %v7394 = vpack.c.bf16 %v7346, %v7346
      %v7395 = vpack.c.bf16 %v7347, %v7347
      %v7396 = vpack.c.bf16 %v7348, %v7348
      %v7397 = vpack.c.bf16 %v7349, %v7349
      %v7398 = vpack.c.bf16 %v7350, %v7350
      %v7399 = vpack.c.bf16 %v7351, %v7351
      %v7400 = vpack.c.bf16 %v7352, %v7352
      %v7401 = vpack.c.bf16 %v7353, %v7353
      %v7402 = vld [vmem:[%s5] sm:$0xf]
      %v7403 = vld [vmem:[%s5 + $0x4] sm:$0xf]
      %v7404 = vld [vmem:[%s5 + $0x8] sm:$0xf]
      %v7405 = vld [vmem:[%s5 + $0xc] sm:$0xf]
      %v7406 = vld [vmem:[%s5 + $0x10] sm:$0xf]
      %v7407 = vld [vmem:[%s5 + $0x14] sm:$0xf]
      %v7408 = vld [vmem:[%s5 + $0x18] sm:$0xf]
      %v7409 = vld [vmem:[%s5 + $0x1c] sm:$0xf]
      %v7410 = vld [vmem:[%s5 + $0x20] sm:$0xf]
      %v7411 = vld [vmem:[%s5 + $0x24] sm:$0xf]
      %v7412 = vld [vmem:[%s5 + $0x28] sm:$0xf]
      %v7413 = vld [vmem:[%s5 + $0x2c] sm:$0xf]
      %v7414 = vld [vmem:[%s5 + $0x30] sm:$0xf]
      %v7415 = vld [vmem:[%s5 + $0x34] sm:$0xf]
      %v7416 = vld [vmem:[%s5 + $0x38] sm:$0xf]
      %v7417 = vld [vmem:[%s5 + $0x3c] sm:$0xf]
      %v7418 = vld [vmem:[%s6] sm:$0x1]
      %v7420 = vperm.slane %v7418, 0
      %v7470 = vunpack.c.l.b16 %v7354
      %v7471 = vunpack.c.l.b16 %v7355
      %v7472 = vunpack.c.l.b16 %v7356
      %v7473 = vunpack.c.l.b16 %v7357
      %v7474 = vunpack.c.l.b16 %v7358
      %v7475 = vunpack.c.l.b16 %v7359
      %v7476 = vunpack.c.l.b16 %v7360
      %v7477 = vunpack.c.l.b16 %v7361
      %v7478 = vunpack.c.l.b16 %v7362
      %v7479 = vunpack.c.l.b16 %v7363
      %v7480 = vunpack.c.l.b16 %v7364
      %v7481 = vunpack.c.l.b16 %v7365
      %v7482 = vunpack.c.l.b16 %v7366
      %v7483 = vunpack.c.l.b16 %v7367
      %v7484 = vunpack.c.l.b16 %v7368
      %v7485 = vunpack.c.l.b16 %v7369
      %v7486 = vunpack.c.l.b16 %v7370
      %v7487 = vunpack.c.l.b16 %v7371
      %v7488 = vunpack.c.l.b16 %v7372
      %v7489 = vunpack.c.l.b16 %v7373
      %v7490 = vunpack.c.l.b16 %v7374
      %v7491 = vunpack.c.l.b16 %v7375
      %v7492 = vunpack.c.l.b16 %v7376
      %v7493 = vunpack.c.l.b16 %v7377
      %v7494 = vunpack.c.l.b16 %v7378
      %v7495 = vunpack.c.l.b16 %v7379
      %v7496 = vunpack.c.l.b16 %v7380
      %v7497 = vunpack.c.l.b16 %v7381
      %v7498 = vunpack.c.l.b16 %v7382
      %v7499 = vunpack.c.l.b16 %v7383
      %v7500 = vunpack.c.l.b16 %v7384
      %v7501 = vunpack.c.l.b16 %v7385
      %v7502 = vunpack.c.l.b16 %v7386
      %v7503 = vunpack.c.l.b16 %v7387
      %v7504 = vunpack.c.l.b16 %v7388
      %v7505 = vunpack.c.l.b16 %v7389
      %v7506 = vunpack.c.l.b16 %v7390
      %v7507 = vunpack.c.l.b16 %v7391
      %v7508 = vunpack.c.l.b16 %v7392
      %v7509 = vunpack.c.l.b16 %v7393
      %v7510 = vunpack.c.l.b16 %v7394
      %v7511 = vunpack.c.l.b16 %v7395
      %v7512 = vunpack.c.l.b16 %v7396
      %v7513 = vunpack.c.l.b16 %v7397
      %v7514 = vunpack.c.l.b16 %v7398
      %v7515 = vunpack.c.l.b16 %v7399
      %v7516 = vunpack.c.l.b16 %v7400
      %v7517 = vunpack.c.l.b16 %v7401
      %v7518 = vpack.c.b16 %v7471, %v7470
      %v7519 = vpack.c.b16 %v7473, %v7472
      %v7520 = vpack.c.b16 %v7475, %v7474
      %v7521 = vpack.c.b16 %v7477, %v7476
      %v7522 = vpack.c.b16 %v7479, %v7478
      %v7523 = vpack.c.b16 %v7481, %v7480
      %v7524 = vpack.c.b16 %v7483, %v7482
      %v7525 = vpack.c.b16 %v7485, %v7484
      %v7526 = vpack.c.b16 %v7487, %v7486
      %v7527 = vpack.c.b16 %v7489, %v7488
      %v7528 = vpack.c.b16 %v7491, %v7490
      %v7529 = vpack.c.b16 %v7493, %v7492
      %v7530 = vpack.c.b16 %v7495, %v7494
      %v7531 = vpack.c.b16 %v7497, %v7496
      %v7532 = vpack.c.b16 %v7499, %v7498
      %v7533 = vpack.c.b16 %v7501, %v7500
      %v7534 = vpack.c.b16 %v7503, %v7502
      %v7535 = vpack.c.b16 %v7505, %v7504
      %v7536 = vpack.c.b16 %v7507, %v7506
      %v7537 = vpack.c.b16 %v7509, %v7508
      %v7538 = vpack.c.b16 %v7511, %v7510
      %v7539 = vpack.c.b16 %v7513, %v7512
      %v7540 = vpack.c.b16 %v7515, %v7514
      %v7541 = vpack.c.b16 %v7517, %v7516
      %v7582 = vunpack.c.l.b16 %v7402
      %v7583 = vunpack.c.l.b16 %v7403
      %v7584 = vunpack.c.l.b16 %v7404
      %v7585 = vunpack.c.l.b16 %v7405
      %v7586 = vunpack.c.l.b16 %v7406
      %v7587 = vunpack.c.l.b16 %v7407
      %v7588 = vunpack.c.l.b16 %v7408
      %v7589 = vunpack.c.l.b16 %v7409
      %v7590 = vunpack.c.l.b16 %v7410
      %v7591 = vunpack.c.l.b16 %v7411
      %v7592 = vunpack.c.l.b16 %v7412
      %v7593 = vunpack.c.l.b16 %v7413
      %v7594 = vunpack.c.l.b16 %v7414
      %v7595 = vunpack.c.l.b16 %v7415
      %v7596 = vunpack.c.l.b16 %v7416
      %v7597 = vunpack.c.l.b16 %v7417
      %v7598 = vpack.c.b16 %v7583, %v7582
      %v7599 = vpack.c.b16 %v7585, %v7584
      %v7600 = vpack.c.b16 %v7587, %v7586
      %v7601 = vpack.c.b16 %v7589, %v7588
      %v7602 = vpack.c.b16 %v7591, %v7590
      %v7603 = vpack.c.b16 %v7593, %v7592
      %v7604 = vpack.c.b16 %v7595, %v7594
      %v7605 = vpack.c.b16 %v7597, %v7596
      %7614 = vmatpush.bf16.msra.mxu0 %v7605
      %7615 = vmatpush.bf16.msra.mxu0 %v7604
      %7616 = vmatpush.bf16.msra.mxu0 %v7603
      %7617 = vmatpush.bf16.msra.mxu0 %v7602
      %7618 = vmatpush.bf16.msra.mxu0 %v7601
      %7619 = vmatpush.bf16.msra.mxu0 %v7600
      %7620 = vmatpush.bf16.msra.mxu0 %v7599
      %7621 = vmatpush.bf16.msra.mxu0 %v7598
      %7622 = vmatmul.bf16.gmra.mxu0 %v7518
      %v7623 = vpop.f32.mrf.mxu0
      %v7624 = vadd.f32 %v7420, %v7623
      %v7625 = vpop.f32.mrf.mxu0
      %v7626 = vadd.f32 %v7420, %v7625
      %7627 = vmatmul.bf16.gmra.mxu0 %v7519
      %v7628 = vpop.f32.mrf.mxu0
      %v7629 = vadd.f32 %v7420, %v7628
      %v7630 = vpop.f32.mrf.mxu0
      %v7631 = vadd.f32 %v7420, %v7630
      %7632 = vmatmul.bf16.gmra.mxu0 %v7520
      %v7633 = vpop.f32.mrf.mxu0
      %v7634 = vadd.f32 %v7420, %v7633
      %v7635 = vpop.f32.mrf.mxu0
      %v7636 = vadd.f32 %v7420, %v7635
      %7637 = vmatmul.bf16.gmra.mxu0 %v7521
      %v7638 = vpop.f32.mrf.mxu0
      %v7639 = vadd.f32 %v7420, %v7638
      %v7640 = vpop.f32.mrf.mxu0
      %v7641 = vadd.f32 %v7420, %v7640
      %7642 = vmatmul.bf16.gmra.mxu0 %v7522
      %v7643 = vpop.f32.mrf.mxu0
      %v7644 = vadd.f32 %v7420, %v7643
      %v7645 = vpop.f32.mrf.mxu0
      %v7646 = vadd.f32 %v7420, %v7645
      %7647 = vmatmul.bf16.gmra.mxu0 %v7523
      %v7648 = vpop.f32.mrf.mxu0
      %v7649 = vadd.f32 %v7420, %v7648
      %v7650 = vpop.f32.mrf.mxu0
      %v7651 = vadd.f32 %v7420, %v7650
      %7652 = vmatmul.bf16.gmra.mxu0 %v7524
      %v7653 = vpop.f32.mrf.mxu0
      %v7654 = vadd.f32 %v7420, %v7653
      %v7655 = vpop.f32.mrf.mxu0
      %v7656 = vadd.f32 %v7420, %v7655
      %7657 = vmatmul.bf16.gmra.mxu0 %v7525
      %v7658 = vpop.f32.mrf.mxu0
      %v7659 = vadd.f32 %v7420, %v7658
      %v7660 = vpop.f32.mrf.mxu0
      %v7661 = vadd.f32 %v7420, %v7660
      %7662 = vmatmul.bf16.gmra.mxu0 %v7526
      %v7663 = vpop.f32.mrf.mxu0
      %v7664 = vadd.f32 %v7420, %v7663
      %v7665 = vpop.f32.mrf.mxu0
      %v7666 = vadd.f32 %v7420, %v7665
      %7667 = vmatmul.bf16.gmra.mxu0 %v7527
      %v7668 = vpop.f32.mrf.mxu0
      %v7669 = vadd.f32 %v7420, %v7668
      %v7670 = vpop.f32.mrf.mxu0
      %v7671 = vadd.f32 %v7420, %v7670
      %7672 = vmatmul.bf16.gmra.mxu0 %v7528
      %v7673 = vpop.f32.mrf.mxu0
      %v7674 = vadd.f32 %v7420, %v7673
      %v7675 = vpop.f32.mrf.mxu0
      %v7676 = vadd.f32 %v7420, %v7675
      %7677 = vmatmul.bf16.gmra.mxu0 %v7529
      %v7678 = vpop.f32.mrf.mxu0
      %v7679 = vadd.f32 %v7420, %v7678
      %v7680 = vpop.f32.mrf.mxu0
      %v7681 = vadd.f32 %v7420, %v7680
      %7682 = vmatmul.bf16.gmra.mxu0 %v7530
      %v7683 = vpop.f32.mrf.mxu0
      %v7684 = vadd.f32 %v7420, %v7683
      %v7685 = vpop.f32.mrf.mxu0
      %v7686 = vadd.f32 %v7420, %v7685
      %7687 = vmatmul.bf16.gmra.mxu0 %v7531
      %v7688 = vpop.f32.mrf.mxu0
      %v7689 = vadd.f32 %v7420, %v7688
      %v7690 = vpop.f32.mrf.mxu0
      %v7691 = vadd.f32 %v7420, %v7690
      %7692 = vmatmul.bf16.gmra.mxu0 %v7532
      %v7693 = vpop.f32.mrf.mxu0
      %v7694 = vadd.f32 %v7420, %v7693
      %v7695 = vpop.f32.mrf.mxu0
      %v7696 = vadd.f32 %v7420, %v7695
      %7697 = vmatmul.bf16.gmra.mxu0 %v7533
      %v7698 = vpop.f32.mrf.mxu0
      %v7699 = vadd.f32 %v7420, %v7698
      %v7700 = vpop.f32.mrf.mxu0
      %v7701 = vadd.f32 %v7420, %v7700
      %7702 = vmatmul.bf16.gmra.mxu0 %v7534
      %v7703 = vpop.f32.mrf.mxu0
      %v7704 = vadd.f32 %v7420, %v7703
      %v7705 = vpop.f32.mrf.mxu0
      %v7706 = vadd.f32 %v7420, %v7705
      %7707 = vmatmul.bf16.gmra.mxu0 %v7535
      %v7708 = vpop.f32.mrf.mxu0
      %v7709 = vadd.f32 %v7420, %v7708
      %v7710 = vpop.f32.mrf.mxu0
      %v7711 = vadd.f32 %v7420, %v7710
      %7712 = vmatmul.bf16.gmra.mxu0 %v7536
      %v7713 = vpop.f32.mrf.mxu0
      %v7714 = vadd.f32 %v7420, %v7713
      %v7715 = vpop.f32.mrf.mxu0
      %v7716 = vadd.f32 %v7420, %v7715
      %7717 = vmatmul.bf16.gmra.mxu0 %v7537
      %v7718 = vpop.f32.mrf.mxu0
      %v7719 = vadd.f32 %v7420, %v7718
      %v7720 = vpop.f32.mrf.mxu0
      %v7721 = vadd.f32 %v7420, %v7720
      %7722 = vmatmul.bf16.gmra.mxu0 %v7538
      %v7723 = vpop.f32.mrf.mxu0
      %v7724 = vadd.f32 %v7420, %v7723
      %v7725 = vpop.f32.mrf.mxu0
      %v7726 = vadd.f32 %v7420, %v7725
      %7727 = vmatmul.bf16.gmra.mxu0 %v7539
      %v7728 = vpop.f32.mrf.mxu0
      %v7729 = vadd.f32 %v7420, %v7728
      %v7730 = vpop.f32.mrf.mxu0
      %v7731 = vadd.f32 %v7420, %v7730
      %7732 = vmatmul.bf16.gmra.mxu0 %v7540
      %v7733 = vpop.f32.mrf.mxu0
      %v7734 = vadd.f32 %v7420, %v7733
      %v7735 = vpop.f32.mrf.mxu0
      %v7736 = vadd.f32 %v7420, %v7735
      %7737 = vmatmul.bf16.gmra.mxu0 %v7541
      %v7738 = vpop.f32.mrf.mxu0
      %v7739 = vadd.f32 %v7420, %v7738
      %v7740 = vpop.f32.mrf.mxu0
      %v7741 = vadd.f32 %v7420, %v7740
      %7742 = vdwg.mxu0
      %7743 = vst [vmem:[%s256] sm:$0xff] %v7624
      %7744 = vst [vmem:[%s256 + $0x8] sm:$0xff] %v7626
      %7745 = vst [vmem:[%s256 + $0x10] sm:$0xff] %v7629
      %7746 = vst [vmem:[%s256 + $0x18] sm:$0xff] %v7631
      %7747 = vst [vmem:[%s256 + $0x20] sm:$0xff] %v7634
      %7748 = vst [vmem:[%s256 + $0x28] sm:$0xff] %v7636
      %7749 = vst [vmem:[%s256 + $0x30] sm:$0xff] %v7639
      %7750 = vst [vmem:[%s256 + $0x38] sm:$0xff] %v7641
      %7751 = vst [vmem:[%s256 + $0x40] sm:$0xff] %v7644
      %7752 = vst [vmem:[%s256 + $0x48] sm:$0xff] %v7646
      %7753 = vst [vmem:[%s256 + $0x50] sm:$0xff] %v7649
      %7754 = vst [vmem:[%s256 + $0x58] sm:$0xff] %v7651
      %7755 = vst [vmem:[%s256 + $0x60] sm:$0xff] %v7654
      %7756 = vst [vmem:[%s256 + $0x68] sm:$0xff] %v7656
      %7757 = vst [vmem:[%s256 + $0x70] sm:$0xff] %v7659
      %7758 = vst [vmem:[%s256 + $0x78] sm:$0xff] %v7661
      %7759 = vst [vmem:[%s256 + $0x80] sm:$0xff] %v7664
      %7760 = vst [vmem:[%s256 + $0x88] sm:$0xff] %v7666
      %7761 = vst [vmem:[%s256 + $0x90] sm:$0xff] %v7669
      %7762 = vst [vmem:[%s256 + $0x98] sm:$0xff] %v7671
      %7763 = vst [vmem:[%s256 + $0xa0] sm:$0xff] %v7674
      %7764 = vst [vmem:[%s256 + $0xa8] sm:$0xff] %v7676
      %7765 = vst [vmem:[%s256 + $0xb0] sm:$0xff] %v7679
      %7766 = vst [vmem:[%s256 + $0xb8] sm:$0xff] %v7681
      %7767 = vst [vmem:[%s256 + $0xc0] sm:$0xff] %v7684
      %7768 = vst [vmem:[%s256 + $0xc8] sm:$0xff] %v7686
      %7769 = vst [vmem:[%s256 + $0xd0] sm:$0xff] %v7689
      %7770 = vst [vmem:[%s256 + $0xd8] sm:$0xff] %v7691
      %7771 = vst [vmem:[%s256 + $0xe0] sm:$0xff] %v7694
      %7772 = vst [vmem:[%s256 + $0xe8] sm:$0xff] %v7696
      %7773 = vst [vmem:[%s256 + $0xf0] sm:$0xff] %v7699
      %7774 = vst [vmem:[%s256 + $0xf8] sm:$0xff] %v7701
      %7775 = vst [vmem:[%s256 + $0x100] sm:$0xff] %v7704
      %7776 = vst [vmem:[%s256 + $0x108] sm:$0xff] %v7706
      %7777 = vst [vmem:[%s256 + $0x110] sm:$0xff] %v7709
      %7778 = vst [vmem:[%s256 + $0x118] sm:$0xff] %v7711
      %7779 = vst [vmem:[%s256 + $0x120] sm:$0xff] %v7714
      %7780 = vst [vmem:[%s256 + $0x128] sm:$0xff] %v7716
      %7781 = vst [vmem:[%s256 + $0x130] sm:$0xff] %v7719
      %7782 = vst [vmem:[%s256 + $0x138] sm:$0xff] %v7721
      %7783 = vst [vmem:[%s256 + $0x140] sm:$0xff] %v7724
      %7784 = vst [vmem:[%s256 + $0x148] sm:$0xff] %v7726
      %7785 = vst [vmem:[%s256 + $0x150] sm:$0xff] %v7729
      %7786 = vst [vmem:[%s256 + $0x158] sm:$0xff] %v7731
      %7787 = vst [vmem:[%s256 + $0x160] sm:$0xff] %v7734
      %7788 = vst [vmem:[%s256 + $0x168] sm:$0xff] %v7736
      %7789 = vst [vmem:[%s256 + $0x170] sm:$0xff] %v7739
      %7790 = vst [vmem:[%s256 + $0x178] sm:$0xff] %v7741
      %s7791 = smul.u32 16, %s23
      %p7792 = scmp.lt.s32.totalorder %s22, 1
      %s7793 = scalar_select %p7792, %s22, 1
      %p7794 = scmp.lt.s32.totalorder %s7791, 15
      %s7795 = scalar_select %p7794, %s7791, 15
      %s7796 = smul.addr %s7795, 3
      %s7797 = smul.addr %s7793, 48
      %s7798 = sadd.s32 %s7796, %s7797
      %s7799 = smul.addr %s7798, 8
      %s7800 = scalar_lea.vmem %s7, %s7799
      // Predicated region
      $region64: #{_lambda_.1} parent=43 // pred_check
        %p7801 = pneg %p176
      $region65: #{_lambda_.1} parent=43 // pred_check_branch
        %7803 = sbr.rel (%p7801) target = $region67
      $region66: #{_lambda_.1} parent=43 // pred_region
        %s7804 = smul.u32 16, %s23
      $region67: #{_lambda_.1} parent=43 // pred_fallthru
        _
    $region44: #{_lambda_.1} parent=5 // pred_fallthru
      _
    %p7805 = scmp.le.s32.totalorder 2, %s13
    // Predicated region
    $region68: #{_lambda_.1} parent=5 // pred_check
      %p7806 = pneg %p7805
    $region69: #{_lambda_.1} parent=5 // pred_check_branch
      %7808 = sbr.rel (%p7806) target = $region71
    $region70: #{_lambda_.1} parent=5 // pred_region
      %s7809 = ssub.s32 %s13, 2
      // Predicated region
      $region72: #{_lambda_.1} parent=70 // pred_check
        %p7810 = pneg %p182
      $region73: #{_lambda_.1} parent=70 // pred_check_branch
        %7812 = sbr.rel (%p7810) target = $region75
      $region74: #{_lambda_.1} parent=70 // pred_region
        %s7813 = smul.u32 16, %s25
        %p7814 = scmp.lt.s32.totalorder %s24, 1
        %s7815 = scalar_select %p7814, %s24, 1
        %p7816 = scmp.lt.s32.totalorder %s7813, 15
        %s7817 = scalar_select %p7816, %s7813, 15
        %s7818 = smul.addr %s7817, 3
        %s7819 = smul.addr %s7815, 48
        %s7820 = sadd.s32 %s7818, %s7819
        %s7821 = smul.addr %s7820, 8
        %s7822 = scalar_lea.vmem %s7, %s7821
      $region75: #{_lambda_.1} parent=70 // pred_fallthru
        _
    $region71: #{_lambda_.1} parent=5 // pred_fallthru
      _
  $region6: #{_lambda_.1} parent=0 // loop_footer
    %s17 = sadd.s32 1, %s13
  $region7: #{_lambda_.1} parent=0 // loop_footer_branch
    %12 = sbr.rel target = $region3
  $region8: #{_lambda_.1} parent=0 // loop_exit
    _
  %7823 = vsyncmov [#allocation3]
  %s7824 = vpop.sfrf %7823
  %p7825 = scmp.eq.s32.totalorder %s7824, 0
  %p7826 = pneg %p7825
  %7828 = shalt.err (%p7826)

</llo_original>
